<compile_context>
chip_gen: v6e
topology: v6e:2x2x1
jax: 0.10.0
libtpu: 0.0.40
codegen_flags: <defaults>
</compile_context>

<pallas_src>
import functools

import jax
import jax.numpy as jnp
from jax import lax
from jax.experimental import pallas as pl
from jax.experimental.pallas import tpu as pltpu


def _activate(x, name):
    """Elementwise activation (f32)."""
    if name is None:
        return x
    if name == 'relu':
        return jnp.maximum(x, 0.0)
    if name == 'leaky_relu':
        return jnp.where(x >= 0, x, 0.01 * x)
    if name == 'sigmoid':
        return 1.0 / (1.0 + jnp.exp(-x))
    raise ValueError(f"unsupported activation: {name}")


def _take_strided(slab, n, stride):
    """Columns slab[:, 0], slab[:, stride], ..., slab[:, (n-1)*stride].

    `slab` is a contiguous (C, n*stride) value.  Implemented as a minor-dim
    split reshape + static lane pick: no strided loads, no gathers.
    """
    C = slab.shape[0]
    return slab.reshape(C, n, stride)[:, :, 0]


def conv_block_kernel(x_ref, w_in_ref, b_in_ref, w_out_ref, b_out_ref,
                      w_res_ref, b_res_ref, out_ref, xp_ref, hp_ref, *,
                      K, stride, L, avg_pool, inner_act, out_act,
                      use_residual, batch_block):
    f32 = jnp.float32
    pad = K // 2
    Lout = (L + 2 * pad - K) // stride + 1
    Lfinal = Lout // avg_pool if avg_pool > 1 else Lout
    Cout = w_in_ref.shape[1]
    slab = Lout * stride            # contiguous width read per strided tap

    # Zero the padded scratch buffers once per grid step: the halo / tail
    # columns must stay zero (conv padding); the interiors are rewritten for
    # every sample below.  Padding is handled entirely in-kernel: no wrapper
    # jnp.pad, no in-kernel concatenate of a full copy.
    xp_ref[...] = jnp.zeros(xp_ref.shape, f32)
    hp_ref[...] = jnp.zeros(hp_ref.shape, f32)

    ys = []
    for i in range(batch_block):   # static unroll: amortizes grid-step overhead
        # ---- inner_conv: kernel K, stride 1, padding 'same' ----
        xp_ref[:, pad:pad + L] = x_ref[i].astype(f32)
        acc = jnp.dot(w_in_ref[0], xp_ref[:, 0:L], preferred_element_type=f32)
        for k in range(1, K):                        # per-tap MXU matmuls
            acc = acc + jnp.dot(w_in_ref[k], xp_ref[:, k:k + L],
                                preferred_element_type=f32)
        acc = acc + b_in_ref[...]                    # bias after the tap loop
        h = _activate(acc, inner_act)                # (Cout, L)

        # ---- out_conv: kernel K, stride s, padding K//2 ----
        # Direct strided accumulation: only Lout columns enter each tap matmul.
        hp_ref[:, pad:pad + L] = h
        y = None
        for k in range(K):
            if stride == 1:
                cols = hp_ref[:, k:k + Lout]
            else:
                cols = _take_strided(hp_ref[:, k:k + slab], Lout, stride)
            t = jnp.dot(w_out_ref[k], cols, preferred_element_type=f32)
            y = t if y is None else y + t
        y = y + b_out_ref[...]

        # ---- res_conv: 1x1 conv, stride s, padding 'valid' ----
        if use_residual:
            if stride == 1:
                xs = xp_ref[:, pad:pad + L]
            else:
                xs = _take_strided(xp_ref[:, pad:pad + slab], Lout, stride)
            y = y + jnp.dot(w_res_ref[...], xs, preferred_element_type=f32)
            y = y + b_res_ref[...]

        # ---- output activation ----
        y = _activate(y, out_act)

        # ---- AvgPool1d(avg_pool): reshape + mean (no pooling matmul) ----
        if avg_pool > 1:
            y = y[:, :Lfinal * avg_pool].reshape(Cout, Lfinal, avg_pool)
            y = y.sum(axis=-1) * (1.0 / avg_pool)

        ys.append(y)

    # Single lane-dense store for the whole batch block.
    out_ref[0] = jnp.concatenate(ys, axis=1).astype(out_ref.dtype)


def _pick_batch_block(B):
    # Several samples per grid step, but keep >=2 grid steps when possible so
    # both v7x TensorCores get work under "parallel" semantics.
    for cand in (8, 4, 2):
        if B % cand == 0 and B // cand >= 2:
            return cand
    return 1


def conv_block_forward(x, params, *, K, stride, avg_pool,
                       inner_act='relu', out_act='sigmoid',
                       use_residual=True, batch_block=None):
    """x: (B, Cin, L) float32.  Returns (B, Cout, Lfinal)."""
    B, Cin, L = x.shape
    w_in, b_in, w_out, b_out, w_res, b_res = params
    Cout = w_in.shape[0]
    assert K % 2 == 1, "module requires odd kernel size"
    pad = K // 2
    Lout = (L + 2 * pad - K) // stride + 1
    Lfinal = Lout // avg_pool if avg_pool > 1 else Lout

    if batch_block is None:
        batch_block = _pick_batch_block(B)
    assert B % batch_block == 0, "batch must be divisible by batch_block"
    G = B // batch_block

    # Tap-major weights -> leading-dim integer indexing in the kernel.
    w_in_t = jnp.transpose(w_in, (2, 0, 1))      # (K, Cout, Cin)
    w_out_t = jnp.transpose(w_out, (2, 0, 1))    # (K, Cout, Cout)
    w_res2 = w_res.reshape(Cout, Cin)            # squeeze the k=1 tap
    b_in2 = b_in.reshape(Cout, 1)
    b_out2 = b_out.reshape(Cout, 1)
    b_res2 = b_res.reshape(Cout, 1)

    # Padded scratch width: wide enough for all tap slabs (contiguous reads).
    buf_w = 2 * pad + max(L, Lout * stride)

    kernel = functools.partial(
        conv_block_kernel, K=K, stride=stride, L=L, avg_pool=avg_pool,
        inner_act=inner_act, out_act=out_act, use_residual=use_residual,
        batch_block=batch_block)

    # Advisory cost estimate for XLA scheduling around the custom call.
    flops = 2 * B * (Cout * Cin * K * L
                     + Cout * Cout * K * Lout
                     + (Cout * Cin * Lout if use_residual else 0))
    transcendentals = B * Cout * ((L if inner_act == 'sigmoid' else 0)
                                  + (Lout if out_act == 'sigmoid' else 0))
    bytes_accessed = 4 * (B * Cin * L + B * Cout * Lfinal
                          + w_in.size + w_out.size + w_res.size
                          + b_in.size + b_out.size + b_res.size)

    out_folded = pl.pallas_call(
        kernel,
        out_shape=jax.ShapeDtypeStruct((G, Cout, batch_block * Lfinal), x.dtype),
        grid_spec=pltpu.PrefetchScalarGridSpec(
            num_scalar_prefetch=0,
            grid=(G,),
            in_specs=[
                pl.BlockSpec((batch_block, Cin, L), lambda g: (g, 0, 0)),
                pl.BlockSpec((K, Cout, Cin), lambda g: (0, 0, 0)),
                pl.BlockSpec((Cout, 1), lambda g: (0, 0)),
                pl.BlockSpec((K, Cout, Cout), lambda g: (0, 0, 0)),
                pl.BlockSpec((Cout, 1), lambda g: (0, 0)),
                pl.BlockSpec((Cout, Cin), lambda g: (0, 0)),
                pl.BlockSpec((Cout, 1), lambda g: (0, 0)),
            ],
            out_specs=pl.BlockSpec((1, Cout, batch_block * Lfinal),
                                   lambda g: (g, 0, 0)),
            scratch_shapes=[
                pltpu.VMEM((Cin, buf_w), jnp.float32),   # zero-haloed x
                pltpu.VMEM((Cout, buf_w), jnp.float32),  # zero-haloed h
            ],
        ),
        compiler_params=pltpu.CompilerParams(dimension_semantics=("parallel",)),
        cost_estimate=pl.CostEstimate(flops=flops,
                                      transcendentals=transcendentals,
                                      bytes_accessed=bytes_accessed),
    )(x, w_in_t, b_in2, w_out_t, b_out2, w_res2, b_res2)

    # Un-fold the lane-dense (G, Cout, batch_block*Lfinal) layout -> (B, Cout, Lfinal).
    out = out_folded.reshape(G, Cout, batch_block, Lfinal)
    out = out.transpose(0, 2, 1, 3).reshape(B, Cout, Lfinal)
    return out


# ----------------------- pure-JAX reference (for validation) -----------------------
def _conv1d_ref(x, w, b, stride, padding):
    out = lax.conv_general_dilated(
        x, w, window_strides=(stride,), padding=[(padding, padding)],
        dimension_numbers=("NCH", "OIH", "NCH"))
    return out + b[None, :, None]


def reference_forward(x, params, *, K, stride, avg_pool,
                      inner_act='relu', out_act='sigmoid', use_residual=True):
    w_in, b_in, w_out, b_out, w_res, b_res = params

    def act(v, name):
        if name is None:
            return v
        if name == 'relu':
            return jnp.maximum(v, 0.0)
        if name == 'leaky_relu':
            return jnp.where(v >= 0, v, 0.01 * v)
        return jax.nn.sigmoid(v)

    h = act(_conv1d_ref(x, w_in, b_in, 1, K // 2), inner_act)
    y = _conv1d_ref(h, w_out, b_out, stride, K // 2)
    if use_residual:
        y = y + _conv1d_ref(x, w_res, b_res, stride, 0)
    y = act(y, out_act)
    if avg_pool > 1:
        B, C, Lo = y.shape
        Lf = Lo // avg_pool
        y = y[:, :, :Lf * avg_pool].reshape(B, C, Lf, avg_pool).mean(-1)
    return y


if __name__ == "__main__":
    B, Cin, Cout, L = 8, 4, 8, 16
    K, stride, avg_pool = 3, 2, 2

    key = jax.random.PRNGKey(0)
    k1, k2, k3, kx = jax.random.split(key, 4)

    # Deterministic kaiming-uniform-style init (bias zeros, as in reset()).
    bound_in = (6.0 / (Cin * K)) ** 0.5
    w_in = jax.random.uniform(k1, (Cout, Cin, K), jnp.float32, -bound_in, bound_in)
    b_in = jnp.zeros((Cout,), jnp.float32)
    bound_out = (6.0 / (Cout * K)) ** 0.5
    w_out = jax.random.uniform(k2, (Cout, Cout, K), jnp.float32, -bound_out, bound_out)
    b_out = jnp.zeros((Cout,), jnp.float32)
    bound_res = (6.0 / Cin) ** 0.5
    w_res = jax.random.uniform(k3, (Cout, Cin, 1), jnp.float32, -bound_res, bound_res)
    b_res = jnp.zeros((Cout,), jnp.float32)

    x = jax.random.normal(kx, (B, Cin, L), jnp.float32)
    params = (w_in, b_in, w_out, b_out, w_res, b_res)

    out = conv_block_forward(x, params, K=K, stride=stride, avg_pool=avg_pool,
                             inner_act='relu', out_act='sigmoid',
                             use_residual=True, batch_block=4)
    out = jax.block_until_ready(out)

    ref = reference_forward(x, params, K=K, stride=stride, avg_pool=avg_pool,
                            inner_act='relu', out_act='sigmoid', use_residual=True)
    Lout = (L + 2 * (K // 2) - K) // stride + 1
    assert out.shape == (B, Cout, Lout // avg_pool)
    assert jnp.allclose(out, ref, atol=1e-5, rtol=1e-4), "mismatch vs JAX reference"

    print("KERNEL_OK")
</pallas_src>

<mosaic_0001>
module attributes {stable_mosaic.version = 11 : i64} {
  func.func @conv_block_kernel(%arg0: i32, %arg1: memref<4x4x16xf32, #tpu.memory_space<vmem>>, %arg2: memref<3x8x4xf32, #tpu.memory_space<vmem>>, %arg3: memref<8x1xf32, #tpu.memory_space<vmem>>, %arg4: memref<3x8x8xf32, #tpu.memory_space<vmem>>, %arg5: memref<8x1xf32, #tpu.memory_space<vmem>>, %arg6: memref<8x4xf32, #tpu.memory_space<vmem>>, %arg7: memref<8x1xf32, #tpu.memory_space<vmem>>, %arg8: memref<1x8x16xf32, #tpu.memory_space<vmem>>, %arg9: memref<4x18xf32, #tpu.memory_space<vmem>>, %arg10: memref<8x18xf32, #tpu.memory_space<vmem>>) attributes {dimension_semantics = [#tpu.dimension_semantics<parallel>], iteration_bounds = array<i64: 2>, scalar_prefetch = 0 : i64, scratch_operands = 2 : i64, tpu.core_type = #tpu.core_type<tc>, window_params = [{transform_indices = @transform_0, window_bounds = array<i64: 4, 4, 16>}, {pipeline_mode = #tpu.pipeline_mode<synchronous>, transform_indices = @transform_1, window_bounds = array<i64: 3, 8, 4>}, {pipeline_mode = #tpu.pipeline_mode<synchronous>, transform_indices = @transform_2, window_bounds = array<i64: 8, 1>}, {pipeline_mode = #tpu.pipeline_mode<synchronous>, transform_indices = @transform_3, window_bounds = array<i64: 3, 8, 8>}, {pipeline_mode = #tpu.pipeline_mode<synchronous>, transform_indices = @transform_4, window_bounds = array<i64: 8, 1>}, {pipeline_mode = #tpu.pipeline_mode<synchronous>, transform_indices = @transform_5, window_bounds = array<i64: 8, 4>}, {pipeline_mode = #tpu.pipeline_mode<synchronous>, transform_indices = @transform_6, window_bounds = array<i64: 8, 1>}, {transform_indices = @transform_7, window_bounds = array<i64: 1, 8, 16>}]} {
    %cst = arith.constant 0.000000e+00 : f32
    %0 = vector.broadcast %cst : f32 to vector<4x18xf32>
    %c0 = arith.constant 0 : index
    %c0_0 = arith.constant 0 : index
    %1 = vector.load %arg9[%c0, %c0_0] : memref<4x18xf32, #tpu.memory_space<vmem>>, vector<4x18xf32>
    tpu.vector_store %arg9[%c0, %c0_0], %0 {strides = array<i32>} : memref<4x18xf32, #tpu.memory_space<vmem>>, vector<4x18xf32>,
    %cst_1 = arith.constant 0.000000e+00 : f32
    %2 = vector.broadcast %cst_1 : f32 to vector<8x18xf32>
    %c0_2 = arith.constant 0 : index
    %c0_3 = arith.constant 0 : index
    %3 = vector.load %arg10[%c0_2, %c0_3] : memref<8x18xf32, #tpu.memory_space<vmem>>, vector<8x18xf32>
    tpu.vector_store %arg10[%c0_2, %c0_3], %2 {strides = array<i32>} : memref<8x18xf32, #tpu.memory_space<vmem>>, vector<8x18xf32>,
    %c0_4 = arith.constant 0 : index
    %c0_5 = arith.constant 0 : index
    %c0_6 = arith.constant 0 : index
    %4 = vector.load %arg1[%c0_4, %c0_5, %c0_6] : memref<4x4x16xf32, #tpu.memory_space<vmem>>, vector<1x4x16xf32>
    %5 = vector.shape_cast %4 : vector<1x4x16xf32> to vector<4x16xf32>
    %c0_7 = arith.constant 0 : index
    %c1 = arith.constant 1 : index
    %6 = vector.load %arg9[%c0_7, %c1] : memref<4x18xf32, #tpu.memory_space<vmem>>, vector<4x16xf32>
    tpu.vector_store %arg9[%c0_7, %c1], %5 {strides = array<i32>} : memref<4x18xf32, #tpu.memory_space<vmem>>, vector<4x16xf32>,
    %c0_8 = arith.constant 0 : index
    %c0_9 = arith.constant 0 : index
    %c0_10 = arith.constant 0 : index
    %7 = vector.load %arg2[%c0_8, %c0_9, %c0_10] : memref<3x8x4xf32, #tpu.memory_space<vmem>>, vector<1x8x4xf32>
    %8 = vector.shape_cast %7 : vector<1x8x4xf32> to vector<8x4xf32>
    %c0_11 = arith.constant 0 : index
    %c0_12 = arith.constant 0 : index
    %9 = vector.load %arg9[%c0_11, %c0_12] : memref<4x18xf32, #tpu.memory_space<vmem>>, vector<4x16xf32>
    %cst_13 = arith.constant dense<0.000000e+00> : vector<8x16xf32>
    %10 = tpu.matmul %8, %9, %cst_13 {dimension_numbers = #tpu.dot_dimension_numbers<[1], [0], [0], [1], [0, 0, 1, 1], [], []>} : vector<8x4xf32>, vector<4x16xf32>, vector<8x16xf32> -> vector<8x16xf32>
    %c1_14 = arith.constant 1 : index
    %c0_15 = arith.constant 0 : index
    %c0_16 = arith.constant 0 : index
    %11 = vector.load %arg2[%c1_14, %c0_15, %c0_16] : memref<3x8x4xf32, #tpu.memory_space<vmem>>, vector<1x8x4xf32>
    %12 = vector.shape_cast %11 : vector<1x8x4xf32> to vector<8x4xf32>
    %c0_17 = arith.constant 0 : index
    %c1_18 = arith.constant 1 : index
    %13 = vector.load %arg9[%c0_17, %c1_18] : memref<4x18xf32, #tpu.memory_space<vmem>>, vector<4x16xf32>
    %cst_19 = arith.constant dense<0.000000e+00> : vector<8x16xf32>
    %14 = tpu.matmul %12, %13, %cst_19 {dimension_numbers = #tpu.dot_dimension_numbers<[1], [0], [0], [1], [0, 0, 1, 1], [], []>} : vector<8x4xf32>, vector<4x16xf32>, vector<8x16xf32> -> vector<8x16xf32>
    %15 = arith.addf %10, %14 : vector<8x16xf32>
    %c2 = arith.constant 2 : index
    %c0_20 = arith.constant 0 : index
    %c0_21 = arith.constant 0 : index
    %16 = vector.load %arg2[%c2, %c0_20, %c0_21] : memref<3x8x4xf32, #tpu.memory_space<vmem>>, vector<1x8x4xf32>
    %17 = vector.shape_cast %16 : vector<1x8x4xf32> to vector<8x4xf32>
    %c0_22 = arith.constant 0 : index
    %c2_23 = arith.constant 2 : index
    %18 = vector.load %arg9[%c0_22, %c2_23] : memref<4x18xf32, #tpu.memory_space<vmem>>, vector<4x16xf32>
    %cst_24 = arith.constant dense<0.000000e+00> : vector<8x16xf32>
    %19 = tpu.matmul %17, %18, %cst_24 {dimension_numbers = #tpu.dot_dimension_numbers<[1], [0], [0], [1], [0, 0, 1, 1], [], []>} : vector<8x4xf32>, vector<4x16xf32>, vector<8x16xf32> -> vector<8x16xf32>
    %20 = arith.addf %15, %19 : vector<8x16xf32>
    %c0_25 = arith.constant 0 : index
    %c0_26 = arith.constant 0 : index
    %21 = vector.load %arg3[%c0_25, %c0_26] : memref<8x1xf32, #tpu.memory_space<vmem>>, vector<8x1xf32>
    %22 = vector.broadcast %21 : vector<8x1xf32> to vector<8x16xf32>
    %23 = arith.addf %20, %22 : vector<8x16xf32>
    %cst_27 = arith.constant 0.000000e+00 : f32
    %24 = vector.broadcast %cst_27 : f32 to vector<8x16xf32>
    %25 = arith.maximumf %23, %24 : vector<8x16xf32>
    %c0_28 = arith.constant 0 : index
    %c1_29 = arith.constant 1 : index
    %26 = vector.load %arg10[%c0_28, %c1_29] : memref<8x18xf32, #tpu.memory_space<vmem>>, vector<8x16xf32>
    tpu.vector_store %arg10[%c0_28, %c1_29], %25 {strides = array<i32>} : memref<8x18xf32, #tpu.memory_space<vmem>>, vector<8x16xf32>,
    %c0_30 = arith.constant 0 : index
    %c0_31 = arith.constant 0 : index
    %27 = vector.load %arg10[%c0_30, %c0_31] : memref<8x18xf32, #tpu.memory_space<vmem>>, vector<8x16xf32>
    %28 = vector.shape_cast %27 : vector<8x16xf32> to vector<8x8x2xf32>
    %29 = vector.extract_strided_slice %28 {offsets = [0, 0, 0], sizes = [8, 8, 1], strides = [1, 1, 1]} : vector<8x8x2xf32> to vector<8x8x1xf32>
    %30 = vector.shape_cast %29 : vector<8x8x1xf32> to vector<8x8xf32>
    %c0_32 = arith.constant 0 : index
    %c0_33 = arith.constant 0 : index
    %c0_34 = arith.constant 0 : index
    %31 = vector.load %arg4[%c0_32, %c0_33, %c0_34] : memref<3x8x8xf32, #tpu.memory_space<vmem>>, vector<1x8x8xf32>
    %32 = vector.shape_cast %31 : vector<1x8x8xf32> to vector<8x8xf32>
    %cst_35 = arith.constant dense<0.000000e+00> : vector<8x8xf32>
    %33 = tpu.matmul %32, %30, %cst_35 {dimension_numbers = #tpu.dot_dimension_numbers<[1], [0], [0], [1], [0, 0, 1, 1], [], []>} : vector<8x8xf32>, vector<8x8xf32>, vector<8x8xf32> -> vector<8x8xf32>
    %c0_36 = arith.constant 0 : index
    %c1_37 = arith.constant 1 : index
    %34 = vector.load %arg10[%c0_36, %c1_37] : memref<8x18xf32, #tpu.memory_space<vmem>>, vector<8x16xf32>
    %35 = vector.shape_cast %34 : vector<8x16xf32> to vector<8x8x2xf32>
    %36 = vector.extract_strided_slice %35 {offsets = [0, 0, 0], sizes = [8, 8, 1], strides = [1, 1, 1]} : vector<8x8x2xf32> to vector<8x8x1xf32>
    %37 = vector.shape_cast %36 : vector<8x8x1xf32> to vector<8x8xf32>
    %c1_38 = arith.constant 1 : index
    %c0_39 = arith.constant 0 : index
    %c0_40 = arith.constant 0 : index
    %38 = vector.load %arg4[%c1_38, %c0_39, %c0_40] : memref<3x8x8xf32, #tpu.memory_space<vmem>>, vector<1x8x8xf32>
    %39 = vector.shape_cast %38 : vector<1x8x8xf32> to vector<8x8xf32>
    %cst_41 = arith.constant dense<0.000000e+00> : vector<8x8xf32>
    %40 = tpu.matmul %39, %37, %cst_41 {dimension_numbers = #tpu.dot_dimension_numbers<[1], [0], [0], [1], [0, 0, 1, 1], [], []>} : vector<8x8xf32>, vector<8x8xf32>, vector<8x8xf32> -> vector<8x8xf32>
    %41 = arith.addf %33, %40 : vector<8x8xf32>
    %c0_42 = arith.constant 0 : index
    %c2_43 = arith.constant 2 : index
    %42 = vector.load %arg10[%c0_42, %c2_43] : memref<8x18xf32, #tpu.memory_space<vmem>>, vector<8x16xf32>
    %43 = vector.shape_cast %42 : vector<8x16xf32> to vector<8x8x2xf32>
    %44 = vector.extract_strided_slice %43 {offsets = [0, 0, 0], sizes = [8, 8, 1], strides = [1, 1, 1]} : vector<8x8x2xf32> to vector<8x8x1xf32>
    %45 = vector.shape_cast %44 : vector<8x8x1xf32> to vector<8x8xf32>
    %c2_44 = arith.constant 2 : index
    %c0_45 = arith.constant 0 : index
    %c0_46 = arith.constant 0 : index
    %46 = vector.load %arg4[%c2_44, %c0_45, %c0_46] : memref<3x8x8xf32, #tpu.memory_space<vmem>>, vector<1x8x8xf32>
    %47 = vector.shape_cast %46 : vector<1x8x8xf32> to vector<8x8xf32>
    %cst_47 = arith.constant dense<0.000000e+00> : vector<8x8xf32>
    %48 = tpu.matmul %47, %45, %cst_47 {dimension_numbers = #tpu.dot_dimension_numbers<[1], [0], [0], [1], [0, 0, 1, 1], [], []>} : vector<8x8xf32>, vector<8x8xf32>, vector<8x8xf32> -> vector<8x8xf32>
    %49 = arith.addf %41, %48 : vector<8x8xf32>
    %c0_48 = arith.constant 0 : index
    %c0_49 = arith.constant 0 : index
    %50 = vector.load %arg5[%c0_48, %c0_49] : memref<8x1xf32, #tpu.memory_space<vmem>>, vector<8x1xf32>
    %51 = vector.broadcast %50 : vector<8x1xf32> to vector<8x8xf32>
    %52 = arith.addf %49, %51 : vector<8x8xf32>
    %c0_50 = arith.constant 0 : index
    %c1_51 = arith.constant 1 : index
    %53 = vector.load %arg9[%c0_50, %c1_51] : memref<4x18xf32, #tpu.memory_space<vmem>>, vector<4x16xf32>
    %54 = vector.shape_cast %53 : vector<4x16xf32> to vector<4x8x2xf32>
    %55 = vector.extract_strided_slice %54 {offsets = [0, 0, 0], sizes = [4, 8, 1], strides = [1, 1, 1]} : vector<4x8x2xf32> to vector<4x8x1xf32>
    %56 = vector.shape_cast %55 : vector<4x8x1xf32> to vector<4x8xf32>
    %c0_52 = arith.constant 0 : index
    %c0_53 = arith.constant 0 : index
    %57 = vector.load %arg6[%c0_52, %c0_53] : memref<8x4xf32, #tpu.memory_space<vmem>>, vector<8x4xf32>
    %cst_54 = arith.constant dense<0.000000e+00> : vector<8x8xf32>
    %58 = tpu.matmul %57, %56, %cst_54 {dimension_numbers = #tpu.dot_dimension_numbers<[1], [0], [0], [1], [0, 0, 1, 1], [], []>} : vector<8x4xf32>, vector<4x8xf32>, vector<8x8xf32> -> vector<8x8xf32>
    %59 = arith.addf %52, %58 : vector<8x8xf32>
    %c0_55 = arith.constant 0 : index
    %c0_56 = arith.constant 0 : index
    %60 = vector.load %arg7[%c0_55, %c0_56] : memref<8x1xf32, #tpu.memory_space<vmem>>, vector<8x1xf32>
    %61 = vector.broadcast %60 : vector<8x1xf32> to vector<8x8xf32>
    %62 = arith.addf %59, %61 : vector<8x8xf32>
    %cst_57 = arith.constant 0.000000e+00 : f32
    %63 = vector.broadcast %cst_57 : f32 to vector<8x8xf32>
    %64 = arith.subf %63, %62 : vector<8x8xf32>
    %65 = math.exp %64 : vector<8x8xf32>
    %cst_58 = arith.constant 1.000000e+00 : f32
    %66 = vector.broadcast %cst_58 : f32 to vector<8x8xf32>
    %67 = arith.addf %66, %65 : vector<8x8xf32>
    %cst_59 = arith.constant 1.000000e+00 : f32
    %68 = vector.broadcast %cst_59 : f32 to vector<8x8xf32>
    %69 = arith.divf %68, %67 : vector<8x8xf32>
    %70 = vector.shape_cast %69 : vector<8x8xf32> to vector<8x4x2xf32>
    %cst_60 = arith.constant dense<0.000000e+00> : vector<8x4xf32>
    %71 = vector.multi_reduction <add>, %70, %cst_60 [2] : vector<8x4x2xf32> to vector<8x4xf32>
    %cst_61 = arith.constant 5.000000e-01 : f32
    %72 = vector.broadcast %cst_61 : f32 to vector<8x4xf32>
    %73 = arith.mulf %71, %72 : vector<8x4xf32>
    %c1_62 = arith.constant 1 : index
    %c0_63 = arith.constant 0 : index
    %c0_64 = arith.constant 0 : index
    %74 = vector.load %arg1[%c1_62, %c0_63, %c0_64] : memref<4x4x16xf32, #tpu.memory_space<vmem>>, vector<1x4x16xf32>
    %75 = vector.shape_cast %74 : vector<1x4x16xf32> to vector<4x16xf32>
    %c0_65 = arith.constant 0 : index
    %c1_66 = arith.constant 1 : index
    %76 = vector.load %arg9[%c0_65, %c1_66] : memref<4x18xf32, #tpu.memory_space<vmem>>, vector<4x16xf32>
    tpu.vector_store %arg9[%c0_65, %c1_66], %75 {strides = array<i32>} : memref<4x18xf32, #tpu.memory_space<vmem>>, vector<4x16xf32>,
    %c0_67 = arith.constant 0 : index
    %c0_68 = arith.constant 0 : index
    %c0_69 = arith.constant 0 : index
    %77 = vector.load %arg2[%c0_67, %c0_68, %c0_69] : memref<3x8x4xf32, #tpu.memory_space<vmem>>, vector<1x8x4xf32>
    %78 = vector.shape_cast %77 : vector<1x8x4xf32> to vector<8x4xf32>
    %c0_70 = arith.constant 0 : index
    %c0_71 = arith.constant 0 : index
    %79 = vector.load %arg9[%c0_70, %c0_71] : memref<4x18xf32, #tpu.memory_space<vmem>>, vector<4x16xf32>
    %cst_72 = arith.constant dense<0.000000e+00> : vector<8x16xf32>
    %80 = tpu.matmul %78, %79, %cst_72 {dimension_numbers = #tpu.dot_dimension_numbers<[1], [0], [0], [1], [0, 0, 1, 1], [], []>} : vector<8x4xf32>, vector<4x16xf32>, vector<8x16xf32> -> vector<8x16xf32>
    %c1_73 = arith.constant 1 : index
    %c0_74 = arith.constant 0 : index
    %c0_75 = arith.constant 0 : index
    %81 = vector.load %arg2[%c1_73, %c0_74, %c0_75] : memref<3x8x4xf32, #tpu.memory_space<vmem>>, vector<1x8x4xf32>
    %82 = vector.shape_cast %81 : vector<1x8x4xf32> to vector<8x4xf32>
    %c0_76 = arith.constant 0 : index
    %c1_77 = arith.constant 1 : index
    %83 = vector.load %arg9[%c0_76, %c1_77] : memref<4x18xf32, #tpu.memory_space<vmem>>, vector<4x16xf32>
    %cst_78 = arith.constant dense<0.000000e+00> : vector<8x16xf32>
    %84 = tpu.matmul %82, %83, %cst_78 {dimension_numbers = #tpu.dot_dimension_numbers<[1], [0], [0], [1], [0, 0, 1, 1], [], []>} : vector<8x4xf32>, vector<4x16xf32>, vector<8x16xf32> -> vector<8x16xf32>
    %85 = arith.addf %80, %84 : vector<8x16xf32>
    %c2_79 = arith.constant 2 : index
    %c0_80 = arith.constant 0 : index
    %c0_81 = arith.constant 0 : index
    %86 = vector.load %arg2[%c2_79, %c0_80, %c0_81] : memref<3x8x4xf32, #tpu.memory_space<vmem>>, vector<1x8x4xf32>
    %87 = vector.shape_cast %86 : vector<1x8x4xf32> to vector<8x4xf32>
    %c0_82 = arith.constant 0 : index
    %c2_83 = arith.constant 2 : index
    %88 = vector.load %arg9[%c0_82, %c2_83] : memref<4x18xf32, #tpu.memory_space<vmem>>, vector<4x16xf32>
    %cst_84 = arith.constant dense<0.000000e+00> : vector<8x16xf32>
    %89 = tpu.matmul %87, %88, %cst_84 {dimension_numbers = #tpu.dot_dimension_numbers<[1], [0], [0], [1], [0, 0, 1, 1], [], []>} : vector<8x4xf32>, vector<4x16xf32>, vector<8x16xf32> -> vector<8x16xf32>
    %90 = arith.addf %85, %89 : vector<8x16xf32>
    %c0_85 = arith.constant 0 : index
    %c0_86 = arith.constant 0 : index
    %91 = vector.load %arg3[%c0_85, %c0_86] : memref<8x1xf32, #tpu.memory_space<vmem>>, vector<8x1xf32>
    %92 = vector.broadcast %91 : vector<8x1xf32> to vector<8x16xf32>
    %93 = arith.addf %90, %92 : vector<8x16xf32>
    %cst_87 = arith.constant 0.000000e+00 : f32
    %94 = vector.broadcast %cst_87 : f32 to vector<8x16xf32>
    %95 = arith.maximumf %93, %94 : vector<8x16xf32>
    %c0_88 = arith.constant 0 : index
    %c1_89 = arith.constant 1 : index
    %96 = vector.load %arg10[%c0_88, %c1_89] : memref<8x18xf32, #tpu.memory_space<vmem>>, vector<8x16xf32>
    tpu.vector_store %arg10[%c0_88, %c1_89], %95 {strides = array<i32>} : memref<8x18xf32, #tpu.memory_space<vmem>>, vector<8x16xf32>,
    %c0_90 = arith.constant 0 : index
    %c0_91 = arith.constant 0 : index
    %97 = vector.load %arg10[%c0_90, %c0_91] : memref<8x18xf32, #tpu.memory_space<vmem>>, vector<8x16xf32>
    %98 = vector.shape_cast %97 : vector<8x16xf32> to vector<8x8x2xf32>
    %99 = vector.extract_strided_slice %98 {offsets = [0, 0, 0], sizes = [8, 8, 1], strides = [1, 1, 1]} : vector<8x8x2xf32> to vector<8x8x1xf32>
    %100 = vector.shape_cast %99 : vector<8x8x1xf32> to vector<8x8xf32>
    %c0_92 = arith.constant 0 : index
    %c0_93 = arith.constant 0 : index
    %c0_94 = arith.constant 0 : index
    %101 = vector.load %arg4[%c0_92, %c0_93, %c0_94] : memref<3x8x8xf32, #tpu.memory_space<vmem>>, vector<1x8x8xf32>
    %102 = vector.shape_cast %101 : vector<1x8x8xf32> to vector<8x8xf32>
    %cst_95 = arith.constant dense<0.000000e+00> : vector<8x8xf32>
    %103 = tpu.matmul %102, %100, %cst_95 {dimension_numbers = #tpu.dot_dimension_numbers<[1], [0], [0], [1], [0, 0, 1, 1], [], []>} : vector<8x8xf32>, vector<8x8xf32>, vector<8x8xf32> -> vector<8x8xf32>
    %c0_96 = arith.constant 0 : index
    %c1_97 = arith.constant 1 : index
    %104 = vector.load %arg10[%c0_96, %c1_97] : memref<8x18xf32, #tpu.memory_space<vmem>>, vector<8x16xf32>
    %105 = vector.shape_cast %104 : vector<8x16xf32> to vector<8x8x2xf32>
    %106 = vector.extract_strided_slice %105 {offsets = [0, 0, 0], sizes = [8, 8, 1], strides = [1, 1, 1]} : vector<8x8x2xf32> to vector<8x8x1xf32>
    %107 = vector.shape_cast %106 : vector<8x8x1xf32> to vector<8x8xf32>
    %c1_98 = arith.constant 1 : index
    %c0_99 = arith.constant 0 : index
    %c0_100 = arith.constant 0 : index
    %108 = vector.load %arg4[%c1_98, %c0_99, %c0_100] : memref<3x8x8xf32, #tpu.memory_space<vmem>>, vector<1x8x8xf32>
    %109 = vector.shape_cast %108 : vector<1x8x8xf32> to vector<8x8xf32>
    %cst_101 = arith.constant dense<0.000000e+00> : vector<8x8xf32>
    %110 = tpu.matmul %109, %107, %cst_101 {dimension_numbers = #tpu.dot_dimension_numbers<[1], [0], [0], [1], [0, 0, 1, 1], [], []>} : vector<8x8xf32>, vector<8x8xf32>, vector<8x8xf32> -> vector<8x8xf32>
    %111 = arith.addf %103, %110 : vector<8x8xf32>
    %c0_102 = arith.constant 0 : index
    %c2_103 = arith.constant 2 : index
    %112 = vector.load %arg10[%c0_102, %c2_103] : memref<8x18xf32, #tpu.memory_space<vmem>>, vector<8x16xf32>
    %113 = vector.shape_cast %112 : vector<8x16xf32> to vector<8x8x2xf32>
    %114 = vector.extract_strided_slice %113 {offsets = [0, 0, 0], sizes = [8, 8, 1], strides = [1, 1, 1]} : vector<8x8x2xf32> to vector<8x8x1xf32>
    %115 = vector.shape_cast %114 : vector<8x8x1xf32> to vector<8x8xf32>
    %c2_104 = arith.constant 2 : index
    %c0_105 = arith.constant 0 : index
    %c0_106 = arith.constant 0 : index
    %116 = vector.load %arg4[%c2_104, %c0_105, %c0_106] : memref<3x8x8xf32, #tpu.memory_space<vmem>>, vector<1x8x8xf32>
    %117 = vector.shape_cast %116 : vector<1x8x8xf32> to vector<8x8xf32>
    %cst_107 = arith.constant dense<0.000000e+00> : vector<8x8xf32>
    %118 = tpu.matmul %117, %115, %cst_107 {dimension_numbers = #tpu.dot_dimension_numbers<[1], [0], [0], [1], [0, 0, 1, 1], [], []>} : vector<8x8xf32>, vector<8x8xf32>, vector<8x8xf32> -> vector<8x8xf32>
    %119 = arith.addf %111, %118 : vector<8x8xf32>
    %c0_108 = arith.constant 0 : index
    %c0_109 = arith.constant 0 : index
    %120 = vector.load %arg5[%c0_108, %c0_109] : memref<8x1xf32, #tpu.memory_space<vmem>>, vector<8x1xf32>
    %121 = vector.broadcast %120 : vector<8x1xf32> to vector<8x8xf32>
    %122 = arith.addf %119, %121 : vector<8x8xf32>
    %c0_110 = arith.constant 0 : index
    %c1_111 = arith.constant 1 : index
    %123 = vector.load %arg9[%c0_110, %c1_111] : memref<4x18xf32, #tpu.memory_space<vmem>>, vector<4x16xf32>
    %124 = vector.shape_cast %123 : vector<4x16xf32> to vector<4x8x2xf32>
    %125 = vector.extract_strided_slice %124 {offsets = [0, 0, 0], sizes = [4, 8, 1], strides = [1, 1, 1]} : vector<4x8x2xf32> to vector<4x8x1xf32>
    %126 = vector.shape_cast %125 : vector<4x8x1xf32> to vector<4x8xf32>
    %c0_112 = arith.constant 0 : index
    %c0_113 = arith.constant 0 : index
    %127 = vector.load %arg6[%c0_112, %c0_113] : memref<8x4xf32, #tpu.memory_space<vmem>>, vector<8x4xf32>
    %cst_114 = arith.constant dense<0.000000e+00> : vector<8x8xf32>
    %128 = tpu.matmul %127, %126, %cst_114 {dimension_numbers = #tpu.dot_dimension_numbers<[1], [0], [0], [1], [0, 0, 1, 1], [], []>} : vector<8x4xf32>, vector<4x8xf32>, vector<8x8xf32> -> vector<8x8xf32>
    %129 = arith.addf %122, %128 : vector<8x8xf32>
    %c0_115 = arith.constant 0 : index
    %c0_116 = arith.constant 0 : index
    %130 = vector.load %arg7[%c0_115, %c0_116] : memref<8x1xf32, #tpu.memory_space<vmem>>, vector<8x1xf32>
    %131 = vector.broadcast %130 : vector<8x1xf32> to vector<8x8xf32>
    %132 = arith.addf %129, %131 : vector<8x8xf32>
    %cst_117 = arith.constant 0.000000e+00 : f32
    %133 = vector.broadcast %cst_117 : f32 to vector<8x8xf32>
    %134 = arith.subf %133, %132 : vector<8x8xf32>
    %135 = math.exp %134 : vector<8x8xf32>
    %cst_118 = arith.constant 1.000000e+00 : f32
    %136 = vector.broadcast %cst_118 : f32 to vector<8x8xf32>
    %137 = arith.addf %136, %135 : vector<8x8xf32>
    %cst_119 = arith.constant 1.000000e+00 : f32
    %138 = vector.broadcast %cst_119 : f32 to vector<8x8xf32>
    %139 = arith.divf %138, %137 : vector<8x8xf32>
    %140 = vector.shape_cast %139 : vector<8x8xf32> to vector<8x4x2xf32>
    %cst_120 = arith.constant dense<0.000000e+00> : vector<8x4xf32>
    %141 = vector.multi_reduction <add>, %140, %cst_120 [2] : vector<8x4x2xf32> to vector<8x4xf32>
    %cst_121 = arith.constant 5.000000e-01 : f32
    %142 = vector.broadcast %cst_121 : f32 to vector<8x4xf32>
    %143 = arith.mulf %141, %142 : vector<8x4xf32>
    %c2_122 = arith.constant 2 : index
    %c0_123 = arith.constant 0 : index
    %c0_124 = arith.constant 0 : index
    %144 = vector.load %arg1[%c2_122, %c0_123, %c0_124] : memref<4x4x16xf32, #tpu.memory_space<vmem>>, vector<1x4x16xf32>
    %145 = vector.shape_cast %144 : vector<1x4x16xf32> to vector<4x16xf32>
    %c0_125 = arith.constant 0 : index
    %c1_126 = arith.constant 1 : index
    %146 = vector.load %arg9[%c0_125, %c1_126] : memref<4x18xf32, #tpu.memory_space<vmem>>, vector<4x16xf32>
    tpu.vector_store %arg9[%c0_125, %c1_126], %145 {strides = array<i32>} : memref<4x18xf32, #tpu.memory_space<vmem>>, vector<4x16xf32>,
    %c0_127 = arith.constant 0 : index
    %c0_128 = arith.constant 0 : index
    %c0_129 = arith.constant 0 : index
    %147 = vector.load %arg2[%c0_127, %c0_128, %c0_129] : memref<3x8x4xf32, #tpu.memory_space<vmem>>, vector<1x8x4xf32>
    %148 = vector.shape_cast %147 : vector<1x8x4xf32> to vector<8x4xf32>
    %c0_130 = arith.constant 0 : index
    %c0_131 = arith.constant 0 : index
    %149 = vector.load %arg9[%c0_130, %c0_131] : memref<4x18xf32, #tpu.memory_space<vmem>>, vector<4x16xf32>
    %cst_132 = arith.constant dense<0.000000e+00> : vector<8x16xf32>
    %150 = tpu.matmul %148, %149, %cst_132 {dimension_numbers = #tpu.dot_dimension_numbers<[1], [0], [0], [1], [0, 0, 1, 1], [], []>} : vector<8x4xf32>, vector<4x16xf32>, vector<8x16xf32> -> vector<8x16xf32>
    %c1_133 = arith.constant 1 : index
    %c0_134 = arith.constant 0 : index
    %c0_135 = arith.constant 0 : index
    %151 = vector.load %arg2[%c1_133, %c0_134, %c0_135] : memref<3x8x4xf32, #tpu.memory_space<vmem>>, vector<1x8x4xf32>
    %152 = vector.shape_cast %151 : vector<1x8x4xf32> to vector<8x4xf32>
    %c0_136 = arith.constant 0 : index
    %c1_137 = arith.constant 1 : index
    %153 = vector.load %arg9[%c0_136, %c1_137] : memref<4x18xf32, #tpu.memory_space<vmem>>, vector<4x16xf32>
    %cst_138 = arith.constant dense<0.000000e+00> : vector<8x16xf32>
    %154 = tpu.matmul %152, %153, %cst_138 {dimension_numbers = #tpu.dot_dimension_numbers<[1], [0], [0], [1], [0, 0, 1, 1], [], []>} : vector<8x4xf32>, vector<4x16xf32>, vector<8x16xf32> -> vector<8x16xf32>
    %155 = arith.addf %150, %154 : vector<8x16xf32>
    %c2_139 = arith.constant 2 : index
    %c0_140 = arith.constant 0 : index
    %c0_141 = arith.constant 0 : index
    %156 = vector.load %arg2[%c2_139, %c0_140, %c0_141] : memref<3x8x4xf32, #tpu.memory_space<vmem>>, vector<1x8x4xf32>
    %157 = vector.shape_cast %156 : vector<1x8x4xf32> to vector<8x4xf32>
    %c0_142 = arith.constant 0 : index
    %c2_143 = arith.constant 2 : index
    %158 = vector.load %arg9[%c0_142, %c2_143] : memref<4x18xf32, #tpu.memory_space<vmem>>, vector<4x16xf32>
    %cst_144 = arith.constant dense<0.000000e+00> : vector<8x16xf32>
    %159 = tpu.matmul %157, %158, %cst_144 {dimension_numbers = #tpu.dot_dimension_numbers<[1], [0], [0], [1], [0, 0, 1, 1], [], []>} : vector<8x4xf32>, vector<4x16xf32>, vector<8x16xf32> -> vector<8x16xf32>
    %160 = arith.addf %155, %159 : vector<8x16xf32>
    %c0_145 = arith.constant 0 : index
    %c0_146 = arith.constant 0 : index
    %161 = vector.load %arg3[%c0_145, %c0_146] : memref<8x1xf32, #tpu.memory_space<vmem>>, vector<8x1xf32>
    %162 = vector.broadcast %161 : vector<8x1xf32> to vector<8x16xf32>
    %163 = arith.addf %160, %162 : vector<8x16xf32>
    %cst_147 = arith.constant 0.000000e+00 : f32
    %164 = vector.broadcast %cst_147 : f32 to vector<8x16xf32>
    %165 = arith.maximumf %163, %164 : vector<8x16xf32>
    %c0_148 = arith.constant 0 : index
    %c1_149 = arith.constant 1 : index
    %166 = vector.load %arg10[%c0_148, %c1_149] : memref<8x18xf32, #tpu.memory_space<vmem>>, vector<8x16xf32>
    tpu.vector_store %arg10[%c0_148, %c1_149], %165 {strides = array<i32>} : memref<8x18xf32, #tpu.memory_space<vmem>>, vector<8x16xf32>,
    %c0_150 = arith.constant 0 : index
    %c0_151 = arith.constant 0 : index
    %167 = vector.load %arg10[%c0_150, %c0_151] : memref<8x18xf32, #tpu.memory_space<vmem>>, vector<8x16xf32>
    %168 = vector.shape_cast %167 : vector<8x16xf32> to vector<8x8x2xf32>
    %169 = vector.extract_strided_slice %168 {offsets = [0, 0, 0], sizes = [8, 8, 1], strides = [1, 1, 1]} : vector<8x8x2xf32> to vector<8x8x1xf32>
    %170 = vector.shape_cast %169 : vector<8x8x1xf32> to vector<8x8xf32>
    %c0_152 = arith.constant 0 : index
    %c0_153 = arith.constant 0 : index
    %c0_154 = arith.constant 0 : index
    %171 = vector.load %arg4[%c0_152, %c0_153, %c0_154] : memref<3x8x8xf32, #tpu.memory_space<vmem>>, vector<1x8x8xf32>
    %172 = vector.shape_cast %171 : vector<1x8x8xf32> to vector<8x8xf32>
    %cst_155 = arith.constant dense<0.000000e+00> : vector<8x8xf32>
    %173 = tpu.matmul %172, %170, %cst_155 {dimension_numbers = #tpu.dot_dimension_numbers<[1], [0], [0], [1], [0, 0, 1, 1], [], []>} : vector<8x8xf32>, vector<8x8xf32>, vector<8x8xf32> -> vector<8x8xf32>
    %c0_156 = arith.constant 0 : index
    %c1_157 = arith.constant 1 : index
    %174 = vector.load %arg10[%c0_156, %c1_157] : memref<8x18xf32, #tpu.memory_space<vmem>>, vector<8x16xf32>
    %175 = vector.shape_cast %174 : vector<8x16xf32> to vector<8x8x2xf32>
    %176 = vector.extract_strided_slice %175 {offsets = [0, 0, 0], sizes = [8, 8, 1], strides = [1, 1, 1]} : vector<8x8x2xf32> to vector<8x8x1xf32>
    %177 = vector.shape_cast %176 : vector<8x8x1xf32> to vector<8x8xf32>
    %c1_158 = arith.constant 1 : index
    %c0_159 = arith.constant 0 : index
    %c0_160 = arith.constant 0 : index
    %178 = vector.load %arg4[%c1_158, %c0_159, %c0_160] : memref<3x8x8xf32, #tpu.memory_space<vmem>>, vector<1x8x8xf32>
    %179 = vector.shape_cast %178 : vector<1x8x8xf32> to vector<8x8xf32>
    %cst_161 = arith.constant dense<0.000000e+00> : vector<8x8xf32>
    %180 = tpu.matmul %179, %177, %cst_161 {dimension_numbers = #tpu.dot_dimension_numbers<[1], [0], [0], [1], [0, 0, 1, 1], [], []>} : vector<8x8xf32>, vector<8x8xf32>, vector<8x8xf32> -> vector<8x8xf32>
    %181 = arith.addf %173, %180 : vector<8x8xf32>
    %c0_162 = arith.constant 0 : index
    %c2_163 = arith.constant 2 : index
    %182 = vector.load %arg10[%c0_162, %c2_163] : memref<8x18xf32, #tpu.memory_space<vmem>>, vector<8x16xf32>
    %183 = vector.shape_cast %182 : vector<8x16xf32> to vector<8x8x2xf32>
    %184 = vector.extract_strided_slice %183 {offsets = [0, 0, 0], sizes = [8, 8, 1], strides = [1, 1, 1]} : vector<8x8x2xf32> to vector<8x8x1xf32>
    %185 = vector.shape_cast %184 : vector<8x8x1xf32> to vector<8x8xf32>
    %c2_164 = arith.constant 2 : index
    %c0_165 = arith.constant 0 : index
    %c0_166 = arith.constant 0 : index
    %186 = vector.load %arg4[%c2_164, %c0_165, %c0_166] : memref<3x8x8xf32, #tpu.memory_space<vmem>>, vector<1x8x8xf32>
    %187 = vector.shape_cast %186 : vector<1x8x8xf32> to vector<8x8xf32>
    %cst_167 = arith.constant dense<0.000000e+00> : vector<8x8xf32>
    %188 = tpu.matmul %187, %185, %cst_167 {dimension_numbers = #tpu.dot_dimension_numbers<[1], [0], [0], [1], [0, 0, 1, 1], [], []>} : vector<8x8xf32>, vector<8x8xf32>, vector<8x8xf32> -> vector<8x8xf32>
    %189 = arith.addf %181, %188 : vector<8x8xf32>
    %c0_168 = arith.constant 0 : index
    %c0_169 = arith.constant 0 : index
    %190 = vector.load %arg5[%c0_168, %c0_169] : memref<8x1xf32, #tpu.memory_space<vmem>>, vector<8x1xf32>
    %191 = vector.broadcast %190 : vector<8x1xf32> to vector<8x8xf32>
    %192 = arith.addf %189, %191 : vector<8x8xf32>
    %c0_170 = arith.constant 0 : index
    %c1_171 = arith.constant 1 : index
    %193 = vector.load %arg9[%c0_170, %c1_171] : memref<4x18xf32, #tpu.memory_space<vmem>>, vector<4x16xf32>
    %194 = vector.shape_cast %193 : vector<4x16xf32> to vector<4x8x2xf32>
    %195 = vector.extract_strided_slice %194 {offsets = [0, 0, 0], sizes = [4, 8, 1], strides = [1, 1, 1]} : vector<4x8x2xf32> to vector<4x8x1xf32>
    %196 = vector.shape_cast %195 : vector<4x8x1xf32> to vector<4x8xf32>
    %c0_172 = arith.constant 0 : index
    %c0_173 = arith.constant 0 : index
    %197 = vector.load %arg6[%c0_172, %c0_173] : memref<8x4xf32, #tpu.memory_space<vmem>>, vector<8x4xf32>
    %cst_174 = arith.constant dense<0.000000e+00> : vector<8x8xf32>
    %198 = tpu.matmul %197, %196, %cst_174 {dimension_numbers = #tpu.dot_dimension_numbers<[1], [0], [0], [1], [0, 0, 1, 1], [], []>} : vector<8x4xf32>, vector<4x8xf32>, vector<8x8xf32> -> vector<8x8xf32>
    %199 = arith.addf %192, %198 : vector<8x8xf32>
    %c0_175 = arith.constant 0 : index
    %c0_176 = arith.constant 0 : index
    %200 = vector.load %arg7[%c0_175, %c0_176] : memref<8x1xf32, #tpu.memory_space<vmem>>, vector<8x1xf32>
    %201 = vector.broadcast %200 : vector<8x1xf32> to vector<8x8xf32>
    %202 = arith.addf %199, %201 : vector<8x8xf32>
    %cst_177 = arith.constant 0.000000e+00 : f32
    %203 = vector.broadcast %cst_177 : f32 to vector<8x8xf32>
    %204 = arith.subf %203, %202 : vector<8x8xf32>
    %205 = math.exp %204 : vector<8x8xf32>
    %cst_178 = arith.constant 1.000000e+00 : f32
    %206 = vector.broadcast %cst_178 : f32 to vector<8x8xf32>
    %207 = arith.addf %206, %205 : vector<8x8xf32>
    %cst_179 = arith.constant 1.000000e+00 : f32
    %208 = vector.broadcast %cst_179 : f32 to vector<8x8xf32>
    %209 = arith.divf %208, %207 : vector<8x8xf32>
    %210 = vector.shape_cast %209 : vector<8x8xf32> to vector<8x4x2xf32>
    %cst_180 = arith.constant dense<0.000000e+00> : vector<8x4xf32>
    %211 = vector.multi_reduction <add>, %210, %cst_180 [2] : vector<8x4x2xf32> to vector<8x4xf32>
    %cst_181 = arith.constant 5.000000e-01 : f32
    %212 = vector.broadcast %cst_181 : f32 to vector<8x4xf32>
    %213 = arith.mulf %211, %212 : vector<8x4xf32>
    %c3 = arith.constant 3 : index
    %c0_182 = arith.constant 0 : index
    %c0_183 = arith.constant 0 : index
    %214 = vector.load %arg1[%c3, %c0_182, %c0_183] : memref<4x4x16xf32, #tpu.memory_space<vmem>>, vector<1x4x16xf32>
    %215 = vector.shape_cast %214 : vector<1x4x16xf32> to vector<4x16xf32>
    %c0_184 = arith.constant 0 : index
    %c1_185 = arith.constant 1 : index
    %216 = vector.load %arg9[%c0_184, %c1_185] : memref<4x18xf32, #tpu.memory_space<vmem>>, vector<4x16xf32>
    tpu.vector_store %arg9[%c0_184, %c1_185], %215 {strides = array<i32>} : memref<4x18xf32, #tpu.memory_space<vmem>>, vector<4x16xf32>,
    %c0_186 = arith.constant 0 : index
    %c0_187 = arith.constant 0 : index
    %c0_188 = arith.constant 0 : index
    %217 = vector.load %arg2[%c0_186, %c0_187, %c0_188] : memref<3x8x4xf32, #tpu.memory_space<vmem>>, vector<1x8x4xf32>
    %218 = vector.shape_cast %217 : vector<1x8x4xf32> to vector<8x4xf32>
    %c0_189 = arith.constant 0 : index
    %c0_190 = arith.constant 0 : index
    %219 = vector.load %arg9[%c0_189, %c0_190] : memref<4x18xf32, #tpu.memory_space<vmem>>, vector<4x16xf32>
    %cst_191 = arith.constant dense<0.000000e+00> : vector<8x16xf32>
    %220 = tpu.matmul %218, %219, %cst_191 {dimension_numbers = #tpu.dot_dimension_numbers<[1], [0], [0], [1], [0, 0, 1, 1], [], []>} : vector<8x4xf32>, vector<4x16xf32>, vector<8x16xf32> -> vector<8x16xf32>
    %c1_192 = arith.constant 1 : index
    %c0_193 = arith.constant 0 : index
    %c0_194 = arith.constant 0 : index
    %221 = vector.load %arg2[%c1_192, %c0_193, %c0_194] : memref<3x8x4xf32, #tpu.memory_space<vmem>>, vector<1x8x4xf32>
    %222 = vector.shape_cast %221 : vector<1x8x4xf32> to vector<8x4xf32>
    %c0_195 = arith.constant 0 : index
    %c1_196 = arith.constant 1 : index
    %223 = vector.load %arg9[%c0_195, %c1_196] : memref<4x18xf32, #tpu.memory_space<vmem>>, vector<4x16xf32>
    %cst_197 = arith.constant dense<0.000000e+00> : vector<8x16xf32>
    %224 = tpu.matmul %222, %223, %cst_197 {dimension_numbers = #tpu.dot_dimension_numbers<[1], [0], [0], [1], [0, 0, 1, 1], [], []>} : vector<8x4xf32>, vector<4x16xf32>, vector<8x16xf32> -> vector<8x16xf32>
    %225 = arith.addf %220, %224 : vector<8x16xf32>
    %c2_198 = arith.constant 2 : index
    %c0_199 = arith.constant 0 : index
    %c0_200 = arith.constant 0 : index
    %226 = vector.load %arg2[%c2_198, %c0_199, %c0_200] : memref<3x8x4xf32, #tpu.memory_space<vmem>>, vector<1x8x4xf32>
    %227 = vector.shape_cast %226 : vector<1x8x4xf32> to vector<8x4xf32>
    %c0_201 = arith.constant 0 : index
    %c2_202 = arith.constant 2 : index
    %228 = vector.load %arg9[%c0_201, %c2_202] : memref<4x18xf32, #tpu.memory_space<vmem>>, vector<4x16xf32>
    %cst_203 = arith.constant dense<0.000000e+00> : vector<8x16xf32>
    %229 = tpu.matmul %227, %228, %cst_203 {dimension_numbers = #tpu.dot_dimension_numbers<[1], [0], [0], [1], [0, 0, 1, 1], [], []>} : vector<8x4xf32>, vector<4x16xf32>, vector<8x16xf32> -> vector<8x16xf32>
    %230 = arith.addf %225, %229 : vector<8x16xf32>
    %c0_204 = arith.constant 0 : index
    %c0_205 = arith.constant 0 : index
    %231 = vector.load %arg3[%c0_204, %c0_205] : memref<8x1xf32, #tpu.memory_space<vmem>>, vector<8x1xf32>
    %232 = vector.broadcast %231 : vector<8x1xf32> to vector<8x16xf32>
    %233 = arith.addf %230, %232 : vector<8x16xf32>
    %cst_206 = arith.constant 0.000000e+00 : f32
    %234 = vector.broadcast %cst_206 : f32 to vector<8x16xf32>
    %235 = arith.maximumf %233, %234 : vector<8x16xf32>
    %c0_207 = arith.constant 0 : index
    %c1_208 = arith.constant 1 : index
    %236 = vector.load %arg10[%c0_207, %c1_208] : memref<8x18xf32, #tpu.memory_space<vmem>>, vector<8x16xf32>
    tpu.vector_store %arg10[%c0_207, %c1_208], %235 {strides = array<i32>} : memref<8x18xf32, #tpu.memory_space<vmem>>, vector<8x16xf32>,
    %c0_209 = arith.constant 0 : index
    %c0_210 = arith.constant 0 : index
    %237 = vector.load %arg10[%c0_209, %c0_210] : memref<8x18xf32, #tpu.memory_space<vmem>>, vector<8x16xf32>
    %238 = vector.shape_cast %237 : vector<8x16xf32> to vector<8x8x2xf32>
    %239 = vector.extract_strided_slice %238 {offsets = [0, 0, 0], sizes = [8, 8, 1], strides = [1, 1, 1]} : vector<8x8x2xf32> to vector<8x8x1xf32>
    %240 = vector.shape_cast %239 : vector<8x8x1xf32> to vector<8x8xf32>
    %c0_211 = arith.constant 0 : index
    %c0_212 = arith.constant 0 : index
    %c0_213 = arith.constant 0 : index
    %241 = vector.load %arg4[%c0_211, %c0_212, %c0_213] : memref<3x8x8xf32, #tpu.memory_space<vmem>>, vector<1x8x8xf32>
    %242 = vector.shape_cast %241 : vector<1x8x8xf32> to vector<8x8xf32>
    %cst_214 = arith.constant dense<0.000000e+00> : vector<8x8xf32>
    %243 = tpu.matmul %242, %240, %cst_214 {dimension_numbers = #tpu.dot_dimension_numbers<[1], [0], [0], [1], [0, 0, 1, 1], [], []>} : vector<8x8xf32>, vector<8x8xf32>, vector<8x8xf32> -> vector<8x8xf32>
    %c0_215 = arith.constant 0 : index
    %c1_216 = arith.constant 1 : index
    %244 = vector.load %arg10[%c0_215, %c1_216] : memref<8x18xf32, #tpu.memory_space<vmem>>, vector<8x16xf32>
    %245 = vector.shape_cast %244 : vector<8x16xf32> to vector<8x8x2xf32>
    %246 = vector.extract_strided_slice %245 {offsets = [0, 0, 0], sizes = [8, 8, 1], strides = [1, 1, 1]} : vector<8x8x2xf32> to vector<8x8x1xf32>
    %247 = vector.shape_cast %246 : vector<8x8x1xf32> to vector<8x8xf32>
    %c1_217 = arith.constant 1 : index
    %c0_218 = arith.constant 0 : index
    %c0_219 = arith.constant 0 : index
    %248 = vector.load %arg4[%c1_217, %c0_218, %c0_219] : memref<3x8x8xf32, #tpu.memory_space<vmem>>, vector<1x8x8xf32>
    %249 = vector.shape_cast %248 : vector<1x8x8xf32> to vector<8x8xf32>
    %cst_220 = arith.constant dense<0.000000e+00> : vector<8x8xf32>
    %250 = tpu.matmul %249, %247, %cst_220 {dimension_numbers = #tpu.dot_dimension_numbers<[1], [0], [0], [1], [0, 0, 1, 1], [], []>} : vector<8x8xf32>, vector<8x8xf32>, vector<8x8xf32> -> vector<8x8xf32>
    %251 = arith.addf %243, %250 : vector<8x8xf32>
    %c0_221 = arith.constant 0 : index
    %c2_222 = arith.constant 2 : index
    %252 = vector.load %arg10[%c0_221, %c2_222] : memref<8x18xf32, #tpu.memory_space<vmem>>, vector<8x16xf32>
    %253 = vector.shape_cast %252 : vector<8x16xf32> to vector<8x8x2xf32>
    %254 = vector.extract_strided_slice %253 {offsets = [0, 0, 0], sizes = [8, 8, 1], strides = [1, 1, 1]} : vector<8x8x2xf32> to vector<8x8x1xf32>
    %255 = vector.shape_cast %254 : vector<8x8x1xf32> to vector<8x8xf32>
    %c2_223 = arith.constant 2 : index
    %c0_224 = arith.constant 0 : index
    %c0_225 = arith.constant 0 : index
    %256 = vector.load %arg4[%c2_223, %c0_224, %c0_225] : memref<3x8x8xf32, #tpu.memory_space<vmem>>, vector<1x8x8xf32>
    %257 = vector.shape_cast %256 : vector<1x8x8xf32> to vector<8x8xf32>
    %cst_226 = arith.constant dense<0.000000e+00> : vector<8x8xf32>
    %258 = tpu.matmul %257, %255, %cst_226 {dimension_numbers = #tpu.dot_dimension_numbers<[1], [0], [0], [1], [0, 0, 1, 1], [], []>} : vector<8x8xf32>, vector<8x8xf32>, vector<8x8xf32> -> vector<8x8xf32>
    %259 = arith.addf %251, %258 : vector<8x8xf32>
    %c0_227 = arith.constant 0 : index
    %c0_228 = arith.constant 0 : index
    %260 = vector.load %arg5[%c0_227, %c0_228] : memref<8x1xf32, #tpu.memory_space<vmem>>, vector<8x1xf32>
    %261 = vector.broadcast %260 : vector<8x1xf32> to vector<8x8xf32>
    %262 = arith.addf %259, %261 : vector<8x8xf32>
    %c0_229 = arith.constant 0 : index
    %c1_230 = arith.constant 1 : index
    %263 = vector.load %arg9[%c0_229, %c1_230] : memref<4x18xf32, #tpu.memory_space<vmem>>, vector<4x16xf32>
    %264 = vector.shape_cast %263 : vector<4x16xf32> to vector<4x8x2xf32>
    %265 = vector.extract_strided_slice %264 {offsets = [0, 0, 0], sizes = [4, 8, 1], strides = [1, 1, 1]} : vector<4x8x2xf32> to vector<4x8x1xf32>
    %266 = vector.shape_cast %265 : vector<4x8x1xf32> to vector<4x8xf32>
    %c0_231 = arith.constant 0 : index
    %c0_232 = arith.constant 0 : index
    %267 = vector.load %arg6[%c0_231, %c0_232] : memref<8x4xf32, #tpu.memory_space<vmem>>, vector<8x4xf32>
    %cst_233 = arith.constant dense<0.000000e+00> : vector<8x8xf32>
    %268 = tpu.matmul %267, %266, %cst_233 {dimension_numbers = #tpu.dot_dimension_numbers<[1], [0], [0], [1], [0, 0, 1, 1], [], []>} : vector<8x4xf32>, vector<4x8xf32>, vector<8x8xf32> -> vector<8x8xf32>
    %269 = arith.addf %262, %268 : vector<8x8xf32>
    %c0_234 = arith.constant 0 : index
    %c0_235 = arith.constant 0 : index
    %270 = vector.load %arg7[%c0_234, %c0_235] : memref<8x1xf32, #tpu.memory_space<vmem>>, vector<8x1xf32>
    %271 = vector.broadcast %270 : vector<8x1xf32> to vector<8x8xf32>
    %272 = arith.addf %269, %271 : vector<8x8xf32>
    %cst_236 = arith.constant 0.000000e+00 : f32
    %273 = vector.broadcast %cst_236 : f32 to vector<8x8xf32>
    %274 = arith.subf %273, %272 : vector<8x8xf32>
    %275 = math.exp %274 : vector<8x8xf32>
    %cst_237 = arith.constant 1.000000e+00 : f32
    %276 = vector.broadcast %cst_237 : f32 to vector<8x8xf32>
    %277 = arith.addf %276, %275 : vector<8x8xf32>
    %cst_238 = arith.constant 1.000000e+00 : f32
    %278 = vector.broadcast %cst_238 : f32 to vector<8x8xf32>
    %279 = arith.divf %278, %277 : vector<8x8xf32>
    %280 = vector.shape_cast %279 : vector<8x8xf32> to vector<8x4x2xf32>
    %cst_239 = arith.constant dense<0.000000e+00> : vector<8x4xf32>
    %281 = vector.multi_reduction <add>, %280, %cst_239 [2] : vector<8x4x2xf32> to vector<8x4xf32>
    %cst_240 = arith.constant 5.000000e-01 : f32
    %282 = vector.broadcast %cst_240 : f32 to vector<8x4xf32>
    %283 = arith.mulf %281, %282 : vector<8x4xf32>
    %284 = tpu.concatenate %73, %143, %213, %283 in 1 : vector<8x4xf32>, vector<8x4xf32>, vector<8x4xf32>, vector<8x4xf32> -> vector<8x16xf32>
    %c0_241 = arith.constant 0 : index
    %c0_242 = arith.constant 0 : index
    %c0_243 = arith.constant 0 : index
    %285 = vector.load %arg8[%c0_241, %c0_242, %c0_243] : memref<1x8x16xf32, #tpu.memory_space<vmem>>, vector<1x8x16xf32>
    %286 = vector.shape_cast %285 : vector<1x8x16xf32> to vector<8x16xf32>
    %287 = vector.shape_cast %284 : vector<8x16xf32> to vector<1x8x16xf32>
    tpu.vector_store %arg8[%c0_241, %c0_242, %c0_243], %287 {strides = array<i32>} : memref<1x8x16xf32, #tpu.memory_space<vmem>>, vector<1x8x16xf32>,
    return
  }
  func.func @transform_0(%arg0: i32) -> (i32, i32, i32) {
    %c0_i32 = arith.constant 0 : i32
    %c0_i32_0 = arith.constant 0 : i32
    %c0_i32_1 = arith.constant 0 : i32
    return %arg0, %c0_i32, %c0_i32_0 : i32, i32, i32
  }
  func.func @transform_1(%arg0: i32) -> (i32, i32, i32) {
    %c0_i32 = arith.constant 0 : i32
    %c0_i32_0 = arith.constant 0 : i32
    %c0_i32_1 = arith.constant 0 : i32
    %c0_i32_2 = arith.constant 0 : i32
    return %c0_i32, %c0_i32_0, %c0_i32_1 : i32, i32, i32
  }
  func.func @transform_2(%arg0: i32) -> (i32, i32) {
    %c0_i32 = arith.constant 0 : i32
    %c0_i32_0 = arith.constant 0 : i32
    %c0_i32_1 = arith.constant 0 : i32
    return %c0_i32, %c0_i32_0 : i32, i32
  }
  func.func @transform_3(%arg0: i32) -> (i32, i32, i32) {
    %c0_i32 = arith.constant 0 : i32
    %c0_i32_0 = arith.constant 0 : i32
    %c0_i32_1 = arith.constant 0 : i32
    %c0_i32_2 = arith.constant 0 : i32
    return %c0_i32, %c0_i32_0, %c0_i32_1 : i32, i32, i32
  }
  func.func @transform_4(%arg0: i32) -> (i32, i32) {
    %c0_i32 = arith.constant 0 : i32
    %c0_i32_0 = arith.constant 0 : i32
    %c0_i32_1 = arith.constant 0 : i32
    return %c0_i32, %c0_i32_0 : i32, i32
  }
  func.func @transform_5(%arg0: i32) -> (i32, i32) {
    %c0_i32 = arith.constant 0 : i32
    %c0_i32_0 = arith.constant 0 : i32
    %c0_i32_1 = arith.constant 0 : i32
    return %c0_i32, %c0_i32_0 : i32, i32
  }
  func.func @transform_6(%arg0: i32) -> (i32, i32) {
    %c0_i32 = arith.constant 0 : i32
    %c0_i32_0 = arith.constant 0 : i32
    %c0_i32_1 = arith.constant 0 : i32
    return %c0_i32, %c0_i32_0 : i32, i32
  }
  func.func @transform_7(%arg0: i32) -> (i32, i32, i32) {
    %c0_i32 = arith.constant 0 : i32
    %c0_i32_0 = arith.constant 0 : i32
    %c0_i32_1 = arith.constant 0 : i32
    return %arg0, %c0_i32, %c0_i32_0 : i32, i32, i32
  }
}

</mosaic_0001>

<llo_original>
// kernel: tpu_custom_call.1
$region0: #{tpu_custom_call.1}
  #allocation0 [shape = 'u32[]', space=smem, size = 0x4, offset = 0x4, fixed_abs, tag = 'smem constant byte address 0x4 - core index']
  #allocation1 [shape = 'u32[144,128]{1,0:T(1,128)}', space=vmem, size = 0x12000, scoped, tag = 'internal scratch']
  #allocation2 [shape = 'f32[4,18]{1,0:T(4,128)}', space=vmem, size = 0x800, scoped, tag = 'scratch operand']
  #allocation3 [shape = 'f32[8,18]{1,0:T(8,128)}', space=vmem, size = 0x1000, scoped, tag = 'scratch operand']
  %s0 = inlined_call_operand.vmem [shape: f32[8,4,16], index: 0, kind: input, shape index: {}]
  %s1 = inlined_call_operand.vmem [shape: f32[3,8,4], index: 1, kind: input, shape index: {}]
  %s2 = inlined_call_operand.vmem [shape: f32[8,1], index: 2, kind: input, shape index: {}]
  %s3 = inlined_call_operand.vmem [shape: f32[3,8,8], index: 3, kind: input, shape index: {}]
  %s4 = inlined_call_operand.vmem [shape: f32[8,1], index: 4, kind: input, shape index: {}]
  %s5 = inlined_call_operand.vmem [shape: f32[8,4], index: 5, kind: input, shape index: {}]
  %s6 = inlined_call_operand.vmem [shape: f32[8,1], index: 6, kind: input, shape index: {}]
  %s7 = inlined_call_operand.hbm [shape: f32[2,8,16], index: 7, kind: output, shape index: {}]
  %s8 = sld [smem:[#allocation0]]
  $region61: #{tpu_custom_call.1} parent=0
    _
  %s10 = ssub.s32 1, %s8
  %s11 = scalar_select 0, %s10, %s8
  $region1: #{tpu_custom_call.1} parent=0
    #allocation4 [shape = 'u8[8192]{0}', space=vmem, size = 0x2000, scoped, tag = 'output window, operand 0']
    #allocation5 [shape = 's32[2]{0}', space=sflag, size = 0x8, scoped, tag = 'scoped memory for tpu_custom_call.1']
    %12 = vsyncpa [#allocation5], 0
    %s13 = scalar_lea.sflag [#allocation5], 1
    %14 = vsyncpa %s13, 0
    loop: start=0, step=1, limit=4
    $region2: #{tpu_custom_call.1} parent=1 // loop_pre_header
      _
    $region3: #{tpu_custom_call.1} parent=1 // loop_header
      %s16 = sphi 0, %s20
      %p17 = scmp.ge.s32.totalorder %s16, 4
      %s26 = sphi 0, %s28
      %s29 = sphi 0, %s26
      %s30 = sphi 0, %s29
      %s46 = sphi 0, %s30
      %s50 = sphi 0, %s50
      %s52 = sphi 0, %s50
      %s53 = sphi 0, %s52
      %s67 = sphi 0, %s53
      %s71 = sphi 0, %s71
      %s73 = sphi 0, %s71
      %s74 = sphi 0, %s73
      %s88 = sphi 0, %s74
      %s92 = sphi 0, %s92
      %s94 = sphi 0, %s92
      %s95 = sphi 0, %s94
      %s109 = sphi 0, %s95
      %s113 = sphi 0, %s113
      %s115 = sphi 0, %s113
      %s116 = sphi 0, %s115
      %s130 = sphi 0, %s116
      %s134 = sphi 0, %s134
      %s136 = sphi 0, %s134
      %s137 = sphi 0, %s136
      %s151 = sphi 0, %s137
      %s155 = sphi 0, %s155
      %s157 = sphi 0, %s155
      %s158 = sphi 0, %s157
      %s172 = sphi 0, %s158
      %s178 = sphi 0, %s180
      %s181 = sphi 0, %s178
      %s182 = sphi 0, %s181
      %s198 = sphi 0, %s182
    $region4: #{tpu_custom_call.1} parent=1 // loop_header_branch
      %19 = sbr.rel (%p17) target = $region8
    $region5: #{tpu_custom_call.1} parent=1 // loop_body
      %s21 = ssub.s32 %s16, 1
      %s22 = ssub.s32 %s16, 2
      %s23 = sadd.s32 %s16, 1
      %s24 = ssub.s32 %s16, %s23
      %p25 = scmp.eq.s32.totalorder %s24, 0
      %s27 = sadd.s32 %s26, 1
      %s28 = scalar_select %p25, %s26, %s27
      %p31 = pneg %p25
      %p32 = scmp.eq.s32.totalorder %s16, 1
      %p33 = por %p31, %p32
      %p34 = scmp.ne.s32.totalorder %s26, %s29
      %p35 = scmp.eq.s32.totalorder %s16, 0
      %p36 = por %p34, %p35
      %p37 = scmp.ne.s32.totalorder %s26, %s29
      %p38 = scmp.eq.s32.totalorder %s21, 1
      %p39 = por %p37, %p38
      %p40 = scmp.ne.s32.totalorder %s29, %s30
      %p41 = scmp.eq.s32.totalorder %s21, 0
      %p42 = por %p40, %p41
      %p43 = scmp.ne.s32.totalorder %s29, %s30
      %p44 = scmp.eq.s32.totalorder %s22, 1
      %p45 = por %p43, %p44
      %p47 = scmp.ne.s32.totalorder %s30, %s46
      %p48 = scmp.eq.s32.totalorder %s22, 0
      %p49 = por %p47, %p48
      %s51 = sadd.s32 %s50, 1
      %p54 = scmp.eq.s32.totalorder %s16, 1
      %p55 = scmp.ne.s32.totalorder %s50, %s52
      %p56 = scmp.eq.s32.totalorder %s16, 0
      %p57 = por %p55, %p56
      %p58 = scmp.ne.s32.totalorder %s50, %s52
      %p59 = scmp.eq.s32.totalorder %s21, 1
      %p60 = por %p58, %p59
      %p61 = scmp.ne.s32.totalorder %s52, %s53
      %p62 = scmp.eq.s32.totalorder %s21, 0
      %p63 = por %p61, %p62
      %p64 = scmp.ne.s32.totalorder %s52, %s53
      %p65 = scmp.eq.s32.totalorder %s22, 1
      %p66 = por %p64, %p65
      %p68 = scmp.ne.s32.totalorder %s53, %s67
      %p69 = scmp.eq.s32.totalorder %s22, 0
      %p70 = por %p68, %p69
      %s72 = sadd.s32 %s71, 1
      %p75 = scmp.eq.s32.totalorder %s16, 1
      %p76 = scmp.ne.s32.totalorder %s71, %s73
      %p77 = scmp.eq.s32.totalorder %s16, 0
      %p78 = por %p76, %p77
      %p79 = scmp.ne.s32.totalorder %s71, %s73
      %p80 = scmp.eq.s32.totalorder %s21, 1
      %p81 = por %p79, %p80
      %p82 = scmp.ne.s32.totalorder %s73, %s74
      %p83 = scmp.eq.s32.totalorder %s21, 0
      %p84 = por %p82, %p83
      %p85 = scmp.ne.s32.totalorder %s73, %s74
      %p86 = scmp.eq.s32.totalorder %s22, 1
      %p87 = por %p85, %p86
      %p89 = scmp.ne.s32.totalorder %s74, %s88
      %p90 = scmp.eq.s32.totalorder %s22, 0
      %p91 = por %p89, %p90
      %s93 = sadd.s32 %s92, 1
      %p96 = scmp.eq.s32.totalorder %s16, 1
      %p97 = scmp.ne.s32.totalorder %s92, %s94
      %p98 = scmp.eq.s32.totalorder %s16, 0
      %p99 = por %p97, %p98
      %p100 = scmp.ne.s32.totalorder %s92, %s94
      %p101 = scmp.eq.s32.totalorder %s21, 1
      %p102 = por %p100, %p101
      %p103 = scmp.ne.s32.totalorder %s94, %s95
      %p104 = scmp.eq.s32.totalorder %s21, 0
      %p105 = por %p103, %p104
      %p106 = scmp.ne.s32.totalorder %s94, %s95
      %p107 = scmp.eq.s32.totalorder %s22, 1
      %p108 = por %p106, %p107
      %p110 = scmp.ne.s32.totalorder %s95, %s109
      %p111 = scmp.eq.s32.totalorder %s22, 0
      %p112 = por %p110, %p111
      %s114 = sadd.s32 %s113, 1
      %p117 = scmp.eq.s32.totalorder %s16, 1
      %p118 = scmp.ne.s32.totalorder %s113, %s115
      %p119 = scmp.eq.s32.totalorder %s16, 0
      %p120 = por %p118, %p119
      %p121 = scmp.ne.s32.totalorder %s113, %s115
      %p122 = scmp.eq.s32.totalorder %s21, 1
      %p123 = por %p121, %p122
      %p124 = scmp.ne.s32.totalorder %s115, %s116
      %p125 = scmp.eq.s32.totalorder %s21, 0
      %p126 = por %p124, %p125
      %p127 = scmp.ne.s32.totalorder %s115, %s116
      %p128 = scmp.eq.s32.totalorder %s22, 1
      %p129 = por %p127, %p128
      %p131 = scmp.ne.s32.totalorder %s116, %s130
      %p132 = scmp.eq.s32.totalorder %s22, 0
      %p133 = por %p131, %p132
      %s135 = sadd.s32 %s134, 1
      %p138 = scmp.eq.s32.totalorder %s16, 1
      %p139 = scmp.ne.s32.totalorder %s134, %s136
      %p140 = scmp.eq.s32.totalorder %s16, 0
      %p141 = por %p139, %p140
      %p142 = scmp.ne.s32.totalorder %s134, %s136
      %p143 = scmp.eq.s32.totalorder %s21, 1
      %p144 = por %p142, %p143
      %p145 = scmp.ne.s32.totalorder %s136, %s137
      %p146 = scmp.eq.s32.totalorder %s21, 0
      %p147 = por %p145, %p146
      %p148 = scmp.ne.s32.totalorder %s136, %s137
      %p149 = scmp.eq.s32.totalorder %s22, 1
      %p150 = por %p148, %p149
      %p152 = scmp.ne.s32.totalorder %s137, %s151
      %p153 = scmp.eq.s32.totalorder %s22, 0
      %p154 = por %p152, %p153
      %s156 = sadd.s32 %s155, 1
      %p159 = scmp.eq.s32.totalorder %s16, 1
      %p160 = scmp.ne.s32.totalorder %s155, %s157
      %p161 = scmp.eq.s32.totalorder %s16, 0
      %p162 = por %p160, %p161
      %p163 = scmp.ne.s32.totalorder %s155, %s157
      %p164 = scmp.eq.s32.totalorder %s21, 1
      %p165 = por %p163, %p164
      %p166 = scmp.ne.s32.totalorder %s157, %s158
      %p167 = scmp.eq.s32.totalorder %s21, 0
      %p168 = por %p166, %p167
      %p169 = scmp.ne.s32.totalorder %s157, %s158
      %p170 = scmp.eq.s32.totalorder %s22, 1
      %p171 = por %p169, %p170
      %p173 = scmp.ne.s32.totalorder %s158, %s172
      %p174 = scmp.eq.s32.totalorder %s22, 0
      %p175 = por %p173, %p174
      %s176 = ssub.s32 %s16, %s23
      %p177 = scmp.eq.s32.totalorder %s176, 0
      %s179 = sadd.s32 %s178, 1
      %s180 = scalar_select %p177, %s178, %s179
      %p183 = pneg %p177
      %p184 = scmp.eq.s32.totalorder %s16, 1
      %p185 = por %p183, %p184
      %p186 = scmp.ne.s32.totalorder %s178, %s181
      %p187 = scmp.eq.s32.totalorder %s16, 0
      %p188 = por %p186, %p187
      %p189 = scmp.ne.s32.totalorder %s178, %s181
      %p190 = scmp.eq.s32.totalorder %s21, 1
      %p191 = por %p189, %p190
      %p192 = scmp.ne.s32.totalorder %s181, %s182
      %p193 = scmp.eq.s32.totalorder %s21, 0
      %p194 = por %p192, %p193
      %p195 = scmp.ne.s32.totalorder %s181, %s182
      %p196 = scmp.eq.s32.totalorder %s22, 1
      %p197 = por %p195, %p196
      %p199 = scmp.ne.s32.totalorder %s182, %s198
      %p200 = scmp.eq.s32.totalorder %s22, 0
      %p201 = por %p199, %p200
      %p202 = scmp.le.s32.totalorder 1, %s16
      %p203 = scmp.lt.s32.totalorder %s16, 3
      %p204 = pnand %p202, %p203
      %p205 = pneg %p204
      // Predicated region
      $region9: #{tpu_custom_call.1} parent=5 // pred_check
        _
      $region10: #{tpu_custom_call.1} parent=5 // pred_check_branch
        %207 = sbr.rel (%p204) target = $region12
      $region11: #{tpu_custom_call.1} parent=5 // pred_region
        %s208 = ssub.s32 %s16, 1
        // Predicated region
        $region13: #{tpu_custom_call.1} parent=11 // pred_check
          %p209 = pneg %p63
        $region14: #{tpu_custom_call.1} parent=11 // pred_check_branch
          %211 = sbr.rel (%p209) target = $region16
        $region15: #{tpu_custom_call.1} parent=11 // pred_region
          _
        $region16: #{tpu_custom_call.1} parent=11 // pred_fallthru
          _
        // Predicated region
        $region17: #{tpu_custom_call.1} parent=11 // pred_check
          %p212 = pneg %p84
        $region18: #{tpu_custom_call.1} parent=11 // pred_check_branch
          %214 = sbr.rel (%p212) target = $region20
        $region19: #{tpu_custom_call.1} parent=11 // pred_region
          _
        $region20: #{tpu_custom_call.1} parent=11 // pred_fallthru
          _
        // Predicated region
        $region21: #{tpu_custom_call.1} parent=11 // pred_check
          %p215 = pneg %p105
        $region22: #{tpu_custom_call.1} parent=11 // pred_check_branch
          %217 = sbr.rel (%p215) target = $region24
        $region23: #{tpu_custom_call.1} parent=11 // pred_region
          _
        $region24: #{tpu_custom_call.1} parent=11 // pred_fallthru
          _
        // Predicated region
        $region25: #{tpu_custom_call.1} parent=11 // pred_check
          %p218 = pneg %p126
        $region26: #{tpu_custom_call.1} parent=11 // pred_check_branch
          %220 = sbr.rel (%p218) target = $region28
        $region27: #{tpu_custom_call.1} parent=11 // pred_region
          _
        $region28: #{tpu_custom_call.1} parent=11 // pred_fallthru
          _
        // Predicated region
        $region29: #{tpu_custom_call.1} parent=11 // pred_check
          %p221 = pneg %p147
        $region30: #{tpu_custom_call.1} parent=11 // pred_check_branch
          %223 = sbr.rel (%p221) target = $region32
        $region31: #{tpu_custom_call.1} parent=11 // pred_region
          _
        $region32: #{tpu_custom_call.1} parent=11 // pred_fallthru
          _
        // Predicated region
        $region33: #{tpu_custom_call.1} parent=11 // pred_check
          %p224 = pneg %p168
        $region34: #{tpu_custom_call.1} parent=11 // pred_check_branch
          %226 = sbr.rel (%p224) target = $region36
        $region35: #{tpu_custom_call.1} parent=11 // pred_region
          _
        $region36: #{tpu_custom_call.1} parent=11 // pred_fallthru
          _
      $region12: #{tpu_custom_call.1} parent=5 // pred_fallthru
        _
      %p227 = scmp.lt.s32.totalorder %s16, 2
      // Predicated region
      $region37: #{tpu_custom_call.1} parent=5 // pred_check
        %p228 = pneg %p227
      $region38: #{tpu_custom_call.1} parent=5 // pred_check_branch
        %230 = sbr.rel (%p228) target = $region40
      $region39: #{tpu_custom_call.1} parent=5 // pred_region
        // Predicated region
        $region41: #{tpu_custom_call.1} parent=39 // pred_check
          %p231 = pneg %p36
        $region42: #{tpu_custom_call.1} parent=39 // pred_check_branch
          %233 = sbr.rel (%p231) target = $region44
        $region43: #{tpu_custom_call.1} parent=39 // pred_region
          %s234 = smul.u32 4, %s16
          %p235 = scmp.lt.s32.totalorder %s234, 7
          %s236 = scalar_select %p235, %s234, 7
          %s237 = smul.addr %s236, 4
          %s238 = scalar_lea.vmem %s0, %s237
          %s239 = smul.u32 4, %s16
        $region44: #{tpu_custom_call.1} parent=39 // pred_fallthru
          _
      $region40: #{tpu_custom_call.1} parent=5 // pred_fallthru
        _
      %p240 = scmp.le.s32.totalorder 1, %s16
      %p241 = scmp.lt.s32.totalorder %s16, 3
      %p242 = pnand %p240, %p241
      %p243 = pneg %p242
      // Predicated region
      $region45: #{tpu_custom_call.1} parent=5 // pred_check
        _
      $region46: #{tpu_custom_call.1} parent=5 // pred_check_branch
        %245 = sbr.rel (%p242) target = $region48
      $region47: #{tpu_custom_call.1} parent=5 // pred_region
        %s246 = ssub.s32 %s16, 1
        %s247 = smul.u32 4, %s21
        %p248 = scmp.lt.s32.totalorder %s247, 7
        %s249 = scalar_select %p248, %s247, 7
        %s250 = smul.addr %s249, 4
        %s251 = scalar_lea.vmem %s0, %s250
        %p252 = pneg %p42
        %p253 = pneg %p39
        %p254 = pneg %p63
        %p255 = pneg %p60
        %p256 = pneg %p84
        %p257 = pneg %p81
        %p258 = pneg %p105
        %p259 = pneg %p102
        %p260 = pneg %p126
        %p261 = pneg %p123
        %p262 = pneg %p147
        %p263 = pneg %p144
        %p264 = pneg %p168
        %p265 = pneg %p165
        %p266 = pneg %p194
        %p267 = pneg %p191
        %s268 = sand.u32 %s181, 1
        %s269 = scalar_lea.sflag [#allocation5], %s268
        %s270 = sand.u32 %s181, 1
        %s271 = smul.addr %s270, 8
        %s272 = scalar_lea.vmem [#allocation4], %s271
        %s273 = smul.u32 4, %s21
        %p274 = scmp.lt.s32.totalorder %s273, 7
        %s275 = scalar_select %p274, %s273, 7
        %s276 = smul.addr %s275, 4
        %s277 = scalar_lea.vmem %s0, %s276
        %s278 = smul.u32 4, %s21
        %vm279 = vcmask 142336
        %280 = vst.msk [vmem:[#allocation2] sm:$0xf] %vm279, 0.0
        %vm281 = vcmask 146432
        %282 = vst.msk [vmem:[#allocation3] sm:$0xff] %vm281, 0.0
        %v283 = vld [vmem:[%s277] sm:$0xf]
        %285 = vrot.lane.b32.xlu0 %v283, 1
        %v286 = vpop.permute.xlu0 %285
        %vm288 = vcmask 134152
        %289 = vst.msk [vmem:[#allocation2] sm:$0xf] %vm288, %v286
        %v290 = vld [vmem:[%s1] sm:$0xff]
        %v291 = vld [vmem:[#allocation2] sm:$0xf]
        %s292 = scalar_lea.vmem %s1, 8
        %v293 = vld [vmem:[%s292] sm:$0xff]
        %295 = vrot.lane.b32.xlu0 %v291, 127
        %v296 = vpop.permute.xlu0 %295
        %vm297 = vcmask 31744
        %v299 = vsel %vm297, %v293, 0
        %vm301 = vcmask 1043456
        %v302 = vsel %vm301, %v296, 0
        %304 = vmatprep.subr.mxu0 0.0
        %305 = vmatpush1.msra.mxu0 0.0
        %306 = vmatprep.subr.mxu0 0.0
        %307 = vmatpush1.msra.mxu0 0.0
        %308 = vmatprep.subr.mxu0 0.0
        %309 = vmatpush1.msra.mxu0 0.0
        %310 = vmatprep.subr.mxu0 0.0
        %311 = vmatpush1.msra.mxu0 0.0
        %312 = vmatprep.subr.mxu0 0.0
        %313 = vmatpush1.msra.mxu0 0.0
        %314 = vmatprep.subr.mxu0 0.0
        %315 = vmatpush1.msra.mxu0 0.0
        %316 = vmatprep.subr.mxu0 0.0
        %317 = vmatpush1.msra.mxu0 0.0
        %318 = vmatprep.subr.mxu0 0.0
        %319 = vmatpush1.msra.mxu0 0.0
        %320 = vmatprep.subr.mxu0 0.0
        %321 = vmatpush1.msra.mxu0 0.0
        %322 = vmatprep.subr.mxu0 0.0
        %323 = vmatpush1.msra.mxu0 0.0
        %324 = vmatprep.subr.mxu0 0.0
        %325 = vmatpush1.msra.mxu0 0.0
        %326 = vmatprep.subr.mxu0 0.0
        %327 = vmatpush1.msra.mxu0 0.0
        %328 = vmatprep.subr.mxu0 0.0
        %329 = vmatpush1.msra.mxu0 0.0
        %330 = vmatprep.subr.mxu0 0.0
        %331 = vmatpush1.msra.mxu0 0.0
        %332 = vmatprep.subr.mxu0 0.0
        %333 = vmatpush1.msra.mxu0 0.0
        %334 = vmatprep.subr.mxu0 0.0
        %335 = vmatpush1.msra.mxu0 %v302
        %336 = vmatprep.subr.mxu0 0.0
        %337 = vmatpush2.msra.mxu0 0.0
        %338 = vmatprep.subr.mxu0 0.0
        %339 = vmatpush2.msra.mxu0 0.0
        %340 = vmatprep.subr.mxu0 0.0
        %341 = vmatpush2.msra.mxu0 0.0
        %342 = vmatprep.subr.mxu0 0.0
        %343 = vmatpush2.msra.mxu0 0.0
        %344 = vmatprep.subr.mxu0 0.0
        %345 = vmatpush2.msra.mxu0 0.0
        %346 = vmatprep.subr.mxu0 0.0
        %347 = vmatpush2.msra.mxu0 0.0
        %348 = vmatprep.subr.mxu0 0.0
        %349 = vmatpush2.msra.mxu0 0.0
        %350 = vmatprep.subr.mxu0 0.0
        %351 = vmatpush2.msra.mxu0 0.0
        %352 = vmatprep.subr.mxu0 0.0
        %353 = vmatpush2.msra.mxu0 0.0
        %354 = vmatprep.subr.mxu0 0.0
        %355 = vmatpush2.msra.mxu0 0.0
        %356 = vmatprep.subr.mxu0 0.0
        %357 = vmatpush2.msra.mxu0 0.0
        %358 = vmatprep.subr.mxu0 0.0
        %359 = vmatpush2.msra.mxu0 0.0
        %360 = vmatprep.subr.mxu0 0.0
        %361 = vmatpush2.msra.mxu0 0.0
        %362 = vmatprep.subr.mxu0 0.0
        %363 = vmatpush2.msra.mxu0 0.0
        %364 = vmatprep.subr.mxu0 0.0
        %365 = vmatpush2.msra.mxu0 0.0
        %366 = vmatprep.subr.mxu0 0.0
        %367 = vmatpush2.msra.mxu0 0.0
        %368 = vmatprep.mubr.f32.mxu0 0.0
        %369 = vmatmul.mubr.f32.gmra.mxu0 %v299
        %v370 = vpop.f32.mrf.mxu0
        %v371 = vadd.f32 0.0, %v370
        %v372 = vpop.f32.mrf.mxu0
        %373 = vdwg.mxu0
        %v375 = vsel %vm297, %v290, 0
        %v377 = vsel %vm301, %v291, 0
        %379 = vmatprep.subr.mxu0 0.0
        %380 = vmatpush1.msra.mxu0 0.0
        %381 = vmatprep.subr.mxu0 0.0
        %382 = vmatpush1.msra.mxu0 0.0
        %383 = vmatprep.subr.mxu0 0.0
        %384 = vmatpush1.msra.mxu0 0.0
        %385 = vmatprep.subr.mxu0 0.0
        %386 = vmatpush1.msra.mxu0 0.0
        %387 = vmatprep.subr.mxu0 0.0
        %388 = vmatpush1.msra.mxu0 0.0
        %389 = vmatprep.subr.mxu0 0.0
        %390 = vmatpush1.msra.mxu0 0.0
        %391 = vmatprep.subr.mxu0 0.0
        %392 = vmatpush1.msra.mxu0 0.0
        %393 = vmatprep.subr.mxu0 0.0
        %394 = vmatpush1.msra.mxu0 0.0
        %395 = vmatprep.subr.mxu0 0.0
        %396 = vmatpush1.msra.mxu0 0.0
        %397 = vmatprep.subr.mxu0 0.0
        %398 = vmatpush1.msra.mxu0 0.0
        %399 = vmatprep.subr.mxu0 0.0
        %400 = vmatpush1.msra.mxu0 0.0
        %401 = vmatprep.subr.mxu0 0.0
        %402 = vmatpush1.msra.mxu0 0.0
        %403 = vmatprep.subr.mxu0 0.0
        %404 = vmatpush1.msra.mxu0 0.0
        %405 = vmatprep.subr.mxu0 0.0
        %406 = vmatpush1.msra.mxu0 0.0
        %407 = vmatprep.subr.mxu0 0.0
        %408 = vmatpush1.msra.mxu0 0.0
        %409 = vmatprep.subr.mxu0 0.0
        %410 = vmatpush1.msra.mxu0 %v377
        %411 = vmatprep.subr.mxu0 0.0
        %412 = vmatpush2.msra.mxu0 0.0
        %413 = vmatprep.subr.mxu0 0.0
        %414 = vmatpush2.msra.mxu0 0.0
        %415 = vmatprep.subr.mxu0 0.0
        %416 = vmatpush2.msra.mxu0 0.0
        %417 = vmatprep.subr.mxu0 0.0
        %418 = vmatpush2.msra.mxu0 0.0
        %419 = vmatprep.subr.mxu0 0.0
        %420 = vmatpush2.msra.mxu0 0.0
        %421 = vmatprep.subr.mxu0 0.0
        %422 = vmatpush2.msra.mxu0 0.0
        %423 = vmatprep.subr.mxu0 0.0
        %424 = vmatpush2.msra.mxu0 0.0
        %425 = vmatprep.subr.mxu0 0.0
        %426 = vmatpush2.msra.mxu0 0.0
        %427 = vmatprep.subr.mxu0 0.0
        %428 = vmatpush2.msra.mxu0 0.0
        %429 = vmatprep.subr.mxu0 0.0
        %430 = vmatpush2.msra.mxu0 0.0
        %431 = vmatprep.subr.mxu0 0.0
        %432 = vmatpush2.msra.mxu0 0.0
        %433 = vmatprep.subr.mxu0 0.0
        %434 = vmatpush2.msra.mxu0 0.0
        %435 = vmatprep.subr.mxu0 0.0
        %436 = vmatpush2.msra.mxu0 0.0
        %437 = vmatprep.subr.mxu0 0.0
        %438 = vmatpush2.msra.mxu0 0.0
        %439 = vmatprep.subr.mxu0 0.0
        %440 = vmatpush2.msra.mxu0 0.0
        %441 = vmatprep.subr.mxu0 0.0
        %442 = vmatpush2.msra.mxu0 0.0
        %443 = vmatprep.mubr.f32.mxu0 0.0
        %444 = vmatmul.mubr.f32.gmra.mxu0 %v375
        %v445 = vpop.f32.mrf.mxu0
        %v446 = vadd.f32 %v371, %v445
        %v447 = vpop.f32.mrf.mxu0
        %448 = vdwg.mxu0
        %s449 = scalar_lea.vmem %s1, 16
        %v450 = vld [vmem:[%s449] sm:$0xff]
        %451 = vrot.lane.b32.xlu0 %v291, 126
        %v452 = vpop.permute.xlu0 %451
        %v454 = vsel %vm297, %v450, 0
        %v456 = vsel %vm301, %v452, 0
        %458 = vmatprep.subr.mxu0 0.0
        %459 = vmatpush1.msra.mxu0 0.0
        %460 = vmatprep.subr.mxu0 0.0
        %461 = vmatpush1.msra.mxu0 0.0
        %462 = vmatprep.subr.mxu0 0.0
        %463 = vmatpush1.msra.mxu0 0.0
        %464 = vmatprep.subr.mxu0 0.0
        %465 = vmatpush1.msra.mxu0 0.0
        %466 = vmatprep.subr.mxu0 0.0
        %467 = vmatpush1.msra.mxu0 0.0
        %468 = vmatprep.subr.mxu0 0.0
        %469 = vmatpush1.msra.mxu0 0.0
        %470 = vmatprep.subr.mxu0 0.0
        %471 = vmatpush1.msra.mxu0 0.0
        %472 = vmatprep.subr.mxu0 0.0
        %473 = vmatpush1.msra.mxu0 0.0
        %474 = vmatprep.subr.mxu0 0.0
        %475 = vmatpush1.msra.mxu0 0.0
        %476 = vmatprep.subr.mxu0 0.0
        %477 = vmatpush1.msra.mxu0 0.0
        %478 = vmatprep.subr.mxu0 0.0
        %479 = vmatpush1.msra.mxu0 0.0
        %480 = vmatprep.subr.mxu0 0.0
        %481 = vmatpush1.msra.mxu0 0.0
        %482 = vmatprep.subr.mxu0 0.0
        %483 = vmatpush1.msra.mxu0 0.0
        %484 = vmatprep.subr.mxu0 0.0
        %485 = vmatpush1.msra.mxu0 0.0
        %486 = vmatprep.subr.mxu0 0.0
        %487 = vmatpush1.msra.mxu0 0.0
        %488 = vmatprep.subr.mxu0 0.0
        %489 = vmatpush1.msra.mxu0 %v456
        %490 = vmatprep.subr.mxu0 0.0
        %491 = vmatpush2.msra.mxu0 0.0
        %492 = vmatprep.subr.mxu0 0.0
        %493 = vmatpush2.msra.mxu0 0.0
        %494 = vmatprep.subr.mxu0 0.0
        %495 = vmatpush2.msra.mxu0 0.0
        %496 = vmatprep.subr.mxu0 0.0
        %497 = vmatpush2.msra.mxu0 0.0
        %498 = vmatprep.subr.mxu0 0.0
        %499 = vmatpush2.msra.mxu0 0.0
        %500 = vmatprep.subr.mxu0 0.0
        %501 = vmatpush2.msra.mxu0 0.0
        %502 = vmatprep.subr.mxu0 0.0
        %503 = vmatpush2.msra.mxu0 0.0
        %504 = vmatprep.subr.mxu0 0.0
        %505 = vmatpush2.msra.mxu0 0.0
        %506 = vmatprep.subr.mxu0 0.0
        %507 = vmatpush2.msra.mxu0 0.0
        %508 = vmatprep.subr.mxu0 0.0
        %509 = vmatpush2.msra.mxu0 0.0
        %510 = vmatprep.subr.mxu0 0.0
        %511 = vmatpush2.msra.mxu0 0.0
        %512 = vmatprep.subr.mxu0 0.0
        %513 = vmatpush2.msra.mxu0 0.0
        %514 = vmatprep.subr.mxu0 0.0
        %515 = vmatpush2.msra.mxu0 0.0
        %516 = vmatprep.subr.mxu0 0.0
        %517 = vmatpush2.msra.mxu0 0.0
        %518 = vmatprep.subr.mxu0 0.0
        %519 = vmatpush2.msra.mxu0 0.0
        %520 = vmatprep.subr.mxu0 0.0
        %521 = vmatpush2.msra.mxu0 0.0
        %522 = vmatprep.mubr.f32.mxu0 0.0
        %523 = vmatmul.mubr.f32.gmra.mxu0 %v454
        %v524 = vpop.f32.mrf.mxu0
        %v525 = vadd.f32 0.0, %v524
        %v526 = vpop.f32.mrf.mxu0
        %527 = vdwg.mxu0
        %v528 = vadd.f32 %v446, %v525
        %v529 = vld [vmem:[%s2] sm:$0xff]
        %531 = vset.pattern.permute.xlu0 0
        %532 = vperm.xlu0 %531, %v529
        %v533 = vpop.permute.xlu0 %532
        %v535 = vadd.f32 %v528, %v533
        %v536 = vmax.f32 %v535, 0.0
        %538 = vrot.lane.b32.xlu0 %v536, 1
        %v539 = vpop.permute.xlu0 %538
        %vm541 = vcmask 138248
        %542 = vst.msk [vmem:[#allocation3] sm:$0xff] %vm541, %v539
        %v543 = vld [vmem:[#allocation3] sm:$0xff]
        %545 = vrot.lane.b32.xlu0 %v543, 126
        %v546 = vpop.permute.xlu0 %545
        %548 = vrot.lane.b32.xlu0 %v543, 124
        %v549 = vpop.permute.xlu0 %548
        %551 = vrot.lane.b32.xlu0 %v543, 122
        %v552 = vpop.permute.xlu0 %551
        %554 = vrot.lane.b32.xlu0 %v543, 120
        %v555 = vpop.permute.xlu0 %554
        %557 = vrot.lane.b32.xlu0 %v543, 118
        %v558 = vpop.permute.xlu0 %557
        %560 = vrot.lane.b32.xlu0 %v543, 116
        %v561 = vpop.permute.xlu0 %560
        %563 = vrot.lane.b32.xlu0 %v543, 114
        %v564 = vpop.permute.xlu0 %563
        %v566 = vcombine.low %v543, %v549
        %v567 = vcombine.high %v543, %v549
        %v569 = vunpack.c.l.s4 1983009808
        %v570 = vunpack.c.0.s8 %v569
        %v571 = vlaneseq
        %v572 = vshrl.u32 %v571, 7
        %v573 = vsub.s32 %v570, %v572
        %v574 = vrot.slane %v566, %v573
        %v576 = vunpack.c.l.s4 1983009808
        %v577 = vunpack.c.0.s8 %v576
        %v578 = vlaneseq
        %v579 = vshrl.u32 %v578, 7
        %v580 = vsub.s32 %v577, %v579
        %v581 = vrot.slane %v567, %v580
        %v582 = vcombine.low %v546, %v552
        %v583 = vcombine.high %v546, %v552
        %v585 = vunpack.c.l.s4 1983009808
        %v586 = vunpack.c.0.s8 %v585
        %v587 = vlaneseq
        %v588 = vshrl.u32 %v587, 7
        %v589 = vsub.s32 %v586, %v588
        %v590 = vrot.slane %v582, %v589
        %v592 = vunpack.c.l.s4 1983009808
        %v593 = vunpack.c.0.s8 %v592
        %v594 = vlaneseq
        %v595 = vshrl.u32 %v594, 7
        %v596 = vsub.s32 %v593, %v595
        %v597 = vrot.slane %v583, %v596
        %v598 = vcombine.low %v555, %v561
        %v599 = vcombine.high %v555, %v561
        %v601 = vunpack.c.l.s4 1983009808
        %v602 = vunpack.c.0.s8 %v601
        %v603 = vlaneseq
        %v604 = vshrl.u32 %v603, 7
        %v605 = vsub.s32 %v602, %v604
        %v606 = vrot.slane %v598, %v605
        %v608 = vunpack.c.l.s4 1983009808
        %v609 = vunpack.c.0.s8 %v608
        %v610 = vlaneseq
        %v611 = vshrl.u32 %v610, 7
        %v612 = vsub.s32 %v609, %v611
        %v613 = vrot.slane %v599, %v612
        %v614 = vcombine.low %v558, %v564
        %v615 = vcombine.high %v558, %v564
        %v617 = vunpack.c.l.s4 1983009808
        %v618 = vunpack.c.0.s8 %v617
        %v619 = vlaneseq
        %v620 = vshrl.u32 %v619, 7
        %v621 = vsub.s32 %v618, %v620
        %v622 = vrot.slane %v614, %v621
        %v624 = vunpack.c.l.s4 1983009808
        %v625 = vunpack.c.0.s8 %v624
        %v626 = vlaneseq
        %v627 = vshrl.u32 %v626, 7
        %v628 = vsub.s32 %v625, %v627
        %v629 = vrot.slane %v615, %v628
        %v630 = vcombine.low %v574, %v590
        %v631 = vcombine.high %v574, %v590
        %v633 = vunpack.c.l.s4 1934713408
        %v634 = vunpack.c.0.s8 %v633
        %v635 = vlaneseq
        %v636 = vshrl.u32 %v635, 7
        %v637 = vsub.s32 %v634, %v636
        %v638 = vrot.slane %v630, %v637
        %v640 = vunpack.c.l.s4 1934713408
        %v641 = vunpack.c.0.s8 %v640
        %v642 = vlaneseq
        %v643 = vshrl.u32 %v642, 7
        %v644 = vsub.s32 %v641, %v643
        %v645 = vrot.slane %v631, %v644
        %v646 = vcombine.low %v581, %v597
        %v647 = vcombine.high %v581, %v597
        %v649 = vunpack.c.l.s4 1934713408
        %v650 = vunpack.c.0.s8 %v649
        %v651 = vlaneseq
        %v652 = vshrl.u32 %v651, 7
        %v653 = vsub.s32 %v650, %v652
        %v654 = vrot.slane %v646, %v653
        %v656 = vunpack.c.l.s4 1934713408
        %v657 = vunpack.c.0.s8 %v656
        %v658 = vlaneseq
        %v659 = vshrl.u32 %v658, 7
        %v660 = vsub.s32 %v657, %v659
        %v661 = vrot.slane %v647, %v660
        %v662 = vcombine.low %v606, %v622
        %v663 = vcombine.high %v606, %v622
        %v665 = vunpack.c.l.s4 1934713408
        %v666 = vunpack.c.0.s8 %v665
        %v667 = vlaneseq
        %v668 = vshrl.u32 %v667, 7
        %v669 = vsub.s32 %v666, %v668
        %v670 = vrot.slane %v662, %v669
        %v672 = vunpack.c.l.s4 1934713408
        %v673 = vunpack.c.0.s8 %v672
        %v674 = vlaneseq
        %v675 = vshrl.u32 %v674, 7
        %v676 = vsub.s32 %v673, %v675
        %v677 = vrot.slane %v663, %v676
        %v678 = vcombine.low %v613, %v629
        %v679 = vcombine.high %v613, %v629
        %v681 = vunpack.c.l.s4 1934713408
        %v682 = vunpack.c.0.s8 %v681
        %v683 = vlaneseq
        %v684 = vshrl.u32 %v683, 7
        %v685 = vsub.s32 %v682, %v684
        %v686 = vrot.slane %v678, %v685
        %v688 = vunpack.c.l.s4 1934713408
        %v689 = vunpack.c.0.s8 %v688
        %v690 = vlaneseq
        %v691 = vshrl.u32 %v690, 7
        %v692 = vsub.s32 %v689, %v691
        %v693 = vrot.slane %v679, %v692
        %v694 = vcombine.low %v638, %v670
        %v695 = vcombine.high %v638, %v670
        %v696 = vcombine.low %v645, %v677
        %v697 = vcombine.high %v645, %v677
        %v698 = vcombine.low %v654, %v686
        %v699 = vcombine.high %v654, %v686
        %v700 = vcombine.low %v661, %v693
        %v701 = vcombine.high %v661, %v693
        %v702 = vld [vmem:[%s3] sm:$0xff]
        %703 = vrot.lane.b32.xlu0 %v543, 127
        %v704 = vpop.permute.xlu0 %703
        %705 = vrot.lane.b32.xlu0 %v546, 127
        %v706 = vpop.permute.xlu0 %705
        %707 = vrot.lane.b32.xlu0 %v549, 127
        %v708 = vpop.permute.xlu0 %707
        %709 = vrot.lane.b32.xlu0 %v552, 127
        %v710 = vpop.permute.xlu0 %709
        %711 = vrot.lane.b32.xlu0 %v555, 127
        %v712 = vpop.permute.xlu0 %711
        %713 = vrot.lane.b32.xlu0 %v558, 127
        %v714 = vpop.permute.xlu0 %713
        %715 = vrot.lane.b32.xlu0 %v561, 127
        %v716 = vpop.permute.xlu0 %715
        %717 = vrot.lane.b32.xlu0 %v564, 127
        %v718 = vpop.permute.xlu0 %717
        %v727 = vcombine.low %v704, %v708
        %v728 = vcombine.high %v704, %v708
        %v730 = vunpack.c.l.s4 1983009808
        %v731 = vunpack.c.0.s8 %v730
        %v732 = vlaneseq
        %v733 = vshrl.u32 %v732, 7
        %v734 = vsub.s32 %v731, %v733
        %v735 = vrot.slane %v727, %v734
        %v737 = vunpack.c.l.s4 1983009808
        %v738 = vunpack.c.0.s8 %v737
        %v739 = vlaneseq
        %v740 = vshrl.u32 %v739, 7
        %v741 = vsub.s32 %v738, %v740
        %v742 = vrot.slane %v728, %v741
        %v743 = vcombine.low %v706, %v710
        %v744 = vcombine.high %v706, %v710
        %v746 = vunpack.c.l.s4 1983009808
        %v747 = vunpack.c.0.s8 %v746
        %v748 = vlaneseq
        %v749 = vshrl.u32 %v748, 7
        %v750 = vsub.s32 %v747, %v749
        %v751 = vrot.slane %v743, %v750
        %v753 = vunpack.c.l.s4 1983009808
        %v754 = vunpack.c.0.s8 %v753
        %v755 = vlaneseq
        %v756 = vshrl.u32 %v755, 7
        %v757 = vsub.s32 %v754, %v756
        %v758 = vrot.slane %v744, %v757
        %v759 = vcombine.low %v712, %v716
        %v760 = vcombine.high %v712, %v716
        %v762 = vunpack.c.l.s4 1983009808
        %v763 = vunpack.c.0.s8 %v762
        %v764 = vlaneseq
        %v765 = vshrl.u32 %v764, 7
        %v766 = vsub.s32 %v763, %v765
        %v767 = vrot.slane %v759, %v766
        %v769 = vunpack.c.l.s4 1983009808
        %v770 = vunpack.c.0.s8 %v769
        %v771 = vlaneseq
        %v772 = vshrl.u32 %v771, 7
        %v773 = vsub.s32 %v770, %v772
        %v774 = vrot.slane %v760, %v773
        %v775 = vcombine.low %v714, %v718
        %v776 = vcombine.high %v714, %v718
        %v778 = vunpack.c.l.s4 1983009808
        %v779 = vunpack.c.0.s8 %v778
        %v780 = vlaneseq
        %v781 = vshrl.u32 %v780, 7
        %v782 = vsub.s32 %v779, %v781
        %v783 = vrot.slane %v775, %v782
        %v785 = vunpack.c.l.s4 1983009808
        %v786 = vunpack.c.0.s8 %v785
        %v787 = vlaneseq
        %v788 = vshrl.u32 %v787, 7
        %v789 = vsub.s32 %v786, %v788
        %v790 = vrot.slane %v776, %v789
        %v791 = vcombine.low %v735, %v751
        %v792 = vcombine.high %v735, %v751
        %v794 = vunpack.c.l.s4 1934713408
        %v795 = vunpack.c.0.s8 %v794
        %v796 = vlaneseq
        %v797 = vshrl.u32 %v796, 7
        %v798 = vsub.s32 %v795, %v797
        %v799 = vrot.slane %v791, %v798
        %v801 = vunpack.c.l.s4 1934713408
        %v802 = vunpack.c.0.s8 %v801
        %v803 = vlaneseq
        %v804 = vshrl.u32 %v803, 7
        %v805 = vsub.s32 %v802, %v804
        %v806 = vrot.slane %v792, %v805
        %v807 = vcombine.low %v742, %v758
        %v808 = vcombine.high %v742, %v758
        %v810 = vunpack.c.l.s4 1934713408
        %v811 = vunpack.c.0.s8 %v810
        %v812 = vlaneseq
        %v813 = vshrl.u32 %v812, 7
        %v814 = vsub.s32 %v811, %v813
        %v815 = vrot.slane %v807, %v814
        %v817 = vunpack.c.l.s4 1934713408
        %v818 = vunpack.c.0.s8 %v817
        %v819 = vlaneseq
        %v820 = vshrl.u32 %v819, 7
        %v821 = vsub.s32 %v818, %v820
        %v822 = vrot.slane %v808, %v821
        %v823 = vcombine.low %v767, %v783
        %v824 = vcombine.high %v767, %v783
        %v826 = vunpack.c.l.s4 1934713408
        %v827 = vunpack.c.0.s8 %v826
        %v828 = vlaneseq
        %v829 = vshrl.u32 %v828, 7
        %v830 = vsub.s32 %v827, %v829
        %v831 = vrot.slane %v823, %v830
        %v833 = vunpack.c.l.s4 1934713408
        %v834 = vunpack.c.0.s8 %v833
        %v835 = vlaneseq
        %v836 = vshrl.u32 %v835, 7
        %v837 = vsub.s32 %v834, %v836
        %v838 = vrot.slane %v824, %v837
        %v839 = vcombine.low %v774, %v790
        %v840 = vcombine.high %v774, %v790
        %v842 = vunpack.c.l.s4 1934713408
        %v843 = vunpack.c.0.s8 %v842
        %v844 = vlaneseq
        %v845 = vshrl.u32 %v844, 7
        %v846 = vsub.s32 %v843, %v845
        %v847 = vrot.slane %v839, %v846
        %v849 = vunpack.c.l.s4 1934713408
        %v850 = vunpack.c.0.s8 %v849
        %v851 = vlaneseq
        %v852 = vshrl.u32 %v851, 7
        %v853 = vsub.s32 %v850, %v852
        %v854 = vrot.slane %v840, %v853
        %v855 = vcombine.low %v799, %v831
        %v856 = vcombine.high %v799, %v831
        %v857 = vcombine.low %v806, %v838
        %v858 = vcombine.high %v806, %v838
        %v859 = vcombine.low %v815, %v847
        %v860 = vcombine.high %v815, %v847
        %v861 = vcombine.low %v822, %v854
        %v862 = vcombine.high %v822, %v854
        %s863 = scalar_lea.vmem %s3, 8
        %v864 = vld [vmem:[%s863] sm:$0xff]
        %873 = vset.pattern.permute.xlu0 0
        %874 = vperm.xlu0 %873, %v855
        %v875 = vpop.permute.xlu0 %874
        %876 = vset.pattern.permute.xlu0 0
        %877 = vperm.xlu0 %876, %v856
        %v878 = vpop.permute.xlu0 %877
        %879 = vset.pattern.permute.xlu0 0
        %880 = vperm.xlu0 %879, %v857
        %v881 = vpop.permute.xlu0 %880
        %882 = vset.pattern.permute.xlu0 0
        %883 = vperm.xlu0 %882, %v858
        %v884 = vpop.permute.xlu0 %883
        %885 = vset.pattern.permute.xlu0 0
        %886 = vperm.xlu0 %885, %v859
        %v887 = vpop.permute.xlu0 %886
        %888 = vset.pattern.permute.xlu0 0
        %889 = vperm.xlu0 %888, %v860
        %v890 = vpop.permute.xlu0 %889
        %891 = vset.pattern.permute.xlu0 0
        %892 = vperm.xlu0 %891, %v861
        %v893 = vpop.permute.xlu0 %892
        %894 = vset.pattern.permute.xlu0 0
        %895 = vperm.xlu0 %894, %v862
        %v896 = vpop.permute.xlu0 %895
        %v897 = vlaneseq
        %v898 = vand.u32 %v897, 127
        %v899 = vlaneseq
        %v900 = vshrl.u32 %v899, 7
        %v901 = vsub.s32 %v898, %v900
        %v902 = vrot.slane %v875, %v901
        %v903 = vlaneseq
        %v904 = vshrl.u32 %v903, 7
        %v905 = vsub.s32 %v898, %v904
        %v906 = vrot.slane %v878, %v905
        %v907 = vlaneseq
        %v908 = vshrl.u32 %v907, 7
        %v909 = vsub.s32 %v898, %v908
        %v910 = vrot.slane %v881, %v909
        %v911 = vlaneseq
        %v912 = vshrl.u32 %v911, 7
        %v913 = vsub.s32 %v898, %v912
        %v914 = vrot.slane %v884, %v913
        %v915 = vlaneseq
        %v916 = vshrl.u32 %v915, 7
        %v917 = vsub.s32 %v898, %v916
        %v918 = vrot.slane %v887, %v917
        %v919 = vlaneseq
        %v920 = vshrl.u32 %v919, 7
        %v921 = vsub.s32 %v898, %v920
        %v922 = vrot.slane %v890, %v921
        %v923 = vlaneseq
        %v924 = vshrl.u32 %v923, 7
        %v925 = vsub.s32 %v898, %v924
        %v926 = vrot.slane %v893, %v925
        %v927 = vlaneseq
        %v928 = vshrl.u32 %v927, 7
        %v929 = vsub.s32 %v898, %v928
        %v930 = vrot.slane %v896, %v929
        %vm931 = vcmask 1041409
        %v932 = vsel %vm931, %v906, %v902
        %vm933 = vcmask 1042434
        %v934 = vsel %vm933, %v910, %v932
        %vm935 = vcmask 1043459
        %v936 = vsel %vm935, %v914, %v934
        %vm937 = vcmask 1044484
        %v938 = vsel %vm937, %v918, %v936
        %vm939 = vcmask 1045509
        %v940 = vsel %vm939, %v922, %v938
        %vm941 = vcmask 1046534
        %v942 = vsel %vm941, %v926, %v940
        %vm943 = vcmask 1047559
        %v944 = vsel %vm943, %v930, %v942
        %vm946 = vcmask 64512
        %v948 = vsel %vm946, %v864, 0
        %950 = vmatprep.subr.mxu0 0.0
        %951 = vmatpush1.msra.mxu0 0.0
        %952 = vmatprep.subr.mxu0 0.0
        %953 = vmatpush1.msra.mxu0 0.0
        %954 = vmatprep.subr.mxu0 0.0
        %955 = vmatpush1.msra.mxu0 0.0
        %956 = vmatprep.subr.mxu0 0.0
        %957 = vmatpush1.msra.mxu0 0.0
        %958 = vmatprep.subr.mxu0 0.0
        %959 = vmatpush1.msra.mxu0 0.0
        %960 = vmatprep.subr.mxu0 0.0
        %961 = vmatpush1.msra.mxu0 0.0
        %962 = vmatprep.subr.mxu0 0.0
        %963 = vmatpush1.msra.mxu0 0.0
        %964 = vmatprep.subr.mxu0 0.0
        %965 = vmatpush1.msra.mxu0 0.0
        %966 = vmatprep.subr.mxu0 0.0
        %967 = vmatpush1.msra.mxu0 0.0
        %968 = vmatprep.subr.mxu0 0.0
        %969 = vmatpush1.msra.mxu0 0.0
        %970 = vmatprep.subr.mxu0 0.0
        %971 = vmatpush1.msra.mxu0 0.0
        %972 = vmatprep.subr.mxu0 0.0
        %973 = vmatpush1.msra.mxu0 0.0
        %974 = vmatprep.subr.mxu0 0.0
        %975 = vmatpush1.msra.mxu0 0.0
        %976 = vmatprep.subr.mxu0 0.0
        %977 = vmatpush1.msra.mxu0 0.0
        %978 = vmatprep.subr.mxu0 0.0
        %979 = vmatpush1.msra.mxu0 0.0
        %980 = vmatprep.subr.mxu0 0.0
        %981 = vmatpush1.msra.mxu0 %v944
        %982 = vmatprep.subr.mxu0 0.0
        %983 = vmatpush2.msra.mxu0 0.0
        %984 = vmatprep.subr.mxu0 0.0
        %985 = vmatpush2.msra.mxu0 0.0
        %986 = vmatprep.subr.mxu0 0.0
        %987 = vmatpush2.msra.mxu0 0.0
        %988 = vmatprep.subr.mxu0 0.0
        %989 = vmatpush2.msra.mxu0 0.0
        %990 = vmatprep.subr.mxu0 0.0
        %991 = vmatpush2.msra.mxu0 0.0
        %992 = vmatprep.subr.mxu0 0.0
        %993 = vmatpush2.msra.mxu0 0.0
        %994 = vmatprep.subr.mxu0 0.0
        %995 = vmatpush2.msra.mxu0 0.0
        %996 = vmatprep.subr.mxu0 0.0
        %997 = vmatpush2.msra.mxu0 0.0
        %998 = vmatprep.subr.mxu0 0.0
        %999 = vmatpush2.msra.mxu0 0.0
        %1000 = vmatprep.subr.mxu0 0.0
        %1001 = vmatpush2.msra.mxu0 0.0
        %1002 = vmatprep.subr.mxu0 0.0
        %1003 = vmatpush2.msra.mxu0 0.0
        %1004 = vmatprep.subr.mxu0 0.0
        %1005 = vmatpush2.msra.mxu0 0.0
        %1006 = vmatprep.subr.mxu0 0.0
        %1007 = vmatpush2.msra.mxu0 0.0
        %1008 = vmatprep.subr.mxu0 0.0
        %1009 = vmatpush2.msra.mxu0 0.0
        %1010 = vmatprep.subr.mxu0 0.0
        %1011 = vmatpush2.msra.mxu0 0.0
        %1012 = vmatprep.subr.mxu0 0.0
        %1013 = vmatpush2.msra.mxu0 0.0
        %1014 = vmatprep.mubr.f32.mxu0 0.0
        %1015 = vmatmul.mubr.f32.gmra.mxu0 %v948
        %v1016 = vpop.f32.mrf.mxu0
        %v1017 = vadd.f32 0.0, %v1016
        %v1018 = vpop.f32.mrf.mxu0
        %1019 = vdwg.mxu0
        %1028 = vset.pattern.permute.xlu0 0
        %1029 = vperm.xlu0 %1028, %v694
        %v1030 = vpop.permute.xlu0 %1029
        %1031 = vset.pattern.permute.xlu0 0
        %1032 = vperm.xlu0 %1031, %v695
        %v1033 = vpop.permute.xlu0 %1032
        %1034 = vset.pattern.permute.xlu0 0
        %1035 = vperm.xlu0 %1034, %v696
        %v1036 = vpop.permute.xlu0 %1035
        %1037 = vset.pattern.permute.xlu0 0
        %1038 = vperm.xlu0 %1037, %v697
        %v1039 = vpop.permute.xlu0 %1038
        %1040 = vset.pattern.permute.xlu0 0
        %1041 = vperm.xlu0 %1040, %v698
        %v1042 = vpop.permute.xlu0 %1041
        %1043 = vset.pattern.permute.xlu0 0
        %1044 = vperm.xlu0 %1043, %v699
        %v1045 = vpop.permute.xlu0 %1044
        %1046 = vset.pattern.permute.xlu0 0
        %1047 = vperm.xlu0 %1046, %v700
        %v1048 = vpop.permute.xlu0 %1047
        %1049 = vset.pattern.permute.xlu0 0
        %1050 = vperm.xlu0 %1049, %v701
        %v1051 = vpop.permute.xlu0 %1050
        %v1052 = vlaneseq
        %v1053 = vshrl.u32 %v1052, 7
        %v1054 = vsub.s32 %v898, %v1053
        %v1055 = vrot.slane %v1030, %v1054
        %v1056 = vlaneseq
        %v1057 = vshrl.u32 %v1056, 7
        %v1058 = vsub.s32 %v898, %v1057
        %v1059 = vrot.slane %v1033, %v1058
        %v1060 = vlaneseq
        %v1061 = vshrl.u32 %v1060, 7
        %v1062 = vsub.s32 %v898, %v1061
        %v1063 = vrot.slane %v1036, %v1062
        %v1064 = vlaneseq
        %v1065 = vshrl.u32 %v1064, 7
        %v1066 = vsub.s32 %v898, %v1065
        %v1067 = vrot.slane %v1039, %v1066
        %v1068 = vlaneseq
        %v1069 = vshrl.u32 %v1068, 7
        %v1070 = vsub.s32 %v898, %v1069
        %v1071 = vrot.slane %v1042, %v1070
        %v1072 = vlaneseq
        %v1073 = vshrl.u32 %v1072, 7
        %v1074 = vsub.s32 %v898, %v1073
        %v1075 = vrot.slane %v1045, %v1074
        %v1076 = vlaneseq
        %v1077 = vshrl.u32 %v1076, 7
        %v1078 = vsub.s32 %v898, %v1077
        %v1079 = vrot.slane %v1048, %v1078
        %v1080 = vlaneseq
        %v1081 = vshrl.u32 %v1080, 7
        %v1082 = vsub.s32 %v898, %v1081
        %v1083 = vrot.slane %v1051, %v1082
        %v1084 = vsel %vm931, %v1059, %v1055
        %v1085 = vsel %vm933, %v1063, %v1084
        %v1086 = vsel %vm935, %v1067, %v1085
        %v1087 = vsel %vm937, %v1071, %v1086
        %v1088 = vsel %vm939, %v1075, %v1087
        %v1089 = vsel %vm941, %v1079, %v1088
        %v1090 = vsel %vm943, %v1083, %v1089
        %v1093 = vsel %vm946, %v702, 0
        %1095 = vmatprep.subr.mxu0 0.0
        %1096 = vmatpush1.msra.mxu0 0.0
        %1097 = vmatprep.subr.mxu0 0.0
        %1098 = vmatpush1.msra.mxu0 0.0
        %1099 = vmatprep.subr.mxu0 0.0
        %1100 = vmatpush1.msra.mxu0 0.0
        %1101 = vmatprep.subr.mxu0 0.0
        %1102 = vmatpush1.msra.mxu0 0.0
        %1103 = vmatprep.subr.mxu0 0.0
        %1104 = vmatpush1.msra.mxu0 0.0
        %1105 = vmatprep.subr.mxu0 0.0
        %1106 = vmatpush1.msra.mxu0 0.0
        %1107 = vmatprep.subr.mxu0 0.0
        %1108 = vmatpush1.msra.mxu0 0.0
        %1109 = vmatprep.subr.mxu0 0.0
        %1110 = vmatpush1.msra.mxu0 0.0
        %1111 = vmatprep.subr.mxu0 0.0
        %1112 = vmatpush1.msra.mxu0 0.0
        %1113 = vmatprep.subr.mxu0 0.0
        %1114 = vmatpush1.msra.mxu0 0.0
        %1115 = vmatprep.subr.mxu0 0.0
        %1116 = vmatpush1.msra.mxu0 0.0
        %1117 = vmatprep.subr.mxu0 0.0
        %1118 = vmatpush1.msra.mxu0 0.0
        %1119 = vmatprep.subr.mxu0 0.0
        %1120 = vmatpush1.msra.mxu0 0.0
        %1121 = vmatprep.subr.mxu0 0.0
        %1122 = vmatpush1.msra.mxu0 0.0
        %1123 = vmatprep.subr.mxu0 0.0
        %1124 = vmatpush1.msra.mxu0 0.0
        %1125 = vmatprep.subr.mxu0 0.0
        %1126 = vmatpush1.msra.mxu0 %v1090
        %1127 = vmatprep.subr.mxu0 0.0
        %1128 = vmatpush2.msra.mxu0 0.0
        %1129 = vmatprep.subr.mxu0 0.0
        %1130 = vmatpush2.msra.mxu0 0.0
        %1131 = vmatprep.subr.mxu0 0.0
        %1132 = vmatpush2.msra.mxu0 0.0
        %1133 = vmatprep.subr.mxu0 0.0
        %1134 = vmatpush2.msra.mxu0 0.0
        %1135 = vmatprep.subr.mxu0 0.0
        %1136 = vmatpush2.msra.mxu0 0.0
        %1137 = vmatprep.subr.mxu0 0.0
        %1138 = vmatpush2.msra.mxu0 0.0
        %1139 = vmatprep.subr.mxu0 0.0
        %1140 = vmatpush2.msra.mxu0 0.0
        %1141 = vmatprep.subr.mxu0 0.0
        %1142 = vmatpush2.msra.mxu0 0.0
        %1143 = vmatprep.subr.mxu0 0.0
        %1144 = vmatpush2.msra.mxu0 0.0
        %1145 = vmatprep.subr.mxu0 0.0
        %1146 = vmatpush2.msra.mxu0 0.0
        %1147 = vmatprep.subr.mxu0 0.0
        %1148 = vmatpush2.msra.mxu0 0.0
        %1149 = vmatprep.subr.mxu0 0.0
        %1150 = vmatpush2.msra.mxu0 0.0
        %1151 = vmatprep.subr.mxu0 0.0
        %1152 = vmatpush2.msra.mxu0 0.0
        %1153 = vmatprep.subr.mxu0 0.0
        %1154 = vmatpush2.msra.mxu0 0.0
        %1155 = vmatprep.subr.mxu0 0.0
        %1156 = vmatpush2.msra.mxu0 0.0
        %1157 = vmatprep.subr.mxu0 0.0
        %1158 = vmatpush2.msra.mxu0 0.0
        %1159 = vmatprep.mubr.f32.mxu0 0.0
        %1160 = vmatmul.mubr.f32.gmra.mxu0 %v1093
        %v1161 = vpop.f32.mrf.mxu0
        %v1162 = vadd.f32 %v1017, %v1161
        %v1163 = vpop.f32.mrf.mxu0
        %1164 = vdwg.mxu0
        %v1165 = vld [vmem:[#allocation3] sm:$0xff]
        %1167 = vrot.lane.b32.xlu0 %v1165, 126
        %v1168 = vpop.permute.xlu0 %1167
        %1169 = vrot.lane.b32.xlu0 %v1165, 124
        %v1170 = vpop.permute.xlu0 %1169
        %1171 = vrot.lane.b32.xlu0 %v1165, 122
        %v1172 = vpop.permute.xlu0 %1171
        %1173 = vrot.lane.b32.xlu0 %v1165, 120
        %v1174 = vpop.permute.xlu0 %1173
        %1175 = vrot.lane.b32.xlu0 %v1165, 118
        %v1176 = vpop.permute.xlu0 %1175
        %1177 = vrot.lane.b32.xlu0 %v1165, 116
        %v1178 = vpop.permute.xlu0 %1177
        %1179 = vrot.lane.b32.xlu0 %v1165, 114
        %v1180 = vpop.permute.xlu0 %1179
        %1181 = vrot.lane.b32.xlu0 %v1168, 126
        %v1182 = vpop.permute.xlu0 %1181
        %1183 = vrot.lane.b32.xlu0 %v1170, 126
        %v1184 = vpop.permute.xlu0 %1183
        %1185 = vrot.lane.b32.xlu0 %v1172, 126
        %v1186 = vpop.permute.xlu0 %1185
        %1187 = vrot.lane.b32.xlu0 %v1174, 126
        %v1188 = vpop.permute.xlu0 %1187
        %1189 = vrot.lane.b32.xlu0 %v1176, 126
        %v1190 = vpop.permute.xlu0 %1189
        %1191 = vrot.lane.b32.xlu0 %v1178, 126
        %v1192 = vpop.permute.xlu0 %1191
        %1193 = vrot.lane.b32.xlu0 %v1180, 126
        %v1194 = vpop.permute.xlu0 %1193
        %v1203 = vcombine.low %v1168, %v1184
        %v1204 = vcombine.high %v1168, %v1184
        %v1206 = vunpack.c.l.s4 1983009808
        %v1207 = vunpack.c.0.s8 %v1206
        %v1208 = vlaneseq
        %v1209 = vshrl.u32 %v1208, 7
        %v1210 = vsub.s32 %v1207, %v1209
        %v1211 = vrot.slane %v1203, %v1210
        %v1213 = vunpack.c.l.s4 1983009808
        %v1214 = vunpack.c.0.s8 %v1213
        %v1215 = vlaneseq
        %v1216 = vshrl.u32 %v1215, 7
        %v1217 = vsub.s32 %v1214, %v1216
        %v1218 = vrot.slane %v1204, %v1217
        %v1219 = vcombine.low %v1182, %v1186
        %v1220 = vcombine.high %v1182, %v1186
        %v1222 = vunpack.c.l.s4 1983009808
        %v1223 = vunpack.c.0.s8 %v1222
        %v1224 = vlaneseq
        %v1225 = vshrl.u32 %v1224, 7
        %v1226 = vsub.s32 %v1223, %v1225
        %v1227 = vrot.slane %v1219, %v1226
        %v1229 = vunpack.c.l.s4 1983009808
        %v1230 = vunpack.c.0.s8 %v1229
        %v1231 = vlaneseq
        %v1232 = vshrl.u32 %v1231, 7
        %v1233 = vsub.s32 %v1230, %v1232
        %v1234 = vrot.slane %v1220, %v1233
        %v1235 = vcombine.low %v1188, %v1192
        %v1236 = vcombine.high %v1188, %v1192
        %v1238 = vunpack.c.l.s4 1983009808
        %v1239 = vunpack.c.0.s8 %v1238
        %v1240 = vlaneseq
        %v1241 = vshrl.u32 %v1240, 7
        %v1242 = vsub.s32 %v1239, %v1241
        %v1243 = vrot.slane %v1235, %v1242
        %v1245 = vunpack.c.l.s4 1983009808
        %v1246 = vunpack.c.0.s8 %v1245
        %v1247 = vlaneseq
        %v1248 = vshrl.u32 %v1247, 7
        %v1249 = vsub.s32 %v1246, %v1248
        %v1250 = vrot.slane %v1236, %v1249
        %v1251 = vcombine.low %v1190, %v1194
        %v1252 = vcombine.high %v1190, %v1194
        %v1254 = vunpack.c.l.s4 1983009808
        %v1255 = vunpack.c.0.s8 %v1254
        %v1256 = vlaneseq
        %v1257 = vshrl.u32 %v1256, 7
        %v1258 = vsub.s32 %v1255, %v1257
        %v1259 = vrot.slane %v1251, %v1258
        %v1261 = vunpack.c.l.s4 1983009808
        %v1262 = vunpack.c.0.s8 %v1261
        %v1263 = vlaneseq
        %v1264 = vshrl.u32 %v1263, 7
        %v1265 = vsub.s32 %v1262, %v1264
        %v1266 = vrot.slane %v1252, %v1265
        %v1267 = vcombine.low %v1211, %v1227
        %v1268 = vcombine.high %v1211, %v1227
        %v1270 = vunpack.c.l.s4 1934713408
        %v1271 = vunpack.c.0.s8 %v1270
        %v1272 = vlaneseq
        %v1273 = vshrl.u32 %v1272, 7
        %v1274 = vsub.s32 %v1271, %v1273
        %v1275 = vrot.slane %v1267, %v1274
        %v1277 = vunpack.c.l.s4 1934713408
        %v1278 = vunpack.c.0.s8 %v1277
        %v1279 = vlaneseq
        %v1280 = vshrl.u32 %v1279, 7
        %v1281 = vsub.s32 %v1278, %v1280
        %v1282 = vrot.slane %v1268, %v1281
        %v1283 = vcombine.low %v1218, %v1234
        %v1284 = vcombine.high %v1218, %v1234
        %v1286 = vunpack.c.l.s4 1934713408
        %v1287 = vunpack.c.0.s8 %v1286
        %v1288 = vlaneseq
        %v1289 = vshrl.u32 %v1288, 7
        %v1290 = vsub.s32 %v1287, %v1289
        %v1291 = vrot.slane %v1283, %v1290
        %v1293 = vunpack.c.l.s4 1934713408
        %v1294 = vunpack.c.0.s8 %v1293
        %v1295 = vlaneseq
        %v1296 = vshrl.u32 %v1295, 7
        %v1297 = vsub.s32 %v1294, %v1296
        %v1298 = vrot.slane %v1284, %v1297
        %v1299 = vcombine.low %v1243, %v1259
        %v1300 = vcombine.high %v1243, %v1259
        %v1302 = vunpack.c.l.s4 1934713408
        %v1303 = vunpack.c.0.s8 %v1302
        %v1304 = vlaneseq
        %v1305 = vshrl.u32 %v1304, 7
        %v1306 = vsub.s32 %v1303, %v1305
        %v1307 = vrot.slane %v1299, %v1306
        %v1309 = vunpack.c.l.s4 1934713408
        %v1310 = vunpack.c.0.s8 %v1309
        %v1311 = vlaneseq
        %v1312 = vshrl.u32 %v1311, 7
        %v1313 = vsub.s32 %v1310, %v1312
        %v1314 = vrot.slane %v1300, %v1313
        %v1315 = vcombine.low %v1250, %v1266
        %v1316 = vcombine.high %v1250, %v1266
        %v1318 = vunpack.c.l.s4 1934713408
        %v1319 = vunpack.c.0.s8 %v1318
        %v1320 = vlaneseq
        %v1321 = vshrl.u32 %v1320, 7
        %v1322 = vsub.s32 %v1319, %v1321
        %v1323 = vrot.slane %v1315, %v1322
        %v1325 = vunpack.c.l.s4 1934713408
        %v1326 = vunpack.c.0.s8 %v1325
        %v1327 = vlaneseq
        %v1328 = vshrl.u32 %v1327, 7
        %v1329 = vsub.s32 %v1326, %v1328
        %v1330 = vrot.slane %v1316, %v1329
        %v1331 = vcombine.low %v1275, %v1307
        %v1332 = vcombine.high %v1275, %v1307
        %v1333 = vcombine.low %v1282, %v1314
        %v1334 = vcombine.high %v1282, %v1314
        %v1335 = vcombine.low %v1291, %v1323
        %v1336 = vcombine.high %v1291, %v1323
        %v1337 = vcombine.low %v1298, %v1330
        %v1338 = vcombine.high %v1298, %v1330
        %s1339 = scalar_lea.vmem %s3, 16
        %v1340 = vld [vmem:[%s1339] sm:$0xff]
        %1349 = vset.pattern.permute.xlu0 0
        %1350 = vperm.xlu0 %1349, %v1331
        %v1351 = vpop.permute.xlu0 %1350
        %1352 = vset.pattern.permute.xlu0 0
        %1353 = vperm.xlu0 %1352, %v1332
        %v1354 = vpop.permute.xlu0 %1353
        %1355 = vset.pattern.permute.xlu0 0
        %1356 = vperm.xlu0 %1355, %v1333
        %v1357 = vpop.permute.xlu0 %1356
        %1358 = vset.pattern.permute.xlu0 0
        %1359 = vperm.xlu0 %1358, %v1334
        %v1360 = vpop.permute.xlu0 %1359
        %1361 = vset.pattern.permute.xlu0 0
        %1362 = vperm.xlu0 %1361, %v1335
        %v1363 = vpop.permute.xlu0 %1362
        %1364 = vset.pattern.permute.xlu0 0
        %1365 = vperm.xlu0 %1364, %v1336
        %v1366 = vpop.permute.xlu0 %1365
        %1367 = vset.pattern.permute.xlu0 0
        %1368 = vperm.xlu0 %1367, %v1337
        %v1369 = vpop.permute.xlu0 %1368
        %1370 = vset.pattern.permute.xlu0 0
        %1371 = vperm.xlu0 %1370, %v1338
        %v1372 = vpop.permute.xlu0 %1371
        %v1373 = vlaneseq
        %v1374 = vshrl.u32 %v1373, 7
        %v1375 = vsub.s32 %v898, %v1374
        %v1376 = vrot.slane %v1351, %v1375
        %v1377 = vlaneseq
        %v1378 = vshrl.u32 %v1377, 7
        %v1379 = vsub.s32 %v898, %v1378
        %v1380 = vrot.slane %v1354, %v1379
        %v1381 = vlaneseq
        %v1382 = vshrl.u32 %v1381, 7
        %v1383 = vsub.s32 %v898, %v1382
        %v1384 = vrot.slane %v1357, %v1383
        %v1385 = vlaneseq
        %v1386 = vshrl.u32 %v1385, 7
        %v1387 = vsub.s32 %v898, %v1386
        %v1388 = vrot.slane %v1360, %v1387
        %v1389 = vlaneseq
        %v1390 = vshrl.u32 %v1389, 7
        %v1391 = vsub.s32 %v898, %v1390
        %v1392 = vrot.slane %v1363, %v1391
        %v1393 = vlaneseq
        %v1394 = vshrl.u32 %v1393, 7
        %v1395 = vsub.s32 %v898, %v1394
        %v1396 = vrot.slane %v1366, %v1395
        %v1397 = vlaneseq
        %v1398 = vshrl.u32 %v1397, 7
        %v1399 = vsub.s32 %v898, %v1398
        %v1400 = vrot.slane %v1369, %v1399
        %v1401 = vlaneseq
        %v1402 = vshrl.u32 %v1401, 7
        %v1403 = vsub.s32 %v898, %v1402
        %v1404 = vrot.slane %v1372, %v1403
        %v1405 = vsel %vm931, %v1380, %v1376
        %v1406 = vsel %vm933, %v1384, %v1405
        %v1407 = vsel %vm935, %v1388, %v1406
        %v1408 = vsel %vm937, %v1392, %v1407
        %v1409 = vsel %vm939, %v1396, %v1408
        %v1410 = vsel %vm941, %v1400, %v1409
        %v1411 = vsel %vm943, %v1404, %v1410
        %v1414 = vsel %vm946, %v1340, 0
        %1416 = vmatprep.subr.mxu0 0.0
        %1417 = vmatpush1.msra.mxu0 0.0
        %1418 = vmatprep.subr.mxu0 0.0
        %1419 = vmatpush1.msra.mxu0 0.0
        %1420 = vmatprep.subr.mxu0 0.0
        %1421 = vmatpush1.msra.mxu0 0.0
        %1422 = vmatprep.subr.mxu0 0.0
        %1423 = vmatpush1.msra.mxu0 0.0
        %1424 = vmatprep.subr.mxu0 0.0
        %1425 = vmatpush1.msra.mxu0 0.0
        %1426 = vmatprep.subr.mxu0 0.0
        %1427 = vmatpush1.msra.mxu0 0.0
        %1428 = vmatprep.subr.mxu0 0.0
        %1429 = vmatpush1.msra.mxu0 0.0
        %1430 = vmatprep.subr.mxu0 0.0
        %1431 = vmatpush1.msra.mxu0 0.0
        %1432 = vmatprep.subr.mxu0 0.0
        %1433 = vmatpush1.msra.mxu0 0.0
        %1434 = vmatprep.subr.mxu0 0.0
        %1435 = vmatpush1.msra.mxu0 0.0
        %1436 = vmatprep.subr.mxu0 0.0
        %1437 = vmatpush1.msra.mxu0 0.0
        %1438 = vmatprep.subr.mxu0 0.0
        %1439 = vmatpush1.msra.mxu0 0.0
        %1440 = vmatprep.subr.mxu0 0.0
        %1441 = vmatpush1.msra.mxu0 0.0
        %1442 = vmatprep.subr.mxu0 0.0
        %1443 = vmatpush1.msra.mxu0 0.0
        %1444 = vmatprep.subr.mxu0 0.0
        %1445 = vmatpush1.msra.mxu0 0.0
        %1446 = vmatprep.subr.mxu0 0.0
        %1447 = vmatpush1.msra.mxu0 %v1411
        %1448 = vmatprep.subr.mxu0 0.0
        %1449 = vmatpush2.msra.mxu0 0.0
        %1450 = vmatprep.subr.mxu0 0.0
        %1451 = vmatpush2.msra.mxu0 0.0
        %1452 = vmatprep.subr.mxu0 0.0
        %1453 = vmatpush2.msra.mxu0 0.0
        %1454 = vmatprep.subr.mxu0 0.0
        %1455 = vmatpush2.msra.mxu0 0.0
        %1456 = vmatprep.subr.mxu0 0.0
        %1457 = vmatpush2.msra.mxu0 0.0
        %1458 = vmatprep.subr.mxu0 0.0
        %1459 = vmatpush2.msra.mxu0 0.0
        %1460 = vmatprep.subr.mxu0 0.0
        %1461 = vmatpush2.msra.mxu0 0.0
        %1462 = vmatprep.subr.mxu0 0.0
        %1463 = vmatpush2.msra.mxu0 0.0
        %1464 = vmatprep.subr.mxu0 0.0
        %1465 = vmatpush2.msra.mxu0 0.0
        %1466 = vmatprep.subr.mxu0 0.0
        %1467 = vmatpush2.msra.mxu0 0.0
        %1468 = vmatprep.subr.mxu0 0.0
        %1469 = vmatpush2.msra.mxu0 0.0
        %1470 = vmatprep.subr.mxu0 0.0
        %1471 = vmatpush2.msra.mxu0 0.0
        %1472 = vmatprep.subr.mxu0 0.0
        %1473 = vmatpush2.msra.mxu0 0.0
        %1474 = vmatprep.subr.mxu0 0.0
        %1475 = vmatpush2.msra.mxu0 0.0
        %1476 = vmatprep.subr.mxu0 0.0
        %1477 = vmatpush2.msra.mxu0 0.0
        %1478 = vmatprep.subr.mxu0 0.0
        %1479 = vmatpush2.msra.mxu0 0.0
        %1480 = vmatprep.mubr.f32.mxu0 0.0
        %1481 = vmatmul.mubr.f32.gmra.mxu0 %v1414
        %v1482 = vpop.f32.mrf.mxu0
        %v1483 = vadd.f32 0.0, %v1482
        %v1484 = vpop.f32.mrf.mxu0
        %1485 = vdwg.mxu0
        %v1486 = vadd.f32 %v1162, %v1483
        %v1487 = vld [vmem:[%s4] sm:$0xff]
        %1489 = vset.pattern.permute.xlu0 0
        %1490 = vperm.xlu0 %1489, %v1487
        %v1491 = vpop.permute.xlu0 %1490
        %v1493 = vadd.f32 %v1486, %v1491
        %v1494 = vld [vmem:[#allocation2] sm:$0xf]
        %1496 = vrot.lane.b32.xlu0 %v1494, 126
        %v1497 = vpop.permute.xlu0 %1496
        %1498 = vrot.lane.b32.xlu0 %v1494, 124
        %v1499 = vpop.permute.xlu0 %1498
        %1500 = vrot.lane.b32.xlu0 %v1494, 122
        %v1501 = vpop.permute.xlu0 %1500
        %1502 = vrot.lane.b32.xlu0 %v1494, 120
        %v1503 = vpop.permute.xlu0 %1502
        %1504 = vrot.lane.b32.xlu0 %v1494, 118
        %v1505 = vpop.permute.xlu0 %1504
        %1506 = vrot.lane.b32.xlu0 %v1494, 116
        %v1507 = vpop.permute.xlu0 %1506
        %1508 = vrot.lane.b32.xlu0 %v1494, 114
        %v1509 = vpop.permute.xlu0 %1508
        %1510 = vrot.lane.b32.xlu0 %v1494, 127
        %v1511 = vpop.permute.xlu0 %1510
        %1512 = vrot.lane.b32.xlu0 %v1497, 127
        %v1513 = vpop.permute.xlu0 %1512
        %1514 = vrot.lane.b32.xlu0 %v1499, 127
        %v1515 = vpop.permute.xlu0 %1514
        %1516 = vrot.lane.b32.xlu0 %v1501, 127
        %v1517 = vpop.permute.xlu0 %1516
        %1518 = vrot.lane.b32.xlu0 %v1503, 127
        %v1519 = vpop.permute.xlu0 %1518
        %1520 = vrot.lane.b32.xlu0 %v1505, 127
        %v1521 = vpop.permute.xlu0 %1520
        %1522 = vrot.lane.b32.xlu0 %v1507, 127
        %v1523 = vpop.permute.xlu0 %1522
        %1524 = vrot.lane.b32.xlu0 %v1509, 127
        %v1525 = vpop.permute.xlu0 %1524
        %v1534 = vcombine.low %v1511, %v1515
        %v1536 = vunpack.c.l.s4 1983009808
        %v1537 = vunpack.c.0.s8 %v1536
        %v1538 = vlaneseq
        %v1539 = vshrl.u32 %v1538, 7
        %v1540 = vsub.s32 %v1537, %v1539
        %v1541 = vrot.slane %v1534, %v1540
        %v1542 = vcombine.low %v1513, %v1517
        %v1544 = vunpack.c.l.s4 1983009808
        %v1545 = vunpack.c.0.s8 %v1544
        %v1546 = vlaneseq
        %v1547 = vshrl.u32 %v1546, 7
        %v1548 = vsub.s32 %v1545, %v1547
        %v1549 = vrot.slane %v1542, %v1548
        %v1550 = vcombine.low %v1519, %v1523
        %v1552 = vunpack.c.l.s4 1983009808
        %v1553 = vunpack.c.0.s8 %v1552
        %v1554 = vlaneseq
        %v1555 = vshrl.u32 %v1554, 7
        %v1556 = vsub.s32 %v1553, %v1555
        %v1557 = vrot.slane %v1550, %v1556
        %v1558 = vcombine.low %v1521, %v1525
        %v1560 = vunpack.c.l.s4 1983009808
        %v1561 = vunpack.c.0.s8 %v1560
        %v1562 = vlaneseq
        %v1563 = vshrl.u32 %v1562, 7
        %v1564 = vsub.s32 %v1561, %v1563
        %v1565 = vrot.slane %v1558, %v1564
        %v1566 = vcombine.low %v1541, %v1549
        %v1567 = vcombine.high %v1541, %v1549
        %v1569 = vunpack.c.l.s4 1934713408
        %v1570 = vunpack.c.0.s8 %v1569
        %v1571 = vlaneseq
        %v1572 = vshrl.u32 %v1571, 7
        %v1573 = vsub.s32 %v1570, %v1572
        %v1574 = vrot.slane %v1566, %v1573
        %v1576 = vunpack.c.l.s4 1934713408
        %v1577 = vunpack.c.0.s8 %v1576
        %v1578 = vlaneseq
        %v1579 = vshrl.u32 %v1578, 7
        %v1580 = vsub.s32 %v1577, %v1579
        %v1581 = vrot.slane %v1567, %v1580
        %v1582 = vcombine.low %v1557, %v1565
        %v1583 = vcombine.high %v1557, %v1565
        %v1585 = vunpack.c.l.s4 1934713408
        %v1586 = vunpack.c.0.s8 %v1585
        %v1587 = vlaneseq
        %v1588 = vshrl.u32 %v1587, 7
        %v1589 = vsub.s32 %v1586, %v1588
        %v1590 = vrot.slane %v1582, %v1589
        %v1592 = vunpack.c.l.s4 1934713408
        %v1593 = vunpack.c.0.s8 %v1592
        %v1594 = vlaneseq
        %v1595 = vshrl.u32 %v1594, 7
        %v1596 = vsub.s32 %v1593, %v1595
        %v1597 = vrot.slane %v1583, %v1596
        %v1598 = vcombine.low %v1574, %v1590
        %v1599 = vcombine.high %v1574, %v1590
        %v1600 = vcombine.low %v1581, %v1597
        %v1601 = vcombine.high %v1581, %v1597
        %v1602 = vld [vmem:[%s5] sm:$0xff]
        %1607 = vset.pattern.permute.xlu0 0
        %1608 = vperm.xlu0 %1607, %v1598
        %v1609 = vpop.permute.xlu0 %1608
        %1610 = vset.pattern.permute.xlu0 0
        %1611 = vperm.xlu0 %1610, %v1599
        %v1612 = vpop.permute.xlu0 %1611
        %1613 = vset.pattern.permute.xlu0 0
        %1614 = vperm.xlu0 %1613, %v1600
        %v1615 = vpop.permute.xlu0 %1614
        %1616 = vset.pattern.permute.xlu0 0
        %1617 = vperm.xlu0 %1616, %v1601
        %v1618 = vpop.permute.xlu0 %1617
        %v1619 = vlaneseq
        %v1620 = vshrl.u32 %v1619, 7
        %v1621 = vsub.s32 %v898, %v1620
        %v1622 = vrot.slane %v1609, %v1621
        %v1623 = vlaneseq
        %v1624 = vshrl.u32 %v1623, 7
        %v1625 = vsub.s32 %v898, %v1624
        %v1626 = vrot.slane %v1612, %v1625
        %v1627 = vlaneseq
        %v1628 = vshrl.u32 %v1627, 7
        %v1629 = vsub.s32 %v898, %v1628
        %v1630 = vrot.slane %v1615, %v1629
        %v1631 = vlaneseq
        %v1632 = vshrl.u32 %v1631, 7
        %v1633 = vsub.s32 %v898, %v1632
        %v1634 = vrot.slane %v1618, %v1633
        %v1635 = vsel %vm931, %v1626, %v1622
        %v1636 = vsel %vm933, %v1630, %v1635
        %v1637 = vsel %vm935, %v1634, %v1636
        %v1639 = vsel %vm297, %v1602, 0
        %v1641 = vsel %vm301, %v1637, 0
        %1643 = vmatprep.subr.mxu0 0.0
        %1644 = vmatpush1.msra.mxu0 0.0
        %1645 = vmatprep.subr.mxu0 0.0
        %1646 = vmatpush1.msra.mxu0 0.0
        %1647 = vmatprep.subr.mxu0 0.0
        %1648 = vmatpush1.msra.mxu0 0.0
        %1649 = vmatprep.subr.mxu0 0.0
        %1650 = vmatpush1.msra.mxu0 0.0
        %1651 = vmatprep.subr.mxu0 0.0
        %1652 = vmatpush1.msra.mxu0 0.0
        %1653 = vmatprep.subr.mxu0 0.0
        %1654 = vmatpush1.msra.mxu0 0.0
        %1655 = vmatprep.subr.mxu0 0.0
        %1656 = vmatpush1.msra.mxu0 0.0
        %1657 = vmatprep.subr.mxu0 0.0
        %1658 = vmatpush1.msra.mxu0 0.0
        %1659 = vmatprep.subr.mxu0 0.0
        %1660 = vmatpush1.msra.mxu0 0.0
        %1661 = vmatprep.subr.mxu0 0.0
        %1662 = vmatpush1.msra.mxu0 0.0
        %1663 = vmatprep.subr.mxu0 0.0
        %1664 = vmatpush1.msra.mxu0 0.0
        %1665 = vmatprep.subr.mxu0 0.0
        %1666 = vmatpush1.msra.mxu0 0.0
        %1667 = vmatprep.subr.mxu0 0.0
        %1668 = vmatpush1.msra.mxu0 0.0
        %1669 = vmatprep.subr.mxu0 0.0
        %1670 = vmatpush1.msra.mxu0 0.0
        %1671 = vmatprep.subr.mxu0 0.0
        %1672 = vmatpush1.msra.mxu0 0.0
        %1673 = vmatprep.subr.mxu0 0.0
        %1674 = vmatpush1.msra.mxu0 %v1641
        %1675 = vmatprep.subr.mxu0 0.0
        %1676 = vmatpush2.msra.mxu0 0.0
        %1677 = vmatprep.subr.mxu0 0.0
        %1678 = vmatpush2.msra.mxu0 0.0
        %1679 = vmatprep.subr.mxu0 0.0
        %1680 = vmatpush2.msra.mxu0 0.0
        %1681 = vmatprep.subr.mxu0 0.0
        %1682 = vmatpush2.msra.mxu0 0.0
        %1683 = vmatprep.subr.mxu0 0.0
        %1684 = vmatpush2.msra.mxu0 0.0
        %1685 = vmatprep.subr.mxu0 0.0
        %1686 = vmatpush2.msra.mxu0 0.0
        %1687 = vmatprep.subr.mxu0 0.0
        %1688 = vmatpush2.msra.mxu0 0.0
        %1689 = vmatprep.subr.mxu0 0.0
        %1690 = vmatpush2.msra.mxu0 0.0
        %1691 = vmatprep.subr.mxu0 0.0
        %1692 = vmatpush2.msra.mxu0 0.0
        %1693 = vmatprep.subr.mxu0 0.0
        %1694 = vmatpush2.msra.mxu0 0.0
        %1695 = vmatprep.subr.mxu0 0.0
        %1696 = vmatpush2.msra.mxu0 0.0
        %1697 = vmatprep.subr.mxu0 0.0
        %1698 = vmatpush2.msra.mxu0 0.0
        %1699 = vmatprep.subr.mxu0 0.0
        %1700 = vmatpush2.msra.mxu0 0.0
        %1701 = vmatprep.subr.mxu0 0.0
        %1702 = vmatpush2.msra.mxu0 0.0
        %1703 = vmatprep.subr.mxu0 0.0
        %1704 = vmatpush2.msra.mxu0 0.0
        %1705 = vmatprep.subr.mxu0 0.0
        %1706 = vmatpush2.msra.mxu0 0.0
        %1707 = vmatprep.mubr.f32.mxu0 0.0
        %1708 = vmatmul.mubr.f32.gmra.mxu0 %v1639
        %v1709 = vpop.f32.mrf.mxu0
        %v1710 = vadd.f32 0.0, %v1709
        %v1711 = vpop.f32.mrf.mxu0
        %1712 = vdwg.mxu0
        %v1713 = vadd.f32 %v1493, %v1710
        %v1714 = vld [vmem:[%s6] sm:$0xff]
        %1716 = vset.pattern.permute.xlu0 0
        %1717 = vperm.xlu0 %1716, %v1714
        %v1718 = vpop.permute.xlu0 %1717
        %v1720 = vadd.f32 %v1713, %v1718
        %v1721 = vsub.f32 0.0, %v1720
        %v1722 = vmul.f32 %v1721, 1.442695
        %v1723 = vpow.pop %v1722
        %v1724 = vadd.f32 %v1723, 1.0
        %v1725 = vrcp.pop %v1724
        %v1726 = vmul.f32 1.0, %v1725
        %1728 = vrot.lane.b32.xlu0 %v1726, 126
        %v1729 = vpop.permute.xlu0 %1728
        %1731 = vrot.lane.b32.xlu0 %v1726, 124
        %v1732 = vpop.permute.xlu0 %1731
        %1734 = vrot.lane.b32.xlu0 %v1726, 122
        %v1735 = vpop.permute.xlu0 %1734
        %v1737 = vcombine.low %v1726, %v1732
        %v1738 = vcombine.high %v1726, %v1732
        %v1740 = vunpack.c.l.s4 1983009808
        %v1741 = vunpack.c.0.s8 %v1740
        %v1742 = vlaneseq
        %v1743 = vshrl.u32 %v1742, 7
        %v1744 = vsub.s32 %v1741, %v1743
        %v1745 = vrot.slane %v1737, %v1744
        %v1747 = vunpack.c.l.s4 1983009808
        %v1748 = vunpack.c.0.s8 %v1747
        %v1749 = vlaneseq
        %v1750 = vshrl.u32 %v1749, 7
        %v1751 = vsub.s32 %v1748, %v1750
        %v1752 = vrot.slane %v1738, %v1751
        %v1753 = vcombine.low %v1729, %v1735
        %v1754 = vcombine.high %v1729, %v1735
        %v1756 = vunpack.c.l.s4 1983009808
        %v1757 = vunpack.c.0.s8 %v1756
        %v1758 = vlaneseq
        %v1759 = vshrl.u32 %v1758, 7
        %v1760 = vsub.s32 %v1757, %v1759
        %v1761 = vrot.slane %v1753, %v1760
        %v1763 = vunpack.c.l.s4 1983009808
        %v1764 = vunpack.c.0.s8 %v1763
        %v1765 = vlaneseq
        %v1766 = vshrl.u32 %v1765, 7
        %v1767 = vsub.s32 %v1764, %v1766
        %v1768 = vrot.slane %v1754, %v1767
        %v1769 = vcombine.low %v1745, %v1761
        %v1770 = vcombine.high %v1745, %v1761
        %v1772 = vunpack.c.l.s4 1934713408
        %v1773 = vunpack.c.0.s8 %v1772
        %v1774 = vlaneseq
        %v1775 = vshrl.u32 %v1774, 7
        %v1776 = vsub.s32 %v1773, %v1775
        %v1777 = vrot.slane %v1769, %v1776
        %v1779 = vunpack.c.l.s4 1934713408
        %v1780 = vunpack.c.0.s8 %v1779
        %v1781 = vlaneseq
        %v1782 = vshrl.u32 %v1781, 7
        %v1783 = vsub.s32 %v1780, %v1782
        %v1784 = vrot.slane %v1770, %v1783
        %v1785 = vcombine.low %v1752, %v1768
        %v1786 = vcombine.high %v1752, %v1768
        %v1788 = vunpack.c.l.s4 1934713408
        %v1789 = vunpack.c.0.s8 %v1788
        %v1790 = vlaneseq
        %v1791 = vshrl.u32 %v1790, 7
        %v1792 = vsub.s32 %v1789, %v1791
        %v1793 = vrot.slane %v1785, %v1792
        %v1795 = vunpack.c.l.s4 1934713408
        %v1796 = vunpack.c.0.s8 %v1795
        %v1797 = vlaneseq
        %v1798 = vshrl.u32 %v1797, 7
        %v1799 = vsub.s32 %v1796, %v1798
        %v1800 = vrot.slane %v1786, %v1799
        %v1801 = vcombine.high %v1777, 0.0
        %v1802 = vcombine.high %v1784, 0.0
        %v1803 = vcombine.high %v1793, 0.0
        %v1804 = vcombine.high %v1800, 0.0
        %vm1805 = vcmask 11264
        %v1806 = vsel %vm1805, %v1777, 0.0
        %1807 = vadd.xlane.f32.xlu0 %v1806
        %v1808 = vpop.xlane.xlu0 %1807
        %v1809 = vsel %vm1805, %v1801, 0.0
        %1810 = vadd.xlane.f32.xlu0 %v1809
        %v1811 = vpop.xlane.xlu0 %1810
        %v1812 = vsel %vm1805, %v1784, 0.0
        %1813 = vadd.xlane.f32.xlu0 %v1812
        %v1814 = vpop.xlane.xlu0 %1813
        %v1815 = vsel %vm1805, %v1802, 0.0
        %1816 = vadd.xlane.f32.xlu0 %v1815
        %v1817 = vpop.xlane.xlu0 %1816
        %v1818 = vsel %vm1805, %v1793, 0.0
        %1819 = vadd.xlane.f32.xlu0 %v1818
        %v1820 = vpop.xlane.xlu0 %1819
        %v1821 = vsel %vm1805, %v1803, 0.0
        %1822 = vadd.xlane.f32.xlu0 %v1821
        %v1823 = vpop.xlane.xlu0 %1822
        %v1824 = vsel %vm1805, %v1800, 0.0
        %1825 = vadd.xlane.f32.xlu0 %v1824
        %v1826 = vpop.xlane.xlu0 %1825
        %v1827 = vsel %vm1805, %v1804, 0.0
        %1828 = vadd.xlane.f32.xlu0 %v1827
        %v1829 = vpop.xlane.xlu0 %1828
        %v1830 = vmul.f32 %v1808, 0.5
        %v1831 = vmul.f32 %v1811, 0.5
        %v1832 = vmul.f32 %v1814, 0.5
        %v1833 = vmul.f32 %v1817, 0.5
        %v1834 = vmul.f32 %v1820, 0.5
        %v1835 = vmul.f32 %v1823, 0.5
        %v1836 = vmul.f32 %v1826, 0.5
        %v1837 = vmul.f32 %v1829, 0.5
        %s1838 = scalar_lea.vmem %s277, 4
        %v1839 = vld [vmem:[%s1838] sm:$0xf]
        %1841 = vrot.lane.b32.xlu0 %v1839, 1
        %v1842 = vpop.permute.xlu0 %1841
        %1844 = vst.msk [vmem:[#allocation2] sm:$0xf] %vm288, %v1842
        %v1845 = vld [vmem:[%s1] sm:$0xff]
        %v1846 = vld [vmem:[#allocation2] sm:$0xf]
        %v1847 = vld [vmem:[%s292] sm:$0xff]
        %1849 = vrot.lane.b32.xlu0 %v1846, 127
        %v1850 = vpop.permute.xlu0 %1849
        %v1852 = vsel %vm297, %v1847, 0
        %v1854 = vsel %vm301, %v1850, 0
        %1856 = vmatprep.subr.mxu0 0.0
        %1857 = vmatpush1.msra.mxu0 0.0
        %1858 = vmatprep.subr.mxu0 0.0
        %1859 = vmatpush1.msra.mxu0 0.0
        %1860 = vmatprep.subr.mxu0 0.0
        %1861 = vmatpush1.msra.mxu0 0.0
        %1862 = vmatprep.subr.mxu0 0.0
        %1863 = vmatpush1.msra.mxu0 0.0
        %1864 = vmatprep.subr.mxu0 0.0
        %1865 = vmatpush1.msra.mxu0 0.0
        %1866 = vmatprep.subr.mxu0 0.0
        %1867 = vmatpush1.msra.mxu0 0.0
        %1868 = vmatprep.subr.mxu0 0.0
        %1869 = vmatpush1.msra.mxu0 0.0
        %1870 = vmatprep.subr.mxu0 0.0
        %1871 = vmatpush1.msra.mxu0 0.0
        %1872 = vmatprep.subr.mxu0 0.0
        %1873 = vmatpush1.msra.mxu0 0.0
        %1874 = vmatprep.subr.mxu0 0.0
        %1875 = vmatpush1.msra.mxu0 0.0
        %1876 = vmatprep.subr.mxu0 0.0
        %1877 = vmatpush1.msra.mxu0 0.0
        %1878 = vmatprep.subr.mxu0 0.0
        %1879 = vmatpush1.msra.mxu0 0.0
        %1880 = vmatprep.subr.mxu0 0.0
        %1881 = vmatpush1.msra.mxu0 0.0
        %1882 = vmatprep.subr.mxu0 0.0
        %1883 = vmatpush1.msra.mxu0 0.0
        %1884 = vmatprep.subr.mxu0 0.0
        %1885 = vmatpush1.msra.mxu0 0.0
        %1886 = vmatprep.subr.mxu0 0.0
        %1887 = vmatpush1.msra.mxu0 %v1854
        %1888 = vmatprep.subr.mxu0 0.0
        %1889 = vmatpush2.msra.mxu0 0.0
        %1890 = vmatprep.subr.mxu0 0.0
        %1891 = vmatpush2.msra.mxu0 0.0
        %1892 = vmatprep.subr.mxu0 0.0
        %1893 = vmatpush2.msra.mxu0 0.0
        %1894 = vmatprep.subr.mxu0 0.0
        %1895 = vmatpush2.msra.mxu0 0.0
        %1896 = vmatprep.subr.mxu0 0.0
        %1897 = vmatpush2.msra.mxu0 0.0
        %1898 = vmatprep.subr.mxu0 0.0
        %1899 = vmatpush2.msra.mxu0 0.0
        %1900 = vmatprep.subr.mxu0 0.0
        %1901 = vmatpush2.msra.mxu0 0.0
        %1902 = vmatprep.subr.mxu0 0.0
        %1903 = vmatpush2.msra.mxu0 0.0
        %1904 = vmatprep.subr.mxu0 0.0
        %1905 = vmatpush2.msra.mxu0 0.0
        %1906 = vmatprep.subr.mxu0 0.0
        %1907 = vmatpush2.msra.mxu0 0.0
        %1908 = vmatprep.subr.mxu0 0.0
        %1909 = vmatpush2.msra.mxu0 0.0
        %1910 = vmatprep.subr.mxu0 0.0
        %1911 = vmatpush2.msra.mxu0 0.0
        %1912 = vmatprep.subr.mxu0 0.0
        %1913 = vmatpush2.msra.mxu0 0.0
        %1914 = vmatprep.subr.mxu0 0.0
        %1915 = vmatpush2.msra.mxu0 0.0
        %1916 = vmatprep.subr.mxu0 0.0
        %1917 = vmatpush2.msra.mxu0 0.0
        %1918 = vmatprep.subr.mxu0 0.0
        %1919 = vmatpush2.msra.mxu0 0.0
        %1920 = vmatprep.mubr.f32.mxu0 0.0
        %1921 = vmatmul.mubr.f32.gmra.mxu0 %v1852
        %v1922 = vpop.f32.mrf.mxu0
        %v1923 = vadd.f32 0.0, %v1922
        %v1924 = vpop.f32.mrf.mxu0
        %1925 = vdwg.mxu0
        %v1927 = vsel %vm297, %v1845, 0
        %v1929 = vsel %vm301, %v1846, 0
        %1931 = vmatprep.subr.mxu0 0.0
        %1932 = vmatpush1.msra.mxu0 0.0
        %1933 = vmatprep.subr.mxu0 0.0
        %1934 = vmatpush1.msra.mxu0 0.0
        %1935 = vmatprep.subr.mxu0 0.0
        %1936 = vmatpush1.msra.mxu0 0.0
        %1937 = vmatprep.subr.mxu0 0.0
        %1938 = vmatpush1.msra.mxu0 0.0
        %1939 = vmatprep.subr.mxu0 0.0
        %1940 = vmatpush1.msra.mxu0 0.0
        %1941 = vmatprep.subr.mxu0 0.0
        %1942 = vmatpush1.msra.mxu0 0.0
        %1943 = vmatprep.subr.mxu0 0.0
        %1944 = vmatpush1.msra.mxu0 0.0
        %1945 = vmatprep.subr.mxu0 0.0
        %1946 = vmatpush1.msra.mxu0 0.0
        %1947 = vmatprep.subr.mxu0 0.0
        %1948 = vmatpush1.msra.mxu0 0.0
        %1949 = vmatprep.subr.mxu0 0.0
        %1950 = vmatpush1.msra.mxu0 0.0
        %1951 = vmatprep.subr.mxu0 0.0
        %1952 = vmatpush1.msra.mxu0 0.0
        %1953 = vmatprep.subr.mxu0 0.0
        %1954 = vmatpush1.msra.mxu0 0.0
        %1955 = vmatprep.subr.mxu0 0.0
        %1956 = vmatpush1.msra.mxu0 0.0
        %1957 = vmatprep.subr.mxu0 0.0
        %1958 = vmatpush1.msra.mxu0 0.0
        %1959 = vmatprep.subr.mxu0 0.0
        %1960 = vmatpush1.msra.mxu0 0.0
        %1961 = vmatprep.subr.mxu0 0.0
        %1962 = vmatpush1.msra.mxu0 %v1929
        %1963 = vmatprep.subr.mxu0 0.0
        %1964 = vmatpush2.msra.mxu0 0.0
        %1965 = vmatprep.subr.mxu0 0.0
        %1966 = vmatpush2.msra.mxu0 0.0
        %1967 = vmatprep.subr.mxu0 0.0
        %1968 = vmatpush2.msra.mxu0 0.0
        %1969 = vmatprep.subr.mxu0 0.0
        %1970 = vmatpush2.msra.mxu0 0.0
        %1971 = vmatprep.subr.mxu0 0.0
        %1972 = vmatpush2.msra.mxu0 0.0
        %1973 = vmatprep.subr.mxu0 0.0
        %1974 = vmatpush2.msra.mxu0 0.0
        %1975 = vmatprep.subr.mxu0 0.0
        %1976 = vmatpush2.msra.mxu0 0.0
        %1977 = vmatprep.subr.mxu0 0.0
        %1978 = vmatpush2.msra.mxu0 0.0
        %1979 = vmatprep.subr.mxu0 0.0
        %1980 = vmatpush2.msra.mxu0 0.0
        %1981 = vmatprep.subr.mxu0 0.0
        %1982 = vmatpush2.msra.mxu0 0.0
        %1983 = vmatprep.subr.mxu0 0.0
        %1984 = vmatpush2.msra.mxu0 0.0
        %1985 = vmatprep.subr.mxu0 0.0
        %1986 = vmatpush2.msra.mxu0 0.0
        %1987 = vmatprep.subr.mxu0 0.0
        %1988 = vmatpush2.msra.mxu0 0.0
        %1989 = vmatprep.subr.mxu0 0.0
        %1990 = vmatpush2.msra.mxu0 0.0
        %1991 = vmatprep.subr.mxu0 0.0
        %1992 = vmatpush2.msra.mxu0 0.0
        %1993 = vmatprep.subr.mxu0 0.0
        %1994 = vmatpush2.msra.mxu0 0.0
        %1995 = vmatprep.mubr.f32.mxu0 0.0
        %1996 = vmatmul.mubr.f32.gmra.mxu0 %v1927
        %v1997 = vpop.f32.mrf.mxu0
        %v1998 = vadd.f32 %v1923, %v1997
        %v1999 = vpop.f32.mrf.mxu0
        %2000 = vdwg.mxu0
        %v2001 = vld [vmem:[%s449] sm:$0xff]
        %2002 = vrot.lane.b32.xlu0 %v1846, 126
        %v2003 = vpop.permute.xlu0 %2002
        %v2005 = vsel %vm297, %v2001, 0
        %v2007 = vsel %vm301, %v2003, 0
        %2009 = vmatprep.subr.mxu0 0.0
        %2010 = vmatpush1.msra.mxu0 0.0
        %2011 = vmatprep.subr.mxu0 0.0
        %2012 = vmatpush1.msra.mxu0 0.0
        %2013 = vmatprep.subr.mxu0 0.0
        %2014 = vmatpush1.msra.mxu0 0.0
        %2015 = vmatprep.subr.mxu0 0.0
        %2016 = vmatpush1.msra.mxu0 0.0
        %2017 = vmatprep.subr.mxu0 0.0
        %2018 = vmatpush1.msra.mxu0 0.0
        %2019 = vmatprep.subr.mxu0 0.0
        %2020 = vmatpush1.msra.mxu0 0.0
        %2021 = vmatprep.subr.mxu0 0.0
        %2022 = vmatpush1.msra.mxu0 0.0
        %2023 = vmatprep.subr.mxu0 0.0
        %2024 = vmatpush1.msra.mxu0 0.0
        %2025 = vmatprep.subr.mxu0 0.0
        %2026 = vmatpush1.msra.mxu0 0.0
        %2027 = vmatprep.subr.mxu0 0.0
        %2028 = vmatpush1.msra.mxu0 0.0
        %2029 = vmatprep.subr.mxu0 0.0
        %2030 = vmatpush1.msra.mxu0 0.0
        %2031 = vmatprep.subr.mxu0 0.0
        %2032 = vmatpush1.msra.mxu0 0.0
        %2033 = vmatprep.subr.mxu0 0.0
        %2034 = vmatpush1.msra.mxu0 0.0
        %2035 = vmatprep.subr.mxu0 0.0
        %2036 = vmatpush1.msra.mxu0 0.0
        %2037 = vmatprep.subr.mxu0 0.0
        %2038 = vmatpush1.msra.mxu0 0.0
        %2039 = vmatprep.subr.mxu0 0.0
        %2040 = vmatpush1.msra.mxu0 %v2007
        %2041 = vmatprep.subr.mxu0 0.0
        %2042 = vmatpush2.msra.mxu0 0.0
        %2043 = vmatprep.subr.mxu0 0.0
        %2044 = vmatpush2.msra.mxu0 0.0
        %2045 = vmatprep.subr.mxu0 0.0
        %2046 = vmatpush2.msra.mxu0 0.0
        %2047 = vmatprep.subr.mxu0 0.0
        %2048 = vmatpush2.msra.mxu0 0.0
        %2049 = vmatprep.subr.mxu0 0.0
        %2050 = vmatpush2.msra.mxu0 0.0
        %2051 = vmatprep.subr.mxu0 0.0
        %2052 = vmatpush2.msra.mxu0 0.0
        %2053 = vmatprep.subr.mxu0 0.0
        %2054 = vmatpush2.msra.mxu0 0.0
        %2055 = vmatprep.subr.mxu0 0.0
        %2056 = vmatpush2.msra.mxu0 0.0
        %2057 = vmatprep.subr.mxu0 0.0
        %2058 = vmatpush2.msra.mxu0 0.0
        %2059 = vmatprep.subr.mxu0 0.0
        %2060 = vmatpush2.msra.mxu0 0.0
        %2061 = vmatprep.subr.mxu0 0.0
        %2062 = vmatpush2.msra.mxu0 0.0
        %2063 = vmatprep.subr.mxu0 0.0
        %2064 = vmatpush2.msra.mxu0 0.0
        %2065 = vmatprep.subr.mxu0 0.0
        %2066 = vmatpush2.msra.mxu0 0.0
        %2067 = vmatprep.subr.mxu0 0.0
        %2068 = vmatpush2.msra.mxu0 0.0
        %2069 = vmatprep.subr.mxu0 0.0
        %2070 = vmatpush2.msra.mxu0 0.0
        %2071 = vmatprep.subr.mxu0 0.0
        %2072 = vmatpush2.msra.mxu0 0.0
        %2073 = vmatprep.mubr.f32.mxu0 0.0
        %2074 = vmatmul.mubr.f32.gmra.mxu0 %v2005
        %v2075 = vpop.f32.mrf.mxu0
        %v2076 = vadd.f32 0.0, %v2075
        %v2077 = vpop.f32.mrf.mxu0
        %2078 = vdwg.mxu0
        %v2079 = vadd.f32 %v1998, %v2076
        %v2080 = vld [vmem:[%s2] sm:$0xff]
        %2082 = vset.pattern.permute.xlu0 0
        %2083 = vperm.xlu0 %2082, %v2080
        %v2084 = vpop.permute.xlu0 %2083
        %v2086 = vadd.f32 %v2079, %v2084
        %v2087 = vmax.f32 %v2086, 0.0
        %2089 = vrot.lane.b32.xlu0 %v2087, 1
        %v2090 = vpop.permute.xlu0 %2089
        %2092 = vst.msk [vmem:[#allocation3] sm:$0xff] %vm541, %v2090
        %v2093 = vld [vmem:[#allocation3] sm:$0xff]
        %2095 = vrot.lane.b32.xlu0 %v2093, 126
        %v2096 = vpop.permute.xlu0 %2095
        %2098 = vrot.lane.b32.xlu0 %v2093, 124
        %v2099 = vpop.permute.xlu0 %2098
        %2101 = vrot.lane.b32.xlu0 %v2093, 122
        %v2102 = vpop.permute.xlu0 %2101
        %2104 = vrot.lane.b32.xlu0 %v2093, 120
        %v2105 = vpop.permute.xlu0 %2104
        %2107 = vrot.lane.b32.xlu0 %v2093, 118
        %v2108 = vpop.permute.xlu0 %2107
        %2110 = vrot.lane.b32.xlu0 %v2093, 116
        %v2111 = vpop.permute.xlu0 %2110
        %2113 = vrot.lane.b32.xlu0 %v2093, 114
        %v2114 = vpop.permute.xlu0 %2113
        %v2116 = vcombine.low %v2093, %v2099
        %v2117 = vcombine.high %v2093, %v2099
        %v2119 = vunpack.c.l.s4 1983009808
        %v2120 = vunpack.c.0.s8 %v2119
        %v2121 = vlaneseq
        %v2122 = vshrl.u32 %v2121, 7
        %v2123 = vsub.s32 %v2120, %v2122
        %v2124 = vrot.slane %v2116, %v2123
        %v2126 = vunpack.c.l.s4 1983009808
        %v2127 = vunpack.c.0.s8 %v2126
        %v2128 = vlaneseq
        %v2129 = vshrl.u32 %v2128, 7
        %v2130 = vsub.s32 %v2127, %v2129
        %v2131 = vrot.slane %v2117, %v2130
        %v2132 = vcombine.low %v2096, %v2102
        %v2133 = vcombine.high %v2096, %v2102
        %v2135 = vunpack.c.l.s4 1983009808
        %v2136 = vunpack.c.0.s8 %v2135
        %v2137 = vlaneseq
        %v2138 = vshrl.u32 %v2137, 7
        %v2139 = vsub.s32 %v2136, %v2138
        %v2140 = vrot.slane %v2132, %v2139
        %v2142 = vunpack.c.l.s4 1983009808
        %v2143 = vunpack.c.0.s8 %v2142
        %v2144 = vlaneseq
        %v2145 = vshrl.u32 %v2144, 7
        %v2146 = vsub.s32 %v2143, %v2145
        %v2147 = vrot.slane %v2133, %v2146
        %v2148 = vcombine.low %v2105, %v2111
        %v2149 = vcombine.high %v2105, %v2111
        %v2151 = vunpack.c.l.s4 1983009808
        %v2152 = vunpack.c.0.s8 %v2151
        %v2153 = vlaneseq
        %v2154 = vshrl.u32 %v2153, 7
        %v2155 = vsub.s32 %v2152, %v2154
        %v2156 = vrot.slane %v2148, %v2155
        %v2158 = vunpack.c.l.s4 1983009808
        %v2159 = vunpack.c.0.s8 %v2158
        %v2160 = vlaneseq
        %v2161 = vshrl.u32 %v2160, 7
        %v2162 = vsub.s32 %v2159, %v2161
        %v2163 = vrot.slane %v2149, %v2162
        %v2164 = vcombine.low %v2108, %v2114
        %v2165 = vcombine.high %v2108, %v2114
        %v2167 = vunpack.c.l.s4 1983009808
        %v2168 = vunpack.c.0.s8 %v2167
        %v2169 = vlaneseq
        %v2170 = vshrl.u32 %v2169, 7
        %v2171 = vsub.s32 %v2168, %v2170
        %v2172 = vrot.slane %v2164, %v2171
        %v2174 = vunpack.c.l.s4 1983009808
        %v2175 = vunpack.c.0.s8 %v2174
        %v2176 = vlaneseq
        %v2177 = vshrl.u32 %v2176, 7
        %v2178 = vsub.s32 %v2175, %v2177
        %v2179 = vrot.slane %v2165, %v2178
        %v2180 = vcombine.low %v2124, %v2140
        %v2181 = vcombine.high %v2124, %v2140
        %v2183 = vunpack.c.l.s4 1934713408
        %v2184 = vunpack.c.0.s8 %v2183
        %v2185 = vlaneseq
        %v2186 = vshrl.u32 %v2185, 7
        %v2187 = vsub.s32 %v2184, %v2186
        %v2188 = vrot.slane %v2180, %v2187
        %v2190 = vunpack.c.l.s4 1934713408
        %v2191 = vunpack.c.0.s8 %v2190
        %v2192 = vlaneseq
        %v2193 = vshrl.u32 %v2192, 7
        %v2194 = vsub.s32 %v2191, %v2193
        %v2195 = vrot.slane %v2181, %v2194
        %v2196 = vcombine.low %v2131, %v2147
        %v2197 = vcombine.high %v2131, %v2147
        %v2199 = vunpack.c.l.s4 1934713408
        %v2200 = vunpack.c.0.s8 %v2199
        %v2201 = vlaneseq
        %v2202 = vshrl.u32 %v2201, 7
        %v2203 = vsub.s32 %v2200, %v2202
        %v2204 = vrot.slane %v2196, %v2203
        %v2206 = vunpack.c.l.s4 1934713408
        %v2207 = vunpack.c.0.s8 %v2206
        %v2208 = vlaneseq
        %v2209 = vshrl.u32 %v2208, 7
        %v2210 = vsub.s32 %v2207, %v2209
        %v2211 = vrot.slane %v2197, %v2210
        %v2212 = vcombine.low %v2156, %v2172
        %v2213 = vcombine.high %v2156, %v2172
        %v2215 = vunpack.c.l.s4 1934713408
        %v2216 = vunpack.c.0.s8 %v2215
        %v2217 = vlaneseq
        %v2218 = vshrl.u32 %v2217, 7
        %v2219 = vsub.s32 %v2216, %v2218
        %v2220 = vrot.slane %v2212, %v2219
        %v2222 = vunpack.c.l.s4 1934713408
        %v2223 = vunpack.c.0.s8 %v2222
        %v2224 = vlaneseq
        %v2225 = vshrl.u32 %v2224, 7
        %v2226 = vsub.s32 %v2223, %v2225
        %v2227 = vrot.slane %v2213, %v2226
        %v2228 = vcombine.low %v2163, %v2179
        %v2229 = vcombine.high %v2163, %v2179
        %v2231 = vunpack.c.l.s4 1934713408
        %v2232 = vunpack.c.0.s8 %v2231
        %v2233 = vlaneseq
        %v2234 = vshrl.u32 %v2233, 7
        %v2235 = vsub.s32 %v2232, %v2234
        %v2236 = vrot.slane %v2228, %v2235
        %v2238 = vunpack.c.l.s4 1934713408
        %v2239 = vunpack.c.0.s8 %v2238
        %v2240 = vlaneseq
        %v2241 = vshrl.u32 %v2240, 7
        %v2242 = vsub.s32 %v2239, %v2241
        %v2243 = vrot.slane %v2229, %v2242
        %v2244 = vcombine.low %v2188, %v2220
        %v2245 = vcombine.high %v2188, %v2220
        %v2246 = vcombine.low %v2195, %v2227
        %v2247 = vcombine.high %v2195, %v2227
        %v2248 = vcombine.low %v2204, %v2236
        %v2249 = vcombine.high %v2204, %v2236
        %v2250 = vcombine.low %v2211, %v2243
        %v2251 = vcombine.high %v2211, %v2243
        %v2252 = vld [vmem:[%s3] sm:$0xff]
        %2253 = vrot.lane.b32.xlu0 %v2093, 127
        %v2254 = vpop.permute.xlu0 %2253
        %2255 = vrot.lane.b32.xlu0 %v2096, 127
        %v2256 = vpop.permute.xlu0 %2255
        %2257 = vrot.lane.b32.xlu0 %v2099, 127
        %v2258 = vpop.permute.xlu0 %2257
        %2259 = vrot.lane.b32.xlu0 %v2102, 127
        %v2260 = vpop.permute.xlu0 %2259
        %2261 = vrot.lane.b32.xlu0 %v2105, 127
        %v2262 = vpop.permute.xlu0 %2261
        %2263 = vrot.lane.b32.xlu0 %v2108, 127
        %v2264 = vpop.permute.xlu0 %2263
        %2265 = vrot.lane.b32.xlu0 %v2111, 127
        %v2266 = vpop.permute.xlu0 %2265
        %2267 = vrot.lane.b32.xlu0 %v2114, 127
        %v2268 = vpop.permute.xlu0 %2267
        %v2277 = vcombine.low %v2254, %v2258
        %v2278 = vcombine.high %v2254, %v2258
        %v2280 = vunpack.c.l.s4 1983009808
        %v2281 = vunpack.c.0.s8 %v2280
        %v2282 = vlaneseq
        %v2283 = vshrl.u32 %v2282, 7
        %v2284 = vsub.s32 %v2281, %v2283
        %v2285 = vrot.slane %v2277, %v2284
        %v2287 = vunpack.c.l.s4 1983009808
        %v2288 = vunpack.c.0.s8 %v2287
        %v2289 = vlaneseq
        %v2290 = vshrl.u32 %v2289, 7
        %v2291 = vsub.s32 %v2288, %v2290
        %v2292 = vrot.slane %v2278, %v2291
        %v2293 = vcombine.low %v2256, %v2260
        %v2294 = vcombine.high %v2256, %v2260
        %v2296 = vunpack.c.l.s4 1983009808
        %v2297 = vunpack.c.0.s8 %v2296
        %v2298 = vlaneseq
        %v2299 = vshrl.u32 %v2298, 7
        %v2300 = vsub.s32 %v2297, %v2299
        %v2301 = vrot.slane %v2293, %v2300
        %v2303 = vunpack.c.l.s4 1983009808
        %v2304 = vunpack.c.0.s8 %v2303
        %v2305 = vlaneseq
        %v2306 = vshrl.u32 %v2305, 7
        %v2307 = vsub.s32 %v2304, %v2306
        %v2308 = vrot.slane %v2294, %v2307
        %v2309 = vcombine.low %v2262, %v2266
        %v2310 = vcombine.high %v2262, %v2266
        %v2312 = vunpack.c.l.s4 1983009808
        %v2313 = vunpack.c.0.s8 %v2312
        %v2314 = vlaneseq
        %v2315 = vshrl.u32 %v2314, 7
        %v2316 = vsub.s32 %v2313, %v2315
        %v2317 = vrot.slane %v2309, %v2316
        %v2319 = vunpack.c.l.s4 1983009808
        %v2320 = vunpack.c.0.s8 %v2319
        %v2321 = vlaneseq
        %v2322 = vshrl.u32 %v2321, 7
        %v2323 = vsub.s32 %v2320, %v2322
        %v2324 = vrot.slane %v2310, %v2323
        %v2325 = vcombine.low %v2264, %v2268
        %v2326 = vcombine.high %v2264, %v2268
        %v2328 = vunpack.c.l.s4 1983009808
        %v2329 = vunpack.c.0.s8 %v2328
        %v2330 = vlaneseq
        %v2331 = vshrl.u32 %v2330, 7
        %v2332 = vsub.s32 %v2329, %v2331
        %v2333 = vrot.slane %v2325, %v2332
        %v2335 = vunpack.c.l.s4 1983009808
        %v2336 = vunpack.c.0.s8 %v2335
        %v2337 = vlaneseq
        %v2338 = vshrl.u32 %v2337, 7
        %v2339 = vsub.s32 %v2336, %v2338
        %v2340 = vrot.slane %v2326, %v2339
        %v2341 = vcombine.low %v2285, %v2301
        %v2342 = vcombine.high %v2285, %v2301
        %v2344 = vunpack.c.l.s4 1934713408
        %v2345 = vunpack.c.0.s8 %v2344
        %v2346 = vlaneseq
        %v2347 = vshrl.u32 %v2346, 7
        %v2348 = vsub.s32 %v2345, %v2347
        %v2349 = vrot.slane %v2341, %v2348
        %v2351 = vunpack.c.l.s4 1934713408
        %v2352 = vunpack.c.0.s8 %v2351
        %v2353 = vlaneseq
        %v2354 = vshrl.u32 %v2353, 7
        %v2355 = vsub.s32 %v2352, %v2354
        %v2356 = vrot.slane %v2342, %v2355
        %v2357 = vcombine.low %v2292, %v2308
        %v2358 = vcombine.high %v2292, %v2308
        %v2360 = vunpack.c.l.s4 1934713408
        %v2361 = vunpack.c.0.s8 %v2360
        %v2362 = vlaneseq
        %v2363 = vshrl.u32 %v2362, 7
        %v2364 = vsub.s32 %v2361, %v2363
        %v2365 = vrot.slane %v2357, %v2364
        %v2367 = vunpack.c.l.s4 1934713408
        %v2368 = vunpack.c.0.s8 %v2367
        %v2369 = vlaneseq
        %v2370 = vshrl.u32 %v2369, 7
        %v2371 = vsub.s32 %v2368, %v2370
        %v2372 = vrot.slane %v2358, %v2371
        %v2373 = vcombine.low %v2317, %v2333
        %v2374 = vcombine.high %v2317, %v2333
        %v2376 = vunpack.c.l.s4 1934713408
        %v2377 = vunpack.c.0.s8 %v2376
        %v2378 = vlaneseq
        %v2379 = vshrl.u32 %v2378, 7
        %v2380 = vsub.s32 %v2377, %v2379
        %v2381 = vrot.slane %v2373, %v2380
        %v2383 = vunpack.c.l.s4 1934713408
        %v2384 = vunpack.c.0.s8 %v2383
        %v2385 = vlaneseq
        %v2386 = vshrl.u32 %v2385, 7
        %v2387 = vsub.s32 %v2384, %v2386
        %v2388 = vrot.slane %v2374, %v2387
        %v2389 = vcombine.low %v2324, %v2340
        %v2390 = vcombine.high %v2324, %v2340
        %v2392 = vunpack.c.l.s4 1934713408
        %v2393 = vunpack.c.0.s8 %v2392
        %v2394 = vlaneseq
        %v2395 = vshrl.u32 %v2394, 7
        %v2396 = vsub.s32 %v2393, %v2395
        %v2397 = vrot.slane %v2389, %v2396
        %v2399 = vunpack.c.l.s4 1934713408
        %v2400 = vunpack.c.0.s8 %v2399
        %v2401 = vlaneseq
        %v2402 = vshrl.u32 %v2401, 7
        %v2403 = vsub.s32 %v2400, %v2402
        %v2404 = vrot.slane %v2390, %v2403
        %v2405 = vcombine.low %v2349, %v2381
        %v2406 = vcombine.high %v2349, %v2381
        %v2407 = vcombine.low %v2356, %v2388
        %v2408 = vcombine.high %v2356, %v2388
        %v2409 = vcombine.low %v2365, %v2397
        %v2410 = vcombine.high %v2365, %v2397
        %v2411 = vcombine.low %v2372, %v2404
        %v2412 = vcombine.high %v2372, %v2404
        %v2413 = vld [vmem:[%s863] sm:$0xff]
        %2422 = vset.pattern.permute.xlu0 0
        %2423 = vperm.xlu0 %2422, %v2405
        %v2424 = vpop.permute.xlu0 %2423
        %2425 = vset.pattern.permute.xlu0 0
        %2426 = vperm.xlu0 %2425, %v2406
        %v2427 = vpop.permute.xlu0 %2426
        %2428 = vset.pattern.permute.xlu0 0
        %2429 = vperm.xlu0 %2428, %v2407
        %v2430 = vpop.permute.xlu0 %2429
        %2431 = vset.pattern.permute.xlu0 0
        %2432 = vperm.xlu0 %2431, %v2408
        %v2433 = vpop.permute.xlu0 %2432
        %2434 = vset.pattern.permute.xlu0 0
        %2435 = vperm.xlu0 %2434, %v2409
        %v2436 = vpop.permute.xlu0 %2435
        %2437 = vset.pattern.permute.xlu0 0
        %2438 = vperm.xlu0 %2437, %v2410
        %v2439 = vpop.permute.xlu0 %2438
        %2440 = vset.pattern.permute.xlu0 0
        %2441 = vperm.xlu0 %2440, %v2411
        %v2442 = vpop.permute.xlu0 %2441
        %2443 = vset.pattern.permute.xlu0 0
        %2444 = vperm.xlu0 %2443, %v2412
        %v2445 = vpop.permute.xlu0 %2444
        %v2446 = vlaneseq
        %v2447 = vshrl.u32 %v2446, 7
        %v2448 = vsub.s32 %v898, %v2447
        %v2449 = vrot.slane %v2424, %v2448
        %v2450 = vlaneseq
        %v2451 = vshrl.u32 %v2450, 7
        %v2452 = vsub.s32 %v898, %v2451
        %v2453 = vrot.slane %v2427, %v2452
        %v2454 = vlaneseq
        %v2455 = vshrl.u32 %v2454, 7
        %v2456 = vsub.s32 %v898, %v2455
        %v2457 = vrot.slane %v2430, %v2456
        %v2458 = vlaneseq
        %v2459 = vshrl.u32 %v2458, 7
        %v2460 = vsub.s32 %v898, %v2459
        %v2461 = vrot.slane %v2433, %v2460
        %v2462 = vlaneseq
        %v2463 = vshrl.u32 %v2462, 7
        %v2464 = vsub.s32 %v898, %v2463
        %v2465 = vrot.slane %v2436, %v2464
        %v2466 = vlaneseq
        %v2467 = vshrl.u32 %v2466, 7
        %v2468 = vsub.s32 %v898, %v2467
        %v2469 = vrot.slane %v2439, %v2468
        %v2470 = vlaneseq
        %v2471 = vshrl.u32 %v2470, 7
        %v2472 = vsub.s32 %v898, %v2471
        %v2473 = vrot.slane %v2442, %v2472
        %v2474 = vlaneseq
        %v2475 = vshrl.u32 %v2474, 7
        %v2476 = vsub.s32 %v898, %v2475
        %v2477 = vrot.slane %v2445, %v2476
        %v2478 = vsel %vm931, %v2453, %v2449
        %v2479 = vsel %vm933, %v2457, %v2478
        %v2480 = vsel %vm935, %v2461, %v2479
        %v2481 = vsel %vm937, %v2465, %v2480
        %v2482 = vsel %vm939, %v2469, %v2481
        %v2483 = vsel %vm941, %v2473, %v2482
        %v2484 = vsel %vm943, %v2477, %v2483
        %v2487 = vsel %vm946, %v2413, 0
        %2489 = vmatprep.subr.mxu0 0.0
        %2490 = vmatpush1.msra.mxu0 0.0
        %2491 = vmatprep.subr.mxu0 0.0
        %2492 = vmatpush1.msra.mxu0 0.0
        %2493 = vmatprep.subr.mxu0 0.0
        %2494 = vmatpush1.msra.mxu0 0.0
        %2495 = vmatprep.subr.mxu0 0.0
        %2496 = vmatpush1.msra.mxu0 0.0
        %2497 = vmatprep.subr.mxu0 0.0
        %2498 = vmatpush1.msra.mxu0 0.0
        %2499 = vmatprep.subr.mxu0 0.0
        %2500 = vmatpush1.msra.mxu0 0.0
        %2501 = vmatprep.subr.mxu0 0.0
        %2502 = vmatpush1.msra.mxu0 0.0
        %2503 = vmatprep.subr.mxu0 0.0
        %2504 = vmatpush1.msra.mxu0 0.0
        %2505 = vmatprep.subr.mxu0 0.0
        %2506 = vmatpush1.msra.mxu0 0.0
        %2507 = vmatprep.subr.mxu0 0.0
        %2508 = vmatpush1.msra.mxu0 0.0
        %2509 = vmatprep.subr.mxu0 0.0
        %2510 = vmatpush1.msra.mxu0 0.0
        %2511 = vmatprep.subr.mxu0 0.0
        %2512 = vmatpush1.msra.mxu0 0.0
        %2513 = vmatprep.subr.mxu0 0.0
        %2514 = vmatpush1.msra.mxu0 0.0
        %2515 = vmatprep.subr.mxu0 0.0
        %2516 = vmatpush1.msra.mxu0 0.0
        %2517 = vmatprep.subr.mxu0 0.0
        %2518 = vmatpush1.msra.mxu0 0.0
        %2519 = vmatprep.subr.mxu0 0.0
        %2520 = vmatpush1.msra.mxu0 %v2484
        %2521 = vmatprep.subr.mxu0 0.0
        %2522 = vmatpush2.msra.mxu0 0.0
        %2523 = vmatprep.subr.mxu0 0.0
        %2524 = vmatpush2.msra.mxu0 0.0
        %2525 = vmatprep.subr.mxu0 0.0
        %2526 = vmatpush2.msra.mxu0 0.0
        %2527 = vmatprep.subr.mxu0 0.0
        %2528 = vmatpush2.msra.mxu0 0.0
        %2529 = vmatprep.subr.mxu0 0.0
        %2530 = vmatpush2.msra.mxu0 0.0
        %2531 = vmatprep.subr.mxu0 0.0
        %2532 = vmatpush2.msra.mxu0 0.0
        %2533 = vmatprep.subr.mxu0 0.0
        %2534 = vmatpush2.msra.mxu0 0.0
        %2535 = vmatprep.subr.mxu0 0.0
        %2536 = vmatpush2.msra.mxu0 0.0
        %2537 = vmatprep.subr.mxu0 0.0
        %2538 = vmatpush2.msra.mxu0 0.0
        %2539 = vmatprep.subr.mxu0 0.0
        %2540 = vmatpush2.msra.mxu0 0.0
        %2541 = vmatprep.subr.mxu0 0.0
        %2542 = vmatpush2.msra.mxu0 0.0
        %2543 = vmatprep.subr.mxu0 0.0
        %2544 = vmatpush2.msra.mxu0 0.0
        %2545 = vmatprep.subr.mxu0 0.0
        %2546 = vmatpush2.msra.mxu0 0.0
        %2547 = vmatprep.subr.mxu0 0.0
        %2548 = vmatpush2.msra.mxu0 0.0
        %2549 = vmatprep.subr.mxu0 0.0
        %2550 = vmatpush2.msra.mxu0 0.0
        %2551 = vmatprep.subr.mxu0 0.0
        %2552 = vmatpush2.msra.mxu0 0.0
        %2553 = vmatprep.mubr.f32.mxu0 0.0
        %2554 = vmatmul.mubr.f32.gmra.mxu0 %v2487
        %v2555 = vpop.f32.mrf.mxu0
        %v2556 = vadd.f32 0.0, %v2555
        %v2557 = vpop.f32.mrf.mxu0
        %2558 = vdwg.mxu0
        %2567 = vset.pattern.permute.xlu0 0
        %2568 = vperm.xlu0 %2567, %v2244
        %v2569 = vpop.permute.xlu0 %2568
        %2570 = vset.pattern.permute.xlu0 0
        %2571 = vperm.xlu0 %2570, %v2245
        %v2572 = vpop.permute.xlu0 %2571
        %2573 = vset.pattern.permute.xlu0 0
        %2574 = vperm.xlu0 %2573, %v2246
        %v2575 = vpop.permute.xlu0 %2574
        %2576 = vset.pattern.permute.xlu0 0
        %2577 = vperm.xlu0 %2576, %v2247
        %v2578 = vpop.permute.xlu0 %2577
        %2579 = vset.pattern.permute.xlu0 0
        %2580 = vperm.xlu0 %2579, %v2248
        %v2581 = vpop.permute.xlu0 %2580
        %2582 = vset.pattern.permute.xlu0 0
        %2583 = vperm.xlu0 %2582, %v2249
        %v2584 = vpop.permute.xlu0 %2583
        %2585 = vset.pattern.permute.xlu0 0
        %2586 = vperm.xlu0 %2585, %v2250
        %v2587 = vpop.permute.xlu0 %2586
        %2588 = vset.pattern.permute.xlu0 0
        %2589 = vperm.xlu0 %2588, %v2251
        %v2590 = vpop.permute.xlu0 %2589
        %v2591 = vlaneseq
        %v2592 = vshrl.u32 %v2591, 7
        %v2593 = vsub.s32 %v898, %v2592
        %v2594 = vrot.slane %v2569, %v2593
        %v2595 = vlaneseq
        %v2596 = vshrl.u32 %v2595, 7
        %v2597 = vsub.s32 %v898, %v2596
        %v2598 = vrot.slane %v2572, %v2597
        %v2599 = vlaneseq
        %v2600 = vshrl.u32 %v2599, 7
        %v2601 = vsub.s32 %v898, %v2600
        %v2602 = vrot.slane %v2575, %v2601
        %v2603 = vlaneseq
        %v2604 = vshrl.u32 %v2603, 7
        %v2605 = vsub.s32 %v898, %v2604
        %v2606 = vrot.slane %v2578, %v2605
        %v2607 = vlaneseq
        %v2608 = vshrl.u32 %v2607, 7
        %v2609 = vsub.s32 %v898, %v2608
        %v2610 = vrot.slane %v2581, %v2609
        %v2611 = vlaneseq
        %v2612 = vshrl.u32 %v2611, 7
        %v2613 = vsub.s32 %v898, %v2612
        %v2614 = vrot.slane %v2584, %v2613
        %v2615 = vlaneseq
        %v2616 = vshrl.u32 %v2615, 7
        %v2617 = vsub.s32 %v898, %v2616
        %v2618 = vrot.slane %v2587, %v2617
        %v2619 = vlaneseq
        %v2620 = vshrl.u32 %v2619, 7
        %v2621 = vsub.s32 %v898, %v2620
        %v2622 = vrot.slane %v2590, %v2621
        %v2623 = vsel %vm931, %v2598, %v2594
        %v2624 = vsel %vm933, %v2602, %v2623
        %v2625 = vsel %vm935, %v2606, %v2624
        %v2626 = vsel %vm937, %v2610, %v2625
        %v2627 = vsel %vm939, %v2614, %v2626
        %v2628 = vsel %vm941, %v2618, %v2627
        %v2629 = vsel %vm943, %v2622, %v2628
        %v2632 = vsel %vm946, %v2252, 0
        %2634 = vmatprep.subr.mxu0 0.0
        %2635 = vmatpush1.msra.mxu0 0.0
        %2636 = vmatprep.subr.mxu0 0.0
        %2637 = vmatpush1.msra.mxu0 0.0
        %2638 = vmatprep.subr.mxu0 0.0
        %2639 = vmatpush1.msra.mxu0 0.0
        %2640 = vmatprep.subr.mxu0 0.0
        %2641 = vmatpush1.msra.mxu0 0.0
        %2642 = vmatprep.subr.mxu0 0.0
        %2643 = vmatpush1.msra.mxu0 0.0
        %2644 = vmatprep.subr.mxu0 0.0
        %2645 = vmatpush1.msra.mxu0 0.0
        %2646 = vmatprep.subr.mxu0 0.0
        %2647 = vmatpush1.msra.mxu0 0.0
        %2648 = vmatprep.subr.mxu0 0.0
        %2649 = vmatpush1.msra.mxu0 0.0
        %2650 = vmatprep.subr.mxu0 0.0
        %2651 = vmatpush1.msra.mxu0 0.0
        %2652 = vmatprep.subr.mxu0 0.0
        %2653 = vmatpush1.msra.mxu0 0.0
        %2654 = vmatprep.subr.mxu0 0.0
        %2655 = vmatpush1.msra.mxu0 0.0
        %2656 = vmatprep.subr.mxu0 0.0
        %2657 = vmatpush1.msra.mxu0 0.0
        %2658 = vmatprep.subr.mxu0 0.0
        %2659 = vmatpush1.msra.mxu0 0.0
        %2660 = vmatprep.subr.mxu0 0.0
        %2661 = vmatpush1.msra.mxu0 0.0
        %2662 = vmatprep.subr.mxu0 0.0
        %2663 = vmatpush1.msra.mxu0 0.0
        %2664 = vmatprep.subr.mxu0 0.0
        %2665 = vmatpush1.msra.mxu0 %v2629
        %2666 = vmatprep.subr.mxu0 0.0
        %2667 = vmatpush2.msra.mxu0 0.0
        %2668 = vmatprep.subr.mxu0 0.0
        %2669 = vmatpush2.msra.mxu0 0.0
        %2670 = vmatprep.subr.mxu0 0.0
        %2671 = vmatpush2.msra.mxu0 0.0
        %2672 = vmatprep.subr.mxu0 0.0
        %2673 = vmatpush2.msra.mxu0 0.0
        %2674 = vmatprep.subr.mxu0 0.0
        %2675 = vmatpush2.msra.mxu0 0.0
        %2676 = vmatprep.subr.mxu0 0.0
        %2677 = vmatpush2.msra.mxu0 0.0
        %2678 = vmatprep.subr.mxu0 0.0
        %2679 = vmatpush2.msra.mxu0 0.0
        %2680 = vmatprep.subr.mxu0 0.0
        %2681 = vmatpush2.msra.mxu0 0.0
        %2682 = vmatprep.subr.mxu0 0.0
        %2683 = vmatpush2.msra.mxu0 0.0
        %2684 = vmatprep.subr.mxu0 0.0
        %2685 = vmatpush2.msra.mxu0 0.0
        %2686 = vmatprep.subr.mxu0 0.0
        %2687 = vmatpush2.msra.mxu0 0.0
        %2688 = vmatprep.subr.mxu0 0.0
        %2689 = vmatpush2.msra.mxu0 0.0
        %2690 = vmatprep.subr.mxu0 0.0
        %2691 = vmatpush2.msra.mxu0 0.0
        %2692 = vmatprep.subr.mxu0 0.0
        %2693 = vmatpush2.msra.mxu0 0.0
        %2694 = vmatprep.subr.mxu0 0.0
        %2695 = vmatpush2.msra.mxu0 0.0
        %2696 = vmatprep.subr.mxu0 0.0
        %2697 = vmatpush2.msra.mxu0 0.0
        %2698 = vmatprep.mubr.f32.mxu0 0.0
        %2699 = vmatmul.mubr.f32.gmra.mxu0 %v2632
        %v2700 = vpop.f32.mrf.mxu0
        %v2701 = vadd.f32 %v2556, %v2700
        %v2702 = vpop.f32.mrf.mxu0
        %2703 = vdwg.mxu0
        %v2704 = vld [vmem:[#allocation3] sm:$0xff]
        %2706 = vrot.lane.b32.xlu0 %v2704, 126
        %v2707 = vpop.permute.xlu0 %2706
        %2708 = vrot.lane.b32.xlu0 %v2704, 124
        %v2709 = vpop.permute.xlu0 %2708
        %2710 = vrot.lane.b32.xlu0 %v2704, 122
        %v2711 = vpop.permute.xlu0 %2710
        %2712 = vrot.lane.b32.xlu0 %v2704, 120
        %v2713 = vpop.permute.xlu0 %2712
        %2714 = vrot.lane.b32.xlu0 %v2704, 118
        %v2715 = vpop.permute.xlu0 %2714
        %2716 = vrot.lane.b32.xlu0 %v2704, 116
        %v2717 = vpop.permute.xlu0 %2716
        %2718 = vrot.lane.b32.xlu0 %v2704, 114
        %v2719 = vpop.permute.xlu0 %2718
        %2720 = vrot.lane.b32.xlu0 %v2707, 126
        %v2721 = vpop.permute.xlu0 %2720
        %2722 = vrot.lane.b32.xlu0 %v2709, 126
        %v2723 = vpop.permute.xlu0 %2722
        %2724 = vrot.lane.b32.xlu0 %v2711, 126
        %v2725 = vpop.permute.xlu0 %2724
        %2726 = vrot.lane.b32.xlu0 %v2713, 126
        %v2727 = vpop.permute.xlu0 %2726
        %2728 = vrot.lane.b32.xlu0 %v2715, 126
        %v2729 = vpop.permute.xlu0 %2728
        %2730 = vrot.lane.b32.xlu0 %v2717, 126
        %v2731 = vpop.permute.xlu0 %2730
        %2732 = vrot.lane.b32.xlu0 %v2719, 126
        %v2733 = vpop.permute.xlu0 %2732
        %v2742 = vcombine.low %v2707, %v2723
        %v2743 = vcombine.high %v2707, %v2723
        %v2745 = vunpack.c.l.s4 1983009808
        %v2746 = vunpack.c.0.s8 %v2745
        %v2747 = vlaneseq
        %v2748 = vshrl.u32 %v2747, 7
        %v2749 = vsub.s32 %v2746, %v2748
        %v2750 = vrot.slane %v2742, %v2749
        %v2752 = vunpack.c.l.s4 1983009808
        %v2753 = vunpack.c.0.s8 %v2752
        %v2754 = vlaneseq
        %v2755 = vshrl.u32 %v2754, 7
        %v2756 = vsub.s32 %v2753, %v2755
        %v2757 = vrot.slane %v2743, %v2756
        %v2758 = vcombine.low %v2721, %v2725
        %v2759 = vcombine.high %v2721, %v2725
        %v2761 = vunpack.c.l.s4 1983009808
        %v2762 = vunpack.c.0.s8 %v2761
        %v2763 = vlaneseq
        %v2764 = vshrl.u32 %v2763, 7
        %v2765 = vsub.s32 %v2762, %v2764
        %v2766 = vrot.slane %v2758, %v2765
        %v2768 = vunpack.c.l.s4 1983009808
        %v2769 = vunpack.c.0.s8 %v2768
        %v2770 = vlaneseq
        %v2771 = vshrl.u32 %v2770, 7
        %v2772 = vsub.s32 %v2769, %v2771
        %v2773 = vrot.slane %v2759, %v2772
        %v2774 = vcombine.low %v2727, %v2731
        %v2775 = vcombine.high %v2727, %v2731
        %v2777 = vunpack.c.l.s4 1983009808
        %v2778 = vunpack.c.0.s8 %v2777
        %v2779 = vlaneseq
        %v2780 = vshrl.u32 %v2779, 7
        %v2781 = vsub.s32 %v2778, %v2780
        %v2782 = vrot.slane %v2774, %v2781
        %v2784 = vunpack.c.l.s4 1983009808
        %v2785 = vunpack.c.0.s8 %v2784
        %v2786 = vlaneseq
        %v2787 = vshrl.u32 %v2786, 7
        %v2788 = vsub.s32 %v2785, %v2787
        %v2789 = vrot.slane %v2775, %v2788
        %v2790 = vcombine.low %v2729, %v2733
        %v2791 = vcombine.high %v2729, %v2733
        %v2793 = vunpack.c.l.s4 1983009808
        %v2794 = vunpack.c.0.s8 %v2793
        %v2795 = vlaneseq
        %v2796 = vshrl.u32 %v2795, 7
        %v2797 = vsub.s32 %v2794, %v2796
        %v2798 = vrot.slane %v2790, %v2797
        %v2800 = vunpack.c.l.s4 1983009808
        %v2801 = vunpack.c.0.s8 %v2800
        %v2802 = vlaneseq
        %v2803 = vshrl.u32 %v2802, 7
        %v2804 = vsub.s32 %v2801, %v2803
        %v2805 = vrot.slane %v2791, %v2804
        %v2806 = vcombine.low %v2750, %v2766
        %v2807 = vcombine.high %v2750, %v2766
        %v2809 = vunpack.c.l.s4 1934713408
        %v2810 = vunpack.c.0.s8 %v2809
        %v2811 = vlaneseq
        %v2812 = vshrl.u32 %v2811, 7
        %v2813 = vsub.s32 %v2810, %v2812
        %v2814 = vrot.slane %v2806, %v2813
        %v2816 = vunpack.c.l.s4 1934713408
        %v2817 = vunpack.c.0.s8 %v2816
        %v2818 = vlaneseq
        %v2819 = vshrl.u32 %v2818, 7
        %v2820 = vsub.s32 %v2817, %v2819
        %v2821 = vrot.slane %v2807, %v2820
        %v2822 = vcombine.low %v2757, %v2773
        %v2823 = vcombine.high %v2757, %v2773
        %v2825 = vunpack.c.l.s4 1934713408
        %v2826 = vunpack.c.0.s8 %v2825
        %v2827 = vlaneseq
        %v2828 = vshrl.u32 %v2827, 7
        %v2829 = vsub.s32 %v2826, %v2828
        %v2830 = vrot.slane %v2822, %v2829
        %v2832 = vunpack.c.l.s4 1934713408
        %v2833 = vunpack.c.0.s8 %v2832
        %v2834 = vlaneseq
        %v2835 = vshrl.u32 %v2834, 7
        %v2836 = vsub.s32 %v2833, %v2835
        %v2837 = vrot.slane %v2823, %v2836
        %v2838 = vcombine.low %v2782, %v2798
        %v2839 = vcombine.high %v2782, %v2798
        %v2841 = vunpack.c.l.s4 1934713408
        %v2842 = vunpack.c.0.s8 %v2841
        %v2843 = vlaneseq
        %v2844 = vshrl.u32 %v2843, 7
        %v2845 = vsub.s32 %v2842, %v2844
        %v2846 = vrot.slane %v2838, %v2845
        %v2848 = vunpack.c.l.s4 1934713408
        %v2849 = vunpack.c.0.s8 %v2848
        %v2850 = vlaneseq
        %v2851 = vshrl.u32 %v2850, 7
        %v2852 = vsub.s32 %v2849, %v2851
        %v2853 = vrot.slane %v2839, %v2852
        %v2854 = vcombine.low %v2789, %v2805
        %v2855 = vcombine.high %v2789, %v2805
        %v2857 = vunpack.c.l.s4 1934713408
        %v2858 = vunpack.c.0.s8 %v2857
        %v2859 = vlaneseq
        %v2860 = vshrl.u32 %v2859, 7
        %v2861 = vsub.s32 %v2858, %v2860
        %v2862 = vrot.slane %v2854, %v2861
        %v2864 = vunpack.c.l.s4 1934713408
        %v2865 = vunpack.c.0.s8 %v2864
        %v2866 = vlaneseq
        %v2867 = vshrl.u32 %v2866, 7
        %v2868 = vsub.s32 %v2865, %v2867
        %v2869 = vrot.slane %v2855, %v2868
        %v2870 = vcombine.low %v2814, %v2846
        %v2871 = vcombine.high %v2814, %v2846
        %v2872 = vcombine.low %v2821, %v2853
        %v2873 = vcombine.high %v2821, %v2853
        %v2874 = vcombine.low %v2830, %v2862
        %v2875 = vcombine.high %v2830, %v2862
        %v2876 = vcombine.low %v2837, %v2869
        %v2877 = vcombine.high %v2837, %v2869
        %v2878 = vld [vmem:[%s1339] sm:$0xff]
        %2887 = vset.pattern.permute.xlu0 0
        %2888 = vperm.xlu0 %2887, %v2870
        %v2889 = vpop.permute.xlu0 %2888
        %2890 = vset.pattern.permute.xlu0 0
        %2891 = vperm.xlu0 %2890, %v2871
        %v2892 = vpop.permute.xlu0 %2891
        %2893 = vset.pattern.permute.xlu0 0
        %2894 = vperm.xlu0 %2893, %v2872
        %v2895 = vpop.permute.xlu0 %2894
        %2896 = vset.pattern.permute.xlu0 0
        %2897 = vperm.xlu0 %2896, %v2873
        %v2898 = vpop.permute.xlu0 %2897
        %2899 = vset.pattern.permute.xlu0 0
        %2900 = vperm.xlu0 %2899, %v2874
        %v2901 = vpop.permute.xlu0 %2900
        %2902 = vset.pattern.permute.xlu0 0
        %2903 = vperm.xlu0 %2902, %v2875
        %v2904 = vpop.permute.xlu0 %2903
        %2905 = vset.pattern.permute.xlu0 0
        %2906 = vperm.xlu0 %2905, %v2876
        %v2907 = vpop.permute.xlu0 %2906
        %2908 = vset.pattern.permute.xlu0 0
        %2909 = vperm.xlu0 %2908, %v2877
        %v2910 = vpop.permute.xlu0 %2909
        %v2911 = vlaneseq
        %v2912 = vshrl.u32 %v2911, 7
        %v2913 = vsub.s32 %v898, %v2912
        %v2914 = vrot.slane %v2889, %v2913
        %v2915 = vlaneseq
        %v2916 = vshrl.u32 %v2915, 7
        %v2917 = vsub.s32 %v898, %v2916
        %v2918 = vrot.slane %v2892, %v2917
        %v2919 = vlaneseq
        %v2920 = vshrl.u32 %v2919, 7
        %v2921 = vsub.s32 %v898, %v2920
        %v2922 = vrot.slane %v2895, %v2921
        %v2923 = vlaneseq
        %v2924 = vshrl.u32 %v2923, 7
        %v2925 = vsub.s32 %v898, %v2924
        %v2926 = vrot.slane %v2898, %v2925
        %v2927 = vlaneseq
        %v2928 = vshrl.u32 %v2927, 7
        %v2929 = vsub.s32 %v898, %v2928
        %v2930 = vrot.slane %v2901, %v2929
        %v2931 = vlaneseq
        %v2932 = vshrl.u32 %v2931, 7
        %v2933 = vsub.s32 %v898, %v2932
        %v2934 = vrot.slane %v2904, %v2933
        %v2935 = vlaneseq
        %v2936 = vshrl.u32 %v2935, 7
        %v2937 = vsub.s32 %v898, %v2936
        %v2938 = vrot.slane %v2907, %v2937
        %v2939 = vlaneseq
        %v2940 = vshrl.u32 %v2939, 7
        %v2941 = vsub.s32 %v898, %v2940
        %v2942 = vrot.slane %v2910, %v2941
        %v2943 = vsel %vm931, %v2918, %v2914
        %v2944 = vsel %vm933, %v2922, %v2943
        %v2945 = vsel %vm935, %v2926, %v2944
        %v2946 = vsel %vm937, %v2930, %v2945
        %v2947 = vsel %vm939, %v2934, %v2946
        %v2948 = vsel %vm941, %v2938, %v2947
        %v2949 = vsel %vm943, %v2942, %v2948
        %v2952 = vsel %vm946, %v2878, 0
        %2954 = vmatprep.subr.mxu0 0.0
        %2955 = vmatpush1.msra.mxu0 0.0
        %2956 = vmatprep.subr.mxu0 0.0
        %2957 = vmatpush1.msra.mxu0 0.0
        %2958 = vmatprep.subr.mxu0 0.0
        %2959 = vmatpush1.msra.mxu0 0.0
        %2960 = vmatprep.subr.mxu0 0.0
        %2961 = vmatpush1.msra.mxu0 0.0
        %2962 = vmatprep.subr.mxu0 0.0
        %2963 = vmatpush1.msra.mxu0 0.0
        %2964 = vmatprep.subr.mxu0 0.0
        %2965 = vmatpush1.msra.mxu0 0.0
        %2966 = vmatprep.subr.mxu0 0.0
        %2967 = vmatpush1.msra.mxu0 0.0
        %2968 = vmatprep.subr.mxu0 0.0
        %2969 = vmatpush1.msra.mxu0 0.0
        %2970 = vmatprep.subr.mxu0 0.0
        %2971 = vmatpush1.msra.mxu0 0.0
        %2972 = vmatprep.subr.mxu0 0.0
        %2973 = vmatpush1.msra.mxu0 0.0
        %2974 = vmatprep.subr.mxu0 0.0
        %2975 = vmatpush1.msra.mxu0 0.0
        %2976 = vmatprep.subr.mxu0 0.0
        %2977 = vmatpush1.msra.mxu0 0.0
        %2978 = vmatprep.subr.mxu0 0.0
        %2979 = vmatpush1.msra.mxu0 0.0
        %2980 = vmatprep.subr.mxu0 0.0
        %2981 = vmatpush1.msra.mxu0 0.0
        %2982 = vmatprep.subr.mxu0 0.0
        %2983 = vmatpush1.msra.mxu0 0.0
        %2984 = vmatprep.subr.mxu0 0.0
        %2985 = vmatpush1.msra.mxu0 %v2949
        %2986 = vmatprep.subr.mxu0 0.0
        %2987 = vmatpush2.msra.mxu0 0.0
        %2988 = vmatprep.subr.mxu0 0.0
        %2989 = vmatpush2.msra.mxu0 0.0
        %2990 = vmatprep.subr.mxu0 0.0
        %2991 = vmatpush2.msra.mxu0 0.0
        %2992 = vmatprep.subr.mxu0 0.0
        %2993 = vmatpush2.msra.mxu0 0.0
        %2994 = vmatprep.subr.mxu0 0.0
        %2995 = vmatpush2.msra.mxu0 0.0
        %2996 = vmatprep.subr.mxu0 0.0
        %2997 = vmatpush2.msra.mxu0 0.0
        %2998 = vmatprep.subr.mxu0 0.0
        %2999 = vmatpush2.msra.mxu0 0.0
        %3000 = vmatprep.subr.mxu0 0.0
        %3001 = vmatpush2.msra.mxu0 0.0
        %3002 = vmatprep.subr.mxu0 0.0
        %3003 = vmatpush2.msra.mxu0 0.0
        %3004 = vmatprep.subr.mxu0 0.0
        %3005 = vmatpush2.msra.mxu0 0.0
        %3006 = vmatprep.subr.mxu0 0.0
        %3007 = vmatpush2.msra.mxu0 0.0
        %3008 = vmatprep.subr.mxu0 0.0
        %3009 = vmatpush2.msra.mxu0 0.0
        %3010 = vmatprep.subr.mxu0 0.0
        %3011 = vmatpush2.msra.mxu0 0.0
        %3012 = vmatprep.subr.mxu0 0.0
        %3013 = vmatpush2.msra.mxu0 0.0
        %3014 = vmatprep.subr.mxu0 0.0
        %3015 = vmatpush2.msra.mxu0 0.0
        %3016 = vmatprep.subr.mxu0 0.0
        %3017 = vmatpush2.msra.mxu0 0.0
        %3018 = vmatprep.mubr.f32.mxu0 0.0
        %3019 = vmatmul.mubr.f32.gmra.mxu0 %v2952
        %v3020 = vpop.f32.mrf.mxu0
        %v3021 = vadd.f32 0.0, %v3020
        %v3022 = vpop.f32.mrf.mxu0
        %3023 = vdwg.mxu0
        %v3024 = vadd.f32 %v2701, %v3021
        %v3025 = vld [vmem:[%s4] sm:$0xff]
        %3027 = vset.pattern.permute.xlu0 0
        %3028 = vperm.xlu0 %3027, %v3025
        %v3029 = vpop.permute.xlu0 %3028
        %v3031 = vadd.f32 %v3024, %v3029
        %v3032 = vld [vmem:[#allocation2] sm:$0xf]
        %3034 = vrot.lane.b32.xlu0 %v3032, 126
        %v3035 = vpop.permute.xlu0 %3034
        %3036 = vrot.lane.b32.xlu0 %v3032, 124
        %v3037 = vpop.permute.xlu0 %3036
        %3038 = vrot.lane.b32.xlu0 %v3032, 122
        %v3039 = vpop.permute.xlu0 %3038
        %3040 = vrot.lane.b32.xlu0 %v3032, 120
        %v3041 = vpop.permute.xlu0 %3040
        %3042 = vrot.lane.b32.xlu0 %v3032, 118
        %v3043 = vpop.permute.xlu0 %3042
        %3044 = vrot.lane.b32.xlu0 %v3032, 116
        %v3045 = vpop.permute.xlu0 %3044
        %3046 = vrot.lane.b32.xlu0 %v3032, 114
        %v3047 = vpop.permute.xlu0 %3046
        %3048 = vrot.lane.b32.xlu0 %v3032, 127
        %v3049 = vpop.permute.xlu0 %3048
        %3050 = vrot.lane.b32.xlu0 %v3035, 127
        %v3051 = vpop.permute.xlu0 %3050
        %3052 = vrot.lane.b32.xlu0 %v3037, 127
        %v3053 = vpop.permute.xlu0 %3052
        %3054 = vrot.lane.b32.xlu0 %v3039, 127
        %v3055 = vpop.permute.xlu0 %3054
        %3056 = vrot.lane.b32.xlu0 %v3041, 127
        %v3057 = vpop.permute.xlu0 %3056
        %3058 = vrot.lane.b32.xlu0 %v3043, 127
        %v3059 = vpop.permute.xlu0 %3058
        %3060 = vrot.lane.b32.xlu0 %v3045, 127
        %v3061 = vpop.permute.xlu0 %3060
        %3062 = vrot.lane.b32.xlu0 %v3047, 127
        %v3063 = vpop.permute.xlu0 %3062
        %v3072 = vcombine.low %v3049, %v3053
        %v3074 = vunpack.c.l.s4 1983009808
        %v3075 = vunpack.c.0.s8 %v3074
        %v3076 = vlaneseq
        %v3077 = vshrl.u32 %v3076, 7
        %v3078 = vsub.s32 %v3075, %v3077
        %v3079 = vrot.slane %v3072, %v3078
        %v3080 = vcombine.low %v3051, %v3055
        %v3082 = vunpack.c.l.s4 1983009808
        %v3083 = vunpack.c.0.s8 %v3082
        %v3084 = vlaneseq
        %v3085 = vshrl.u32 %v3084, 7
        %v3086 = vsub.s32 %v3083, %v3085
        %v3087 = vrot.slane %v3080, %v3086
        %v3088 = vcombine.low %v3057, %v3061
        %v3090 = vunpack.c.l.s4 1983009808
        %v3091 = vunpack.c.0.s8 %v3090
        %v3092 = vlaneseq
        %v3093 = vshrl.u32 %v3092, 7
        %v3094 = vsub.s32 %v3091, %v3093
        %v3095 = vrot.slane %v3088, %v3094
        %v3096 = vcombine.low %v3059, %v3063
        %v3098 = vunpack.c.l.s4 1983009808
        %v3099 = vunpack.c.0.s8 %v3098
        %v3100 = vlaneseq
        %v3101 = vshrl.u32 %v3100, 7
        %v3102 = vsub.s32 %v3099, %v3101
        %v3103 = vrot.slane %v3096, %v3102
        %v3104 = vcombine.low %v3079, %v3087
        %v3105 = vcombine.high %v3079, %v3087
        %v3107 = vunpack.c.l.s4 1934713408
        %v3108 = vunpack.c.0.s8 %v3107
        %v3109 = vlaneseq
        %v3110 = vshrl.u32 %v3109, 7
        %v3111 = vsub.s32 %v3108, %v3110
        %v3112 = vrot.slane %v3104, %v3111
        %v3114 = vunpack.c.l.s4 1934713408
        %v3115 = vunpack.c.0.s8 %v3114
        %v3116 = vlaneseq
        %v3117 = vshrl.u32 %v3116, 7
        %v3118 = vsub.s32 %v3115, %v3117
        %v3119 = vrot.slane %v3105, %v3118
        %v3120 = vcombine.low %v3095, %v3103
        %v3121 = vcombine.high %v3095, %v3103
        %v3123 = vunpack.c.l.s4 1934713408
        %v3124 = vunpack.c.0.s8 %v3123
        %v3125 = vlaneseq
        %v3126 = vshrl.u32 %v3125, 7
        %v3127 = vsub.s32 %v3124, %v3126
        %v3128 = vrot.slane %v3120, %v3127
        %v3130 = vunpack.c.l.s4 1934713408
        %v3131 = vunpack.c.0.s8 %v3130
        %v3132 = vlaneseq
        %v3133 = vshrl.u32 %v3132, 7
        %v3134 = vsub.s32 %v3131, %v3133
        %v3135 = vrot.slane %v3121, %v3134
        %v3136 = vcombine.low %v3112, %v3128
        %v3137 = vcombine.high %v3112, %v3128
        %v3138 = vcombine.low %v3119, %v3135
        %v3139 = vcombine.high %v3119, %v3135
        %v3140 = vld [vmem:[%s5] sm:$0xff]
        %3145 = vset.pattern.permute.xlu0 0
        %3146 = vperm.xlu0 %3145, %v3136
        %v3147 = vpop.permute.xlu0 %3146
        %3148 = vset.pattern.permute.xlu0 0
        %3149 = vperm.xlu0 %3148, %v3137
        %v3150 = vpop.permute.xlu0 %3149
        %3151 = vset.pattern.permute.xlu0 0
        %3152 = vperm.xlu0 %3151, %v3138
        %v3153 = vpop.permute.xlu0 %3152
        %3154 = vset.pattern.permute.xlu0 0
        %3155 = vperm.xlu0 %3154, %v3139
        %v3156 = vpop.permute.xlu0 %3155
        %v3157 = vlaneseq
        %v3158 = vshrl.u32 %v3157, 7
        %v3159 = vsub.s32 %v898, %v3158
        %v3160 = vrot.slane %v3147, %v3159
        %v3161 = vlaneseq
        %v3162 = vshrl.u32 %v3161, 7
        %v3163 = vsub.s32 %v898, %v3162
        %v3164 = vrot.slane %v3150, %v3163
        %v3165 = vlaneseq
        %v3166 = vshrl.u32 %v3165, 7
        %v3167 = vsub.s32 %v898, %v3166
        %v3168 = vrot.slane %v3153, %v3167
        %v3169 = vlaneseq
        %v3170 = vshrl.u32 %v3169, 7
        %v3171 = vsub.s32 %v898, %v3170
        %v3172 = vrot.slane %v3156, %v3171
        %v3173 = vsel %vm931, %v3164, %v3160
        %v3174 = vsel %vm933, %v3168, %v3173
        %v3175 = vsel %vm935, %v3172, %v3174
        %v3177 = vsel %vm297, %v3140, 0
        %v3179 = vsel %vm301, %v3175, 0
        %3181 = vmatprep.subr.mxu0 0.0
        %3182 = vmatpush1.msra.mxu0 0.0
        %3183 = vmatprep.subr.mxu0 0.0
        %3184 = vmatpush1.msra.mxu0 0.0
        %3185 = vmatprep.subr.mxu0 0.0
        %3186 = vmatpush1.msra.mxu0 0.0
        %3187 = vmatprep.subr.mxu0 0.0
        %3188 = vmatpush1.msra.mxu0 0.0
        %3189 = vmatprep.subr.mxu0 0.0
        %3190 = vmatpush1.msra.mxu0 0.0
        %3191 = vmatprep.subr.mxu0 0.0
        %3192 = vmatpush1.msra.mxu0 0.0
        %3193 = vmatprep.subr.mxu0 0.0
        %3194 = vmatpush1.msra.mxu0 0.0
        %3195 = vmatprep.subr.mxu0 0.0
        %3196 = vmatpush1.msra.mxu0 0.0
        %3197 = vmatprep.subr.mxu0 0.0
        %3198 = vmatpush1.msra.mxu0 0.0
        %3199 = vmatprep.subr.mxu0 0.0
        %3200 = vmatpush1.msra.mxu0 0.0
        %3201 = vmatprep.subr.mxu0 0.0
        %3202 = vmatpush1.msra.mxu0 0.0
        %3203 = vmatprep.subr.mxu0 0.0
        %3204 = vmatpush1.msra.mxu0 0.0
        %3205 = vmatprep.subr.mxu0 0.0
        %3206 = vmatpush1.msra.mxu0 0.0
        %3207 = vmatprep.subr.mxu0 0.0
        %3208 = vmatpush1.msra.mxu0 0.0
        %3209 = vmatprep.subr.mxu0 0.0
        %3210 = vmatpush1.msra.mxu0 0.0
        %3211 = vmatprep.subr.mxu0 0.0
        %3212 = vmatpush1.msra.mxu0 %v3179
        %3213 = vmatprep.subr.mxu0 0.0
        %3214 = vmatpush2.msra.mxu0 0.0
        %3215 = vmatprep.subr.mxu0 0.0
        %3216 = vmatpush2.msra.mxu0 0.0
        %3217 = vmatprep.subr.mxu0 0.0
        %3218 = vmatpush2.msra.mxu0 0.0
        %3219 = vmatprep.subr.mxu0 0.0
        %3220 = vmatpush2.msra.mxu0 0.0
        %3221 = vmatprep.subr.mxu0 0.0
        %3222 = vmatpush2.msra.mxu0 0.0
        %3223 = vmatprep.subr.mxu0 0.0
        %3224 = vmatpush2.msra.mxu0 0.0
        %3225 = vmatprep.subr.mxu0 0.0
        %3226 = vmatpush2.msra.mxu0 0.0
        %3227 = vmatprep.subr.mxu0 0.0
        %3228 = vmatpush2.msra.mxu0 0.0
        %3229 = vmatprep.subr.mxu0 0.0
        %3230 = vmatpush2.msra.mxu0 0.0
        %3231 = vmatprep.subr.mxu0 0.0
        %3232 = vmatpush2.msra.mxu0 0.0
        %3233 = vmatprep.subr.mxu0 0.0
        %3234 = vmatpush2.msra.mxu0 0.0
        %3235 = vmatprep.subr.mxu0 0.0
        %3236 = vmatpush2.msra.mxu0 0.0
        %3237 = vmatprep.subr.mxu0 0.0
        %3238 = vmatpush2.msra.mxu0 0.0
        %3239 = vmatprep.subr.mxu0 0.0
        %3240 = vmatpush2.msra.mxu0 0.0
        %3241 = vmatprep.subr.mxu0 0.0
        %3242 = vmatpush2.msra.mxu0 0.0
        %3243 = vmatprep.subr.mxu0 0.0
        %3244 = vmatpush2.msra.mxu0 0.0
        %3245 = vmatprep.mubr.f32.mxu0 0.0
        %3246 = vmatmul.mubr.f32.gmra.mxu0 %v3177
        %v3247 = vpop.f32.mrf.mxu0
        %v3248 = vadd.f32 0.0, %v3247
        %v3249 = vpop.f32.mrf.mxu0
        %3250 = vdwg.mxu0
        %v3251 = vadd.f32 %v3031, %v3248
        %v3252 = vld [vmem:[%s6] sm:$0xff]
        %3254 = vset.pattern.permute.xlu0 0
        %3255 = vperm.xlu0 %3254, %v3252
        %v3256 = vpop.permute.xlu0 %3255
        %v3258 = vadd.f32 %v3251, %v3256
        %v3259 = vsub.f32 0.0, %v3258
        %v3260 = vmul.f32 %v3259, 1.442695
        %v3261 = vpow.pop %v3260
        %v3262 = vadd.f32 %v3261, 1.0
        %v3263 = vrcp.pop %v3262
        %v3264 = vmul.f32 1.0, %v3263
        %3266 = vrot.lane.b32.xlu0 %v3264, 126
        %v3267 = vpop.permute.xlu0 %3266
        %3269 = vrot.lane.b32.xlu0 %v3264, 124
        %v3270 = vpop.permute.xlu0 %3269
        %3272 = vrot.lane.b32.xlu0 %v3264, 122
        %v3273 = vpop.permute.xlu0 %3272
        %v3275 = vcombine.low %v3264, %v3270
        %v3276 = vcombine.high %v3264, %v3270
        %v3278 = vunpack.c.l.s4 1983009808
        %v3279 = vunpack.c.0.s8 %v3278
        %v3280 = vlaneseq
        %v3281 = vshrl.u32 %v3280, 7
        %v3282 = vsub.s32 %v3279, %v3281
        %v3283 = vrot.slane %v3275, %v3282
        %v3285 = vunpack.c.l.s4 1983009808
        %v3286 = vunpack.c.0.s8 %v3285
        %v3287 = vlaneseq
        %v3288 = vshrl.u32 %v3287, 7
        %v3289 = vsub.s32 %v3286, %v3288
        %v3290 = vrot.slane %v3276, %v3289
        %v3291 = vcombine.low %v3267, %v3273
        %v3292 = vcombine.high %v3267, %v3273
        %v3294 = vunpack.c.l.s4 1983009808
        %v3295 = vunpack.c.0.s8 %v3294
        %v3296 = vlaneseq
        %v3297 = vshrl.u32 %v3296, 7
        %v3298 = vsub.s32 %v3295, %v3297
        %v3299 = vrot.slane %v3291, %v3298
        %v3301 = vunpack.c.l.s4 1983009808
        %v3302 = vunpack.c.0.s8 %v3301
        %v3303 = vlaneseq
        %v3304 = vshrl.u32 %v3303, 7
        %v3305 = vsub.s32 %v3302, %v3304
        %v3306 = vrot.slane %v3292, %v3305
        %v3307 = vcombine.low %v3283, %v3299
        %v3308 = vcombine.high %v3283, %v3299
        %v3310 = vunpack.c.l.s4 1934713408
        %v3311 = vunpack.c.0.s8 %v3310
        %v3312 = vlaneseq
        %v3313 = vshrl.u32 %v3312, 7
        %v3314 = vsub.s32 %v3311, %v3313
        %v3315 = vrot.slane %v3307, %v3314
        %v3317 = vunpack.c.l.s4 1934713408
        %v3318 = vunpack.c.0.s8 %v3317
        %v3319 = vlaneseq
        %v3320 = vshrl.u32 %v3319, 7
        %v3321 = vsub.s32 %v3318, %v3320
        %v3322 = vrot.slane %v3308, %v3321
        %v3323 = vcombine.low %v3290, %v3306
        %v3324 = vcombine.high %v3290, %v3306
        %v3326 = vunpack.c.l.s4 1934713408
        %v3327 = vunpack.c.0.s8 %v3326
        %v3328 = vlaneseq
        %v3329 = vshrl.u32 %v3328, 7
        %v3330 = vsub.s32 %v3327, %v3329
        %v3331 = vrot.slane %v3323, %v3330
        %v3333 = vunpack.c.l.s4 1934713408
        %v3334 = vunpack.c.0.s8 %v3333
        %v3335 = vlaneseq
        %v3336 = vshrl.u32 %v3335, 7
        %v3337 = vsub.s32 %v3334, %v3336
        %v3338 = vrot.slane %v3324, %v3337
        %v3339 = vcombine.high %v3315, 0.0
        %v3340 = vcombine.high %v3322, 0.0
        %v3341 = vcombine.high %v3331, 0.0
        %v3342 = vcombine.high %v3338, 0.0
        %v3343 = vsel %vm1805, %v3315, 0.0
        %3344 = vadd.xlane.f32.xlu0 %v3343
        %v3345 = vpop.xlane.xlu0 %3344
        %v3346 = vsel %vm1805, %v3339, 0.0
        %3347 = vadd.xlane.f32.xlu0 %v3346
        %v3348 = vpop.xlane.xlu0 %3347
        %v3349 = vsel %vm1805, %v3322, 0.0
        %3350 = vadd.xlane.f32.xlu0 %v3349
        %v3351 = vpop.xlane.xlu0 %3350
        %v3352 = vsel %vm1805, %v3340, 0.0
        %3353 = vadd.xlane.f32.xlu0 %v3352
        %v3354 = vpop.xlane.xlu0 %3353
        %v3355 = vsel %vm1805, %v3331, 0.0
        %3356 = vadd.xlane.f32.xlu0 %v3355
        %v3357 = vpop.xlane.xlu0 %3356
        %v3358 = vsel %vm1805, %v3341, 0.0
        %3359 = vadd.xlane.f32.xlu0 %v3358
        %v3360 = vpop.xlane.xlu0 %3359
        %v3361 = vsel %vm1805, %v3338, 0.0
        %3362 = vadd.xlane.f32.xlu0 %v3361
        %v3363 = vpop.xlane.xlu0 %3362
        %v3364 = vsel %vm1805, %v3342, 0.0
        %3365 = vadd.xlane.f32.xlu0 %v3364
        %v3366 = vpop.xlane.xlu0 %3365
        %v3367 = vmul.f32 %v3345, 0.5
        %v3368 = vmul.f32 %v3348, 0.5
        %v3369 = vmul.f32 %v3351, 0.5
        %v3370 = vmul.f32 %v3354, 0.5
        %v3371 = vmul.f32 %v3357, 0.5
        %v3372 = vmul.f32 %v3360, 0.5
        %v3373 = vmul.f32 %v3363, 0.5
        %v3374 = vmul.f32 %v3366, 0.5
        %s3375 = scalar_lea.vmem %s277, 8
        %v3376 = vld [vmem:[%s3375] sm:$0xf]
        %3378 = vrot.lane.b32.xlu0 %v3376, 1
        %v3379 = vpop.permute.xlu0 %3378
        %3381 = vst.msk [vmem:[#allocation2] sm:$0xf] %vm288, %v3379
        %v3382 = vld [vmem:[%s1] sm:$0xff]
        %v3383 = vld [vmem:[#allocation2] sm:$0xf]
        %v3384 = vld [vmem:[%s292] sm:$0xff]
        %3386 = vrot.lane.b32.xlu0 %v3383, 127
        %v3387 = vpop.permute.xlu0 %3386
        %v3389 = vsel %vm297, %v3384, 0
        %v3391 = vsel %vm301, %v3387, 0
        %3393 = vmatprep.subr.mxu0 0.0
        %3394 = vmatpush1.msra.mxu0 0.0
        %3395 = vmatprep.subr.mxu0 0.0
        %3396 = vmatpush1.msra.mxu0 0.0
        %3397 = vmatprep.subr.mxu0 0.0
        %3398 = vmatpush1.msra.mxu0 0.0
        %3399 = vmatprep.subr.mxu0 0.0
        %3400 = vmatpush1.msra.mxu0 0.0
        %3401 = vmatprep.subr.mxu0 0.0
        %3402 = vmatpush1.msra.mxu0 0.0
        %3403 = vmatprep.subr.mxu0 0.0
        %3404 = vmatpush1.msra.mxu0 0.0
        %3405 = vmatprep.subr.mxu0 0.0
        %3406 = vmatpush1.msra.mxu0 0.0
        %3407 = vmatprep.subr.mxu0 0.0
        %3408 = vmatpush1.msra.mxu0 0.0
        %3409 = vmatprep.subr.mxu0 0.0
        %3410 = vmatpush1.msra.mxu0 0.0
        %3411 = vmatprep.subr.mxu0 0.0
        %3412 = vmatpush1.msra.mxu0 0.0
        %3413 = vmatprep.subr.mxu0 0.0
        %3414 = vmatpush1.msra.mxu0 0.0
        %3415 = vmatprep.subr.mxu0 0.0
        %3416 = vmatpush1.msra.mxu0 0.0
        %3417 = vmatprep.subr.mxu0 0.0
        %3418 = vmatpush1.msra.mxu0 0.0
        %3419 = vmatprep.subr.mxu0 0.0
        %3420 = vmatpush1.msra.mxu0 0.0
        %3421 = vmatprep.subr.mxu0 0.0
        %3422 = vmatpush1.msra.mxu0 0.0
        %3423 = vmatprep.subr.mxu0 0.0
        %3424 = vmatpush1.msra.mxu0 %v3391
        %3425 = vmatprep.subr.mxu0 0.0
        %3426 = vmatpush2.msra.mxu0 0.0
        %3427 = vmatprep.subr.mxu0 0.0
        %3428 = vmatpush2.msra.mxu0 0.0
        %3429 = vmatprep.subr.mxu0 0.0
        %3430 = vmatpush2.msra.mxu0 0.0
        %3431 = vmatprep.subr.mxu0 0.0
        %3432 = vmatpush2.msra.mxu0 0.0
        %3433 = vmatprep.subr.mxu0 0.0
        %3434 = vmatpush2.msra.mxu0 0.0
        %3435 = vmatprep.subr.mxu0 0.0
        %3436 = vmatpush2.msra.mxu0 0.0
        %3437 = vmatprep.subr.mxu0 0.0
        %3438 = vmatpush2.msra.mxu0 0.0
        %3439 = vmatprep.subr.mxu0 0.0
        %3440 = vmatpush2.msra.mxu0 0.0
        %3441 = vmatprep.subr.mxu0 0.0
        %3442 = vmatpush2.msra.mxu0 0.0
        %3443 = vmatprep.subr.mxu0 0.0
        %3444 = vmatpush2.msra.mxu0 0.0
        %3445 = vmatprep.subr.mxu0 0.0
        %3446 = vmatpush2.msra.mxu0 0.0
        %3447 = vmatprep.subr.mxu0 0.0
        %3448 = vmatpush2.msra.mxu0 0.0
        %3449 = vmatprep.subr.mxu0 0.0
        %3450 = vmatpush2.msra.mxu0 0.0
        %3451 = vmatprep.subr.mxu0 0.0
        %3452 = vmatpush2.msra.mxu0 0.0
        %3453 = vmatprep.subr.mxu0 0.0
        %3454 = vmatpush2.msra.mxu0 0.0
        %3455 = vmatprep.subr.mxu0 0.0
        %3456 = vmatpush2.msra.mxu0 0.0
        %3457 = vmatprep.mubr.f32.mxu0 0.0
        %3458 = vmatmul.mubr.f32.gmra.mxu0 %v3389
        %v3459 = vpop.f32.mrf.mxu0
        %v3460 = vadd.f32 0.0, %v3459
        %v3461 = vpop.f32.mrf.mxu0
        %3462 = vdwg.mxu0
        %v3464 = vsel %vm297, %v3382, 0
        %v3466 = vsel %vm301, %v3383, 0
        %3468 = vmatprep.subr.mxu0 0.0
        %3469 = vmatpush1.msra.mxu0 0.0
        %3470 = vmatprep.subr.mxu0 0.0
        %3471 = vmatpush1.msra.mxu0 0.0
        %3472 = vmatprep.subr.mxu0 0.0
        %3473 = vmatpush1.msra.mxu0 0.0
        %3474 = vmatprep.subr.mxu0 0.0
        %3475 = vmatpush1.msra.mxu0 0.0
        %3476 = vmatprep.subr.mxu0 0.0
        %3477 = vmatpush1.msra.mxu0 0.0
        %3478 = vmatprep.subr.mxu0 0.0
        %3479 = vmatpush1.msra.mxu0 0.0
        %3480 = vmatprep.subr.mxu0 0.0
        %3481 = vmatpush1.msra.mxu0 0.0
        %3482 = vmatprep.subr.mxu0 0.0
        %3483 = vmatpush1.msra.mxu0 0.0
        %3484 = vmatprep.subr.mxu0 0.0
        %3485 = vmatpush1.msra.mxu0 0.0
        %3486 = vmatprep.subr.mxu0 0.0
        %3487 = vmatpush1.msra.mxu0 0.0
        %3488 = vmatprep.subr.mxu0 0.0
        %3489 = vmatpush1.msra.mxu0 0.0
        %3490 = vmatprep.subr.mxu0 0.0
        %3491 = vmatpush1.msra.mxu0 0.0
        %3492 = vmatprep.subr.mxu0 0.0
        %3493 = vmatpush1.msra.mxu0 0.0
        %3494 = vmatprep.subr.mxu0 0.0
        %3495 = vmatpush1.msra.mxu0 0.0
        %3496 = vmatprep.subr.mxu0 0.0
        %3497 = vmatpush1.msra.mxu0 0.0
        %3498 = vmatprep.subr.mxu0 0.0
        %3499 = vmatpush1.msra.mxu0 %v3466
        %3500 = vmatprep.subr.mxu0 0.0
        %3501 = vmatpush2.msra.mxu0 0.0
        %3502 = vmatprep.subr.mxu0 0.0
        %3503 = vmatpush2.msra.mxu0 0.0
        %3504 = vmatprep.subr.mxu0 0.0
        %3505 = vmatpush2.msra.mxu0 0.0
        %3506 = vmatprep.subr.mxu0 0.0
        %3507 = vmatpush2.msra.mxu0 0.0
        %3508 = vmatprep.subr.mxu0 0.0
        %3509 = vmatpush2.msra.mxu0 0.0
        %3510 = vmatprep.subr.mxu0 0.0
        %3511 = vmatpush2.msra.mxu0 0.0
        %3512 = vmatprep.subr.mxu0 0.0
        %3513 = vmatpush2.msra.mxu0 0.0
        %3514 = vmatprep.subr.mxu0 0.0
        %3515 = vmatpush2.msra.mxu0 0.0
        %3516 = vmatprep.subr.mxu0 0.0
        %3517 = vmatpush2.msra.mxu0 0.0
        %3518 = vmatprep.subr.mxu0 0.0
        %3519 = vmatpush2.msra.mxu0 0.0
        %3520 = vmatprep.subr.mxu0 0.0
        %3521 = vmatpush2.msra.mxu0 0.0
        %3522 = vmatprep.subr.mxu0 0.0
        %3523 = vmatpush2.msra.mxu0 0.0
        %3524 = vmatprep.subr.mxu0 0.0
        %3525 = vmatpush2.msra.mxu0 0.0
        %3526 = vmatprep.subr.mxu0 0.0
        %3527 = vmatpush2.msra.mxu0 0.0
        %3528 = vmatprep.subr.mxu0 0.0
        %3529 = vmatpush2.msra.mxu0 0.0
        %3530 = vmatprep.subr.mxu0 0.0
        %3531 = vmatpush2.msra.mxu0 0.0
        %3532 = vmatprep.mubr.f32.mxu0 0.0
        %3533 = vmatmul.mubr.f32.gmra.mxu0 %v3464
        %v3534 = vpop.f32.mrf.mxu0
        %v3535 = vadd.f32 %v3460, %v3534
        %v3536 = vpop.f32.mrf.mxu0
        %3537 = vdwg.mxu0
        %v3538 = vld [vmem:[%s449] sm:$0xff]
        %3539 = vrot.lane.b32.xlu0 %v3383, 126
        %v3540 = vpop.permute.xlu0 %3539
        %v3542 = vsel %vm297, %v3538, 0
        %v3544 = vsel %vm301, %v3540, 0
        %3546 = vmatprep.subr.mxu0 0.0
        %3547 = vmatpush1.msra.mxu0 0.0
        %3548 = vmatprep.subr.mxu0 0.0
        %3549 = vmatpush1.msra.mxu0 0.0
        %3550 = vmatprep.subr.mxu0 0.0
        %3551 = vmatpush1.msra.mxu0 0.0
        %3552 = vmatprep.subr.mxu0 0.0
        %3553 = vmatpush1.msra.mxu0 0.0
        %3554 = vmatprep.subr.mxu0 0.0
        %3555 = vmatpush1.msra.mxu0 0.0
        %3556 = vmatprep.subr.mxu0 0.0
        %3557 = vmatpush1.msra.mxu0 0.0
        %3558 = vmatprep.subr.mxu0 0.0
        %3559 = vmatpush1.msra.mxu0 0.0
        %3560 = vmatprep.subr.mxu0 0.0
        %3561 = vmatpush1.msra.mxu0 0.0
        %3562 = vmatprep.subr.mxu0 0.0
        %3563 = vmatpush1.msra.mxu0 0.0
        %3564 = vmatprep.subr.mxu0 0.0
        %3565 = vmatpush1.msra.mxu0 0.0
        %3566 = vmatprep.subr.mxu0 0.0
        %3567 = vmatpush1.msra.mxu0 0.0
        %3568 = vmatprep.subr.mxu0 0.0
        %3569 = vmatpush1.msra.mxu0 0.0
        %3570 = vmatprep.subr.mxu0 0.0
        %3571 = vmatpush1.msra.mxu0 0.0
        %3572 = vmatprep.subr.mxu0 0.0
        %3573 = vmatpush1.msra.mxu0 0.0
        %3574 = vmatprep.subr.mxu0 0.0
        %3575 = vmatpush1.msra.mxu0 0.0
        %3576 = vmatprep.subr.mxu0 0.0
        %3577 = vmatpush1.msra.mxu0 %v3544
        %3578 = vmatprep.subr.mxu0 0.0
        %3579 = vmatpush2.msra.mxu0 0.0
        %3580 = vmatprep.subr.mxu0 0.0
        %3581 = vmatpush2.msra.mxu0 0.0
        %3582 = vmatprep.subr.mxu0 0.0
        %3583 = vmatpush2.msra.mxu0 0.0
        %3584 = vmatprep.subr.mxu0 0.0
        %3585 = vmatpush2.msra.mxu0 0.0
        %3586 = vmatprep.subr.mxu0 0.0
        %3587 = vmatpush2.msra.mxu0 0.0
        %3588 = vmatprep.subr.mxu0 0.0
        %3589 = vmatpush2.msra.mxu0 0.0
        %3590 = vmatprep.subr.mxu0 0.0
        %3591 = vmatpush2.msra.mxu0 0.0
        %3592 = vmatprep.subr.mxu0 0.0
        %3593 = vmatpush2.msra.mxu0 0.0
        %3594 = vmatprep.subr.mxu0 0.0
        %3595 = vmatpush2.msra.mxu0 0.0
        %3596 = vmatprep.subr.mxu0 0.0
        %3597 = vmatpush2.msra.mxu0 0.0
        %3598 = vmatprep.subr.mxu0 0.0
        %3599 = vmatpush2.msra.mxu0 0.0
        %3600 = vmatprep.subr.mxu0 0.0
        %3601 = vmatpush2.msra.mxu0 0.0
        %3602 = vmatprep.subr.mxu0 0.0
        %3603 = vmatpush2.msra.mxu0 0.0
        %3604 = vmatprep.subr.mxu0 0.0
        %3605 = vmatpush2.msra.mxu0 0.0
        %3606 = vmatprep.subr.mxu0 0.0
        %3607 = vmatpush2.msra.mxu0 0.0
        %3608 = vmatprep.subr.mxu0 0.0
        %3609 = vmatpush2.msra.mxu0 0.0
        %3610 = vmatprep.mubr.f32.mxu0 0.0
        %3611 = vmatmul.mubr.f32.gmra.mxu0 %v3542
        %v3612 = vpop.f32.mrf.mxu0
        %v3613 = vadd.f32 0.0, %v3612
        %v3614 = vpop.f32.mrf.mxu0
        %3615 = vdwg.mxu0
        %v3616 = vadd.f32 %v3535, %v3613
        %v3617 = vld [vmem:[%s2] sm:$0xff]
        %3619 = vset.pattern.permute.xlu0 0
        %3620 = vperm.xlu0 %3619, %v3617
        %v3621 = vpop.permute.xlu0 %3620
        %v3623 = vadd.f32 %v3616, %v3621
        %v3624 = vmax.f32 %v3623, 0.0
        %3626 = vrot.lane.b32.xlu0 %v3624, 1
        %v3627 = vpop.permute.xlu0 %3626
        %3629 = vst.msk [vmem:[#allocation3] sm:$0xff] %vm541, %v3627
        %v3630 = vld [vmem:[#allocation3] sm:$0xff]
        %3632 = vrot.lane.b32.xlu0 %v3630, 126
        %v3633 = vpop.permute.xlu0 %3632
        %3635 = vrot.lane.b32.xlu0 %v3630, 124
        %v3636 = vpop.permute.xlu0 %3635
        %3638 = vrot.lane.b32.xlu0 %v3630, 122
        %v3639 = vpop.permute.xlu0 %3638
        %3641 = vrot.lane.b32.xlu0 %v3630, 120
        %v3642 = vpop.permute.xlu0 %3641
        %3644 = vrot.lane.b32.xlu0 %v3630, 118
        %v3645 = vpop.permute.xlu0 %3644
        %3647 = vrot.lane.b32.xlu0 %v3630, 116
        %v3648 = vpop.permute.xlu0 %3647
        %3650 = vrot.lane.b32.xlu0 %v3630, 114
        %v3651 = vpop.permute.xlu0 %3650
        %v3653 = vcombine.low %v3630, %v3636
        %v3654 = vcombine.high %v3630, %v3636
        %v3656 = vunpack.c.l.s4 1983009808
        %v3657 = vunpack.c.0.s8 %v3656
        %v3658 = vlaneseq
        %v3659 = vshrl.u32 %v3658, 7
        %v3660 = vsub.s32 %v3657, %v3659
        %v3661 = vrot.slane %v3653, %v3660
        %v3663 = vunpack.c.l.s4 1983009808
        %v3664 = vunpack.c.0.s8 %v3663
        %v3665 = vlaneseq
        %v3666 = vshrl.u32 %v3665, 7
        %v3667 = vsub.s32 %v3664, %v3666
        %v3668 = vrot.slane %v3654, %v3667
        %v3669 = vcombine.low %v3633, %v3639
        %v3670 = vcombine.high %v3633, %v3639
        %v3672 = vunpack.c.l.s4 1983009808
        %v3673 = vunpack.c.0.s8 %v3672
        %v3674 = vlaneseq
        %v3675 = vshrl.u32 %v3674, 7
        %v3676 = vsub.s32 %v3673, %v3675
        %v3677 = vrot.slane %v3669, %v3676
        %v3679 = vunpack.c.l.s4 1983009808
        %v3680 = vunpack.c.0.s8 %v3679
        %v3681 = vlaneseq
        %v3682 = vshrl.u32 %v3681, 7
        %v3683 = vsub.s32 %v3680, %v3682
        %v3684 = vrot.slane %v3670, %v3683
        %v3685 = vcombine.low %v3642, %v3648
        %v3686 = vcombine.high %v3642, %v3648
        %v3688 = vunpack.c.l.s4 1983009808
        %v3689 = vunpack.c.0.s8 %v3688
        %v3690 = vlaneseq
        %v3691 = vshrl.u32 %v3690, 7
        %v3692 = vsub.s32 %v3689, %v3691
        %v3693 = vrot.slane %v3685, %v3692
        %v3695 = vunpack.c.l.s4 1983009808
        %v3696 = vunpack.c.0.s8 %v3695
        %v3697 = vlaneseq
        %v3698 = vshrl.u32 %v3697, 7
        %v3699 = vsub.s32 %v3696, %v3698
        %v3700 = vrot.slane %v3686, %v3699
        %v3701 = vcombine.low %v3645, %v3651
        %v3702 = vcombine.high %v3645, %v3651
        %v3704 = vunpack.c.l.s4 1983009808
        %v3705 = vunpack.c.0.s8 %v3704
        %v3706 = vlaneseq
        %v3707 = vshrl.u32 %v3706, 7
        %v3708 = vsub.s32 %v3705, %v3707
        %v3709 = vrot.slane %v3701, %v3708
        %v3711 = vunpack.c.l.s4 1983009808
        %v3712 = vunpack.c.0.s8 %v3711
        %v3713 = vlaneseq
        %v3714 = vshrl.u32 %v3713, 7
        %v3715 = vsub.s32 %v3712, %v3714
        %v3716 = vrot.slane %v3702, %v3715
        %v3717 = vcombine.low %v3661, %v3677
        %v3718 = vcombine.high %v3661, %v3677
        %v3720 = vunpack.c.l.s4 1934713408
        %v3721 = vunpack.c.0.s8 %v3720
        %v3722 = vlaneseq
        %v3723 = vshrl.u32 %v3722, 7
        %v3724 = vsub.s32 %v3721, %v3723
        %v3725 = vrot.slane %v3717, %v3724
        %v3727 = vunpack.c.l.s4 1934713408
        %v3728 = vunpack.c.0.s8 %v3727
        %v3729 = vlaneseq
        %v3730 = vshrl.u32 %v3729, 7
        %v3731 = vsub.s32 %v3728, %v3730
        %v3732 = vrot.slane %v3718, %v3731
        %v3733 = vcombine.low %v3668, %v3684
        %v3734 = vcombine.high %v3668, %v3684
        %v3736 = vunpack.c.l.s4 1934713408
        %v3737 = vunpack.c.0.s8 %v3736
        %v3738 = vlaneseq
        %v3739 = vshrl.u32 %v3738, 7
        %v3740 = vsub.s32 %v3737, %v3739
        %v3741 = vrot.slane %v3733, %v3740
        %v3743 = vunpack.c.l.s4 1934713408
        %v3744 = vunpack.c.0.s8 %v3743
        %v3745 = vlaneseq
        %v3746 = vshrl.u32 %v3745, 7
        %v3747 = vsub.s32 %v3744, %v3746
        %v3748 = vrot.slane %v3734, %v3747
        %v3749 = vcombine.low %v3693, %v3709
        %v3750 = vcombine.high %v3693, %v3709
        %v3752 = vunpack.c.l.s4 1934713408
        %v3753 = vunpack.c.0.s8 %v3752
        %v3754 = vlaneseq
        %v3755 = vshrl.u32 %v3754, 7
        %v3756 = vsub.s32 %v3753, %v3755
        %v3757 = vrot.slane %v3749, %v3756
        %v3759 = vunpack.c.l.s4 1934713408
        %v3760 = vunpack.c.0.s8 %v3759
        %v3761 = vlaneseq
        %v3762 = vshrl.u32 %v3761, 7
        %v3763 = vsub.s32 %v3760, %v3762
        %v3764 = vrot.slane %v3750, %v3763
        %v3765 = vcombine.low %v3700, %v3716
        %v3766 = vcombine.high %v3700, %v3716
        %v3768 = vunpack.c.l.s4 1934713408
        %v3769 = vunpack.c.0.s8 %v3768
        %v3770 = vlaneseq
        %v3771 = vshrl.u32 %v3770, 7
        %v3772 = vsub.s32 %v3769, %v3771
        %v3773 = vrot.slane %v3765, %v3772
        %v3775 = vunpack.c.l.s4 1934713408
        %v3776 = vunpack.c.0.s8 %v3775
        %v3777 = vlaneseq
        %v3778 = vshrl.u32 %v3777, 7
        %v3779 = vsub.s32 %v3776, %v3778
        %v3780 = vrot.slane %v3766, %v3779
        %v3781 = vcombine.low %v3725, %v3757
        %v3782 = vcombine.high %v3725, %v3757
        %v3783 = vcombine.low %v3732, %v3764
        %v3784 = vcombine.high %v3732, %v3764
        %v3785 = vcombine.low %v3741, %v3773
        %v3786 = vcombine.high %v3741, %v3773
        %v3787 = vcombine.low %v3748, %v3780
        %v3788 = vcombine.high %v3748, %v3780
        %v3789 = vld [vmem:[%s3] sm:$0xff]
        %3790 = vrot.lane.b32.xlu0 %v3630, 127
        %v3791 = vpop.permute.xlu0 %3790
        %3792 = vrot.lane.b32.xlu0 %v3633, 127
        %v3793 = vpop.permute.xlu0 %3792
        %3794 = vrot.lane.b32.xlu0 %v3636, 127
        %v3795 = vpop.permute.xlu0 %3794
        %3796 = vrot.lane.b32.xlu0 %v3639, 127
        %v3797 = vpop.permute.xlu0 %3796
        %3798 = vrot.lane.b32.xlu0 %v3642, 127
        %v3799 = vpop.permute.xlu0 %3798
        %3800 = vrot.lane.b32.xlu0 %v3645, 127
        %v3801 = vpop.permute.xlu0 %3800
        %3802 = vrot.lane.b32.xlu0 %v3648, 127
        %v3803 = vpop.permute.xlu0 %3802
        %3804 = vrot.lane.b32.xlu0 %v3651, 127
        %v3805 = vpop.permute.xlu0 %3804
        %v3814 = vcombine.low %v3791, %v3795
        %v3815 = vcombine.high %v3791, %v3795
        %v3817 = vunpack.c.l.s4 1983009808
        %v3818 = vunpack.c.0.s8 %v3817
        %v3819 = vlaneseq
        %v3820 = vshrl.u32 %v3819, 7
        %v3821 = vsub.s32 %v3818, %v3820
        %v3822 = vrot.slane %v3814, %v3821
        %v3824 = vunpack.c.l.s4 1983009808
        %v3825 = vunpack.c.0.s8 %v3824
        %v3826 = vlaneseq
        %v3827 = vshrl.u32 %v3826, 7
        %v3828 = vsub.s32 %v3825, %v3827
        %v3829 = vrot.slane %v3815, %v3828
        %v3830 = vcombine.low %v3793, %v3797
        %v3831 = vcombine.high %v3793, %v3797
        %v3833 = vunpack.c.l.s4 1983009808
        %v3834 = vunpack.c.0.s8 %v3833
        %v3835 = vlaneseq
        %v3836 = vshrl.u32 %v3835, 7
        %v3837 = vsub.s32 %v3834, %v3836
        %v3838 = vrot.slane %v3830, %v3837
        %v3840 = vunpack.c.l.s4 1983009808
        %v3841 = vunpack.c.0.s8 %v3840
        %v3842 = vlaneseq
        %v3843 = vshrl.u32 %v3842, 7
        %v3844 = vsub.s32 %v3841, %v3843
        %v3845 = vrot.slane %v3831, %v3844
        %v3846 = vcombine.low %v3799, %v3803
        %v3847 = vcombine.high %v3799, %v3803
        %v3849 = vunpack.c.l.s4 1983009808
        %v3850 = vunpack.c.0.s8 %v3849
        %v3851 = vlaneseq
        %v3852 = vshrl.u32 %v3851, 7
        %v3853 = vsub.s32 %v3850, %v3852
        %v3854 = vrot.slane %v3846, %v3853
        %v3856 = vunpack.c.l.s4 1983009808
        %v3857 = vunpack.c.0.s8 %v3856
        %v3858 = vlaneseq
        %v3859 = vshrl.u32 %v3858, 7
        %v3860 = vsub.s32 %v3857, %v3859
        %v3861 = vrot.slane %v3847, %v3860
        %v3862 = vcombine.low %v3801, %v3805
        %v3863 = vcombine.high %v3801, %v3805
        %v3865 = vunpack.c.l.s4 1983009808
        %v3866 = vunpack.c.0.s8 %v3865
        %v3867 = vlaneseq
        %v3868 = vshrl.u32 %v3867, 7
        %v3869 = vsub.s32 %v3866, %v3868
        %v3870 = vrot.slane %v3862, %v3869
        %v3872 = vunpack.c.l.s4 1983009808
        %v3873 = vunpack.c.0.s8 %v3872
        %v3874 = vlaneseq
        %v3875 = vshrl.u32 %v3874, 7
        %v3876 = vsub.s32 %v3873, %v3875
        %v3877 = vrot.slane %v3863, %v3876
        %v3878 = vcombine.low %v3822, %v3838
        %v3879 = vcombine.high %v3822, %v3838
        %v3881 = vunpack.c.l.s4 1934713408
        %v3882 = vunpack.c.0.s8 %v3881
        %v3883 = vlaneseq
        %v3884 = vshrl.u32 %v3883, 7
        %v3885 = vsub.s32 %v3882, %v3884
        %v3886 = vrot.slane %v3878, %v3885
        %v3888 = vunpack.c.l.s4 1934713408
        %v3889 = vunpack.c.0.s8 %v3888
        %v3890 = vlaneseq
        %v3891 = vshrl.u32 %v3890, 7
        %v3892 = vsub.s32 %v3889, %v3891
        %v3893 = vrot.slane %v3879, %v3892
        %v3894 = vcombine.low %v3829, %v3845
        %v3895 = vcombine.high %v3829, %v3845
        %v3897 = vunpack.c.l.s4 1934713408
        %v3898 = vunpack.c.0.s8 %v3897
        %v3899 = vlaneseq
        %v3900 = vshrl.u32 %v3899, 7
        %v3901 = vsub.s32 %v3898, %v3900
        %v3902 = vrot.slane %v3894, %v3901
        %v3904 = vunpack.c.l.s4 1934713408
        %v3905 = vunpack.c.0.s8 %v3904
        %v3906 = vlaneseq
        %v3907 = vshrl.u32 %v3906, 7
        %v3908 = vsub.s32 %v3905, %v3907
        %v3909 = vrot.slane %v3895, %v3908
        %v3910 = vcombine.low %v3854, %v3870
        %v3911 = vcombine.high %v3854, %v3870
        %v3913 = vunpack.c.l.s4 1934713408
        %v3914 = vunpack.c.0.s8 %v3913
        %v3915 = vlaneseq
        %v3916 = vshrl.u32 %v3915, 7
        %v3917 = vsub.s32 %v3914, %v3916
        %v3918 = vrot.slane %v3910, %v3917
        %v3920 = vunpack.c.l.s4 1934713408
        %v3921 = vunpack.c.0.s8 %v3920
        %v3922 = vlaneseq
        %v3923 = vshrl.u32 %v3922, 7
        %v3924 = vsub.s32 %v3921, %v3923
        %v3925 = vrot.slane %v3911, %v3924
        %v3926 = vcombine.low %v3861, %v3877
        %v3927 = vcombine.high %v3861, %v3877
        %v3929 = vunpack.c.l.s4 1934713408
        %v3930 = vunpack.c.0.s8 %v3929
        %v3931 = vlaneseq
        %v3932 = vshrl.u32 %v3931, 7
        %v3933 = vsub.s32 %v3930, %v3932
        %v3934 = vrot.slane %v3926, %v3933
        %v3936 = vunpack.c.l.s4 1934713408
        %v3937 = vunpack.c.0.s8 %v3936
        %v3938 = vlaneseq
        %v3939 = vshrl.u32 %v3938, 7
        %v3940 = vsub.s32 %v3937, %v3939
        %v3941 = vrot.slane %v3927, %v3940
        %v3942 = vcombine.low %v3886, %v3918
        %v3943 = vcombine.high %v3886, %v3918
        %v3944 = vcombine.low %v3893, %v3925
        %v3945 = vcombine.high %v3893, %v3925
        %v3946 = vcombine.low %v3902, %v3934
        %v3947 = vcombine.high %v3902, %v3934
        %v3948 = vcombine.low %v3909, %v3941
        %v3949 = vcombine.high %v3909, %v3941
        %v3950 = vld [vmem:[%s863] sm:$0xff]
        %3959 = vset.pattern.permute.xlu0 0
        %3960 = vperm.xlu0 %3959, %v3942
        %v3961 = vpop.permute.xlu0 %3960
        %3962 = vset.pattern.permute.xlu0 0
        %3963 = vperm.xlu0 %3962, %v3943
        %v3964 = vpop.permute.xlu0 %3963
        %3965 = vset.pattern.permute.xlu0 0
        %3966 = vperm.xlu0 %3965, %v3944
        %v3967 = vpop.permute.xlu0 %3966
        %3968 = vset.pattern.permute.xlu0 0
        %3969 = vperm.xlu0 %3968, %v3945
        %v3970 = vpop.permute.xlu0 %3969
        %3971 = vset.pattern.permute.xlu0 0
        %3972 = vperm.xlu0 %3971, %v3946
        %v3973 = vpop.permute.xlu0 %3972
        %3974 = vset.pattern.permute.xlu0 0
        %3975 = vperm.xlu0 %3974, %v3947
        %v3976 = vpop.permute.xlu0 %3975
        %3977 = vset.pattern.permute.xlu0 0
        %3978 = vperm.xlu0 %3977, %v3948
        %v3979 = vpop.permute.xlu0 %3978
        %3980 = vset.pattern.permute.xlu0 0
        %3981 = vperm.xlu0 %3980, %v3949
        %v3982 = vpop.permute.xlu0 %3981
        %v3983 = vlaneseq
        %v3984 = vshrl.u32 %v3983, 7
        %v3985 = vsub.s32 %v898, %v3984
        %v3986 = vrot.slane %v3961, %v3985
        %v3987 = vlaneseq
        %v3988 = vshrl.u32 %v3987, 7
        %v3989 = vsub.s32 %v898, %v3988
        %v3990 = vrot.slane %v3964, %v3989
        %v3991 = vlaneseq
        %v3992 = vshrl.u32 %v3991, 7
        %v3993 = vsub.s32 %v898, %v3992
        %v3994 = vrot.slane %v3967, %v3993
        %v3995 = vlaneseq
        %v3996 = vshrl.u32 %v3995, 7
        %v3997 = vsub.s32 %v898, %v3996
        %v3998 = vrot.slane %v3970, %v3997
        %v3999 = vlaneseq
        %v4000 = vshrl.u32 %v3999, 7
        %v4001 = vsub.s32 %v898, %v4000
        %v4002 = vrot.slane %v3973, %v4001
        %v4003 = vlaneseq
        %v4004 = vshrl.u32 %v4003, 7
        %v4005 = vsub.s32 %v898, %v4004
        %v4006 = vrot.slane %v3976, %v4005
        %v4007 = vlaneseq
        %v4008 = vshrl.u32 %v4007, 7
        %v4009 = vsub.s32 %v898, %v4008
        %v4010 = vrot.slane %v3979, %v4009
        %v4011 = vlaneseq
        %v4012 = vshrl.u32 %v4011, 7
        %v4013 = vsub.s32 %v898, %v4012
        %v4014 = vrot.slane %v3982, %v4013
        %v4015 = vsel %vm931, %v3990, %v3986
        %v4016 = vsel %vm933, %v3994, %v4015
        %v4017 = vsel %vm935, %v3998, %v4016
        %v4018 = vsel %vm937, %v4002, %v4017
        %v4019 = vsel %vm939, %v4006, %v4018
        %v4020 = vsel %vm941, %v4010, %v4019
        %v4021 = vsel %vm943, %v4014, %v4020
        %v4024 = vsel %vm946, %v3950, 0
        %4026 = vmatprep.subr.mxu0 0.0
        %4027 = vmatpush1.msra.mxu0 0.0
        %4028 = vmatprep.subr.mxu0 0.0
        %4029 = vmatpush1.msra.mxu0 0.0
        %4030 = vmatprep.subr.mxu0 0.0
        %4031 = vmatpush1.msra.mxu0 0.0
        %4032 = vmatprep.subr.mxu0 0.0
        %4033 = vmatpush1.msra.mxu0 0.0
        %4034 = vmatprep.subr.mxu0 0.0
        %4035 = vmatpush1.msra.mxu0 0.0
        %4036 = vmatprep.subr.mxu0 0.0
        %4037 = vmatpush1.msra.mxu0 0.0
        %4038 = vmatprep.subr.mxu0 0.0
        %4039 = vmatpush1.msra.mxu0 0.0
        %4040 = vmatprep.subr.mxu0 0.0
        %4041 = vmatpush1.msra.mxu0 0.0
        %4042 = vmatprep.subr.mxu0 0.0
        %4043 = vmatpush1.msra.mxu0 0.0
        %4044 = vmatprep.subr.mxu0 0.0
        %4045 = vmatpush1.msra.mxu0 0.0
        %4046 = vmatprep.subr.mxu0 0.0
        %4047 = vmatpush1.msra.mxu0 0.0
        %4048 = vmatprep.subr.mxu0 0.0
        %4049 = vmatpush1.msra.mxu0 0.0
        %4050 = vmatprep.subr.mxu0 0.0
        %4051 = vmatpush1.msra.mxu0 0.0
        %4052 = vmatprep.subr.mxu0 0.0
        %4053 = vmatpush1.msra.mxu0 0.0
        %4054 = vmatprep.subr.mxu0 0.0
        %4055 = vmatpush1.msra.mxu0 0.0
        %4056 = vmatprep.subr.mxu0 0.0
        %4057 = vmatpush1.msra.mxu0 %v4021
        %4058 = vmatprep.subr.mxu0 0.0
        %4059 = vmatpush2.msra.mxu0 0.0
        %4060 = vmatprep.subr.mxu0 0.0
        %4061 = vmatpush2.msra.mxu0 0.0
        %4062 = vmatprep.subr.mxu0 0.0
        %4063 = vmatpush2.msra.mxu0 0.0
        %4064 = vmatprep.subr.mxu0 0.0
        %4065 = vmatpush2.msra.mxu0 0.0
        %4066 = vmatprep.subr.mxu0 0.0
        %4067 = vmatpush2.msra.mxu0 0.0
        %4068 = vmatprep.subr.mxu0 0.0
        %4069 = vmatpush2.msra.mxu0 0.0
        %4070 = vmatprep.subr.mxu0 0.0
        %4071 = vmatpush2.msra.mxu0 0.0
        %4072 = vmatprep.subr.mxu0 0.0
        %4073 = vmatpush2.msra.mxu0 0.0
        %4074 = vmatprep.subr.mxu0 0.0
        %4075 = vmatpush2.msra.mxu0 0.0
        %4076 = vmatprep.subr.mxu0 0.0
        %4077 = vmatpush2.msra.mxu0 0.0
        %4078 = vmatprep.subr.mxu0 0.0
        %4079 = vmatpush2.msra.mxu0 0.0
        %4080 = vmatprep.subr.mxu0 0.0
        %4081 = vmatpush2.msra.mxu0 0.0
        %4082 = vmatprep.subr.mxu0 0.0
        %4083 = vmatpush2.msra.mxu0 0.0
        %4084 = vmatprep.subr.mxu0 0.0
        %4085 = vmatpush2.msra.mxu0 0.0
        %4086 = vmatprep.subr.mxu0 0.0
        %4087 = vmatpush2.msra.mxu0 0.0
        %4088 = vmatprep.subr.mxu0 0.0
        %4089 = vmatpush2.msra.mxu0 0.0
        %4090 = vmatprep.mubr.f32.mxu0 0.0
        %4091 = vmatmul.mubr.f32.gmra.mxu0 %v4024
        %v4092 = vpop.f32.mrf.mxu0
        %v4093 = vadd.f32 0.0, %v4092
        %v4094 = vpop.f32.mrf.mxu0
        %4095 = vdwg.mxu0
        %4104 = vset.pattern.permute.xlu0 0
        %4105 = vperm.xlu0 %4104, %v3781
        %v4106 = vpop.permute.xlu0 %4105
        %4107 = vset.pattern.permute.xlu0 0
        %4108 = vperm.xlu0 %4107, %v3782
        %v4109 = vpop.permute.xlu0 %4108
        %4110 = vset.pattern.permute.xlu0 0
        %4111 = vperm.xlu0 %4110, %v3783
        %v4112 = vpop.permute.xlu0 %4111
        %4113 = vset.pattern.permute.xlu0 0
        %4114 = vperm.xlu0 %4113, %v3784
        %v4115 = vpop.permute.xlu0 %4114
        %4116 = vset.pattern.permute.xlu0 0
        %4117 = vperm.xlu0 %4116, %v3785
        %v4118 = vpop.permute.xlu0 %4117
        %4119 = vset.pattern.permute.xlu0 0
        %4120 = vperm.xlu0 %4119, %v3786
        %v4121 = vpop.permute.xlu0 %4120
        %4122 = vset.pattern.permute.xlu0 0
        %4123 = vperm.xlu0 %4122, %v3787
        %v4124 = vpop.permute.xlu0 %4123
        %4125 = vset.pattern.permute.xlu0 0
        %4126 = vperm.xlu0 %4125, %v3788
        %v4127 = vpop.permute.xlu0 %4126
        %v4128 = vlaneseq
        %v4129 = vshrl.u32 %v4128, 7
        %v4130 = vsub.s32 %v898, %v4129
        %v4131 = vrot.slane %v4106, %v4130
        %v4132 = vlaneseq
        %v4133 = vshrl.u32 %v4132, 7
        %v4134 = vsub.s32 %v898, %v4133
        %v4135 = vrot.slane %v4109, %v4134
        %v4136 = vlaneseq
        %v4137 = vshrl.u32 %v4136, 7
        %v4138 = vsub.s32 %v898, %v4137
        %v4139 = vrot.slane %v4112, %v4138
        %v4140 = vlaneseq
        %v4141 = vshrl.u32 %v4140, 7
        %v4142 = vsub.s32 %v898, %v4141
        %v4143 = vrot.slane %v4115, %v4142
        %v4144 = vlaneseq
        %v4145 = vshrl.u32 %v4144, 7
        %v4146 = vsub.s32 %v898, %v4145
        %v4147 = vrot.slane %v4118, %v4146
        %v4148 = vlaneseq
        %v4149 = vshrl.u32 %v4148, 7
        %v4150 = vsub.s32 %v898, %v4149
        %v4151 = vrot.slane %v4121, %v4150
        %v4152 = vlaneseq
        %v4153 = vshrl.u32 %v4152, 7
        %v4154 = vsub.s32 %v898, %v4153
        %v4155 = vrot.slane %v4124, %v4154
        %v4156 = vlaneseq
        %v4157 = vshrl.u32 %v4156, 7
        %v4158 = vsub.s32 %v898, %v4157
        %v4159 = vrot.slane %v4127, %v4158
        %v4160 = vsel %vm931, %v4135, %v4131
        %v4161 = vsel %vm933, %v4139, %v4160
        %v4162 = vsel %vm935, %v4143, %v4161
        %v4163 = vsel %vm937, %v4147, %v4162
        %v4164 = vsel %vm939, %v4151, %v4163
        %v4165 = vsel %vm941, %v4155, %v4164
        %v4166 = vsel %vm943, %v4159, %v4165
        %v4169 = vsel %vm946, %v3789, 0
        %4171 = vmatprep.subr.mxu0 0.0
        %4172 = vmatpush1.msra.mxu0 0.0
        %4173 = vmatprep.subr.mxu0 0.0
        %4174 = vmatpush1.msra.mxu0 0.0
        %4175 = vmatprep.subr.mxu0 0.0
        %4176 = vmatpush1.msra.mxu0 0.0
        %4177 = vmatprep.subr.mxu0 0.0
        %4178 = vmatpush1.msra.mxu0 0.0
        %4179 = vmatprep.subr.mxu0 0.0
        %4180 = vmatpush1.msra.mxu0 0.0
        %4181 = vmatprep.subr.mxu0 0.0
        %4182 = vmatpush1.msra.mxu0 0.0
        %4183 = vmatprep.subr.mxu0 0.0
        %4184 = vmatpush1.msra.mxu0 0.0
        %4185 = vmatprep.subr.mxu0 0.0
        %4186 = vmatpush1.msra.mxu0 0.0
        %4187 = vmatprep.subr.mxu0 0.0
        %4188 = vmatpush1.msra.mxu0 0.0
        %4189 = vmatprep.subr.mxu0 0.0
        %4190 = vmatpush1.msra.mxu0 0.0
        %4191 = vmatprep.subr.mxu0 0.0
        %4192 = vmatpush1.msra.mxu0 0.0
        %4193 = vmatprep.subr.mxu0 0.0
        %4194 = vmatpush1.msra.mxu0 0.0
        %4195 = vmatprep.subr.mxu0 0.0
        %4196 = vmatpush1.msra.mxu0 0.0
        %4197 = vmatprep.subr.mxu0 0.0
        %4198 = vmatpush1.msra.mxu0 0.0
        %4199 = vmatprep.subr.mxu0 0.0
        %4200 = vmatpush1.msra.mxu0 0.0
        %4201 = vmatprep.subr.mxu0 0.0
        %4202 = vmatpush1.msra.mxu0 %v4166
        %4203 = vmatprep.subr.mxu0 0.0
        %4204 = vmatpush2.msra.mxu0 0.0
        %4205 = vmatprep.subr.mxu0 0.0
        %4206 = vmatpush2.msra.mxu0 0.0
        %4207 = vmatprep.subr.mxu0 0.0
        %4208 = vmatpush2.msra.mxu0 0.0
        %4209 = vmatprep.subr.mxu0 0.0
        %4210 = vmatpush2.msra.mxu0 0.0
        %4211 = vmatprep.subr.mxu0 0.0
        %4212 = vmatpush2.msra.mxu0 0.0
        %4213 = vmatprep.subr.mxu0 0.0
        %4214 = vmatpush2.msra.mxu0 0.0
        %4215 = vmatprep.subr.mxu0 0.0
        %4216 = vmatpush2.msra.mxu0 0.0
        %4217 = vmatprep.subr.mxu0 0.0
        %4218 = vmatpush2.msra.mxu0 0.0
        %4219 = vmatprep.subr.mxu0 0.0
        %4220 = vmatpush2.msra.mxu0 0.0
        %4221 = vmatprep.subr.mxu0 0.0
        %4222 = vmatpush2.msra.mxu0 0.0
        %4223 = vmatprep.subr.mxu0 0.0
        %4224 = vmatpush2.msra.mxu0 0.0
        %4225 = vmatprep.subr.mxu0 0.0
        %4226 = vmatpush2.msra.mxu0 0.0
        %4227 = vmatprep.subr.mxu0 0.0
        %4228 = vmatpush2.msra.mxu0 0.0
        %4229 = vmatprep.subr.mxu0 0.0
        %4230 = vmatpush2.msra.mxu0 0.0
        %4231 = vmatprep.subr.mxu0 0.0
        %4232 = vmatpush2.msra.mxu0 0.0
        %4233 = vmatprep.subr.mxu0 0.0
        %4234 = vmatpush2.msra.mxu0 0.0
        %4235 = vmatprep.mubr.f32.mxu0 0.0
        %4236 = vmatmul.mubr.f32.gmra.mxu0 %v4169
        %v4237 = vpop.f32.mrf.mxu0
        %v4238 = vadd.f32 %v4093, %v4237
        %v4239 = vpop.f32.mrf.mxu0
        %4240 = vdwg.mxu0
        %v4241 = vld [vmem:[#allocation3] sm:$0xff]
        %4243 = vrot.lane.b32.xlu0 %v4241, 126
        %v4244 = vpop.permute.xlu0 %4243
        %4245 = vrot.lane.b32.xlu0 %v4241, 124
        %v4246 = vpop.permute.xlu0 %4245
        %4247 = vrot.lane.b32.xlu0 %v4241, 122
        %v4248 = vpop.permute.xlu0 %4247
        %4249 = vrot.lane.b32.xlu0 %v4241, 120
        %v4250 = vpop.permute.xlu0 %4249
        %4251 = vrot.lane.b32.xlu0 %v4241, 118
        %v4252 = vpop.permute.xlu0 %4251
        %4253 = vrot.lane.b32.xlu0 %v4241, 116
        %v4254 = vpop.permute.xlu0 %4253
        %4255 = vrot.lane.b32.xlu0 %v4241, 114
        %v4256 = vpop.permute.xlu0 %4255
        %4257 = vrot.lane.b32.xlu0 %v4244, 126
        %v4258 = vpop.permute.xlu0 %4257
        %4259 = vrot.lane.b32.xlu0 %v4246, 126
        %v4260 = vpop.permute.xlu0 %4259
        %4261 = vrot.lane.b32.xlu0 %v4248, 126
        %v4262 = vpop.permute.xlu0 %4261
        %4263 = vrot.lane.b32.xlu0 %v4250, 126
        %v4264 = vpop.permute.xlu0 %4263
        %4265 = vrot.lane.b32.xlu0 %v4252, 126
        %v4266 = vpop.permute.xlu0 %4265
        %4267 = vrot.lane.b32.xlu0 %v4254, 126
        %v4268 = vpop.permute.xlu0 %4267
        %4269 = vrot.lane.b32.xlu0 %v4256, 126
        %v4270 = vpop.permute.xlu0 %4269
        %v4279 = vcombine.low %v4244, %v4260
        %v4280 = vcombine.high %v4244, %v4260
        %v4282 = vunpack.c.l.s4 1983009808
        %v4283 = vunpack.c.0.s8 %v4282
        %v4284 = vlaneseq
        %v4285 = vshrl.u32 %v4284, 7
        %v4286 = vsub.s32 %v4283, %v4285
        %v4287 = vrot.slane %v4279, %v4286
        %v4289 = vunpack.c.l.s4 1983009808
        %v4290 = vunpack.c.0.s8 %v4289
        %v4291 = vlaneseq
        %v4292 = vshrl.u32 %v4291, 7
        %v4293 = vsub.s32 %v4290, %v4292
        %v4294 = vrot.slane %v4280, %v4293
        %v4295 = vcombine.low %v4258, %v4262
        %v4296 = vcombine.high %v4258, %v4262
        %v4298 = vunpack.c.l.s4 1983009808
        %v4299 = vunpack.c.0.s8 %v4298
        %v4300 = vlaneseq
        %v4301 = vshrl.u32 %v4300, 7
        %v4302 = vsub.s32 %v4299, %v4301
        %v4303 = vrot.slane %v4295, %v4302
        %v4305 = vunpack.c.l.s4 1983009808
        %v4306 = vunpack.c.0.s8 %v4305
        %v4307 = vlaneseq
        %v4308 = vshrl.u32 %v4307, 7
        %v4309 = vsub.s32 %v4306, %v4308
        %v4310 = vrot.slane %v4296, %v4309
        %v4311 = vcombine.low %v4264, %v4268
        %v4312 = vcombine.high %v4264, %v4268
        %v4314 = vunpack.c.l.s4 1983009808
        %v4315 = vunpack.c.0.s8 %v4314
        %v4316 = vlaneseq
        %v4317 = vshrl.u32 %v4316, 7
        %v4318 = vsub.s32 %v4315, %v4317
        %v4319 = vrot.slane %v4311, %v4318
        %v4321 = vunpack.c.l.s4 1983009808
        %v4322 = vunpack.c.0.s8 %v4321
        %v4323 = vlaneseq
        %v4324 = vshrl.u32 %v4323, 7
        %v4325 = vsub.s32 %v4322, %v4324
        %v4326 = vrot.slane %v4312, %v4325
        %v4327 = vcombine.low %v4266, %v4270
        %v4328 = vcombine.high %v4266, %v4270
        %v4330 = vunpack.c.l.s4 1983009808
        %v4331 = vunpack.c.0.s8 %v4330
        %v4332 = vlaneseq
        %v4333 = vshrl.u32 %v4332, 7
        %v4334 = vsub.s32 %v4331, %v4333
        %v4335 = vrot.slane %v4327, %v4334
        %v4337 = vunpack.c.l.s4 1983009808
        %v4338 = vunpack.c.0.s8 %v4337
        %v4339 = vlaneseq
        %v4340 = vshrl.u32 %v4339, 7
        %v4341 = vsub.s32 %v4338, %v4340
        %v4342 = vrot.slane %v4328, %v4341
        %v4343 = vcombine.low %v4287, %v4303
        %v4344 = vcombine.high %v4287, %v4303
        %v4346 = vunpack.c.l.s4 1934713408
        %v4347 = vunpack.c.0.s8 %v4346
        %v4348 = vlaneseq
        %v4349 = vshrl.u32 %v4348, 7
        %v4350 = vsub.s32 %v4347, %v4349
        %v4351 = vrot.slane %v4343, %v4350
        %v4353 = vunpack.c.l.s4 1934713408
        %v4354 = vunpack.c.0.s8 %v4353
        %v4355 = vlaneseq
        %v4356 = vshrl.u32 %v4355, 7
        %v4357 = vsub.s32 %v4354, %v4356
        %v4358 = vrot.slane %v4344, %v4357
        %v4359 = vcombine.low %v4294, %v4310
        %v4360 = vcombine.high %v4294, %v4310
        %v4362 = vunpack.c.l.s4 1934713408
        %v4363 = vunpack.c.0.s8 %v4362
        %v4364 = vlaneseq
        %v4365 = vshrl.u32 %v4364, 7
        %v4366 = vsub.s32 %v4363, %v4365
        %v4367 = vrot.slane %v4359, %v4366
        %v4369 = vunpack.c.l.s4 1934713408
        %v4370 = vunpack.c.0.s8 %v4369
        %v4371 = vlaneseq
        %v4372 = vshrl.u32 %v4371, 7
        %v4373 = vsub.s32 %v4370, %v4372
        %v4374 = vrot.slane %v4360, %v4373
        %v4375 = vcombine.low %v4319, %v4335
        %v4376 = vcombine.high %v4319, %v4335
        %v4378 = vunpack.c.l.s4 1934713408
        %v4379 = vunpack.c.0.s8 %v4378
        %v4380 = vlaneseq
        %v4381 = vshrl.u32 %v4380, 7
        %v4382 = vsub.s32 %v4379, %v4381
        %v4383 = vrot.slane %v4375, %v4382
        %v4385 = vunpack.c.l.s4 1934713408
        %v4386 = vunpack.c.0.s8 %v4385
        %v4387 = vlaneseq
        %v4388 = vshrl.u32 %v4387, 7
        %v4389 = vsub.s32 %v4386, %v4388
        %v4390 = vrot.slane %v4376, %v4389
        %v4391 = vcombine.low %v4326, %v4342
        %v4392 = vcombine.high %v4326, %v4342
        %v4394 = vunpack.c.l.s4 1934713408
        %v4395 = vunpack.c.0.s8 %v4394
        %v4396 = vlaneseq
        %v4397 = vshrl.u32 %v4396, 7
        %v4398 = vsub.s32 %v4395, %v4397
        %v4399 = vrot.slane %v4391, %v4398
        %v4401 = vunpack.c.l.s4 1934713408
        %v4402 = vunpack.c.0.s8 %v4401
        %v4403 = vlaneseq
        %v4404 = vshrl.u32 %v4403, 7
        %v4405 = vsub.s32 %v4402, %v4404
        %v4406 = vrot.slane %v4392, %v4405
        %v4407 = vcombine.low %v4351, %v4383
        %v4408 = vcombine.high %v4351, %v4383
        %v4409 = vcombine.low %v4358, %v4390
        %v4410 = vcombine.high %v4358, %v4390
        %v4411 = vcombine.low %v4367, %v4399
        %v4412 = vcombine.high %v4367, %v4399
        %v4413 = vcombine.low %v4374, %v4406
        %v4414 = vcombine.high %v4374, %v4406
        %v4415 = vld [vmem:[%s1339] sm:$0xff]
        %4424 = vset.pattern.permute.xlu0 0
        %4425 = vperm.xlu0 %4424, %v4407
        %v4426 = vpop.permute.xlu0 %4425
        %4427 = vset.pattern.permute.xlu0 0
        %4428 = vperm.xlu0 %4427, %v4408
        %v4429 = vpop.permute.xlu0 %4428
        %4430 = vset.pattern.permute.xlu0 0
        %4431 = vperm.xlu0 %4430, %v4409
        %v4432 = vpop.permute.xlu0 %4431
        %4433 = vset.pattern.permute.xlu0 0
        %4434 = vperm.xlu0 %4433, %v4410
        %v4435 = vpop.permute.xlu0 %4434
        %4436 = vset.pattern.permute.xlu0 0
        %4437 = vperm.xlu0 %4436, %v4411
        %v4438 = vpop.permute.xlu0 %4437
        %4439 = vset.pattern.permute.xlu0 0
        %4440 = vperm.xlu0 %4439, %v4412
        %v4441 = vpop.permute.xlu0 %4440
        %4442 = vset.pattern.permute.xlu0 0
        %4443 = vperm.xlu0 %4442, %v4413
        %v4444 = vpop.permute.xlu0 %4443
        %4445 = vset.pattern.permute.xlu0 0
        %4446 = vperm.xlu0 %4445, %v4414
        %v4447 = vpop.permute.xlu0 %4446
        %v4448 = vlaneseq
        %v4449 = vshrl.u32 %v4448, 7
        %v4450 = vsub.s32 %v898, %v4449
        %v4451 = vrot.slane %v4426, %v4450
        %v4452 = vlaneseq
        %v4453 = vshrl.u32 %v4452, 7
        %v4454 = vsub.s32 %v898, %v4453
        %v4455 = vrot.slane %v4429, %v4454
        %v4456 = vlaneseq
        %v4457 = vshrl.u32 %v4456, 7
        %v4458 = vsub.s32 %v898, %v4457
        %v4459 = vrot.slane %v4432, %v4458
        %v4460 = vlaneseq
        %v4461 = vshrl.u32 %v4460, 7
        %v4462 = vsub.s32 %v898, %v4461
        %v4463 = vrot.slane %v4435, %v4462
        %v4464 = vlaneseq
        %v4465 = vshrl.u32 %v4464, 7
        %v4466 = vsub.s32 %v898, %v4465
        %v4467 = vrot.slane %v4438, %v4466
        %v4468 = vlaneseq
        %v4469 = vshrl.u32 %v4468, 7
        %v4470 = vsub.s32 %v898, %v4469
        %v4471 = vrot.slane %v4441, %v4470
        %v4472 = vlaneseq
        %v4473 = vshrl.u32 %v4472, 7
        %v4474 = vsub.s32 %v898, %v4473
        %v4475 = vrot.slane %v4444, %v4474
        %v4476 = vlaneseq
        %v4477 = vshrl.u32 %v4476, 7
        %v4478 = vsub.s32 %v898, %v4477
        %v4479 = vrot.slane %v4447, %v4478
        %v4480 = vsel %vm931, %v4455, %v4451
        %v4481 = vsel %vm933, %v4459, %v4480
        %v4482 = vsel %vm935, %v4463, %v4481
        %v4483 = vsel %vm937, %v4467, %v4482
        %v4484 = vsel %vm939, %v4471, %v4483
        %v4485 = vsel %vm941, %v4475, %v4484
        %v4486 = vsel %vm943, %v4479, %v4485
        %v4489 = vsel %vm946, %v4415, 0
        %4491 = vmatprep.subr.mxu0 0.0
        %4492 = vmatpush1.msra.mxu0 0.0
        %4493 = vmatprep.subr.mxu0 0.0
        %4494 = vmatpush1.msra.mxu0 0.0
        %4495 = vmatprep.subr.mxu0 0.0
        %4496 = vmatpush1.msra.mxu0 0.0
        %4497 = vmatprep.subr.mxu0 0.0
        %4498 = vmatpush1.msra.mxu0 0.0
        %4499 = vmatprep.subr.mxu0 0.0
        %4500 = vmatpush1.msra.mxu0 0.0
        %4501 = vmatprep.subr.mxu0 0.0
        %4502 = vmatpush1.msra.mxu0 0.0
        %4503 = vmatprep.subr.mxu0 0.0
        %4504 = vmatpush1.msra.mxu0 0.0
        %4505 = vmatprep.subr.mxu0 0.0
        %4506 = vmatpush1.msra.mxu0 0.0
        %4507 = vmatprep.subr.mxu0 0.0
        %4508 = vmatpush1.msra.mxu0 0.0
        %4509 = vmatprep.subr.mxu0 0.0
        %4510 = vmatpush1.msra.mxu0 0.0
        %4511 = vmatprep.subr.mxu0 0.0
        %4512 = vmatpush1.msra.mxu0 0.0
        %4513 = vmatprep.subr.mxu0 0.0
        %4514 = vmatpush1.msra.mxu0 0.0
        %4515 = vmatprep.subr.mxu0 0.0
        %4516 = vmatpush1.msra.mxu0 0.0
        %4517 = vmatprep.subr.mxu0 0.0
        %4518 = vmatpush1.msra.mxu0 0.0
        %4519 = vmatprep.subr.mxu0 0.0
        %4520 = vmatpush1.msra.mxu0 0.0
        %4521 = vmatprep.subr.mxu0 0.0
        %4522 = vmatpush1.msra.mxu0 %v4486
        %4523 = vmatprep.subr.mxu0 0.0
        %4524 = vmatpush2.msra.mxu0 0.0
        %4525 = vmatprep.subr.mxu0 0.0
        %4526 = vmatpush2.msra.mxu0 0.0
        %4527 = vmatprep.subr.mxu0 0.0
        %4528 = vmatpush2.msra.mxu0 0.0
        %4529 = vmatprep.subr.mxu0 0.0
        %4530 = vmatpush2.msra.mxu0 0.0
        %4531 = vmatprep.subr.mxu0 0.0
        %4532 = vmatpush2.msra.mxu0 0.0
        %4533 = vmatprep.subr.mxu0 0.0
        %4534 = vmatpush2.msra.mxu0 0.0
        %4535 = vmatprep.subr.mxu0 0.0
        %4536 = vmatpush2.msra.mxu0 0.0
        %4537 = vmatprep.subr.mxu0 0.0
        %4538 = vmatpush2.msra.mxu0 0.0
        %4539 = vmatprep.subr.mxu0 0.0
        %4540 = vmatpush2.msra.mxu0 0.0
        %4541 = vmatprep.subr.mxu0 0.0
        %4542 = vmatpush2.msra.mxu0 0.0
        %4543 = vmatprep.subr.mxu0 0.0
        %4544 = vmatpush2.msra.mxu0 0.0
        %4545 = vmatprep.subr.mxu0 0.0
        %4546 = vmatpush2.msra.mxu0 0.0
        %4547 = vmatprep.subr.mxu0 0.0
        %4548 = vmatpush2.msra.mxu0 0.0
        %4549 = vmatprep.subr.mxu0 0.0
        %4550 = vmatpush2.msra.mxu0 0.0
        %4551 = vmatprep.subr.mxu0 0.0
        %4552 = vmatpush2.msra.mxu0 0.0
        %4553 = vmatprep.subr.mxu0 0.0
        %4554 = vmatpush2.msra.mxu0 0.0
        %4555 = vmatprep.mubr.f32.mxu0 0.0
        %4556 = vmatmul.mubr.f32.gmra.mxu0 %v4489
        %v4557 = vpop.f32.mrf.mxu0
        %v4558 = vadd.f32 0.0, %v4557
        %v4559 = vpop.f32.mrf.mxu0
        %4560 = vdwg.mxu0
        %v4561 = vadd.f32 %v4238, %v4558
        %v4562 = vld [vmem:[%s4] sm:$0xff]
        %4564 = vset.pattern.permute.xlu0 0
        %4565 = vperm.xlu0 %4564, %v4562
        %v4566 = vpop.permute.xlu0 %4565
        %v4568 = vadd.f32 %v4561, %v4566
        %v4569 = vld [vmem:[#allocation2] sm:$0xf]
        %4571 = vrot.lane.b32.xlu0 %v4569, 126
        %v4572 = vpop.permute.xlu0 %4571
        %4573 = vrot.lane.b32.xlu0 %v4569, 124
        %v4574 = vpop.permute.xlu0 %4573
        %4575 = vrot.lane.b32.xlu0 %v4569, 122
        %v4576 = vpop.permute.xlu0 %4575
        %4577 = vrot.lane.b32.xlu0 %v4569, 120
        %v4578 = vpop.permute.xlu0 %4577
        %4579 = vrot.lane.b32.xlu0 %v4569, 118
        %v4580 = vpop.permute.xlu0 %4579
        %4581 = vrot.lane.b32.xlu0 %v4569, 116
        %v4582 = vpop.permute.xlu0 %4581
        %4583 = vrot.lane.b32.xlu0 %v4569, 114
        %v4584 = vpop.permute.xlu0 %4583
        %4585 = vrot.lane.b32.xlu0 %v4569, 127
        %v4586 = vpop.permute.xlu0 %4585
        %4587 = vrot.lane.b32.xlu0 %v4572, 127
        %v4588 = vpop.permute.xlu0 %4587
        %4589 = vrot.lane.b32.xlu0 %v4574, 127
        %v4590 = vpop.permute.xlu0 %4589
        %4591 = vrot.lane.b32.xlu0 %v4576, 127
        %v4592 = vpop.permute.xlu0 %4591
        %4593 = vrot.lane.b32.xlu0 %v4578, 127
        %v4594 = vpop.permute.xlu0 %4593
        %4595 = vrot.lane.b32.xlu0 %v4580, 127
        %v4596 = vpop.permute.xlu0 %4595
        %4597 = vrot.lane.b32.xlu0 %v4582, 127
        %v4598 = vpop.permute.xlu0 %4597
        %4599 = vrot.lane.b32.xlu0 %v4584, 127
        %v4600 = vpop.permute.xlu0 %4599
        %v4609 = vcombine.low %v4586, %v4590
        %v4611 = vunpack.c.l.s4 1983009808
        %v4612 = vunpack.c.0.s8 %v4611
        %v4613 = vlaneseq
        %v4614 = vshrl.u32 %v4613, 7
        %v4615 = vsub.s32 %v4612, %v4614
        %v4616 = vrot.slane %v4609, %v4615
        %v4617 = vcombine.low %v4588, %v4592
        %v4619 = vunpack.c.l.s4 1983009808
        %v4620 = vunpack.c.0.s8 %v4619
        %v4621 = vlaneseq
        %v4622 = vshrl.u32 %v4621, 7
        %v4623 = vsub.s32 %v4620, %v4622
        %v4624 = vrot.slane %v4617, %v4623
        %v4625 = vcombine.low %v4594, %v4598
        %v4627 = vunpack.c.l.s4 1983009808
        %v4628 = vunpack.c.0.s8 %v4627
        %v4629 = vlaneseq
        %v4630 = vshrl.u32 %v4629, 7
        %v4631 = vsub.s32 %v4628, %v4630
        %v4632 = vrot.slane %v4625, %v4631
        %v4633 = vcombine.low %v4596, %v4600
        %v4635 = vunpack.c.l.s4 1983009808
        %v4636 = vunpack.c.0.s8 %v4635
        %v4637 = vlaneseq
        %v4638 = vshrl.u32 %v4637, 7
        %v4639 = vsub.s32 %v4636, %v4638
        %v4640 = vrot.slane %v4633, %v4639
        %v4641 = vcombine.low %v4616, %v4624
        %v4642 = vcombine.high %v4616, %v4624
        %v4644 = vunpack.c.l.s4 1934713408
        %v4645 = vunpack.c.0.s8 %v4644
        %v4646 = vlaneseq
        %v4647 = vshrl.u32 %v4646, 7
        %v4648 = vsub.s32 %v4645, %v4647
        %v4649 = vrot.slane %v4641, %v4648
        %v4651 = vunpack.c.l.s4 1934713408
        %v4652 = vunpack.c.0.s8 %v4651
        %v4653 = vlaneseq
        %v4654 = vshrl.u32 %v4653, 7
        %v4655 = vsub.s32 %v4652, %v4654
        %v4656 = vrot.slane %v4642, %v4655
        %v4657 = vcombine.low %v4632, %v4640
        %v4658 = vcombine.high %v4632, %v4640
        %v4660 = vunpack.c.l.s4 1934713408
        %v4661 = vunpack.c.0.s8 %v4660
        %v4662 = vlaneseq
        %v4663 = vshrl.u32 %v4662, 7
        %v4664 = vsub.s32 %v4661, %v4663
        %v4665 = vrot.slane %v4657, %v4664
        %v4667 = vunpack.c.l.s4 1934713408
        %v4668 = vunpack.c.0.s8 %v4667
        %v4669 = vlaneseq
        %v4670 = vshrl.u32 %v4669, 7
        %v4671 = vsub.s32 %v4668, %v4670
        %v4672 = vrot.slane %v4658, %v4671
        %v4673 = vcombine.low %v4649, %v4665
        %v4674 = vcombine.high %v4649, %v4665
        %v4675 = vcombine.low %v4656, %v4672
        %v4676 = vcombine.high %v4656, %v4672
        %v4677 = vld [vmem:[%s5] sm:$0xff]
        %4682 = vset.pattern.permute.xlu0 0
        %4683 = vperm.xlu0 %4682, %v4673
        %v4684 = vpop.permute.xlu0 %4683
        %4685 = vset.pattern.permute.xlu0 0
        %4686 = vperm.xlu0 %4685, %v4674
        %v4687 = vpop.permute.xlu0 %4686
        %4688 = vset.pattern.permute.xlu0 0
        %4689 = vperm.xlu0 %4688, %v4675
        %v4690 = vpop.permute.xlu0 %4689
        %4691 = vset.pattern.permute.xlu0 0
        %4692 = vperm.xlu0 %4691, %v4676
        %v4693 = vpop.permute.xlu0 %4692
        %v4694 = vlaneseq
        %v4695 = vshrl.u32 %v4694, 7
        %v4696 = vsub.s32 %v898, %v4695
        %v4697 = vrot.slane %v4684, %v4696
        %v4698 = vlaneseq
        %v4699 = vshrl.u32 %v4698, 7
        %v4700 = vsub.s32 %v898, %v4699
        %v4701 = vrot.slane %v4687, %v4700
        %v4702 = vlaneseq
        %v4703 = vshrl.u32 %v4702, 7
        %v4704 = vsub.s32 %v898, %v4703
        %v4705 = vrot.slane %v4690, %v4704
        %v4706 = vlaneseq
        %v4707 = vshrl.u32 %v4706, 7
        %v4708 = vsub.s32 %v898, %v4707
        %v4709 = vrot.slane %v4693, %v4708
        %v4710 = vsel %vm931, %v4701, %v4697
        %v4711 = vsel %vm933, %v4705, %v4710
        %v4712 = vsel %vm935, %v4709, %v4711
        %v4714 = vsel %vm297, %v4677, 0
        %v4716 = vsel %vm301, %v4712, 0
        %4718 = vmatprep.subr.mxu0 0.0
        %4719 = vmatpush1.msra.mxu0 0.0
        %4720 = vmatprep.subr.mxu0 0.0
        %4721 = vmatpush1.msra.mxu0 0.0
        %4722 = vmatprep.subr.mxu0 0.0
        %4723 = vmatpush1.msra.mxu0 0.0
        %4724 = vmatprep.subr.mxu0 0.0
        %4725 = vmatpush1.msra.mxu0 0.0
        %4726 = vmatprep.subr.mxu0 0.0
        %4727 = vmatpush1.msra.mxu0 0.0
        %4728 = vmatprep.subr.mxu0 0.0
        %4729 = vmatpush1.msra.mxu0 0.0
        %4730 = vmatprep.subr.mxu0 0.0
        %4731 = vmatpush1.msra.mxu0 0.0
        %4732 = vmatprep.subr.mxu0 0.0
        %4733 = vmatpush1.msra.mxu0 0.0
        %4734 = vmatprep.subr.mxu0 0.0
        %4735 = vmatpush1.msra.mxu0 0.0
        %4736 = vmatprep.subr.mxu0 0.0
        %4737 = vmatpush1.msra.mxu0 0.0
        %4738 = vmatprep.subr.mxu0 0.0
        %4739 = vmatpush1.msra.mxu0 0.0
        %4740 = vmatprep.subr.mxu0 0.0
        %4741 = vmatpush1.msra.mxu0 0.0
        %4742 = vmatprep.subr.mxu0 0.0
        %4743 = vmatpush1.msra.mxu0 0.0
        %4744 = vmatprep.subr.mxu0 0.0
        %4745 = vmatpush1.msra.mxu0 0.0
        %4746 = vmatprep.subr.mxu0 0.0
        %4747 = vmatpush1.msra.mxu0 0.0
        %4748 = vmatprep.subr.mxu0 0.0
        %4749 = vmatpush1.msra.mxu0 %v4716
        %4750 = vmatprep.subr.mxu0 0.0
        %4751 = vmatpush2.msra.mxu0 0.0
        %4752 = vmatprep.subr.mxu0 0.0
        %4753 = vmatpush2.msra.mxu0 0.0
        %4754 = vmatprep.subr.mxu0 0.0
        %4755 = vmatpush2.msra.mxu0 0.0
        %4756 = vmatprep.subr.mxu0 0.0
        %4757 = vmatpush2.msra.mxu0 0.0
        %4758 = vmatprep.subr.mxu0 0.0
        %4759 = vmatpush2.msra.mxu0 0.0
        %4760 = vmatprep.subr.mxu0 0.0
        %4761 = vmatpush2.msra.mxu0 0.0
        %4762 = vmatprep.subr.mxu0 0.0
        %4763 = vmatpush2.msra.mxu0 0.0
        %4764 = vmatprep.subr.mxu0 0.0
        %4765 = vmatpush2.msra.mxu0 0.0
        %4766 = vmatprep.subr.mxu0 0.0
        %4767 = vmatpush2.msra.mxu0 0.0
        %4768 = vmatprep.subr.mxu0 0.0
        %4769 = vmatpush2.msra.mxu0 0.0
        %4770 = vmatprep.subr.mxu0 0.0
        %4771 = vmatpush2.msra.mxu0 0.0
        %4772 = vmatprep.subr.mxu0 0.0
        %4773 = vmatpush2.msra.mxu0 0.0
        %4774 = vmatprep.subr.mxu0 0.0
        %4775 = vmatpush2.msra.mxu0 0.0
        %4776 = vmatprep.subr.mxu0 0.0
        %4777 = vmatpush2.msra.mxu0 0.0
        %4778 = vmatprep.subr.mxu0 0.0
        %4779 = vmatpush2.msra.mxu0 0.0
        %4780 = vmatprep.subr.mxu0 0.0
        %4781 = vmatpush2.msra.mxu0 0.0
        %4782 = vmatprep.mubr.f32.mxu0 0.0
        %4783 = vmatmul.mubr.f32.gmra.mxu0 %v4714
        %v4784 = vpop.f32.mrf.mxu0
        %v4785 = vadd.f32 0.0, %v4784
        %v4786 = vpop.f32.mrf.mxu0
        %4787 = vdwg.mxu0
        %v4788 = vadd.f32 %v4568, %v4785
        %v4789 = vld [vmem:[%s6] sm:$0xff]
        %4791 = vset.pattern.permute.xlu0 0
        %4792 = vperm.xlu0 %4791, %v4789
        %v4793 = vpop.permute.xlu0 %4792
        %v4795 = vadd.f32 %v4788, %v4793
        %v4796 = vsub.f32 0.0, %v4795
        %v4797 = vmul.f32 %v4796, 1.442695
        %v4798 = vpow.pop %v4797
        %v4799 = vadd.f32 %v4798, 1.0
        %v4800 = vrcp.pop %v4799
        %v4801 = vmul.f32 1.0, %v4800
        %4803 = vrot.lane.b32.xlu0 %v4801, 126
        %v4804 = vpop.permute.xlu0 %4803
        %4806 = vrot.lane.b32.xlu0 %v4801, 124
        %v4807 = vpop.permute.xlu0 %4806
        %4809 = vrot.lane.b32.xlu0 %v4801, 122
        %v4810 = vpop.permute.xlu0 %4809
        %v4812 = vcombine.low %v4801, %v4807
        %v4813 = vcombine.high %v4801, %v4807
        %v4815 = vunpack.c.l.s4 1983009808
        %v4816 = vunpack.c.0.s8 %v4815
        %v4817 = vlaneseq
        %v4818 = vshrl.u32 %v4817, 7
        %v4819 = vsub.s32 %v4816, %v4818
        %v4820 = vrot.slane %v4812, %v4819
        %v4822 = vunpack.c.l.s4 1983009808
        %v4823 = vunpack.c.0.s8 %v4822
        %v4824 = vlaneseq
        %v4825 = vshrl.u32 %v4824, 7
        %v4826 = vsub.s32 %v4823, %v4825
        %v4827 = vrot.slane %v4813, %v4826
        %v4828 = vcombine.low %v4804, %v4810
        %v4829 = vcombine.high %v4804, %v4810
        %v4831 = vunpack.c.l.s4 1983009808
        %v4832 = vunpack.c.0.s8 %v4831
        %v4833 = vlaneseq
        %v4834 = vshrl.u32 %v4833, 7
        %v4835 = vsub.s32 %v4832, %v4834
        %v4836 = vrot.slane %v4828, %v4835
        %v4838 = vunpack.c.l.s4 1983009808
        %v4839 = vunpack.c.0.s8 %v4838
        %v4840 = vlaneseq
        %v4841 = vshrl.u32 %v4840, 7
        %v4842 = vsub.s32 %v4839, %v4841
        %v4843 = vrot.slane %v4829, %v4842
        %v4844 = vcombine.low %v4820, %v4836
        %v4845 = vcombine.high %v4820, %v4836
        %v4847 = vunpack.c.l.s4 1934713408
        %v4848 = vunpack.c.0.s8 %v4847
        %v4849 = vlaneseq
        %v4850 = vshrl.u32 %v4849, 7
        %v4851 = vsub.s32 %v4848, %v4850
        %v4852 = vrot.slane %v4844, %v4851
        %v4854 = vunpack.c.l.s4 1934713408
        %v4855 = vunpack.c.0.s8 %v4854
        %v4856 = vlaneseq
        %v4857 = vshrl.u32 %v4856, 7
        %v4858 = vsub.s32 %v4855, %v4857
        %v4859 = vrot.slane %v4845, %v4858
        %v4860 = vcombine.low %v4827, %v4843
        %v4861 = vcombine.high %v4827, %v4843
        %v4863 = vunpack.c.l.s4 1934713408
        %v4864 = vunpack.c.0.s8 %v4863
        %v4865 = vlaneseq
        %v4866 = vshrl.u32 %v4865, 7
        %v4867 = vsub.s32 %v4864, %v4866
        %v4868 = vrot.slane %v4860, %v4867
        %v4870 = vunpack.c.l.s4 1934713408
        %v4871 = vunpack.c.0.s8 %v4870
        %v4872 = vlaneseq
        %v4873 = vshrl.u32 %v4872, 7
        %v4874 = vsub.s32 %v4871, %v4873
        %v4875 = vrot.slane %v4861, %v4874
        %v4876 = vcombine.high %v4852, 0.0
        %v4877 = vcombine.high %v4859, 0.0
        %v4878 = vcombine.high %v4868, 0.0
        %v4879 = vcombine.high %v4875, 0.0
        %v4880 = vsel %vm1805, %v4852, 0.0
        %4881 = vadd.xlane.f32.xlu0 %v4880
        %v4882 = vpop.xlane.xlu0 %4881
        %v4883 = vsel %vm1805, %v4876, 0.0
        %4884 = vadd.xlane.f32.xlu0 %v4883
        %v4885 = vpop.xlane.xlu0 %4884
        %v4886 = vsel %vm1805, %v4859, 0.0
        %4887 = vadd.xlane.f32.xlu0 %v4886
        %v4888 = vpop.xlane.xlu0 %4887
        %v4889 = vsel %vm1805, %v4877, 0.0
        %4890 = vadd.xlane.f32.xlu0 %v4889
        %v4891 = vpop.xlane.xlu0 %4890
        %v4892 = vsel %vm1805, %v4868, 0.0
        %4893 = vadd.xlane.f32.xlu0 %v4892
        %v4894 = vpop.xlane.xlu0 %4893
        %v4895 = vsel %vm1805, %v4878, 0.0
        %4896 = vadd.xlane.f32.xlu0 %v4895
        %v4897 = vpop.xlane.xlu0 %4896
        %v4898 = vsel %vm1805, %v4875, 0.0
        %4899 = vadd.xlane.f32.xlu0 %v4898
        %v4900 = vpop.xlane.xlu0 %4899
        %v4901 = vsel %vm1805, %v4879, 0.0
        %4902 = vadd.xlane.f32.xlu0 %v4901
        %v4903 = vpop.xlane.xlu0 %4902
        %v4904 = vmul.f32 %v4882, 0.5
        %v4905 = vmul.f32 %v4885, 0.5
        %v4906 = vmul.f32 %v4888, 0.5
        %v4907 = vmul.f32 %v4891, 0.5
        %v4908 = vmul.f32 %v4894, 0.5
        %v4909 = vmul.f32 %v4897, 0.5
        %v4910 = vmul.f32 %v4900, 0.5
        %v4911 = vmul.f32 %v4903, 0.5
        %s4912 = scalar_lea.vmem %s277, 12
        %v4913 = vld [vmem:[%s4912] sm:$0xf]
        %4915 = vrot.lane.b32.xlu0 %v4913, 1
        %v4916 = vpop.permute.xlu0 %4915
        %4918 = vst.msk [vmem:[#allocation2] sm:$0xf] %vm288, %v4916
        %v4919 = vld [vmem:[%s1] sm:$0xff]
        %v4920 = vld [vmem:[#allocation2] sm:$0xf]
        %v4921 = vld [vmem:[%s292] sm:$0xff]
        %4923 = vrot.lane.b32.xlu0 %v4920, 127
        %v4924 = vpop.permute.xlu0 %4923
        %v4926 = vsel %vm297, %v4921, 0
        %v4928 = vsel %vm301, %v4924, 0
        %4930 = vmatprep.subr.mxu0 0.0
        %4931 = vmatpush1.msra.mxu0 0.0
        %4932 = vmatprep.subr.mxu0 0.0
        %4933 = vmatpush1.msra.mxu0 0.0
        %4934 = vmatprep.subr.mxu0 0.0
        %4935 = vmatpush1.msra.mxu0 0.0
        %4936 = vmatprep.subr.mxu0 0.0
        %4937 = vmatpush1.msra.mxu0 0.0
        %4938 = vmatprep.subr.mxu0 0.0
        %4939 = vmatpush1.msra.mxu0 0.0
        %4940 = vmatprep.subr.mxu0 0.0
        %4941 = vmatpush1.msra.mxu0 0.0
        %4942 = vmatprep.subr.mxu0 0.0
        %4943 = vmatpush1.msra.mxu0 0.0
        %4944 = vmatprep.subr.mxu0 0.0
        %4945 = vmatpush1.msra.mxu0 0.0
        %4946 = vmatprep.subr.mxu0 0.0
        %4947 = vmatpush1.msra.mxu0 0.0
        %4948 = vmatprep.subr.mxu0 0.0
        %4949 = vmatpush1.msra.mxu0 0.0
        %4950 = vmatprep.subr.mxu0 0.0
        %4951 = vmatpush1.msra.mxu0 0.0
        %4952 = vmatprep.subr.mxu0 0.0
        %4953 = vmatpush1.msra.mxu0 0.0
        %4954 = vmatprep.subr.mxu0 0.0
        %4955 = vmatpush1.msra.mxu0 0.0
        %4956 = vmatprep.subr.mxu0 0.0
        %4957 = vmatpush1.msra.mxu0 0.0
        %4958 = vmatprep.subr.mxu0 0.0
        %4959 = vmatpush1.msra.mxu0 0.0
        %4960 = vmatprep.subr.mxu0 0.0
        %4961 = vmatpush1.msra.mxu0 %v4928
        %4962 = vmatprep.subr.mxu0 0.0
        %4963 = vmatpush2.msra.mxu0 0.0
        %4964 = vmatprep.subr.mxu0 0.0
        %4965 = vmatpush2.msra.mxu0 0.0
        %4966 = vmatprep.subr.mxu0 0.0
        %4967 = vmatpush2.msra.mxu0 0.0
        %4968 = vmatprep.subr.mxu0 0.0
        %4969 = vmatpush2.msra.mxu0 0.0
        %4970 = vmatprep.subr.mxu0 0.0
        %4971 = vmatpush2.msra.mxu0 0.0
        %4972 = vmatprep.subr.mxu0 0.0
        %4973 = vmatpush2.msra.mxu0 0.0
        %4974 = vmatprep.subr.mxu0 0.0
        %4975 = vmatpush2.msra.mxu0 0.0
        %4976 = vmatprep.subr.mxu0 0.0
        %4977 = vmatpush2.msra.mxu0 0.0
        %4978 = vmatprep.subr.mxu0 0.0
        %4979 = vmatpush2.msra.mxu0 0.0
        %4980 = vmatprep.subr.mxu0 0.0
        %4981 = vmatpush2.msra.mxu0 0.0
        %4982 = vmatprep.subr.mxu0 0.0
        %4983 = vmatpush2.msra.mxu0 0.0
        %4984 = vmatprep.subr.mxu0 0.0
        %4985 = vmatpush2.msra.mxu0 0.0
        %4986 = vmatprep.subr.mxu0 0.0
        %4987 = vmatpush2.msra.mxu0 0.0
        %4988 = vmatprep.subr.mxu0 0.0
        %4989 = vmatpush2.msra.mxu0 0.0
        %4990 = vmatprep.subr.mxu0 0.0
        %4991 = vmatpush2.msra.mxu0 0.0
        %4992 = vmatprep.subr.mxu0 0.0
        %4993 = vmatpush2.msra.mxu0 0.0
        %4994 = vmatprep.mubr.f32.mxu0 0.0
        %4995 = vmatmul.mubr.f32.gmra.mxu0 %v4926
        %v4996 = vpop.f32.mrf.mxu0
        %v4997 = vadd.f32 0.0, %v4996
        %v4998 = vpop.f32.mrf.mxu0
        %4999 = vdwg.mxu0
        %v5001 = vsel %vm297, %v4919, 0
        %v5003 = vsel %vm301, %v4920, 0
        %5005 = vmatprep.subr.mxu0 0.0
        %5006 = vmatpush1.msra.mxu0 0.0
        %5007 = vmatprep.subr.mxu0 0.0
        %5008 = vmatpush1.msra.mxu0 0.0
        %5009 = vmatprep.subr.mxu0 0.0
        %5010 = vmatpush1.msra.mxu0 0.0
        %5011 = vmatprep.subr.mxu0 0.0
        %5012 = vmatpush1.msra.mxu0 0.0
        %5013 = vmatprep.subr.mxu0 0.0
        %5014 = vmatpush1.msra.mxu0 0.0
        %5015 = vmatprep.subr.mxu0 0.0
        %5016 = vmatpush1.msra.mxu0 0.0
        %5017 = vmatprep.subr.mxu0 0.0
        %5018 = vmatpush1.msra.mxu0 0.0
        %5019 = vmatprep.subr.mxu0 0.0
        %5020 = vmatpush1.msra.mxu0 0.0
        %5021 = vmatprep.subr.mxu0 0.0
        %5022 = vmatpush1.msra.mxu0 0.0
        %5023 = vmatprep.subr.mxu0 0.0
        %5024 = vmatpush1.msra.mxu0 0.0
        %5025 = vmatprep.subr.mxu0 0.0
        %5026 = vmatpush1.msra.mxu0 0.0
        %5027 = vmatprep.subr.mxu0 0.0
        %5028 = vmatpush1.msra.mxu0 0.0
        %5029 = vmatprep.subr.mxu0 0.0
        %5030 = vmatpush1.msra.mxu0 0.0
        %5031 = vmatprep.subr.mxu0 0.0
        %5032 = vmatpush1.msra.mxu0 0.0
        %5033 = vmatprep.subr.mxu0 0.0
        %5034 = vmatpush1.msra.mxu0 0.0
        %5035 = vmatprep.subr.mxu0 0.0
        %5036 = vmatpush1.msra.mxu0 %v5003
        %5037 = vmatprep.subr.mxu0 0.0
        %5038 = vmatpush2.msra.mxu0 0.0
        %5039 = vmatprep.subr.mxu0 0.0
        %5040 = vmatpush2.msra.mxu0 0.0
        %5041 = vmatprep.subr.mxu0 0.0
        %5042 = vmatpush2.msra.mxu0 0.0
        %5043 = vmatprep.subr.mxu0 0.0
        %5044 = vmatpush2.msra.mxu0 0.0
        %5045 = vmatprep.subr.mxu0 0.0
        %5046 = vmatpush2.msra.mxu0 0.0
        %5047 = vmatprep.subr.mxu0 0.0
        %5048 = vmatpush2.msra.mxu0 0.0
        %5049 = vmatprep.subr.mxu0 0.0
        %5050 = vmatpush2.msra.mxu0 0.0
        %5051 = vmatprep.subr.mxu0 0.0
        %5052 = vmatpush2.msra.mxu0 0.0
        %5053 = vmatprep.subr.mxu0 0.0
        %5054 = vmatpush2.msra.mxu0 0.0
        %5055 = vmatprep.subr.mxu0 0.0
        %5056 = vmatpush2.msra.mxu0 0.0
        %5057 = vmatprep.subr.mxu0 0.0
        %5058 = vmatpush2.msra.mxu0 0.0
        %5059 = vmatprep.subr.mxu0 0.0
        %5060 = vmatpush2.msra.mxu0 0.0
        %5061 = vmatprep.subr.mxu0 0.0
        %5062 = vmatpush2.msra.mxu0 0.0
        %5063 = vmatprep.subr.mxu0 0.0
        %5064 = vmatpush2.msra.mxu0 0.0
        %5065 = vmatprep.subr.mxu0 0.0
        %5066 = vmatpush2.msra.mxu0 0.0
        %5067 = vmatprep.subr.mxu0 0.0
        %5068 = vmatpush2.msra.mxu0 0.0
        %5069 = vmatprep.mubr.f32.mxu0 0.0
        %5070 = vmatmul.mubr.f32.gmra.mxu0 %v5001
        %v5071 = vpop.f32.mrf.mxu0
        %v5072 = vadd.f32 %v4997, %v5071
        %v5073 = vpop.f32.mrf.mxu0
        %5074 = vdwg.mxu0
        %v5075 = vld [vmem:[%s449] sm:$0xff]
        %5076 = vrot.lane.b32.xlu0 %v4920, 126
        %v5077 = vpop.permute.xlu0 %5076
        %v5079 = vsel %vm297, %v5075, 0
        %v5081 = vsel %vm301, %v5077, 0
        %5083 = vmatprep.subr.mxu0 0.0
        %5084 = vmatpush1.msra.mxu0 0.0
        %5085 = vmatprep.subr.mxu0 0.0
        %5086 = vmatpush1.msra.mxu0 0.0
        %5087 = vmatprep.subr.mxu0 0.0
        %5088 = vmatpush1.msra.mxu0 0.0
        %5089 = vmatprep.subr.mxu0 0.0
        %5090 = vmatpush1.msra.mxu0 0.0
        %5091 = vmatprep.subr.mxu0 0.0
        %5092 = vmatpush1.msra.mxu0 0.0
        %5093 = vmatprep.subr.mxu0 0.0
        %5094 = vmatpush1.msra.mxu0 0.0
        %5095 = vmatprep.subr.mxu0 0.0
        %5096 = vmatpush1.msra.mxu0 0.0
        %5097 = vmatprep.subr.mxu0 0.0
        %5098 = vmatpush1.msra.mxu0 0.0
        %5099 = vmatprep.subr.mxu0 0.0
        %5100 = vmatpush1.msra.mxu0 0.0
        %5101 = vmatprep.subr.mxu0 0.0
        %5102 = vmatpush1.msra.mxu0 0.0
        %5103 = vmatprep.subr.mxu0 0.0
        %5104 = vmatpush1.msra.mxu0 0.0
        %5105 = vmatprep.subr.mxu0 0.0
        %5106 = vmatpush1.msra.mxu0 0.0
        %5107 = vmatprep.subr.mxu0 0.0
        %5108 = vmatpush1.msra.mxu0 0.0
        %5109 = vmatprep.subr.mxu0 0.0
        %5110 = vmatpush1.msra.mxu0 0.0
        %5111 = vmatprep.subr.mxu0 0.0
        %5112 = vmatpush1.msra.mxu0 0.0
        %5113 = vmatprep.subr.mxu0 0.0
        %5114 = vmatpush1.msra.mxu0 %v5081
        %5115 = vmatprep.subr.mxu0 0.0
        %5116 = vmatpush2.msra.mxu0 0.0
        %5117 = vmatprep.subr.mxu0 0.0
        %5118 = vmatpush2.msra.mxu0 0.0
        %5119 = vmatprep.subr.mxu0 0.0
        %5120 = vmatpush2.msra.mxu0 0.0
        %5121 = vmatprep.subr.mxu0 0.0
        %5122 = vmatpush2.msra.mxu0 0.0
        %5123 = vmatprep.subr.mxu0 0.0
        %5124 = vmatpush2.msra.mxu0 0.0
        %5125 = vmatprep.subr.mxu0 0.0
        %5126 = vmatpush2.msra.mxu0 0.0
        %5127 = vmatprep.subr.mxu0 0.0
        %5128 = vmatpush2.msra.mxu0 0.0
        %5129 = vmatprep.subr.mxu0 0.0
        %5130 = vmatpush2.msra.mxu0 0.0
        %5131 = vmatprep.subr.mxu0 0.0
        %5132 = vmatpush2.msra.mxu0 0.0
        %5133 = vmatprep.subr.mxu0 0.0
        %5134 = vmatpush2.msra.mxu0 0.0
        %5135 = vmatprep.subr.mxu0 0.0
        %5136 = vmatpush2.msra.mxu0 0.0
        %5137 = vmatprep.subr.mxu0 0.0
        %5138 = vmatpush2.msra.mxu0 0.0
        %5139 = vmatprep.subr.mxu0 0.0
        %5140 = vmatpush2.msra.mxu0 0.0
        %5141 = vmatprep.subr.mxu0 0.0
        %5142 = vmatpush2.msra.mxu0 0.0
        %5143 = vmatprep.subr.mxu0 0.0
        %5144 = vmatpush2.msra.mxu0 0.0
        %5145 = vmatprep.subr.mxu0 0.0
        %5146 = vmatpush2.msra.mxu0 0.0
        %5147 = vmatprep.mubr.f32.mxu0 0.0
        %5148 = vmatmul.mubr.f32.gmra.mxu0 %v5079
        %v5149 = vpop.f32.mrf.mxu0
        %v5150 = vadd.f32 0.0, %v5149
        %v5151 = vpop.f32.mrf.mxu0
        %5152 = vdwg.mxu0
        %v5153 = vadd.f32 %v5072, %v5150
        %v5154 = vld [vmem:[%s2] sm:$0xff]
        %5156 = vset.pattern.permute.xlu0 0
        %5157 = vperm.xlu0 %5156, %v5154
        %v5158 = vpop.permute.xlu0 %5157
        %v5160 = vadd.f32 %v5153, %v5158
        %v5161 = vmax.f32 %v5160, 0.0
        %5163 = vrot.lane.b32.xlu0 %v5161, 1
        %v5164 = vpop.permute.xlu0 %5163
        %5166 = vst.msk [vmem:[#allocation3] sm:$0xff] %vm541, %v5164
        %v5167 = vld [vmem:[#allocation3] sm:$0xff]
        %5169 = vrot.lane.b32.xlu0 %v5167, 126
        %v5170 = vpop.permute.xlu0 %5169
        %5172 = vrot.lane.b32.xlu0 %v5167, 124
        %v5173 = vpop.permute.xlu0 %5172
        %5175 = vrot.lane.b32.xlu0 %v5167, 122
        %v5176 = vpop.permute.xlu0 %5175
        %5178 = vrot.lane.b32.xlu0 %v5167, 120
        %v5179 = vpop.permute.xlu0 %5178
        %5181 = vrot.lane.b32.xlu0 %v5167, 118
        %v5182 = vpop.permute.xlu0 %5181
        %5184 = vrot.lane.b32.xlu0 %v5167, 116
        %v5185 = vpop.permute.xlu0 %5184
        %5187 = vrot.lane.b32.xlu0 %v5167, 114
        %v5188 = vpop.permute.xlu0 %5187
        %v5190 = vcombine.low %v5167, %v5173
        %v5191 = vcombine.high %v5167, %v5173
        %v5193 = vunpack.c.l.s4 1983009808
        %v5194 = vunpack.c.0.s8 %v5193
        %v5195 = vlaneseq
        %v5196 = vshrl.u32 %v5195, 7
        %v5197 = vsub.s32 %v5194, %v5196
        %v5198 = vrot.slane %v5190, %v5197
        %v5200 = vunpack.c.l.s4 1983009808
        %v5201 = vunpack.c.0.s8 %v5200
        %v5202 = vlaneseq
        %v5203 = vshrl.u32 %v5202, 7
        %v5204 = vsub.s32 %v5201, %v5203
        %v5205 = vrot.slane %v5191, %v5204
        %v5206 = vcombine.low %v5170, %v5176
        %v5207 = vcombine.high %v5170, %v5176
        %v5209 = vunpack.c.l.s4 1983009808
        %v5210 = vunpack.c.0.s8 %v5209
        %v5211 = vlaneseq
        %v5212 = vshrl.u32 %v5211, 7
        %v5213 = vsub.s32 %v5210, %v5212
        %v5214 = vrot.slane %v5206, %v5213
        %v5216 = vunpack.c.l.s4 1983009808
        %v5217 = vunpack.c.0.s8 %v5216
        %v5218 = vlaneseq
        %v5219 = vshrl.u32 %v5218, 7
        %v5220 = vsub.s32 %v5217, %v5219
        %v5221 = vrot.slane %v5207, %v5220
        %v5222 = vcombine.low %v5179, %v5185
        %v5223 = vcombine.high %v5179, %v5185
        %v5225 = vunpack.c.l.s4 1983009808
        %v5226 = vunpack.c.0.s8 %v5225
        %v5227 = vlaneseq
        %v5228 = vshrl.u32 %v5227, 7
        %v5229 = vsub.s32 %v5226, %v5228
        %v5230 = vrot.slane %v5222, %v5229
        %v5232 = vunpack.c.l.s4 1983009808
        %v5233 = vunpack.c.0.s8 %v5232
        %v5234 = vlaneseq
        %v5235 = vshrl.u32 %v5234, 7
        %v5236 = vsub.s32 %v5233, %v5235
        %v5237 = vrot.slane %v5223, %v5236
        %v5238 = vcombine.low %v5182, %v5188
        %v5239 = vcombine.high %v5182, %v5188
        %v5241 = vunpack.c.l.s4 1983009808
        %v5242 = vunpack.c.0.s8 %v5241
        %v5243 = vlaneseq
        %v5244 = vshrl.u32 %v5243, 7
        %v5245 = vsub.s32 %v5242, %v5244
        %v5246 = vrot.slane %v5238, %v5245
        %v5248 = vunpack.c.l.s4 1983009808
        %v5249 = vunpack.c.0.s8 %v5248
        %v5250 = vlaneseq
        %v5251 = vshrl.u32 %v5250, 7
        %v5252 = vsub.s32 %v5249, %v5251
        %v5253 = vrot.slane %v5239, %v5252
        %v5254 = vcombine.low %v5198, %v5214
        %v5255 = vcombine.high %v5198, %v5214
        %v5257 = vunpack.c.l.s4 1934713408
        %v5258 = vunpack.c.0.s8 %v5257
        %v5259 = vlaneseq
        %v5260 = vshrl.u32 %v5259, 7
        %v5261 = vsub.s32 %v5258, %v5260
        %v5262 = vrot.slane %v5254, %v5261
        %v5264 = vunpack.c.l.s4 1934713408
        %v5265 = vunpack.c.0.s8 %v5264
        %v5266 = vlaneseq
        %v5267 = vshrl.u32 %v5266, 7
        %v5268 = vsub.s32 %v5265, %v5267
        %v5269 = vrot.slane %v5255, %v5268
        %v5270 = vcombine.low %v5205, %v5221
        %v5271 = vcombine.high %v5205, %v5221
        %v5273 = vunpack.c.l.s4 1934713408
        %v5274 = vunpack.c.0.s8 %v5273
        %v5275 = vlaneseq
        %v5276 = vshrl.u32 %v5275, 7
        %v5277 = vsub.s32 %v5274, %v5276
        %v5278 = vrot.slane %v5270, %v5277
        %v5280 = vunpack.c.l.s4 1934713408
        %v5281 = vunpack.c.0.s8 %v5280
        %v5282 = vlaneseq
        %v5283 = vshrl.u32 %v5282, 7
        %v5284 = vsub.s32 %v5281, %v5283
        %v5285 = vrot.slane %v5271, %v5284
        %v5286 = vcombine.low %v5230, %v5246
        %v5287 = vcombine.high %v5230, %v5246
        %v5289 = vunpack.c.l.s4 1934713408
        %v5290 = vunpack.c.0.s8 %v5289
        %v5291 = vlaneseq
        %v5292 = vshrl.u32 %v5291, 7
        %v5293 = vsub.s32 %v5290, %v5292
        %v5294 = vrot.slane %v5286, %v5293
        %v5296 = vunpack.c.l.s4 1934713408
        %v5297 = vunpack.c.0.s8 %v5296
        %v5298 = vlaneseq
        %v5299 = vshrl.u32 %v5298, 7
        %v5300 = vsub.s32 %v5297, %v5299
        %v5301 = vrot.slane %v5287, %v5300
        %v5302 = vcombine.low %v5237, %v5253
        %v5303 = vcombine.high %v5237, %v5253
        %v5305 = vunpack.c.l.s4 1934713408
        %v5306 = vunpack.c.0.s8 %v5305
        %v5307 = vlaneseq
        %v5308 = vshrl.u32 %v5307, 7
        %v5309 = vsub.s32 %v5306, %v5308
        %v5310 = vrot.slane %v5302, %v5309
        %v5312 = vunpack.c.l.s4 1934713408
        %v5313 = vunpack.c.0.s8 %v5312
        %v5314 = vlaneseq
        %v5315 = vshrl.u32 %v5314, 7
        %v5316 = vsub.s32 %v5313, %v5315
        %v5317 = vrot.slane %v5303, %v5316
        %v5318 = vcombine.low %v5262, %v5294
        %v5319 = vcombine.high %v5262, %v5294
        %v5320 = vcombine.low %v5269, %v5301
        %v5321 = vcombine.high %v5269, %v5301
        %v5322 = vcombine.low %v5278, %v5310
        %v5323 = vcombine.high %v5278, %v5310
        %v5324 = vcombine.low %v5285, %v5317
        %v5325 = vcombine.high %v5285, %v5317
        %v5326 = vld [vmem:[%s3] sm:$0xff]
        %5327 = vrot.lane.b32.xlu0 %v5167, 127
        %v5328 = vpop.permute.xlu0 %5327
        %5329 = vrot.lane.b32.xlu0 %v5170, 127
        %v5330 = vpop.permute.xlu0 %5329
        %5331 = vrot.lane.b32.xlu0 %v5173, 127
        %v5332 = vpop.permute.xlu0 %5331
        %5333 = vrot.lane.b32.xlu0 %v5176, 127
        %v5334 = vpop.permute.xlu0 %5333
        %5335 = vrot.lane.b32.xlu0 %v5179, 127
        %v5336 = vpop.permute.xlu0 %5335
        %5337 = vrot.lane.b32.xlu0 %v5182, 127
        %v5338 = vpop.permute.xlu0 %5337
        %5339 = vrot.lane.b32.xlu0 %v5185, 127
        %v5340 = vpop.permute.xlu0 %5339
        %5341 = vrot.lane.b32.xlu0 %v5188, 127
        %v5342 = vpop.permute.xlu0 %5341
        %v5351 = vcombine.low %v5328, %v5332
        %v5352 = vcombine.high %v5328, %v5332
        %v5354 = vunpack.c.l.s4 1983009808
        %v5355 = vunpack.c.0.s8 %v5354
        %v5356 = vlaneseq
        %v5357 = vshrl.u32 %v5356, 7
        %v5358 = vsub.s32 %v5355, %v5357
        %v5359 = vrot.slane %v5351, %v5358
        %v5361 = vunpack.c.l.s4 1983009808
        %v5362 = vunpack.c.0.s8 %v5361
        %v5363 = vlaneseq
        %v5364 = vshrl.u32 %v5363, 7
        %v5365 = vsub.s32 %v5362, %v5364
        %v5366 = vrot.slane %v5352, %v5365
        %v5367 = vcombine.low %v5330, %v5334
        %v5368 = vcombine.high %v5330, %v5334
        %v5370 = vunpack.c.l.s4 1983009808
        %v5371 = vunpack.c.0.s8 %v5370
        %v5372 = vlaneseq
        %v5373 = vshrl.u32 %v5372, 7
        %v5374 = vsub.s32 %v5371, %v5373
        %v5375 = vrot.slane %v5367, %v5374
        %v5377 = vunpack.c.l.s4 1983009808
        %v5378 = vunpack.c.0.s8 %v5377
        %v5379 = vlaneseq
        %v5380 = vshrl.u32 %v5379, 7
        %v5381 = vsub.s32 %v5378, %v5380
        %v5382 = vrot.slane %v5368, %v5381
        %v5383 = vcombine.low %v5336, %v5340
        %v5384 = vcombine.high %v5336, %v5340
        %v5386 = vunpack.c.l.s4 1983009808
        %v5387 = vunpack.c.0.s8 %v5386
        %v5388 = vlaneseq
        %v5389 = vshrl.u32 %v5388, 7
        %v5390 = vsub.s32 %v5387, %v5389
        %v5391 = vrot.slane %v5383, %v5390
        %v5393 = vunpack.c.l.s4 1983009808
        %v5394 = vunpack.c.0.s8 %v5393
        %v5395 = vlaneseq
        %v5396 = vshrl.u32 %v5395, 7
        %v5397 = vsub.s32 %v5394, %v5396
        %v5398 = vrot.slane %v5384, %v5397
        %v5399 = vcombine.low %v5338, %v5342
        %v5400 = vcombine.high %v5338, %v5342
        %v5402 = vunpack.c.l.s4 1983009808
        %v5403 = vunpack.c.0.s8 %v5402
        %v5404 = vlaneseq
        %v5405 = vshrl.u32 %v5404, 7
        %v5406 = vsub.s32 %v5403, %v5405
        %v5407 = vrot.slane %v5399, %v5406
        %v5409 = vunpack.c.l.s4 1983009808
        %v5410 = vunpack.c.0.s8 %v5409
        %v5411 = vlaneseq
        %v5412 = vshrl.u32 %v5411, 7
        %v5413 = vsub.s32 %v5410, %v5412
        %v5414 = vrot.slane %v5400, %v5413
        %v5415 = vcombine.low %v5359, %v5375
        %v5416 = vcombine.high %v5359, %v5375
        %v5418 = vunpack.c.l.s4 1934713408
        %v5419 = vunpack.c.0.s8 %v5418
        %v5420 = vlaneseq
        %v5421 = vshrl.u32 %v5420, 7
        %v5422 = vsub.s32 %v5419, %v5421
        %v5423 = vrot.slane %v5415, %v5422
        %v5425 = vunpack.c.l.s4 1934713408
        %v5426 = vunpack.c.0.s8 %v5425
        %v5427 = vlaneseq
        %v5428 = vshrl.u32 %v5427, 7
        %v5429 = vsub.s32 %v5426, %v5428
        %v5430 = vrot.slane %v5416, %v5429
        %v5431 = vcombine.low %v5366, %v5382
        %v5432 = vcombine.high %v5366, %v5382
        %v5434 = vunpack.c.l.s4 1934713408
        %v5435 = vunpack.c.0.s8 %v5434
        %v5436 = vlaneseq
        %v5437 = vshrl.u32 %v5436, 7
        %v5438 = vsub.s32 %v5435, %v5437
        %v5439 = vrot.slane %v5431, %v5438
        %v5441 = vunpack.c.l.s4 1934713408
        %v5442 = vunpack.c.0.s8 %v5441
        %v5443 = vlaneseq
        %v5444 = vshrl.u32 %v5443, 7
        %v5445 = vsub.s32 %v5442, %v5444
        %v5446 = vrot.slane %v5432, %v5445
        %v5447 = vcombine.low %v5391, %v5407
        %v5448 = vcombine.high %v5391, %v5407
        %v5450 = vunpack.c.l.s4 1934713408
        %v5451 = vunpack.c.0.s8 %v5450
        %v5452 = vlaneseq
        %v5453 = vshrl.u32 %v5452, 7
        %v5454 = vsub.s32 %v5451, %v5453
        %v5455 = vrot.slane %v5447, %v5454
        %v5457 = vunpack.c.l.s4 1934713408
        %v5458 = vunpack.c.0.s8 %v5457
        %v5459 = vlaneseq
        %v5460 = vshrl.u32 %v5459, 7
        %v5461 = vsub.s32 %v5458, %v5460
        %v5462 = vrot.slane %v5448, %v5461
        %v5463 = vcombine.low %v5398, %v5414
        %v5464 = vcombine.high %v5398, %v5414
        %v5466 = vunpack.c.l.s4 1934713408
        %v5467 = vunpack.c.0.s8 %v5466
        %v5468 = vlaneseq
        %v5469 = vshrl.u32 %v5468, 7
        %v5470 = vsub.s32 %v5467, %v5469
        %v5471 = vrot.slane %v5463, %v5470
        %v5473 = vunpack.c.l.s4 1934713408
        %v5474 = vunpack.c.0.s8 %v5473
        %v5475 = vlaneseq
        %v5476 = vshrl.u32 %v5475, 7
        %v5477 = vsub.s32 %v5474, %v5476
        %v5478 = vrot.slane %v5464, %v5477
        %v5479 = vcombine.low %v5423, %v5455
        %v5480 = vcombine.high %v5423, %v5455
        %v5481 = vcombine.low %v5430, %v5462
        %v5482 = vcombine.high %v5430, %v5462
        %v5483 = vcombine.low %v5439, %v5471
        %v5484 = vcombine.high %v5439, %v5471
        %v5485 = vcombine.low %v5446, %v5478
        %v5486 = vcombine.high %v5446, %v5478
        %v5487 = vld [vmem:[%s863] sm:$0xff]
        %5496 = vset.pattern.permute.xlu0 0
        %5497 = vperm.xlu0 %5496, %v5479
        %v5498 = vpop.permute.xlu0 %5497
        %5499 = vset.pattern.permute.xlu0 0
        %5500 = vperm.xlu0 %5499, %v5480
        %v5501 = vpop.permute.xlu0 %5500
        %5502 = vset.pattern.permute.xlu0 0
        %5503 = vperm.xlu0 %5502, %v5481
        %v5504 = vpop.permute.xlu0 %5503
        %5505 = vset.pattern.permute.xlu0 0
        %5506 = vperm.xlu0 %5505, %v5482
        %v5507 = vpop.permute.xlu0 %5506
        %5508 = vset.pattern.permute.xlu0 0
        %5509 = vperm.xlu0 %5508, %v5483
        %v5510 = vpop.permute.xlu0 %5509
        %5511 = vset.pattern.permute.xlu0 0
        %5512 = vperm.xlu0 %5511, %v5484
        %v5513 = vpop.permute.xlu0 %5512
        %5514 = vset.pattern.permute.xlu0 0
        %5515 = vperm.xlu0 %5514, %v5485
        %v5516 = vpop.permute.xlu0 %5515
        %5517 = vset.pattern.permute.xlu0 0
        %5518 = vperm.xlu0 %5517, %v5486
        %v5519 = vpop.permute.xlu0 %5518
        %v5520 = vlaneseq
        %v5521 = vshrl.u32 %v5520, 7
        %v5522 = vsub.s32 %v898, %v5521
        %v5523 = vrot.slane %v5498, %v5522
        %v5524 = vlaneseq
        %v5525 = vshrl.u32 %v5524, 7
        %v5526 = vsub.s32 %v898, %v5525
        %v5527 = vrot.slane %v5501, %v5526
        %v5528 = vlaneseq
        %v5529 = vshrl.u32 %v5528, 7
        %v5530 = vsub.s32 %v898, %v5529
        %v5531 = vrot.slane %v5504, %v5530
        %v5532 = vlaneseq
        %v5533 = vshrl.u32 %v5532, 7
        %v5534 = vsub.s32 %v898, %v5533
        %v5535 = vrot.slane %v5507, %v5534
        %v5536 = vlaneseq
        %v5537 = vshrl.u32 %v5536, 7
        %v5538 = vsub.s32 %v898, %v5537
        %v5539 = vrot.slane %v5510, %v5538
        %v5540 = vlaneseq
        %v5541 = vshrl.u32 %v5540, 7
        %v5542 = vsub.s32 %v898, %v5541
        %v5543 = vrot.slane %v5513, %v5542
        %v5544 = vlaneseq
        %v5545 = vshrl.u32 %v5544, 7
        %v5546 = vsub.s32 %v898, %v5545
        %v5547 = vrot.slane %v5516, %v5546
        %v5548 = vlaneseq
        %v5549 = vshrl.u32 %v5548, 7
        %v5550 = vsub.s32 %v898, %v5549
        %v5551 = vrot.slane %v5519, %v5550
        %v5552 = vsel %vm931, %v5527, %v5523
        %v5553 = vsel %vm933, %v5531, %v5552
        %v5554 = vsel %vm935, %v5535, %v5553
        %v5555 = vsel %vm937, %v5539, %v5554
        %v5556 = vsel %vm939, %v5543, %v5555
        %v5557 = vsel %vm941, %v5547, %v5556
        %v5558 = vsel %vm943, %v5551, %v5557
        %v5561 = vsel %vm946, %v5487, 0
        %5563 = vmatprep.subr.mxu0 0.0
        %5564 = vmatpush1.msra.mxu0 0.0
        %5565 = vmatprep.subr.mxu0 0.0
        %5566 = vmatpush1.msra.mxu0 0.0
        %5567 = vmatprep.subr.mxu0 0.0
        %5568 = vmatpush1.msra.mxu0 0.0
        %5569 = vmatprep.subr.mxu0 0.0
        %5570 = vmatpush1.msra.mxu0 0.0
        %5571 = vmatprep.subr.mxu0 0.0
        %5572 = vmatpush1.msra.mxu0 0.0
        %5573 = vmatprep.subr.mxu0 0.0
        %5574 = vmatpush1.msra.mxu0 0.0
        %5575 = vmatprep.subr.mxu0 0.0
        %5576 = vmatpush1.msra.mxu0 0.0
        %5577 = vmatprep.subr.mxu0 0.0
        %5578 = vmatpush1.msra.mxu0 0.0
        %5579 = vmatprep.subr.mxu0 0.0
        %5580 = vmatpush1.msra.mxu0 0.0
        %5581 = vmatprep.subr.mxu0 0.0
        %5582 = vmatpush1.msra.mxu0 0.0
        %5583 = vmatprep.subr.mxu0 0.0
        %5584 = vmatpush1.msra.mxu0 0.0
        %5585 = vmatprep.subr.mxu0 0.0
        %5586 = vmatpush1.msra.mxu0 0.0
        %5587 = vmatprep.subr.mxu0 0.0
        %5588 = vmatpush1.msra.mxu0 0.0
        %5589 = vmatprep.subr.mxu0 0.0
        %5590 = vmatpush1.msra.mxu0 0.0
        %5591 = vmatprep.subr.mxu0 0.0
        %5592 = vmatpush1.msra.mxu0 0.0
        %5593 = vmatprep.subr.mxu0 0.0
        %5594 = vmatpush1.msra.mxu0 %v5558
        %5595 = vmatprep.subr.mxu0 0.0
        %5596 = vmatpush2.msra.mxu0 0.0
        %5597 = vmatprep.subr.mxu0 0.0
        %5598 = vmatpush2.msra.mxu0 0.0
        %5599 = vmatprep.subr.mxu0 0.0
        %5600 = vmatpush2.msra.mxu0 0.0
        %5601 = vmatprep.subr.mxu0 0.0
        %5602 = vmatpush2.msra.mxu0 0.0
        %5603 = vmatprep.subr.mxu0 0.0
        %5604 = vmatpush2.msra.mxu0 0.0
        %5605 = vmatprep.subr.mxu0 0.0
        %5606 = vmatpush2.msra.mxu0 0.0
        %5607 = vmatprep.subr.mxu0 0.0
        %5608 = vmatpush2.msra.mxu0 0.0
        %5609 = vmatprep.subr.mxu0 0.0
        %5610 = vmatpush2.msra.mxu0 0.0
        %5611 = vmatprep.subr.mxu0 0.0
        %5612 = vmatpush2.msra.mxu0 0.0
        %5613 = vmatprep.subr.mxu0 0.0
        %5614 = vmatpush2.msra.mxu0 0.0
        %5615 = vmatprep.subr.mxu0 0.0
        %5616 = vmatpush2.msra.mxu0 0.0
        %5617 = vmatprep.subr.mxu0 0.0
        %5618 = vmatpush2.msra.mxu0 0.0
        %5619 = vmatprep.subr.mxu0 0.0
        %5620 = vmatpush2.msra.mxu0 0.0
        %5621 = vmatprep.subr.mxu0 0.0
        %5622 = vmatpush2.msra.mxu0 0.0
        %5623 = vmatprep.subr.mxu0 0.0
        %5624 = vmatpush2.msra.mxu0 0.0
        %5625 = vmatprep.subr.mxu0 0.0
        %5626 = vmatpush2.msra.mxu0 0.0
        %5627 = vmatprep.mubr.f32.mxu0 0.0
        %5628 = vmatmul.mubr.f32.gmra.mxu0 %v5561
        %v5629 = vpop.f32.mrf.mxu0
        %v5630 = vadd.f32 0.0, %v5629
        %v5631 = vpop.f32.mrf.mxu0
        %5632 = vdwg.mxu0
        %5641 = vset.pattern.permute.xlu0 0
        %5642 = vperm.xlu0 %5641, %v5318
        %v5643 = vpop.permute.xlu0 %5642
        %5644 = vset.pattern.permute.xlu0 0
        %5645 = vperm.xlu0 %5644, %v5319
        %v5646 = vpop.permute.xlu0 %5645
        %5647 = vset.pattern.permute.xlu0 0
        %5648 = vperm.xlu0 %5647, %v5320
        %v5649 = vpop.permute.xlu0 %5648
        %5650 = vset.pattern.permute.xlu0 0
        %5651 = vperm.xlu0 %5650, %v5321
        %v5652 = vpop.permute.xlu0 %5651
        %5653 = vset.pattern.permute.xlu0 0
        %5654 = vperm.xlu0 %5653, %v5322
        %v5655 = vpop.permute.xlu0 %5654
        %5656 = vset.pattern.permute.xlu0 0
        %5657 = vperm.xlu0 %5656, %v5323
        %v5658 = vpop.permute.xlu0 %5657
        %5659 = vset.pattern.permute.xlu0 0
        %5660 = vperm.xlu0 %5659, %v5324
        %v5661 = vpop.permute.xlu0 %5660
        %5662 = vset.pattern.permute.xlu0 0
        %5663 = vperm.xlu0 %5662, %v5325
        %v5664 = vpop.permute.xlu0 %5663
        %v5665 = vlaneseq
        %v5666 = vshrl.u32 %v5665, 7
        %v5667 = vsub.s32 %v898, %v5666
        %v5668 = vrot.slane %v5643, %v5667
        %v5669 = vlaneseq
        %v5670 = vshrl.u32 %v5669, 7
        %v5671 = vsub.s32 %v898, %v5670
        %v5672 = vrot.slane %v5646, %v5671
        %v5673 = vlaneseq
        %v5674 = vshrl.u32 %v5673, 7
        %v5675 = vsub.s32 %v898, %v5674
        %v5676 = vrot.slane %v5649, %v5675
        %v5677 = vlaneseq
        %v5678 = vshrl.u32 %v5677, 7
        %v5679 = vsub.s32 %v898, %v5678
        %v5680 = vrot.slane %v5652, %v5679
        %v5681 = vlaneseq
        %v5682 = vshrl.u32 %v5681, 7
        %v5683 = vsub.s32 %v898, %v5682
        %v5684 = vrot.slane %v5655, %v5683
        %v5685 = vlaneseq
        %v5686 = vshrl.u32 %v5685, 7
        %v5687 = vsub.s32 %v898, %v5686
        %v5688 = vrot.slane %v5658, %v5687
        %v5689 = vlaneseq
        %v5690 = vshrl.u32 %v5689, 7
        %v5691 = vsub.s32 %v898, %v5690
        %v5692 = vrot.slane %v5661, %v5691
        %v5693 = vlaneseq
        %v5694 = vshrl.u32 %v5693, 7
        %v5695 = vsub.s32 %v898, %v5694
        %v5696 = vrot.slane %v5664, %v5695
        %v5697 = vsel %vm931, %v5672, %v5668
        %v5698 = vsel %vm933, %v5676, %v5697
        %v5699 = vsel %vm935, %v5680, %v5698
        %v5700 = vsel %vm937, %v5684, %v5699
        %v5701 = vsel %vm939, %v5688, %v5700
        %v5702 = vsel %vm941, %v5692, %v5701
        %v5703 = vsel %vm943, %v5696, %v5702
        %v5706 = vsel %vm946, %v5326, 0
        %5708 = vmatprep.subr.mxu0 0.0
        %5709 = vmatpush1.msra.mxu0 0.0
        %5710 = vmatprep.subr.mxu0 0.0
        %5711 = vmatpush1.msra.mxu0 0.0
        %5712 = vmatprep.subr.mxu0 0.0
        %5713 = vmatpush1.msra.mxu0 0.0
        %5714 = vmatprep.subr.mxu0 0.0
        %5715 = vmatpush1.msra.mxu0 0.0
        %5716 = vmatprep.subr.mxu0 0.0
        %5717 = vmatpush1.msra.mxu0 0.0
        %5718 = vmatprep.subr.mxu0 0.0
        %5719 = vmatpush1.msra.mxu0 0.0
        %5720 = vmatprep.subr.mxu0 0.0
        %5721 = vmatpush1.msra.mxu0 0.0
        %5722 = vmatprep.subr.mxu0 0.0
        %5723 = vmatpush1.msra.mxu0 0.0
        %5724 = vmatprep.subr.mxu0 0.0
        %5725 = vmatpush1.msra.mxu0 0.0
        %5726 = vmatprep.subr.mxu0 0.0
        %5727 = vmatpush1.msra.mxu0 0.0
        %5728 = vmatprep.subr.mxu0 0.0
        %5729 = vmatpush1.msra.mxu0 0.0
        %5730 = vmatprep.subr.mxu0 0.0
        %5731 = vmatpush1.msra.mxu0 0.0
        %5732 = vmatprep.subr.mxu0 0.0
        %5733 = vmatpush1.msra.mxu0 0.0
        %5734 = vmatprep.subr.mxu0 0.0
        %5735 = vmatpush1.msra.mxu0 0.0
        %5736 = vmatprep.subr.mxu0 0.0
        %5737 = vmatpush1.msra.mxu0 0.0
        %5738 = vmatprep.subr.mxu0 0.0
        %5739 = vmatpush1.msra.mxu0 %v5703
        %5740 = vmatprep.subr.mxu0 0.0
        %5741 = vmatpush2.msra.mxu0 0.0
        %5742 = vmatprep.subr.mxu0 0.0
        %5743 = vmatpush2.msra.mxu0 0.0
        %5744 = vmatprep.subr.mxu0 0.0
        %5745 = vmatpush2.msra.mxu0 0.0
        %5746 = vmatprep.subr.mxu0 0.0
        %5747 = vmatpush2.msra.mxu0 0.0
        %5748 = vmatprep.subr.mxu0 0.0
        %5749 = vmatpush2.msra.mxu0 0.0
        %5750 = vmatprep.subr.mxu0 0.0
        %5751 = vmatpush2.msra.mxu0 0.0
        %5752 = vmatprep.subr.mxu0 0.0
        %5753 = vmatpush2.msra.mxu0 0.0
        %5754 = vmatprep.subr.mxu0 0.0
        %5755 = vmatpush2.msra.mxu0 0.0
        %5756 = vmatprep.subr.mxu0 0.0
        %5757 = vmatpush2.msra.mxu0 0.0
        %5758 = vmatprep.subr.mxu0 0.0
        %5759 = vmatpush2.msra.mxu0 0.0
        %5760 = vmatprep.subr.mxu0 0.0
        %5761 = vmatpush2.msra.mxu0 0.0
        %5762 = vmatprep.subr.mxu0 0.0
        %5763 = vmatpush2.msra.mxu0 0.0
        %5764 = vmatprep.subr.mxu0 0.0
        %5765 = vmatpush2.msra.mxu0 0.0
        %5766 = vmatprep.subr.mxu0 0.0
        %5767 = vmatpush2.msra.mxu0 0.0
        %5768 = vmatprep.subr.mxu0 0.0
        %5769 = vmatpush2.msra.mxu0 0.0
        %5770 = vmatprep.subr.mxu0 0.0
        %5771 = vmatpush2.msra.mxu0 0.0
        %5772 = vmatprep.mubr.f32.mxu0 0.0
        %5773 = vmatmul.mubr.f32.gmra.mxu0 %v5706
        %v5774 = vpop.f32.mrf.mxu0
        %v5775 = vadd.f32 %v5630, %v5774
        %v5776 = vpop.f32.mrf.mxu0
        %5777 = vdwg.mxu0
        %v5778 = vld [vmem:[#allocation3] sm:$0xff]
        %5780 = vrot.lane.b32.xlu0 %v5778, 126
        %v5781 = vpop.permute.xlu0 %5780
        %5782 = vrot.lane.b32.xlu0 %v5778, 124
        %v5783 = vpop.permute.xlu0 %5782
        %5784 = vrot.lane.b32.xlu0 %v5778, 122
        %v5785 = vpop.permute.xlu0 %5784
        %5786 = vrot.lane.b32.xlu0 %v5778, 120
        %v5787 = vpop.permute.xlu0 %5786
        %5788 = vrot.lane.b32.xlu0 %v5778, 118
        %v5789 = vpop.permute.xlu0 %5788
        %5790 = vrot.lane.b32.xlu0 %v5778, 116
        %v5791 = vpop.permute.xlu0 %5790
        %5792 = vrot.lane.b32.xlu0 %v5778, 114
        %v5793 = vpop.permute.xlu0 %5792
        %5794 = vrot.lane.b32.xlu0 %v5781, 126
        %v5795 = vpop.permute.xlu0 %5794
        %5796 = vrot.lane.b32.xlu0 %v5783, 126
        %v5797 = vpop.permute.xlu0 %5796
        %5798 = vrot.lane.b32.xlu0 %v5785, 126
        %v5799 = vpop.permute.xlu0 %5798
        %5800 = vrot.lane.b32.xlu0 %v5787, 126
        %v5801 = vpop.permute.xlu0 %5800
        %5802 = vrot.lane.b32.xlu0 %v5789, 126
        %v5803 = vpop.permute.xlu0 %5802
        %5804 = vrot.lane.b32.xlu0 %v5791, 126
        %v5805 = vpop.permute.xlu0 %5804
        %5806 = vrot.lane.b32.xlu0 %v5793, 126
        %v5807 = vpop.permute.xlu0 %5806
        %v5816 = vcombine.low %v5781, %v5797
        %v5817 = vcombine.high %v5781, %v5797
        %v5819 = vunpack.c.l.s4 1983009808
        %v5820 = vunpack.c.0.s8 %v5819
        %v5821 = vlaneseq
        %v5822 = vshrl.u32 %v5821, 7
        %v5823 = vsub.s32 %v5820, %v5822
        %v5824 = vrot.slane %v5816, %v5823
        %v5826 = vunpack.c.l.s4 1983009808
        %v5827 = vunpack.c.0.s8 %v5826
        %v5828 = vlaneseq
        %v5829 = vshrl.u32 %v5828, 7
        %v5830 = vsub.s32 %v5827, %v5829
        %v5831 = vrot.slane %v5817, %v5830
        %v5832 = vcombine.low %v5795, %v5799
        %v5833 = vcombine.high %v5795, %v5799
        %v5835 = vunpack.c.l.s4 1983009808
        %v5836 = vunpack.c.0.s8 %v5835
        %v5837 = vlaneseq
        %v5838 = vshrl.u32 %v5837, 7
        %v5839 = vsub.s32 %v5836, %v5838
        %v5840 = vrot.slane %v5832, %v5839
        %v5842 = vunpack.c.l.s4 1983009808
        %v5843 = vunpack.c.0.s8 %v5842
        %v5844 = vlaneseq
        %v5845 = vshrl.u32 %v5844, 7
        %v5846 = vsub.s32 %v5843, %v5845
        %v5847 = vrot.slane %v5833, %v5846
        %v5848 = vcombine.low %v5801, %v5805
        %v5849 = vcombine.high %v5801, %v5805
        %v5851 = vunpack.c.l.s4 1983009808
        %v5852 = vunpack.c.0.s8 %v5851
        %v5853 = vlaneseq
        %v5854 = vshrl.u32 %v5853, 7
        %v5855 = vsub.s32 %v5852, %v5854
        %v5856 = vrot.slane %v5848, %v5855
        %v5858 = vunpack.c.l.s4 1983009808
        %v5859 = vunpack.c.0.s8 %v5858
        %v5860 = vlaneseq
        %v5861 = vshrl.u32 %v5860, 7
        %v5862 = vsub.s32 %v5859, %v5861
        %v5863 = vrot.slane %v5849, %v5862
        %v5864 = vcombine.low %v5803, %v5807
        %v5865 = vcombine.high %v5803, %v5807
        %v5867 = vunpack.c.l.s4 1983009808
        %v5868 = vunpack.c.0.s8 %v5867
        %v5869 = vlaneseq
        %v5870 = vshrl.u32 %v5869, 7
        %v5871 = vsub.s32 %v5868, %v5870
        %v5872 = vrot.slane %v5864, %v5871
        %v5874 = vunpack.c.l.s4 1983009808
        %v5875 = vunpack.c.0.s8 %v5874
        %v5876 = vlaneseq
        %v5877 = vshrl.u32 %v5876, 7
        %v5878 = vsub.s32 %v5875, %v5877
        %v5879 = vrot.slane %v5865, %v5878
        %v5880 = vcombine.low %v5824, %v5840
        %v5881 = vcombine.high %v5824, %v5840
        %v5883 = vunpack.c.l.s4 1934713408
        %v5884 = vunpack.c.0.s8 %v5883
        %v5885 = vlaneseq
        %v5886 = vshrl.u32 %v5885, 7
        %v5887 = vsub.s32 %v5884, %v5886
        %v5888 = vrot.slane %v5880, %v5887
        %v5890 = vunpack.c.l.s4 1934713408
        %v5891 = vunpack.c.0.s8 %v5890
        %v5892 = vlaneseq
        %v5893 = vshrl.u32 %v5892, 7
        %v5894 = vsub.s32 %v5891, %v5893
        %v5895 = vrot.slane %v5881, %v5894
        %v5896 = vcombine.low %v5831, %v5847
        %v5897 = vcombine.high %v5831, %v5847
        %v5899 = vunpack.c.l.s4 1934713408
        %v5900 = vunpack.c.0.s8 %v5899
        %v5901 = vlaneseq
        %v5902 = vshrl.u32 %v5901, 7
        %v5903 = vsub.s32 %v5900, %v5902
        %v5904 = vrot.slane %v5896, %v5903
        %v5906 = vunpack.c.l.s4 1934713408
        %v5907 = vunpack.c.0.s8 %v5906
        %v5908 = vlaneseq
        %v5909 = vshrl.u32 %v5908, 7
        %v5910 = vsub.s32 %v5907, %v5909
        %v5911 = vrot.slane %v5897, %v5910
        %v5912 = vcombine.low %v5856, %v5872
        %v5913 = vcombine.high %v5856, %v5872
        %v5915 = vunpack.c.l.s4 1934713408
        %v5916 = vunpack.c.0.s8 %v5915
        %v5917 = vlaneseq
        %v5918 = vshrl.u32 %v5917, 7
        %v5919 = vsub.s32 %v5916, %v5918
        %v5920 = vrot.slane %v5912, %v5919
        %v5922 = vunpack.c.l.s4 1934713408
        %v5923 = vunpack.c.0.s8 %v5922
        %v5924 = vlaneseq
        %v5925 = vshrl.u32 %v5924, 7
        %v5926 = vsub.s32 %v5923, %v5925
        %v5927 = vrot.slane %v5913, %v5926
        %v5928 = vcombine.low %v5863, %v5879
        %v5929 = vcombine.high %v5863, %v5879
        %v5931 = vunpack.c.l.s4 1934713408
        %v5932 = vunpack.c.0.s8 %v5931
        %v5933 = vlaneseq
        %v5934 = vshrl.u32 %v5933, 7
        %v5935 = vsub.s32 %v5932, %v5934
        %v5936 = vrot.slane %v5928, %v5935
        %v5938 = vunpack.c.l.s4 1934713408
        %v5939 = vunpack.c.0.s8 %v5938
        %v5940 = vlaneseq
        %v5941 = vshrl.u32 %v5940, 7
        %v5942 = vsub.s32 %v5939, %v5941
        %v5943 = vrot.slane %v5929, %v5942
        %v5944 = vcombine.low %v5888, %v5920
        %v5945 = vcombine.high %v5888, %v5920
        %v5946 = vcombine.low %v5895, %v5927
        %v5947 = vcombine.high %v5895, %v5927
        %v5948 = vcombine.low %v5904, %v5936
        %v5949 = vcombine.high %v5904, %v5936
        %v5950 = vcombine.low %v5911, %v5943
        %v5951 = vcombine.high %v5911, %v5943
        %v5952 = vld [vmem:[%s1339] sm:$0xff]
        %5961 = vset.pattern.permute.xlu0 0
        %5962 = vperm.xlu0 %5961, %v5944
        %v5963 = vpop.permute.xlu0 %5962
        %5964 = vset.pattern.permute.xlu0 0
        %5965 = vperm.xlu0 %5964, %v5945
        %v5966 = vpop.permute.xlu0 %5965
        %5967 = vset.pattern.permute.xlu0 0
        %5968 = vperm.xlu0 %5967, %v5946
        %v5969 = vpop.permute.xlu0 %5968
        %5970 = vset.pattern.permute.xlu0 0
        %5971 = vperm.xlu0 %5970, %v5947
        %v5972 = vpop.permute.xlu0 %5971
        %5973 = vset.pattern.permute.xlu0 0
        %5974 = vperm.xlu0 %5973, %v5948
        %v5975 = vpop.permute.xlu0 %5974
        %5976 = vset.pattern.permute.xlu0 0
        %5977 = vperm.xlu0 %5976, %v5949
        %v5978 = vpop.permute.xlu0 %5977
        %5979 = vset.pattern.permute.xlu0 0
        %5980 = vperm.xlu0 %5979, %v5950
        %v5981 = vpop.permute.xlu0 %5980
        %5982 = vset.pattern.permute.xlu0 0
        %5983 = vperm.xlu0 %5982, %v5951
        %v5984 = vpop.permute.xlu0 %5983
        %v5985 = vlaneseq
        %v5986 = vshrl.u32 %v5985, 7
        %v5987 = vsub.s32 %v898, %v5986
        %v5988 = vrot.slane %v5963, %v5987
        %v5989 = vlaneseq
        %v5990 = vshrl.u32 %v5989, 7
        %v5991 = vsub.s32 %v898, %v5990
        %v5992 = vrot.slane %v5966, %v5991
        %v5993 = vlaneseq
        %v5994 = vshrl.u32 %v5993, 7
        %v5995 = vsub.s32 %v898, %v5994
        %v5996 = vrot.slane %v5969, %v5995
        %v5997 = vlaneseq
        %v5998 = vshrl.u32 %v5997, 7
        %v5999 = vsub.s32 %v898, %v5998
        %v6000 = vrot.slane %v5972, %v5999
        %v6001 = vlaneseq
        %v6002 = vshrl.u32 %v6001, 7
        %v6003 = vsub.s32 %v898, %v6002
        %v6004 = vrot.slane %v5975, %v6003
        %v6005 = vlaneseq
        %v6006 = vshrl.u32 %v6005, 7
        %v6007 = vsub.s32 %v898, %v6006
        %v6008 = vrot.slane %v5978, %v6007
        %v6009 = vlaneseq
        %v6010 = vshrl.u32 %v6009, 7
        %v6011 = vsub.s32 %v898, %v6010
        %v6012 = vrot.slane %v5981, %v6011
        %v6013 = vlaneseq
        %v6014 = vshrl.u32 %v6013, 7
        %v6015 = vsub.s32 %v898, %v6014
        %v6016 = vrot.slane %v5984, %v6015
        %v6017 = vsel %vm931, %v5992, %v5988
        %v6018 = vsel %vm933, %v5996, %v6017
        %v6019 = vsel %vm935, %v6000, %v6018
        %v6020 = vsel %vm937, %v6004, %v6019
        %v6021 = vsel %vm939, %v6008, %v6020
        %v6022 = vsel %vm941, %v6012, %v6021
        %v6023 = vsel %vm943, %v6016, %v6022
        %v6026 = vsel %vm946, %v5952, 0
        %6028 = vmatprep.subr.mxu0 0.0
        %6029 = vmatpush1.msra.mxu0 0.0
        %6030 = vmatprep.subr.mxu0 0.0
        %6031 = vmatpush1.msra.mxu0 0.0
        %6032 = vmatprep.subr.mxu0 0.0
        %6033 = vmatpush1.msra.mxu0 0.0
        %6034 = vmatprep.subr.mxu0 0.0
        %6035 = vmatpush1.msra.mxu0 0.0
        %6036 = vmatprep.subr.mxu0 0.0
        %6037 = vmatpush1.msra.mxu0 0.0
        %6038 = vmatprep.subr.mxu0 0.0
        %6039 = vmatpush1.msra.mxu0 0.0
        %6040 = vmatprep.subr.mxu0 0.0
        %6041 = vmatpush1.msra.mxu0 0.0
        %6042 = vmatprep.subr.mxu0 0.0
        %6043 = vmatpush1.msra.mxu0 0.0
        %6044 = vmatprep.subr.mxu0 0.0
        %6045 = vmatpush1.msra.mxu0 0.0
        %6046 = vmatprep.subr.mxu0 0.0
        %6047 = vmatpush1.msra.mxu0 0.0
        %6048 = vmatprep.subr.mxu0 0.0
        %6049 = vmatpush1.msra.mxu0 0.0
        %6050 = vmatprep.subr.mxu0 0.0
        %6051 = vmatpush1.msra.mxu0 0.0
        %6052 = vmatprep.subr.mxu0 0.0
        %6053 = vmatpush1.msra.mxu0 0.0
        %6054 = vmatprep.subr.mxu0 0.0
        %6055 = vmatpush1.msra.mxu0 0.0
        %6056 = vmatprep.subr.mxu0 0.0
        %6057 = vmatpush1.msra.mxu0 0.0
        %6058 = vmatprep.subr.mxu0 0.0
        %6059 = vmatpush1.msra.mxu0 %v6023
        %6060 = vmatprep.subr.mxu0 0.0
        %6061 = vmatpush2.msra.mxu0 0.0
        %6062 = vmatprep.subr.mxu0 0.0
        %6063 = vmatpush2.msra.mxu0 0.0
        %6064 = vmatprep.subr.mxu0 0.0
        %6065 = vmatpush2.msra.mxu0 0.0
        %6066 = vmatprep.subr.mxu0 0.0
        %6067 = vmatpush2.msra.mxu0 0.0
        %6068 = vmatprep.subr.mxu0 0.0
        %6069 = vmatpush2.msra.mxu0 0.0
        %6070 = vmatprep.subr.mxu0 0.0
        %6071 = vmatpush2.msra.mxu0 0.0
        %6072 = vmatprep.subr.mxu0 0.0
        %6073 = vmatpush2.msra.mxu0 0.0
        %6074 = vmatprep.subr.mxu0 0.0
        %6075 = vmatpush2.msra.mxu0 0.0
        %6076 = vmatprep.subr.mxu0 0.0
        %6077 = vmatpush2.msra.mxu0 0.0
        %6078 = vmatprep.subr.mxu0 0.0
        %6079 = vmatpush2.msra.mxu0 0.0
        %6080 = vmatprep.subr.mxu0 0.0
        %6081 = vmatpush2.msra.mxu0 0.0
        %6082 = vmatprep.subr.mxu0 0.0
        %6083 = vmatpush2.msra.mxu0 0.0
        %6084 = vmatprep.subr.mxu0 0.0
        %6085 = vmatpush2.msra.mxu0 0.0
        %6086 = vmatprep.subr.mxu0 0.0
        %6087 = vmatpush2.msra.mxu0 0.0
        %6088 = vmatprep.subr.mxu0 0.0
        %6089 = vmatpush2.msra.mxu0 0.0
        %6090 = vmatprep.subr.mxu0 0.0
        %6091 = vmatpush2.msra.mxu0 0.0
        %6092 = vmatprep.mubr.f32.mxu0 0.0
        %6093 = vmatmul.mubr.f32.gmra.mxu0 %v6026
        %v6094 = vpop.f32.mrf.mxu0
        %v6095 = vadd.f32 0.0, %v6094
        %v6096 = vpop.f32.mrf.mxu0
        %6097 = vdwg.mxu0
        %v6098 = vadd.f32 %v5775, %v6095
        %v6099 = vld [vmem:[%s4] sm:$0xff]
        %6101 = vset.pattern.permute.xlu0 0
        %6102 = vperm.xlu0 %6101, %v6099
        %v6103 = vpop.permute.xlu0 %6102
        %v6105 = vadd.f32 %v6098, %v6103
        %v6106 = vld [vmem:[#allocation2] sm:$0xf]
        %6108 = vrot.lane.b32.xlu0 %v6106, 126
        %v6109 = vpop.permute.xlu0 %6108
        %6110 = vrot.lane.b32.xlu0 %v6106, 124
        %v6111 = vpop.permute.xlu0 %6110
        %6112 = vrot.lane.b32.xlu0 %v6106, 122
        %v6113 = vpop.permute.xlu0 %6112
        %6114 = vrot.lane.b32.xlu0 %v6106, 120
        %v6115 = vpop.permute.xlu0 %6114
        %6116 = vrot.lane.b32.xlu0 %v6106, 118
        %v6117 = vpop.permute.xlu0 %6116
        %6118 = vrot.lane.b32.xlu0 %v6106, 116
        %v6119 = vpop.permute.xlu0 %6118
        %6120 = vrot.lane.b32.xlu0 %v6106, 114
        %v6121 = vpop.permute.xlu0 %6120
        %6122 = vrot.lane.b32.xlu0 %v6106, 127
        %v6123 = vpop.permute.xlu0 %6122
        %6124 = vrot.lane.b32.xlu0 %v6109, 127
        %v6125 = vpop.permute.xlu0 %6124
        %6126 = vrot.lane.b32.xlu0 %v6111, 127
        %v6127 = vpop.permute.xlu0 %6126
        %6128 = vrot.lane.b32.xlu0 %v6113, 127
        %v6129 = vpop.permute.xlu0 %6128
        %6130 = vrot.lane.b32.xlu0 %v6115, 127
        %v6131 = vpop.permute.xlu0 %6130
        %6132 = vrot.lane.b32.xlu0 %v6117, 127
        %v6133 = vpop.permute.xlu0 %6132
        %6134 = vrot.lane.b32.xlu0 %v6119, 127
        %v6135 = vpop.permute.xlu0 %6134
        %6136 = vrot.lane.b32.xlu0 %v6121, 127
        %v6137 = vpop.permute.xlu0 %6136
        %v6146 = vcombine.low %v6123, %v6127
        %v6148 = vunpack.c.l.s4 1983009808
        %v6149 = vunpack.c.0.s8 %v6148
        %v6150 = vlaneseq
        %v6151 = vshrl.u32 %v6150, 7
        %v6152 = vsub.s32 %v6149, %v6151
        %v6153 = vrot.slane %v6146, %v6152
        %v6154 = vcombine.low %v6125, %v6129
        %v6156 = vunpack.c.l.s4 1983009808
        %v6157 = vunpack.c.0.s8 %v6156
        %v6158 = vlaneseq
        %v6159 = vshrl.u32 %v6158, 7
        %v6160 = vsub.s32 %v6157, %v6159
        %v6161 = vrot.slane %v6154, %v6160
        %v6162 = vcombine.low %v6131, %v6135
        %v6164 = vunpack.c.l.s4 1983009808
        %v6165 = vunpack.c.0.s8 %v6164
        %v6166 = vlaneseq
        %v6167 = vshrl.u32 %v6166, 7
        %v6168 = vsub.s32 %v6165, %v6167
        %v6169 = vrot.slane %v6162, %v6168
        %v6170 = vcombine.low %v6133, %v6137
        %v6172 = vunpack.c.l.s4 1983009808
        %v6173 = vunpack.c.0.s8 %v6172
        %v6174 = vlaneseq
        %v6175 = vshrl.u32 %v6174, 7
        %v6176 = vsub.s32 %v6173, %v6175
        %v6177 = vrot.slane %v6170, %v6176
        %v6178 = vcombine.low %v6153, %v6161
        %v6179 = vcombine.high %v6153, %v6161
        %v6181 = vunpack.c.l.s4 1934713408
        %v6182 = vunpack.c.0.s8 %v6181
        %v6183 = vlaneseq
        %v6184 = vshrl.u32 %v6183, 7
        %v6185 = vsub.s32 %v6182, %v6184
        %v6186 = vrot.slane %v6178, %v6185
        %v6188 = vunpack.c.l.s4 1934713408
        %v6189 = vunpack.c.0.s8 %v6188
        %v6190 = vlaneseq
        %v6191 = vshrl.u32 %v6190, 7
        %v6192 = vsub.s32 %v6189, %v6191
        %v6193 = vrot.slane %v6179, %v6192
        %v6194 = vcombine.low %v6169, %v6177
        %v6195 = vcombine.high %v6169, %v6177
        %v6197 = vunpack.c.l.s4 1934713408
        %v6198 = vunpack.c.0.s8 %v6197
        %v6199 = vlaneseq
        %v6200 = vshrl.u32 %v6199, 7
        %v6201 = vsub.s32 %v6198, %v6200
        %v6202 = vrot.slane %v6194, %v6201
        %v6204 = vunpack.c.l.s4 1934713408
        %v6205 = vunpack.c.0.s8 %v6204
        %v6206 = vlaneseq
        %v6207 = vshrl.u32 %v6206, 7
        %v6208 = vsub.s32 %v6205, %v6207
        %v6209 = vrot.slane %v6195, %v6208
        %v6210 = vcombine.low %v6186, %v6202
        %v6211 = vcombine.high %v6186, %v6202
        %v6212 = vcombine.low %v6193, %v6209
        %v6213 = vcombine.high %v6193, %v6209
        %v6214 = vld [vmem:[%s5] sm:$0xff]
        %6219 = vset.pattern.permute.xlu0 0
        %6220 = vperm.xlu0 %6219, %v6210
        %v6221 = vpop.permute.xlu0 %6220
        %6222 = vset.pattern.permute.xlu0 0
        %6223 = vperm.xlu0 %6222, %v6211
        %v6224 = vpop.permute.xlu0 %6223
        %6225 = vset.pattern.permute.xlu0 0
        %6226 = vperm.xlu0 %6225, %v6212
        %v6227 = vpop.permute.xlu0 %6226
        %6228 = vset.pattern.permute.xlu0 0
        %6229 = vperm.xlu0 %6228, %v6213
        %v6230 = vpop.permute.xlu0 %6229
        %v6231 = vlaneseq
        %v6232 = vshrl.u32 %v6231, 7
        %v6233 = vsub.s32 %v898, %v6232
        %v6234 = vrot.slane %v6221, %v6233
        %v6235 = vlaneseq
        %v6236 = vshrl.u32 %v6235, 7
        %v6237 = vsub.s32 %v898, %v6236
        %v6238 = vrot.slane %v6224, %v6237
        %v6239 = vlaneseq
        %v6240 = vshrl.u32 %v6239, 7
        %v6241 = vsub.s32 %v898, %v6240
        %v6242 = vrot.slane %v6227, %v6241
        %v6243 = vlaneseq
        %v6244 = vshrl.u32 %v6243, 7
        %v6245 = vsub.s32 %v898, %v6244
        %v6246 = vrot.slane %v6230, %v6245
        %v6247 = vsel %vm931, %v6238, %v6234
        %v6248 = vsel %vm933, %v6242, %v6247
        %v6249 = vsel %vm935, %v6246, %v6248
        %v6251 = vsel %vm297, %v6214, 0
        %v6253 = vsel %vm301, %v6249, 0
        %6255 = vmatprep.subr.mxu0 0.0
        %6256 = vmatpush1.msra.mxu0 0.0
        %6257 = vmatprep.subr.mxu0 0.0
        %6258 = vmatpush1.msra.mxu0 0.0
        %6259 = vmatprep.subr.mxu0 0.0
        %6260 = vmatpush1.msra.mxu0 0.0
        %6261 = vmatprep.subr.mxu0 0.0
        %6262 = vmatpush1.msra.mxu0 0.0
        %6263 = vmatprep.subr.mxu0 0.0
        %6264 = vmatpush1.msra.mxu0 0.0
        %6265 = vmatprep.subr.mxu0 0.0
        %6266 = vmatpush1.msra.mxu0 0.0
        %6267 = vmatprep.subr.mxu0 0.0
        %6268 = vmatpush1.msra.mxu0 0.0
        %6269 = vmatprep.subr.mxu0 0.0
        %6270 = vmatpush1.msra.mxu0 0.0
        %6271 = vmatprep.subr.mxu0 0.0
        %6272 = vmatpush1.msra.mxu0 0.0
        %6273 = vmatprep.subr.mxu0 0.0
        %6274 = vmatpush1.msra.mxu0 0.0
        %6275 = vmatprep.subr.mxu0 0.0
        %6276 = vmatpush1.msra.mxu0 0.0
        %6277 = vmatprep.subr.mxu0 0.0
        %6278 = vmatpush1.msra.mxu0 0.0
        %6279 = vmatprep.subr.mxu0 0.0
        %6280 = vmatpush1.msra.mxu0 0.0
        %6281 = vmatprep.subr.mxu0 0.0
        %6282 = vmatpush1.msra.mxu0 0.0
        %6283 = vmatprep.subr.mxu0 0.0
        %6284 = vmatpush1.msra.mxu0 0.0
        %6285 = vmatprep.subr.mxu0 0.0
        %6286 = vmatpush1.msra.mxu0 %v6253
        %6287 = vmatprep.subr.mxu0 0.0
        %6288 = vmatpush2.msra.mxu0 0.0
        %6289 = vmatprep.subr.mxu0 0.0
        %6290 = vmatpush2.msra.mxu0 0.0
        %6291 = vmatprep.subr.mxu0 0.0
        %6292 = vmatpush2.msra.mxu0 0.0
        %6293 = vmatprep.subr.mxu0 0.0
        %6294 = vmatpush2.msra.mxu0 0.0
        %6295 = vmatprep.subr.mxu0 0.0
        %6296 = vmatpush2.msra.mxu0 0.0
        %6297 = vmatprep.subr.mxu0 0.0
        %6298 = vmatpush2.msra.mxu0 0.0
        %6299 = vmatprep.subr.mxu0 0.0
        %6300 = vmatpush2.msra.mxu0 0.0
        %6301 = vmatprep.subr.mxu0 0.0
        %6302 = vmatpush2.msra.mxu0 0.0
        %6303 = vmatprep.subr.mxu0 0.0
        %6304 = vmatpush2.msra.mxu0 0.0
        %6305 = vmatprep.subr.mxu0 0.0
        %6306 = vmatpush2.msra.mxu0 0.0
        %6307 = vmatprep.subr.mxu0 0.0
        %6308 = vmatpush2.msra.mxu0 0.0
        %6309 = vmatprep.subr.mxu0 0.0
        %6310 = vmatpush2.msra.mxu0 0.0
        %6311 = vmatprep.subr.mxu0 0.0
        %6312 = vmatpush2.msra.mxu0 0.0
        %6313 = vmatprep.subr.mxu0 0.0
        %6314 = vmatpush2.msra.mxu0 0.0
        %6315 = vmatprep.subr.mxu0 0.0
        %6316 = vmatpush2.msra.mxu0 0.0
        %6317 = vmatprep.subr.mxu0 0.0
        %6318 = vmatpush2.msra.mxu0 0.0
        %6319 = vmatprep.mubr.f32.mxu0 0.0
        %6320 = vmatmul.mubr.f32.gmra.mxu0 %v6251
        %v6321 = vpop.f32.mrf.mxu0
        %v6322 = vadd.f32 0.0, %v6321
        %v6323 = vpop.f32.mrf.mxu0
        %6324 = vdwg.mxu0
        %v6325 = vadd.f32 %v6105, %v6322
        %v6326 = vld [vmem:[%s6] sm:$0xff]
        %6328 = vset.pattern.permute.xlu0 0
        %6329 = vperm.xlu0 %6328, %v6326
        %v6330 = vpop.permute.xlu0 %6329
        %v6332 = vadd.f32 %v6325, %v6330
        %v6333 = vsub.f32 0.0, %v6332
        %v6334 = vmul.f32 %v6333, 1.442695
        %v6335 = vpow.pop %v6334
        %v6336 = vadd.f32 %v6335, 1.0
        %v6337 = vrcp.pop %v6336
        %v6338 = vmul.f32 1.0, %v6337
        %6340 = vrot.lane.b32.xlu0 %v6338, 126
        %v6341 = vpop.permute.xlu0 %6340
        %6343 = vrot.lane.b32.xlu0 %v6338, 124
        %v6344 = vpop.permute.xlu0 %6343
        %6346 = vrot.lane.b32.xlu0 %v6338, 122
        %v6347 = vpop.permute.xlu0 %6346
        %v6349 = vcombine.low %v6338, %v6344
        %v6350 = vcombine.high %v6338, %v6344
        %v6352 = vunpack.c.l.s4 1983009808
        %v6353 = vunpack.c.0.s8 %v6352
        %v6354 = vlaneseq
        %v6355 = vshrl.u32 %v6354, 7
        %v6356 = vsub.s32 %v6353, %v6355
        %v6357 = vrot.slane %v6349, %v6356
        %v6359 = vunpack.c.l.s4 1983009808
        %v6360 = vunpack.c.0.s8 %v6359
        %v6361 = vlaneseq
        %v6362 = vshrl.u32 %v6361, 7
        %v6363 = vsub.s32 %v6360, %v6362
        %v6364 = vrot.slane %v6350, %v6363
        %v6365 = vcombine.low %v6341, %v6347
        %v6366 = vcombine.high %v6341, %v6347
        %v6368 = vunpack.c.l.s4 1983009808
        %v6369 = vunpack.c.0.s8 %v6368
        %v6370 = vlaneseq
        %v6371 = vshrl.u32 %v6370, 7
        %v6372 = vsub.s32 %v6369, %v6371
        %v6373 = vrot.slane %v6365, %v6372
        %v6375 = vunpack.c.l.s4 1983009808
        %v6376 = vunpack.c.0.s8 %v6375
        %v6377 = vlaneseq
        %v6378 = vshrl.u32 %v6377, 7
        %v6379 = vsub.s32 %v6376, %v6378
        %v6380 = vrot.slane %v6366, %v6379
        %v6381 = vcombine.low %v6357, %v6373
        %v6382 = vcombine.high %v6357, %v6373
        %v6384 = vunpack.c.l.s4 1934713408
        %v6385 = vunpack.c.0.s8 %v6384
        %v6386 = vlaneseq
        %v6387 = vshrl.u32 %v6386, 7
        %v6388 = vsub.s32 %v6385, %v6387
        %v6389 = vrot.slane %v6381, %v6388
        %v6391 = vunpack.c.l.s4 1934713408
        %v6392 = vunpack.c.0.s8 %v6391
        %v6393 = vlaneseq
        %v6394 = vshrl.u32 %v6393, 7
        %v6395 = vsub.s32 %v6392, %v6394
        %v6396 = vrot.slane %v6382, %v6395
        %v6397 = vcombine.low %v6364, %v6380
        %v6398 = vcombine.high %v6364, %v6380
        %v6400 = vunpack.c.l.s4 1934713408
        %v6401 = vunpack.c.0.s8 %v6400
        %v6402 = vlaneseq
        %v6403 = vshrl.u32 %v6402, 7
        %v6404 = vsub.s32 %v6401, %v6403
        %v6405 = vrot.slane %v6397, %v6404
        %v6407 = vunpack.c.l.s4 1934713408
        %v6408 = vunpack.c.0.s8 %v6407
        %v6409 = vlaneseq
        %v6410 = vshrl.u32 %v6409, 7
        %v6411 = vsub.s32 %v6408, %v6410
        %v6412 = vrot.slane %v6398, %v6411
        %v6413 = vcombine.high %v6389, 0.0
        %v6414 = vcombine.high %v6396, 0.0
        %v6415 = vcombine.high %v6405, 0.0
        %v6416 = vcombine.high %v6412, 0.0
        %v6417 = vsel %vm1805, %v6389, 0.0
        %6418 = vadd.xlane.f32.xlu0 %v6417
        %v6419 = vpop.xlane.xlu0 %6418
        %v6420 = vsel %vm1805, %v6413, 0.0
        %6421 = vadd.xlane.f32.xlu0 %v6420
        %v6422 = vpop.xlane.xlu0 %6421
        %v6423 = vsel %vm1805, %v6396, 0.0
        %6424 = vadd.xlane.f32.xlu0 %v6423
        %v6425 = vpop.xlane.xlu0 %6424
        %v6426 = vsel %vm1805, %v6414, 0.0
        %6427 = vadd.xlane.f32.xlu0 %v6426
        %v6428 = vpop.xlane.xlu0 %6427
        %v6429 = vsel %vm1805, %v6405, 0.0
        %6430 = vadd.xlane.f32.xlu0 %v6429
        %v6431 = vpop.xlane.xlu0 %6430
        %v6432 = vsel %vm1805, %v6415, 0.0
        %6433 = vadd.xlane.f32.xlu0 %v6432
        %v6434 = vpop.xlane.xlu0 %6433
        %v6435 = vsel %vm1805, %v6412, 0.0
        %6436 = vadd.xlane.f32.xlu0 %v6435
        %v6437 = vpop.xlane.xlu0 %6436
        %v6438 = vsel %vm1805, %v6416, 0.0
        %6439 = vadd.xlane.f32.xlu0 %v6438
        %v6440 = vpop.xlane.xlu0 %6439
        %v6441 = vmul.f32 %v6419, 0.5
        %v6442 = vmul.f32 %v6422, 0.5
        %v6443 = vmul.f32 %v6425, 0.5
        %v6444 = vmul.f32 %v6428, 0.5
        %v6445 = vmul.f32 %v6431, 0.5
        %v6446 = vmul.f32 %v6434, 0.5
        %v6447 = vmul.f32 %v6437, 0.5
        %v6448 = vmul.f32 %v6440, 0.5
        %v6457 = vlaneseq
        %v6458 = vshrl.u32 %v6457, 7
        %v6459 = vsub.s32 %v898, %v6458
        %v6460 = vrot.slane %v1830, %v6459
        %v6461 = vlaneseq
        %v6462 = vshrl.u32 %v6461, 7
        %v6463 = vsub.s32 %v898, %v6462
        %v6464 = vrot.slane %v1831, %v6463
        %v6465 = vlaneseq
        %v6466 = vshrl.u32 %v6465, 7
        %v6467 = vsub.s32 %v898, %v6466
        %v6468 = vrot.slane %v1832, %v6467
        %v6469 = vlaneseq
        %v6470 = vshrl.u32 %v6469, 7
        %v6471 = vsub.s32 %v898, %v6470
        %v6472 = vrot.slane %v1833, %v6471
        %v6473 = vlaneseq
        %v6474 = vshrl.u32 %v6473, 7
        %v6475 = vsub.s32 %v898, %v6474
        %v6476 = vrot.slane %v1834, %v6475
        %v6477 = vlaneseq
        %v6478 = vshrl.u32 %v6477, 7
        %v6479 = vsub.s32 %v898, %v6478
        %v6480 = vrot.slane %v1835, %v6479
        %v6481 = vlaneseq
        %v6482 = vshrl.u32 %v6481, 7
        %v6483 = vsub.s32 %v898, %v6482
        %v6484 = vrot.slane %v1836, %v6483
        %v6485 = vlaneseq
        %v6486 = vshrl.u32 %v6485, 7
        %v6487 = vsub.s32 %v898, %v6486
        %v6488 = vrot.slane %v1837, %v6487
        %v6489 = vsel %vm931, %v6464, %v6460
        %v6490 = vsel %vm933, %v6468, %v6489
        %v6491 = vsel %vm935, %v6472, %v6490
        %v6492 = vsel %vm937, %v6476, %v6491
        %v6493 = vsel %vm939, %v6480, %v6492
        %v6494 = vsel %vm941, %v6484, %v6493
        %v6495 = vsel %vm943, %v6488, %v6494
        %v6505 = vadd.s32 %v898, 4294967292
        %v6506 = vlaneseq
        %v6507 = vshrl.u32 %v6506, 7
        %v6508 = vsub.s32 %v6505, %v6507
        %v6509 = vrot.slane %v3367, %v6508
        %v6510 = vlaneseq
        %v6511 = vshrl.u32 %v6510, 7
        %v6512 = vsub.s32 %v6505, %v6511
        %v6513 = vrot.slane %v3368, %v6512
        %v6514 = vlaneseq
        %v6515 = vshrl.u32 %v6514, 7
        %v6516 = vsub.s32 %v6505, %v6515
        %v6517 = vrot.slane %v3369, %v6516
        %v6518 = vlaneseq
        %v6519 = vshrl.u32 %v6518, 7
        %v6520 = vsub.s32 %v6505, %v6519
        %v6521 = vrot.slane %v3370, %v6520
        %v6522 = vlaneseq
        %v6523 = vshrl.u32 %v6522, 7
        %v6524 = vsub.s32 %v6505, %v6523
        %v6525 = vrot.slane %v3371, %v6524
        %v6526 = vlaneseq
        %v6527 = vshrl.u32 %v6526, 7
        %v6528 = vsub.s32 %v6505, %v6527
        %v6529 = vrot.slane %v3372, %v6528
        %v6530 = vlaneseq
        %v6531 = vshrl.u32 %v6530, 7
        %v6532 = vsub.s32 %v6505, %v6531
        %v6533 = vrot.slane %v3373, %v6532
        %v6534 = vlaneseq
        %v6535 = vshrl.u32 %v6534, 7
        %v6536 = vsub.s32 %v6505, %v6535
        %v6537 = vrot.slane %v3374, %v6536
        %v6538 = vsel %vm931, %v6513, %v6509
        %v6539 = vsel %vm933, %v6517, %v6538
        %v6540 = vsel %vm935, %v6521, %v6539
        %v6541 = vsel %vm937, %v6525, %v6540
        %v6542 = vsel %vm939, %v6529, %v6541
        %v6543 = vsel %vm941, %v6533, %v6542
        %v6544 = vsel %vm943, %v6537, %v6543
        %v6554 = vadd.s32 %v898, 4294967288
        %v6555 = vlaneseq
        %v6556 = vshrl.u32 %v6555, 7
        %v6557 = vsub.s32 %v6554, %v6556
        %v6558 = vrot.slane %v4904, %v6557
        %v6559 = vlaneseq
        %v6560 = vshrl.u32 %v6559, 7
        %v6561 = vsub.s32 %v6554, %v6560
        %v6562 = vrot.slane %v4905, %v6561
        %v6563 = vlaneseq
        %v6564 = vshrl.u32 %v6563, 7
        %v6565 = vsub.s32 %v6554, %v6564
        %v6566 = vrot.slane %v4906, %v6565
        %v6567 = vlaneseq
        %v6568 = vshrl.u32 %v6567, 7
        %v6569 = vsub.s32 %v6554, %v6568
        %v6570 = vrot.slane %v4907, %v6569
        %v6571 = vlaneseq
        %v6572 = vshrl.u32 %v6571, 7
        %v6573 = vsub.s32 %v6554, %v6572
        %v6574 = vrot.slane %v4908, %v6573
        %v6575 = vlaneseq
        %v6576 = vshrl.u32 %v6575, 7
        %v6577 = vsub.s32 %v6554, %v6576
        %v6578 = vrot.slane %v4909, %v6577
        %v6579 = vlaneseq
        %v6580 = vshrl.u32 %v6579, 7
        %v6581 = vsub.s32 %v6554, %v6580
        %v6582 = vrot.slane %v4910, %v6581
        %v6583 = vlaneseq
        %v6584 = vshrl.u32 %v6583, 7
        %v6585 = vsub.s32 %v6554, %v6584
        %v6586 = vrot.slane %v4911, %v6585
        %v6587 = vsel %vm931, %v6562, %v6558
        %v6588 = vsel %vm933, %v6566, %v6587
        %v6589 = vsel %vm935, %v6570, %v6588
        %v6590 = vsel %vm937, %v6574, %v6589
        %v6591 = vsel %vm939, %v6578, %v6590
        %v6592 = vsel %vm941, %v6582, %v6591
        %v6593 = vsel %vm943, %v6586, %v6592
        %v6603 = vadd.s32 %v898, 4294967284
        %v6604 = vlaneseq
        %v6605 = vshrl.u32 %v6604, 7
        %v6606 = vsub.s32 %v6603, %v6605
        %v6607 = vrot.slane %v6441, %v6606
        %v6608 = vlaneseq
        %v6609 = vshrl.u32 %v6608, 7
        %v6610 = vsub.s32 %v6603, %v6609
        %v6611 = vrot.slane %v6442, %v6610
        %v6612 = vlaneseq
        %v6613 = vshrl.u32 %v6612, 7
        %v6614 = vsub.s32 %v6603, %v6613
        %v6615 = vrot.slane %v6443, %v6614
        %v6616 = vlaneseq
        %v6617 = vshrl.u32 %v6616, 7
        %v6618 = vsub.s32 %v6603, %v6617
        %v6619 = vrot.slane %v6444, %v6618
        %v6620 = vlaneseq
        %v6621 = vshrl.u32 %v6620, 7
        %v6622 = vsub.s32 %v6603, %v6621
        %v6623 = vrot.slane %v6445, %v6622
        %v6624 = vlaneseq
        %v6625 = vshrl.u32 %v6624, 7
        %v6626 = vsub.s32 %v6603, %v6625
        %v6627 = vrot.slane %v6446, %v6626
        %v6628 = vlaneseq
        %v6629 = vshrl.u32 %v6628, 7
        %v6630 = vsub.s32 %v6603, %v6629
        %v6631 = vrot.slane %v6447, %v6630
        %v6632 = vlaneseq
        %v6633 = vshrl.u32 %v6632, 7
        %v6634 = vsub.s32 %v6603, %v6633
        %v6635 = vrot.slane %v6448, %v6634
        %v6636 = vsel %vm931, %v6611, %v6607
        %v6637 = vsel %vm933, %v6615, %v6636
        %v6638 = vsel %vm935, %v6619, %v6637
        %v6639 = vsel %vm937, %v6623, %v6638
        %v6640 = vsel %vm939, %v6627, %v6639
        %v6641 = vsel %vm941, %v6631, %v6640
        %v6642 = vsel %vm943, %v6635, %v6641
        %v6644 = vsel %vm297, %v6495, %v6544
        %v6645 = vsel %vm946, %v6644, %v6593
        %vm6646 = vcmask 97280
        %v6647 = vsel %vm6646, %v6645, %v6642
        %vm6648 = vcmask 130048
        %6649 = vst.msk [vmem:[%s272] sm:$0xff] %vm6648, %v6647
        %s6650 = sand.u32 %s181, 1
        %s6651 = scalar_lea.sflag [#allocation5], %s6650
        %s6652 = sand.u32 %s181, 1
        %s6653 = smul.addr %s6652, 8
        %s6654 = scalar_lea.vmem [#allocation4], %s6653
        // Predicated region
        $region49: #{tpu_custom_call.1} parent=47 // pred_check
          %p6655 = pneg %p191
        $region50: #{tpu_custom_call.1} parent=47 // pred_check_branch
          %6657 = sbr.rel (%p6655) target = $region52
        $region51: #{tpu_custom_call.1} parent=47 // pred_region
          %s6659 = ssub.s32 128, 128
          %6660 = vsyncadd %s6651, %s6659
          %s6661 = smul.addr %s21, 128
          %s6662 = scalar_lea.hbm %s7, %s6661
          %s6664 = sshll.u32 %s6654, 4
          %s6665 = int_to_ptr.vmem [resolvable:$true] %s6664
          %6667 = dma.vmem_to_hbm [thread:$0]  %s6665, 128, %s6662, %s6651
        $region52: #{tpu_custom_call.1} parent=47 // pred_fallthru
          _
      $region48: #{tpu_custom_call.1} parent=5 // pred_fallthru
        _
      %p6668 = scmp.le.s32.totalorder 2, %s16
      // Predicated region
      $region53: #{tpu_custom_call.1} parent=5 // pred_check
        %p6669 = pneg %p6668
      $region54: #{tpu_custom_call.1} parent=5 // pred_check_branch
        %6671 = sbr.rel (%p6669) target = $region56
      $region55: #{tpu_custom_call.1} parent=5 // pred_region
        %s6672 = ssub.s32 %s16, 2
        // Predicated region
        $region57: #{tpu_custom_call.1} parent=55 // pred_check
          %p6673 = pneg %p197
        $region58: #{tpu_custom_call.1} parent=55 // pred_check_branch
          %6675 = sbr.rel (%p6673) target = $region60
        $region59: #{tpu_custom_call.1} parent=55 // pred_region
          %s6676 = sand.u32 %s182, 1
          %s6677 = scalar_lea.sflag [#allocation5], %s6676
          %s6678 = sand.u32 %s182, 1
          %s6679 = smul.addr %s6678, 8
          %s6680 = scalar_lea.vmem [#allocation4], %s6679
          %6681 = dma.done %s6677, 128
        $region60: #{tpu_custom_call.1} parent=55 // pred_fallthru
          _
      $region56: #{tpu_custom_call.1} parent=5 // pred_fallthru
        _
    $region6: #{tpu_custom_call.1} parent=1 // loop_footer
      %s20 = sadd.s32 1, %s16
    $region7: #{tpu_custom_call.1} parent=1 // loop_footer_branch
      %15 = sbr.rel target = $region3
    $region8: #{tpu_custom_call.1} parent=1 // loop_exit
      _
    %6682 = vsyncpa [#allocation5], 1
    %s6683 = scalar_lea.sflag [#allocation5], 1
    %6684 = vsyncpa %s6683, 1

</llo_original>
